<compile_context>
chip_gen: v7x
topology: tpu7x:2x2x1
jax: 0.10.0
libtpu: 0.0.40
codegen_flags: <defaults>
</compile_context>

<pallas_src>
import jax
import jax.numpy as jnp
from jax import lax
from jax.experimental import pallas as pl
from jax.experimental.pallas import tpu as pltpu

PAD_ID = 0


def _vmem():
    return pl.BlockSpec(memory_space=pltpu.MemorySpace.VMEM)


# ----------------------------------------------------------------------------
# Fused kernel:  char CNN -> BiLSTM -> fc + softmax(time) -> Viterbi decode
# ----------------------------------------------------------------------------
def _lstm_crf_kernel(emb_ref, char_ref,
                     w1_ref, b1_ref, w2_ref, b2_ref, w3_ref, b3_ref,
                     wih_w_ref, wih_c_ref, bih_ref,
                     whh_f_ref, whh_b_ref,
                     h0f_ref, c0f_ref, h0b_ref, c0b_ref,
                     wfc_f_ref, wfc_b_ref, bfc_ref,
                     trans_ref, start_ref, end_ref,
                     mask_ref,
                     out_ref,
                     hf_scr, hb_scr):
    T, B, E = emb_ref.shape
    H = whh_f_ref.shape[0]
    L = trans_ref.shape[0]
    H4 = 4 * H

    # ---- 1. char CNN: 3x (im2col conv1d + relu) -> max-pool over time ------
    def conv_relu(x, wcol_ref, b_ref):
        Bb, Lin, Cin = x.shape
        KCin, Cout = wcol_ref.shape
        K = KCin // Cin
        Lout = Lin - K + 1
        # im2col: one matmul per layer instead of K shifted matmuls
        cols = jnp.concatenate([x[:, k:k + Lout, :] for k in range(K)], axis=2)
        y = jnp.dot(cols.reshape(Bb * Lout, KCin), wcol_ref[...],
                    preferred_element_type=jnp.float32) + b_ref[...]
        return jnp.maximum(y, 0.0).reshape(Bb, Lout, Cout)

    y = conv_relu(char_ref[...], w1_ref, b1_ref)
    y = conv_relu(y, w2_ref, b2_ref)
    y = conv_relu(y, w3_ref, b3_ref)
    char_feat = jnp.max(y, axis=1)                              # (B, C)

    # ---- 2. hoisted LSTM input projection (fwd & bwd gates at once) --------
    gx = jnp.dot(emb_ref[...].reshape(T * B, E), wih_w_ref[...],
                 preferred_element_type=jnp.float32)            # (T*B, 8H)
    gc = jnp.dot(char_feat, wih_c_ref[...],
                 preferred_element_type=jnp.float32)            # (B, 8H)
    gx = gx.reshape(T, B, 2 * H4) + gc[None, :, :] + bih_ref[...][None, :, :]

    def cell(gates_x, h, c, whh_ref):
        gates = gates_x + jnp.dot(h, whh_ref[...],
                                  preferred_element_type=jnp.float32)
        i = jax.nn.sigmoid(gates[:, 0:H])
        f = jax.nn.sigmoid(gates[:, H:2 * H])
        g = jnp.tanh(gates[:, 2 * H:3 * H])
        o = jax.nn.sigmoid(gates[:, 3 * H:4 * H])
        c_new = f * c + i * g
        h_new = o * jnp.tanh(c_new)
        return h_new, c_new

    # ---- 3. bidirectional recurrence (fully unrolled, T is small/static) ---
    h, c = h0f_ref[...], c0f_ref[...]
    for t in range(T):
        h, c = cell(gx[t, :, 0:H4], h, c, whh_f_ref)
        hf_scr[t] = h
    h, c = h0b_ref[...], c0b_ref[...]
    for t in range(T - 1, -1, -1):
        h, c = cell(gx[t, :, H4:2 * H4], h, c, whh_b_ref)
        hb_scr[t] = h

    # ---- 4. fc + softmax over the TIME axis (torch: F.softmax(dim=1)) ------
    hf2 = hf_scr[...].reshape(T * B, H)
    hb2 = hb_scr[...].reshape(T * B, H)
    logits = (jnp.dot(hf2, wfc_f_ref[...], preferred_element_type=jnp.float32)
              + jnp.dot(hb2, wfc_b_ref[...], preferred_element_type=jnp.float32)
              + bfc_ref[...]).reshape(T, B, L)
    m = jnp.max(logits, axis=0, keepdims=True)
    e = jnp.exp(logits - m)
    s = jnp.sum(e, axis=0, keepdims=True)
    emis = e * pl.reciprocal(s, approx=True)                    # (T, B, L)

    # ---- 5. masked Viterbi decode (pytorch-crf style), fully unrolled ------
    mvals = mask_ref[...]                                       # (B, T)
    trans = trans_ref[...]                                      # (L, L)
    lane = lax.broadcasted_iota(jnp.int32, (B, L), 1)           # tag ids
    prev_iota = lax.broadcasted_iota(jnp.int32, (B, L, L), 1)   # "from" tag ids

    score = start_ref[...] + emis[0]                            # (B, L)
    bps = [None] * T                                            # in registers
    for t in range(1, T):
        cand = score[:, :, None] + trans[None, :, :] + emis[t][:, None, :]
        best = jnp.max(cand, axis=1)                            # (B, L)
        mx = jnp.max(cand, axis=1, keepdims=True)
        idx = jnp.min(jnp.where(cand == mx, prev_iota, L), axis=1).astype(jnp.int32)
        keep = mvals[:, t:t + 1] > 0.5                          # (B, 1)
        bps[t] = jnp.where(keep, idx, lane)                     # identity when padded
        score = jnp.where(keep, best, score)

    score = score + end_ref[...]
    smx = jnp.max(score, axis=1, keepdims=True)
    cur = jnp.min(jnp.where(score == smx, lane, L), axis=1,
                  keepdims=True).astype(jnp.int32)              # (B, 1)

    t_iota = lax.broadcasted_iota(jnp.int32, (B, T), 1)
    tags = jnp.where(t_iota == (T - 1), cur, 0)
    for t in range(T - 1, 0, -1):                               # backtrack
        cur = jnp.sum(jnp.where(lane == cur, bps[t], 0), axis=1, keepdims=True)
        tags = jnp.where(t_iota == (t - 1), cur, tags)
    out_ref[...] = tags                                         # (B, T) int32


# ----------------------------------------------------------------------------
# Wrapper: gathers + weight layout plumbing in JAX, single pallas_call
# ----------------------------------------------------------------------------
def lstm_crf_forward(x, x_char, p):
    B, T = x.shape
    E = p["word_emb"].shape[1]
    H = p["whh_f"].shape[0]

    mask_bt = (x != PAD_ID).astype(jnp.float32)                 # (B, T)
    emb_tm = jnp.transpose(p["word_emb"][x], (1, 0, 2))         # (T, B, E)
    char_seq = p["char_emb"][x_char]                            # (B, Tc, Ec)

    # layout plumbing (done once, outside the kernel)
    w1c = p["w1"].reshape(-1, p["w1"].shape[-1])                # (K*Cin, C)
    w2c = p["w2"].reshape(-1, p["w2"].shape[-1])
    w3c = p["w3"].reshape(-1, p["w3"].shape[-1])
    wih_cat = jnp.concatenate([p["wih_f"], p["wih_b"]], axis=1)  # (E+C, 8H)
    wih_word = wih_cat[:E]                                      # (E, 8H)
    wih_char = wih_cat[E:]                                      # (C, 8H)
    bih = jnp.concatenate([p["b_f"], p["b_b"]], axis=1)         # (1, 8H)
    wfc_f = p["w_fc"][:H]                                       # (H, L)
    wfc_b = p["w_fc"][H:]                                       # (H, L)

    return pl.pallas_call(
        _lstm_crf_kernel,
        out_shape=jax.ShapeDtypeStruct((B, T), jnp.int32),
        in_specs=[_vmem()] * 24,
        out_specs=_vmem(),
        scratch_shapes=[pltpu.VMEM((T, B, H), jnp.float32),
                        pltpu.VMEM((T, B, H), jnp.float32)],
    )(emb_tm, char_seq,
      w1c, p["b1"], w2c, p["b2"], w3c, p["b3"],
      wih_word, wih_char, bih,
      p["whh_f"], p["whh_b"],
      p["h0"][0], p["c0"][0], p["h0"][1], p["c0"][1],
      wfc_f, wfc_b, p["b_fc"],
      p["crf_trans"], p["crf_start"], p["crf_end"],
      mask_bt)


# ----------------------------------------------------------------------------
# Deterministic parameter init (synthetic; shapes follow the module __init__)
# ----------------------------------------------------------------------------
def init_params(key, *, vocab, emb_dim, hidden, nb_labels,
                char_vocab, char_emb_dim, char_in_channels, batch):
    ks = jax.random.split(key, 24)

    def rnd(k, shape, scale=0.1):
        return jax.random.normal(k, shape, dtype=jnp.float32) * scale

    D = emb_dim + char_in_channels
    p = {}
    p["word_emb"] = rnd(ks[0], (vocab, emb_dim), 1.0)
    char_tab = rnd(ks[1], (char_vocab, char_emb_dim), 1.0)
    p["char_emb"] = char_tab.at[PAD_ID].set(0.0)                # padding_idx
    # conv weights stored as (K, C_in, C_out)  (== torch (C_out, C_in, K) transposed)
    p["w1"] = rnd(ks[2], (3, char_emb_dim, char_in_channels))
    p["b1"] = rnd(ks[3], (1, char_in_channels))
    p["w2"] = rnd(ks[4], (4, char_in_channels, char_in_channels))
    p["b2"] = rnd(ks[5], (1, char_in_channels))
    p["w3"] = rnd(ks[6], (5, char_in_channels, char_in_channels))
    p["b3"] = rnd(ks[7], (1, char_in_channels))
    # LSTM weights stored pre-transposed: (D, 4H), (H, 4H); bias = b_ih + b_hh
    p["wih_f"] = rnd(ks[8], (D, 4 * hidden))
    p["whh_f"] = rnd(ks[9], (hidden, 4 * hidden))
    p["b_f"] = rnd(ks[10], (1, 4 * hidden))
    p["wih_b"] = rnd(ks[11], (D, 4 * hidden))
    p["whh_b"] = rnd(ks[12], (hidden, 4 * hidden))
    p["b_b"] = rnd(ks[13], (1, 4 * hidden))
    p["h0"] = rnd(ks[14], (2, batch, hidden), 1.0)              # stand-in for torch.randn
    p["c0"] = rnd(ks[15], (2, batch, hidden), 1.0)
    p["w_fc"] = rnd(ks[16], (2 * hidden, nb_labels))
    p["b_fc"] = rnd(ks[17], (1, nb_labels))
    p["crf_start"] = rnd(ks[18], (1, nb_labels))
    p["crf_end"] = rnd(ks[19], (1, nb_labels))
    p["crf_trans"] = rnd(ks[20], (nb_labels, nb_labels))
    return p


if __name__ == "__main__":
    B, T, Tc = 2, 8, 16
    VOCAB, EMB = 50, 16
    HID, NLAB = 32, 5
    CHAR_VOCAB, CHAR_EMB, C_IN = 30, 8, 8

    root = jax.random.PRNGKey(0)
    kp, kx, kc = jax.random.split(root, 3)

    params = init_params(kp, vocab=VOCAB, emb_dim=EMB, hidden=HID, nb_labels=NLAB,
                         char_vocab=CHAR_VOCAB, char_emb_dim=CHAR_EMB,
                         char_in_channels=C_IN, batch=B)

    x = jax.random.randint(kx, (B, T), 1, VOCAB, dtype=jnp.int32)
    x = x.at[1, T - 2:].set(PAD_ID)          # trailing padding to exercise the mask
    x_char = jax.random.randint(kc, (B, Tc), 1, CHAR_VOCAB, dtype=jnp.int32)

    fwd = jax.jit(lstm_crf_forward)
    path = fwd(x, x_char, params)
    jax.block_until_ready(path)
    assert path.shape == (B, T) and path.dtype == jnp.int32
    print("KERNEL_OK")
</pallas_src>

<mosaic_0001>
module attributes {stable_mosaic.version = 11 : i64} {
  func.func @_lstm_crf_kernel(%arg0: memref<8x2x16xf32, #tpu.memory_space<vmem>>, %arg1: memref<2x16x8xf32, #tpu.memory_space<vmem>>, %arg2: memref<24x8xf32, #tpu.memory_space<vmem>>, %arg3: memref<1x8xf32, #tpu.memory_space<vmem>>, %arg4: memref<32x8xf32, #tpu.memory_space<vmem>>, %arg5: memref<1x8xf32, #tpu.memory_space<vmem>>, %arg6: memref<40x8xf32, #tpu.memory_space<vmem>>, %arg7: memref<1x8xf32, #tpu.memory_space<vmem>>, %arg8: memref<16x256xf32, #tpu.memory_space<vmem>>, %arg9: memref<8x256xf32, #tpu.memory_space<vmem>>, %arg10: memref<1x256xf32, #tpu.memory_space<vmem>>, %arg11: memref<32x128xf32, #tpu.memory_space<vmem>>, %arg12: memref<32x128xf32, #tpu.memory_space<vmem>>, %arg13: memref<2x32xf32, #tpu.memory_space<vmem>>, %arg14: memref<2x32xf32, #tpu.memory_space<vmem>>, %arg15: memref<2x32xf32, #tpu.memory_space<vmem>>, %arg16: memref<2x32xf32, #tpu.memory_space<vmem>>, %arg17: memref<32x5xf32, #tpu.memory_space<vmem>>, %arg18: memref<32x5xf32, #tpu.memory_space<vmem>>, %arg19: memref<1x5xf32, #tpu.memory_space<vmem>>, %arg20: memref<5x5xf32, #tpu.memory_space<vmem>>, %arg21: memref<1x5xf32, #tpu.memory_space<vmem>>, %arg22: memref<1x5xf32, #tpu.memory_space<vmem>>, %arg23: memref<2x8xf32, #tpu.memory_space<vmem>>, %arg24: memref<2x8xi32, #tpu.memory_space<vmem>>, %arg25: memref<8x2x32xf32, #tpu.memory_space<vmem>>, %arg26: memref<8x2x32xf32, #tpu.memory_space<vmem>>) attributes {dimension_semantics = [], scalar_prefetch = 0 : i64, scratch_operands = 2 : i64, tpu.core_type = #tpu.core_type<tc>} {
    %c0 = arith.constant 0 : index
    %c0_0 = arith.constant 0 : index
    %c0_1 = arith.constant 0 : index
    %0 = vector.load %arg1[%c0, %c0_0, %c0_1] : memref<2x16x8xf32, #tpu.memory_space<vmem>>, vector<2x16x8xf32>
    %1 = vector.extract_strided_slice %0 {offsets = [0, 0, 0], sizes = [2, 14, 8], strides = [1, 1, 1]} : vector<2x16x8xf32> to vector<2x14x8xf32>
    %2 = vector.extract_strided_slice %0 {offsets = [0, 1, 0], sizes = [2, 14, 8], strides = [1, 1, 1]} : vector<2x16x8xf32> to vector<2x14x8xf32>
    %3 = vector.extract_strided_slice %0 {offsets = [0, 2, 0], sizes = [2, 14, 8], strides = [1, 1, 1]} : vector<2x16x8xf32> to vector<2x14x8xf32>
    %4 = tpu.concatenate %1, %2, %3 in 2 : vector<2x14x8xf32>, vector<2x14x8xf32>, vector<2x14x8xf32> -> vector<2x14x24xf32>
    %5 = vector.shape_cast %4 : vector<2x14x24xf32> to vector<28x24xf32>
    %c0_2 = arith.constant 0 : index
    %c0_3 = arith.constant 0 : index
    %6 = vector.load %arg2[%c0_2, %c0_3] : memref<24x8xf32, #tpu.memory_space<vmem>>, vector<24x8xf32>
    %cst = arith.constant dense<0.000000e+00> : vector<28x8xf32>
    %7 = tpu.matmul %5, %6, %cst {dimension_numbers = #tpu.dot_dimension_numbers<[1], [0], [0], [1], [0, 0, 1, 1], [], []>} : vector<28x24xf32>, vector<24x8xf32>, vector<28x8xf32> -> vector<28x8xf32>
    %c0_4 = arith.constant 0 : index
    %c0_5 = arith.constant 0 : index
    %8 = vector.load %arg3[%c0_4, %c0_5] : memref<1x8xf32, #tpu.memory_space<vmem>>, vector<1x8xf32>
    %9 = vector.broadcast %8 : vector<1x8xf32> to vector<28x8xf32>
    %10 = arith.addf %7, %9 : vector<28x8xf32>
    %cst_6 = arith.constant 0.000000e+00 : f32
    %11 = vector.broadcast %cst_6 : f32 to vector<28x8xf32>
    %12 = arith.maximumf %10, %11 : vector<28x8xf32>
    %13 = vector.shape_cast %12 : vector<28x8xf32> to vector<2x14x8xf32>
    %14 = vector.extract_strided_slice %13 {offsets = [0, 0, 0], sizes = [2, 11, 8], strides = [1, 1, 1]} : vector<2x14x8xf32> to vector<2x11x8xf32>
    %15 = vector.extract_strided_slice %13 {offsets = [0, 1, 0], sizes = [2, 11, 8], strides = [1, 1, 1]} : vector<2x14x8xf32> to vector<2x11x8xf32>
    %16 = vector.extract_strided_slice %13 {offsets = [0, 2, 0], sizes = [2, 11, 8], strides = [1, 1, 1]} : vector<2x14x8xf32> to vector<2x11x8xf32>
    %17 = vector.extract_strided_slice %13 {offsets = [0, 3, 0], sizes = [2, 11, 8], strides = [1, 1, 1]} : vector<2x14x8xf32> to vector<2x11x8xf32>
    %18 = tpu.concatenate %14, %15, %16, %17 in 2 : vector<2x11x8xf32>, vector<2x11x8xf32>, vector<2x11x8xf32>, vector<2x11x8xf32> -> vector<2x11x32xf32>
    %19 = vector.shape_cast %18 : vector<2x11x32xf32> to vector<22x32xf32>
    %c0_7 = arith.constant 0 : index
    %c0_8 = arith.constant 0 : index
    %20 = vector.load %arg4[%c0_7, %c0_8] : memref<32x8xf32, #tpu.memory_space<vmem>>, vector<32x8xf32>
    %cst_9 = arith.constant dense<0.000000e+00> : vector<22x8xf32>
    %21 = tpu.matmul %19, %20, %cst_9 {dimension_numbers = #tpu.dot_dimension_numbers<[1], [0], [0], [1], [0, 0, 1, 1], [], []>} : vector<22x32xf32>, vector<32x8xf32>, vector<22x8xf32> -> vector<22x8xf32>
    %c0_10 = arith.constant 0 : index
    %c0_11 = arith.constant 0 : index
    %22 = vector.load %arg5[%c0_10, %c0_11] : memref<1x8xf32, #tpu.memory_space<vmem>>, vector<1x8xf32>
    %23 = vector.broadcast %22 : vector<1x8xf32> to vector<22x8xf32>
    %24 = arith.addf %21, %23 : vector<22x8xf32>
    %cst_12 = arith.constant 0.000000e+00 : f32
    %25 = vector.broadcast %cst_12 : f32 to vector<22x8xf32>
    %26 = arith.maximumf %24, %25 : vector<22x8xf32>
    %27 = vector.shape_cast %26 : vector<22x8xf32> to vector<2x11x8xf32>
    %28 = vector.extract_strided_slice %27 {offsets = [0, 0, 0], sizes = [2, 7, 8], strides = [1, 1, 1]} : vector<2x11x8xf32> to vector<2x7x8xf32>
    %29 = vector.extract_strided_slice %27 {offsets = [0, 1, 0], sizes = [2, 7, 8], strides = [1, 1, 1]} : vector<2x11x8xf32> to vector<2x7x8xf32>
    %30 = vector.extract_strided_slice %27 {offsets = [0, 2, 0], sizes = [2, 7, 8], strides = [1, 1, 1]} : vector<2x11x8xf32> to vector<2x7x8xf32>
    %31 = vector.extract_strided_slice %27 {offsets = [0, 3, 0], sizes = [2, 7, 8], strides = [1, 1, 1]} : vector<2x11x8xf32> to vector<2x7x8xf32>
    %32 = vector.extract_strided_slice %27 {offsets = [0, 4, 0], sizes = [2, 7, 8], strides = [1, 1, 1]} : vector<2x11x8xf32> to vector<2x7x8xf32>
    %33 = tpu.concatenate %28, %29, %30, %31, %32 in 2 : vector<2x7x8xf32>, vector<2x7x8xf32>, vector<2x7x8xf32>, vector<2x7x8xf32>, vector<2x7x8xf32> -> vector<2x7x40xf32>
    %34 = vector.shape_cast %33 : vector<2x7x40xf32> to vector<14x40xf32>
    %c0_13 = arith.constant 0 : index
    %c0_14 = arith.constant 0 : index
    %35 = vector.load %arg6[%c0_13, %c0_14] : memref<40x8xf32, #tpu.memory_space<vmem>>, vector<40x8xf32>
    %cst_15 = arith.constant dense<0.000000e+00> : vector<14x8xf32>
    %36 = tpu.matmul %34, %35, %cst_15 {dimension_numbers = #tpu.dot_dimension_numbers<[1], [0], [0], [1], [0, 0, 1, 1], [], []>} : vector<14x40xf32>, vector<40x8xf32>, vector<14x8xf32> -> vector<14x8xf32>
    %c0_16 = arith.constant 0 : index
    %c0_17 = arith.constant 0 : index
    %37 = vector.load %arg7[%c0_16, %c0_17] : memref<1x8xf32, #tpu.memory_space<vmem>>, vector<1x8xf32>
    %38 = vector.broadcast %37 : vector<1x8xf32> to vector<14x8xf32>
    %39 = arith.addf %36, %38 : vector<14x8xf32>
    %cst_18 = arith.constant 0.000000e+00 : f32
    %40 = vector.broadcast %cst_18 : f32 to vector<14x8xf32>
    %41 = arith.maximumf %39, %40 : vector<14x8xf32>
    %42 = vector.shape_cast %41 : vector<14x8xf32> to vector<2x7x8xf32>
    %cst_19 = arith.constant dense<0xFF800000> : vector<2x8xf32>
    %43 = vector.multi_reduction <maximumf>, %42, %cst_19 [1] : vector<2x7x8xf32> to vector<2x8xf32>
    %c0_20 = arith.constant 0 : index
    %c0_21 = arith.constant 0 : index
    %c0_22 = arith.constant 0 : index
    %44 = vector.load %arg0[%c0_20, %c0_21, %c0_22] : memref<8x2x16xf32, #tpu.memory_space<vmem>>, vector<8x2x16xf32>
    %45 = vector.shape_cast %44 : vector<8x2x16xf32> to vector<16x16xf32>
    %c0_23 = arith.constant 0 : index
    %c0_24 = arith.constant 0 : index
    %46 = vector.load %arg8[%c0_23, %c0_24] : memref<16x256xf32, #tpu.memory_space<vmem>>, vector<16x256xf32>
    %cst_25 = arith.constant dense<0.000000e+00> : vector<16x256xf32>
    %47 = tpu.matmul %45, %46, %cst_25 {dimension_numbers = #tpu.dot_dimension_numbers<[1], [0], [0], [1], [0, 0, 1, 1], [], []>} : vector<16x16xf32>, vector<16x256xf32>, vector<16x256xf32> -> vector<16x256xf32>
    %c0_26 = arith.constant 0 : index
    %c0_27 = arith.constant 0 : index
    %48 = vector.load %arg9[%c0_26, %c0_27] : memref<8x256xf32, #tpu.memory_space<vmem>>, vector<8x256xf32>
    %cst_28 = arith.constant dense<0.000000e+00> : vector<2x256xf32>
    %49 = tpu.matmul %43, %48, %cst_28 {dimension_numbers = #tpu.dot_dimension_numbers<[1], [0], [0], [1], [0, 0, 1, 1], [], []>} : vector<2x8xf32>, vector<8x256xf32>, vector<2x256xf32> -> vector<2x256xf32>
    %50 = vector.shape_cast %47 : vector<16x256xf32> to vector<8x2x256xf32>
    %51 = vector.shape_cast %49 : vector<2x256xf32> to vector<1x2x256xf32>
    %52 = vector.broadcast %51 : vector<1x2x256xf32> to vector<8x2x256xf32>
    %53 = arith.addf %50, %52 : vector<8x2x256xf32>
    %c0_29 = arith.constant 0 : index
    %c0_30 = arith.constant 0 : index
    %54 = vector.load %arg10[%c0_29, %c0_30] : memref<1x256xf32, #tpu.memory_space<vmem>>, vector<1x256xf32>
    %55 = vector.shape_cast %54 : vector<1x256xf32> to vector<1x1x256xf32>
    %56 = vector.broadcast %55 : vector<1x1x256xf32> to vector<8x2x256xf32>
    %57 = arith.addf %53, %56 : vector<8x2x256xf32>
    %c0_31 = arith.constant 0 : index
    %c0_32 = arith.constant 0 : index
    %58 = vector.load %arg13[%c0_31, %c0_32] : memref<2x32xf32, #tpu.memory_space<vmem>>, vector<2x32xf32>
    %c0_33 = arith.constant 0 : index
    %c0_34 = arith.constant 0 : index
    %59 = vector.load %arg14[%c0_33, %c0_34] : memref<2x32xf32, #tpu.memory_space<vmem>>, vector<2x32xf32>
    %60 = vector.extract_strided_slice %57 {offsets = [0, 0, 0], sizes = [1, 2, 128], strides = [1, 1, 1]} : vector<8x2x256xf32> to vector<1x2x128xf32>
    %61 = vector.shape_cast %60 : vector<1x2x128xf32> to vector<2x128xf32>
    %c0_35 = arith.constant 0 : index
    %c0_36 = arith.constant 0 : index
    %62 = vector.load %arg11[%c0_35, %c0_36] : memref<32x128xf32, #tpu.memory_space<vmem>>, vector<32x128xf32>
    %cst_37 = arith.constant dense<0.000000e+00> : vector<2x128xf32>
    %63 = tpu.matmul %58, %62, %cst_37 {dimension_numbers = #tpu.dot_dimension_numbers<[1], [0], [0], [1], [0, 0, 1, 1], [], []>} : vector<2x32xf32>, vector<32x128xf32>, vector<2x128xf32> -> vector<2x128xf32>
    %64 = arith.addf %61, %63 : vector<2x128xf32>
    %65 = vector.extract_strided_slice %64 {offsets = [0, 0], sizes = [2, 32], strides = [1, 1]} : vector<2x128xf32> to vector<2x32xf32>
    %66 = arith.negf %65 : vector<2x32xf32>
    %67 = math.exp %66 : vector<2x32xf32>
    %cst_38 = arith.constant 1.000000e+00 : f32
    %68 = vector.broadcast %cst_38 : f32 to vector<2x32xf32>
    %69 = arith.addf %68, %67 : vector<2x32xf32>
    %70 = arith.divf %68, %69 : vector<2x32xf32>
    %71 = vector.extract_strided_slice %64 {offsets = [0, 32], sizes = [2, 32], strides = [1, 1]} : vector<2x128xf32> to vector<2x32xf32>
    %72 = arith.negf %71 : vector<2x32xf32>
    %73 = math.exp %72 : vector<2x32xf32>
    %cst_39 = arith.constant 1.000000e+00 : f32
    %74 = vector.broadcast %cst_39 : f32 to vector<2x32xf32>
    %75 = arith.addf %74, %73 : vector<2x32xf32>
    %76 = arith.divf %74, %75 : vector<2x32xf32>
    %77 = vector.extract_strided_slice %64 {offsets = [0, 64], sizes = [2, 32], strides = [1, 1]} : vector<2x128xf32> to vector<2x32xf32>
    %78 = math.tanh %77 : vector<2x32xf32>
    %79 = vector.extract_strided_slice %64 {offsets = [0, 96], sizes = [2, 32], strides = [1, 1]} : vector<2x128xf32> to vector<2x32xf32>
    %80 = arith.negf %79 : vector<2x32xf32>
    %81 = math.exp %80 : vector<2x32xf32>
    %cst_40 = arith.constant 1.000000e+00 : f32
    %82 = vector.broadcast %cst_40 : f32 to vector<2x32xf32>
    %83 = arith.addf %82, %81 : vector<2x32xf32>
    %84 = arith.divf %82, %83 : vector<2x32xf32>
    %85 = arith.mulf %76, %59 : vector<2x32xf32>
    %86 = arith.mulf %70, %78 : vector<2x32xf32>
    %87 = arith.addf %85, %86 : vector<2x32xf32>
    %88 = math.tanh %87 : vector<2x32xf32>
    %89 = arith.mulf %84, %88 : vector<2x32xf32>
    %c0_41 = arith.constant 0 : index
    %c0_42 = arith.constant 0 : index
    %c0_43 = arith.constant 0 : index
    %90 = vector.load %arg25[%c0_41, %c0_42, %c0_43] : memref<8x2x32xf32, #tpu.memory_space<vmem>>, vector<1x2x32xf32>
    %91 = vector.shape_cast %90 : vector<1x2x32xf32> to vector<2x32xf32>
    %92 = vector.shape_cast %89 : vector<2x32xf32> to vector<1x2x32xf32>
    tpu.vector_store %arg25[%c0_41, %c0_42, %c0_43], %92 {strides = array<i32>} : memref<8x2x32xf32, #tpu.memory_space<vmem>>, vector<1x2x32xf32>,
    %93 = vector.extract_strided_slice %57 {offsets = [1, 0, 0], sizes = [1, 2, 128], strides = [1, 1, 1]} : vector<8x2x256xf32> to vector<1x2x128xf32>
    %94 = vector.shape_cast %93 : vector<1x2x128xf32> to vector<2x128xf32>
    %c0_44 = arith.constant 0 : index
    %c0_45 = arith.constant 0 : index
    %95 = vector.load %arg11[%c0_44, %c0_45] : memref<32x128xf32, #tpu.memory_space<vmem>>, vector<32x128xf32>
    %cst_46 = arith.constant dense<0.000000e+00> : vector<2x128xf32>
    %96 = tpu.matmul %89, %95, %cst_46 {dimension_numbers = #tpu.dot_dimension_numbers<[1], [0], [0], [1], [0, 0, 1, 1], [], []>} : vector<2x32xf32>, vector<32x128xf32>, vector<2x128xf32> -> vector<2x128xf32>
    %97 = arith.addf %94, %96 : vector<2x128xf32>
    %98 = vector.extract_strided_slice %97 {offsets = [0, 0], sizes = [2, 32], strides = [1, 1]} : vector<2x128xf32> to vector<2x32xf32>
    %99 = arith.negf %98 : vector<2x32xf32>
    %100 = math.exp %99 : vector<2x32xf32>
    %cst_47 = arith.constant 1.000000e+00 : f32
    %101 = vector.broadcast %cst_47 : f32 to vector<2x32xf32>
    %102 = arith.addf %101, %100 : vector<2x32xf32>
    %103 = arith.divf %101, %102 : vector<2x32xf32>
    %104 = vector.extract_strided_slice %97 {offsets = [0, 32], sizes = [2, 32], strides = [1, 1]} : vector<2x128xf32> to vector<2x32xf32>
    %105 = arith.negf %104 : vector<2x32xf32>
    %106 = math.exp %105 : vector<2x32xf32>
    %cst_48 = arith.constant 1.000000e+00 : f32
    %107 = vector.broadcast %cst_48 : f32 to vector<2x32xf32>
    %108 = arith.addf %107, %106 : vector<2x32xf32>
    %109 = arith.divf %107, %108 : vector<2x32xf32>
    %110 = vector.extract_strided_slice %97 {offsets = [0, 64], sizes = [2, 32], strides = [1, 1]} : vector<2x128xf32> to vector<2x32xf32>
    %111 = math.tanh %110 : vector<2x32xf32>
    %112 = vector.extract_strided_slice %97 {offsets = [0, 96], sizes = [2, 32], strides = [1, 1]} : vector<2x128xf32> to vector<2x32xf32>
    %113 = arith.negf %112 : vector<2x32xf32>
    %114 = math.exp %113 : vector<2x32xf32>
    %cst_49 = arith.constant 1.000000e+00 : f32
    %115 = vector.broadcast %cst_49 : f32 to vector<2x32xf32>
    %116 = arith.addf %115, %114 : vector<2x32xf32>
    %117 = arith.divf %115, %116 : vector<2x32xf32>
    %118 = arith.mulf %109, %87 : vector<2x32xf32>
    %119 = arith.mulf %103, %111 : vector<2x32xf32>
    %120 = arith.addf %118, %119 : vector<2x32xf32>
    %121 = math.tanh %120 : vector<2x32xf32>
    %122 = arith.mulf %117, %121 : vector<2x32xf32>
    %c1 = arith.constant 1 : index
    %c0_50 = arith.constant 0 : index
    %c0_51 = arith.constant 0 : index
    %123 = vector.load %arg25[%c1, %c0_50, %c0_51] : memref<8x2x32xf32, #tpu.memory_space<vmem>>, vector<1x2x32xf32>
    %124 = vector.shape_cast %123 : vector<1x2x32xf32> to vector<2x32xf32>
    %125 = vector.shape_cast %122 : vector<2x32xf32> to vector<1x2x32xf32>
    tpu.vector_store %arg25[%c1, %c0_50, %c0_51], %125 {strides = array<i32>} : memref<8x2x32xf32, #tpu.memory_space<vmem>>, vector<1x2x32xf32>,
    %126 = vector.extract_strided_slice %57 {offsets = [2, 0, 0], sizes = [1, 2, 128], strides = [1, 1, 1]} : vector<8x2x256xf32> to vector<1x2x128xf32>
    %127 = vector.shape_cast %126 : vector<1x2x128xf32> to vector<2x128xf32>
    %c0_52 = arith.constant 0 : index
    %c0_53 = arith.constant 0 : index
    %128 = vector.load %arg11[%c0_52, %c0_53] : memref<32x128xf32, #tpu.memory_space<vmem>>, vector<32x128xf32>
    %cst_54 = arith.constant dense<0.000000e+00> : vector<2x128xf32>
    %129 = tpu.matmul %122, %128, %cst_54 {dimension_numbers = #tpu.dot_dimension_numbers<[1], [0], [0], [1], [0, 0, 1, 1], [], []>} : vector<2x32xf32>, vector<32x128xf32>, vector<2x128xf32> -> vector<2x128xf32>
    %130 = arith.addf %127, %129 : vector<2x128xf32>
    %131 = vector.extract_strided_slice %130 {offsets = [0, 0], sizes = [2, 32], strides = [1, 1]} : vector<2x128xf32> to vector<2x32xf32>
    %132 = arith.negf %131 : vector<2x32xf32>
    %133 = math.exp %132 : vector<2x32xf32>
    %cst_55 = arith.constant 1.000000e+00 : f32
    %134 = vector.broadcast %cst_55 : f32 to vector<2x32xf32>
    %135 = arith.addf %134, %133 : vector<2x32xf32>
    %136 = arith.divf %134, %135 : vector<2x32xf32>
    %137 = vector.extract_strided_slice %130 {offsets = [0, 32], sizes = [2, 32], strides = [1, 1]} : vector<2x128xf32> to vector<2x32xf32>
    %138 = arith.negf %137 : vector<2x32xf32>
    %139 = math.exp %138 : vector<2x32xf32>
    %cst_56 = arith.constant 1.000000e+00 : f32
    %140 = vector.broadcast %cst_56 : f32 to vector<2x32xf32>
    %141 = arith.addf %140, %139 : vector<2x32xf32>
    %142 = arith.divf %140, %141 : vector<2x32xf32>
    %143 = vector.extract_strided_slice %130 {offsets = [0, 64], sizes = [2, 32], strides = [1, 1]} : vector<2x128xf32> to vector<2x32xf32>
    %144 = math.tanh %143 : vector<2x32xf32>
    %145 = vector.extract_strided_slice %130 {offsets = [0, 96], sizes = [2, 32], strides = [1, 1]} : vector<2x128xf32> to vector<2x32xf32>
    %146 = arith.negf %145 : vector<2x32xf32>
    %147 = math.exp %146 : vector<2x32xf32>
    %cst_57 = arith.constant 1.000000e+00 : f32
    %148 = vector.broadcast %cst_57 : f32 to vector<2x32xf32>
    %149 = arith.addf %148, %147 : vector<2x32xf32>
    %150 = arith.divf %148, %149 : vector<2x32xf32>
    %151 = arith.mulf %142, %120 : vector<2x32xf32>
    %152 = arith.mulf %136, %144 : vector<2x32xf32>
    %153 = arith.addf %151, %152 : vector<2x32xf32>
    %154 = math.tanh %153 : vector<2x32xf32>
    %155 = arith.mulf %150, %154 : vector<2x32xf32>
    %c2 = arith.constant 2 : index
    %c0_58 = arith.constant 0 : index
    %c0_59 = arith.constant 0 : index
    %156 = vector.load %arg25[%c2, %c0_58, %c0_59] : memref<8x2x32xf32, #tpu.memory_space<vmem>>, vector<1x2x32xf32>
    %157 = vector.shape_cast %156 : vector<1x2x32xf32> to vector<2x32xf32>
    %158 = vector.shape_cast %155 : vector<2x32xf32> to vector<1x2x32xf32>
    tpu.vector_store %arg25[%c2, %c0_58, %c0_59], %158 {strides = array<i32>} : memref<8x2x32xf32, #tpu.memory_space<vmem>>, vector<1x2x32xf32>,
    %159 = vector.extract_strided_slice %57 {offsets = [3, 0, 0], sizes = [1, 2, 128], strides = [1, 1, 1]} : vector<8x2x256xf32> to vector<1x2x128xf32>
    %160 = vector.shape_cast %159 : vector<1x2x128xf32> to vector<2x128xf32>
    %c0_60 = arith.constant 0 : index
    %c0_61 = arith.constant 0 : index
    %161 = vector.load %arg11[%c0_60, %c0_61] : memref<32x128xf32, #tpu.memory_space<vmem>>, vector<32x128xf32>
    %cst_62 = arith.constant dense<0.000000e+00> : vector<2x128xf32>
    %162 = tpu.matmul %155, %161, %cst_62 {dimension_numbers = #tpu.dot_dimension_numbers<[1], [0], [0], [1], [0, 0, 1, 1], [], []>} : vector<2x32xf32>, vector<32x128xf32>, vector<2x128xf32> -> vector<2x128xf32>
    %163 = arith.addf %160, %162 : vector<2x128xf32>
    %164 = vector.extract_strided_slice %163 {offsets = [0, 0], sizes = [2, 32], strides = [1, 1]} : vector<2x128xf32> to vector<2x32xf32>
    %165 = arith.negf %164 : vector<2x32xf32>
    %166 = math.exp %165 : vector<2x32xf32>
    %cst_63 = arith.constant 1.000000e+00 : f32
    %167 = vector.broadcast %cst_63 : f32 to vector<2x32xf32>
    %168 = arith.addf %167, %166 : vector<2x32xf32>
    %169 = arith.divf %167, %168 : vector<2x32xf32>
    %170 = vector.extract_strided_slice %163 {offsets = [0, 32], sizes = [2, 32], strides = [1, 1]} : vector<2x128xf32> to vector<2x32xf32>
    %171 = arith.negf %170 : vector<2x32xf32>
    %172 = math.exp %171 : vector<2x32xf32>
    %cst_64 = arith.constant 1.000000e+00 : f32
    %173 = vector.broadcast %cst_64 : f32 to vector<2x32xf32>
    %174 = arith.addf %173, %172 : vector<2x32xf32>
    %175 = arith.divf %173, %174 : vector<2x32xf32>
    %176 = vector.extract_strided_slice %163 {offsets = [0, 64], sizes = [2, 32], strides = [1, 1]} : vector<2x128xf32> to vector<2x32xf32>
    %177 = math.tanh %176 : vector<2x32xf32>
    %178 = vector.extract_strided_slice %163 {offsets = [0, 96], sizes = [2, 32], strides = [1, 1]} : vector<2x128xf32> to vector<2x32xf32>
    %179 = arith.negf %178 : vector<2x32xf32>
    %180 = math.exp %179 : vector<2x32xf32>
    %cst_65 = arith.constant 1.000000e+00 : f32
    %181 = vector.broadcast %cst_65 : f32 to vector<2x32xf32>
    %182 = arith.addf %181, %180 : vector<2x32xf32>
    %183 = arith.divf %181, %182 : vector<2x32xf32>
    %184 = arith.mulf %175, %153 : vector<2x32xf32>
    %185 = arith.mulf %169, %177 : vector<2x32xf32>
    %186 = arith.addf %184, %185 : vector<2x32xf32>
    %187 = math.tanh %186 : vector<2x32xf32>
    %188 = arith.mulf %183, %187 : vector<2x32xf32>
    %c3 = arith.constant 3 : index
    %c0_66 = arith.constant 0 : index
    %c0_67 = arith.constant 0 : index
    %189 = vector.load %arg25[%c3, %c0_66, %c0_67] : memref<8x2x32xf32, #tpu.memory_space<vmem>>, vector<1x2x32xf32>
    %190 = vector.shape_cast %189 : vector<1x2x32xf32> to vector<2x32xf32>
    %191 = vector.shape_cast %188 : vector<2x32xf32> to vector<1x2x32xf32>
    tpu.vector_store %arg25[%c3, %c0_66, %c0_67], %191 {strides = array<i32>} : memref<8x2x32xf32, #tpu.memory_space<vmem>>, vector<1x2x32xf32>,
    %192 = vector.extract_strided_slice %57 {offsets = [4, 0, 0], sizes = [1, 2, 128], strides = [1, 1, 1]} : vector<8x2x256xf32> to vector<1x2x128xf32>
    %193 = vector.shape_cast %192 : vector<1x2x128xf32> to vector<2x128xf32>
    %c0_68 = arith.constant 0 : index
    %c0_69 = arith.constant 0 : index
    %194 = vector.load %arg11[%c0_68, %c0_69] : memref<32x128xf32, #tpu.memory_space<vmem>>, vector<32x128xf32>
    %cst_70 = arith.constant dense<0.000000e+00> : vector<2x128xf32>
    %195 = tpu.matmul %188, %194, %cst_70 {dimension_numbers = #tpu.dot_dimension_numbers<[1], [0], [0], [1], [0, 0, 1, 1], [], []>} : vector<2x32xf32>, vector<32x128xf32>, vector<2x128xf32> -> vector<2x128xf32>
    %196 = arith.addf %193, %195 : vector<2x128xf32>
    %197 = vector.extract_strided_slice %196 {offsets = [0, 0], sizes = [2, 32], strides = [1, 1]} : vector<2x128xf32> to vector<2x32xf32>
    %198 = arith.negf %197 : vector<2x32xf32>
    %199 = math.exp %198 : vector<2x32xf32>
    %cst_71 = arith.constant 1.000000e+00 : f32
    %200 = vector.broadcast %cst_71 : f32 to vector<2x32xf32>
    %201 = arith.addf %200, %199 : vector<2x32xf32>
    %202 = arith.divf %200, %201 : vector<2x32xf32>
    %203 = vector.extract_strided_slice %196 {offsets = [0, 32], sizes = [2, 32], strides = [1, 1]} : vector<2x128xf32> to vector<2x32xf32>
    %204 = arith.negf %203 : vector<2x32xf32>
    %205 = math.exp %204 : vector<2x32xf32>
    %cst_72 = arith.constant 1.000000e+00 : f32
    %206 = vector.broadcast %cst_72 : f32 to vector<2x32xf32>
    %207 = arith.addf %206, %205 : vector<2x32xf32>
    %208 = arith.divf %206, %207 : vector<2x32xf32>
    %209 = vector.extract_strided_slice %196 {offsets = [0, 64], sizes = [2, 32], strides = [1, 1]} : vector<2x128xf32> to vector<2x32xf32>
    %210 = math.tanh %209 : vector<2x32xf32>
    %211 = vector.extract_strided_slice %196 {offsets = [0, 96], sizes = [2, 32], strides = [1, 1]} : vector<2x128xf32> to vector<2x32xf32>
    %212 = arith.negf %211 : vector<2x32xf32>
    %213 = math.exp %212 : vector<2x32xf32>
    %cst_73 = arith.constant 1.000000e+00 : f32
    %214 = vector.broadcast %cst_73 : f32 to vector<2x32xf32>
    %215 = arith.addf %214, %213 : vector<2x32xf32>
    %216 = arith.divf %214, %215 : vector<2x32xf32>
    %217 = arith.mulf %208, %186 : vector<2x32xf32>
    %218 = arith.mulf %202, %210 : vector<2x32xf32>
    %219 = arith.addf %217, %218 : vector<2x32xf32>
    %220 = math.tanh %219 : vector<2x32xf32>
    %221 = arith.mulf %216, %220 : vector<2x32xf32>
    %c4 = arith.constant 4 : index
    %c0_74 = arith.constant 0 : index
    %c0_75 = arith.constant 0 : index
    %222 = vector.load %arg25[%c4, %c0_74, %c0_75] : memref<8x2x32xf32, #tpu.memory_space<vmem>>, vector<1x2x32xf32>
    %223 = vector.shape_cast %222 : vector<1x2x32xf32> to vector<2x32xf32>
    %224 = vector.shape_cast %221 : vector<2x32xf32> to vector<1x2x32xf32>
    tpu.vector_store %arg25[%c4, %c0_74, %c0_75], %224 {strides = array<i32>} : memref<8x2x32xf32, #tpu.memory_space<vmem>>, vector<1x2x32xf32>,
    %225 = vector.extract_strided_slice %57 {offsets = [5, 0, 0], sizes = [1, 2, 128], strides = [1, 1, 1]} : vector<8x2x256xf32> to vector<1x2x128xf32>
    %226 = vector.shape_cast %225 : vector<1x2x128xf32> to vector<2x128xf32>
    %c0_76 = arith.constant 0 : index
    %c0_77 = arith.constant 0 : index
    %227 = vector.load %arg11[%c0_76, %c0_77] : memref<32x128xf32, #tpu.memory_space<vmem>>, vector<32x128xf32>
    %cst_78 = arith.constant dense<0.000000e+00> : vector<2x128xf32>
    %228 = tpu.matmul %221, %227, %cst_78 {dimension_numbers = #tpu.dot_dimension_numbers<[1], [0], [0], [1], [0, 0, 1, 1], [], []>} : vector<2x32xf32>, vector<32x128xf32>, vector<2x128xf32> -> vector<2x128xf32>
    %229 = arith.addf %226, %228 : vector<2x128xf32>
    %230 = vector.extract_strided_slice %229 {offsets = [0, 0], sizes = [2, 32], strides = [1, 1]} : vector<2x128xf32> to vector<2x32xf32>
    %231 = arith.negf %230 : vector<2x32xf32>
    %232 = math.exp %231 : vector<2x32xf32>
    %cst_79 = arith.constant 1.000000e+00 : f32
    %233 = vector.broadcast %cst_79 : f32 to vector<2x32xf32>
    %234 = arith.addf %233, %232 : vector<2x32xf32>
    %235 = arith.divf %233, %234 : vector<2x32xf32>
    %236 = vector.extract_strided_slice %229 {offsets = [0, 32], sizes = [2, 32], strides = [1, 1]} : vector<2x128xf32> to vector<2x32xf32>
    %237 = arith.negf %236 : vector<2x32xf32>
    %238 = math.exp %237 : vector<2x32xf32>
    %cst_80 = arith.constant 1.000000e+00 : f32
    %239 = vector.broadcast %cst_80 : f32 to vector<2x32xf32>
    %240 = arith.addf %239, %238 : vector<2x32xf32>
    %241 = arith.divf %239, %240 : vector<2x32xf32>
    %242 = vector.extract_strided_slice %229 {offsets = [0, 64], sizes = [2, 32], strides = [1, 1]} : vector<2x128xf32> to vector<2x32xf32>
    %243 = math.tanh %242 : vector<2x32xf32>
    %244 = vector.extract_strided_slice %229 {offsets = [0, 96], sizes = [2, 32], strides = [1, 1]} : vector<2x128xf32> to vector<2x32xf32>
    %245 = arith.negf %244 : vector<2x32xf32>
    %246 = math.exp %245 : vector<2x32xf32>
    %cst_81 = arith.constant 1.000000e+00 : f32
    %247 = vector.broadcast %cst_81 : f32 to vector<2x32xf32>
    %248 = arith.addf %247, %246 : vector<2x32xf32>
    %249 = arith.divf %247, %248 : vector<2x32xf32>
    %250 = arith.mulf %241, %219 : vector<2x32xf32>
    %251 = arith.mulf %235, %243 : vector<2x32xf32>
    %252 = arith.addf %250, %251 : vector<2x32xf32>
    %253 = math.tanh %252 : vector<2x32xf32>
    %254 = arith.mulf %249, %253 : vector<2x32xf32>
    %c5 = arith.constant 5 : index
    %c0_82 = arith.constant 0 : index
    %c0_83 = arith.constant 0 : index
    %255 = vector.load %arg25[%c5, %c0_82, %c0_83] : memref<8x2x32xf32, #tpu.memory_space<vmem>>, vector<1x2x32xf32>
    %256 = vector.shape_cast %255 : vector<1x2x32xf32> to vector<2x32xf32>
    %257 = vector.shape_cast %254 : vector<2x32xf32> to vector<1x2x32xf32>
    tpu.vector_store %arg25[%c5, %c0_82, %c0_83], %257 {strides = array<i32>} : memref<8x2x32xf32, #tpu.memory_space<vmem>>, vector<1x2x32xf32>,
    %258 = vector.extract_strided_slice %57 {offsets = [6, 0, 0], sizes = [1, 2, 128], strides = [1, 1, 1]} : vector<8x2x256xf32> to vector<1x2x128xf32>
    %259 = vector.shape_cast %258 : vector<1x2x128xf32> to vector<2x128xf32>
    %c0_84 = arith.constant 0 : index
    %c0_85 = arith.constant 0 : index
    %260 = vector.load %arg11[%c0_84, %c0_85] : memref<32x128xf32, #tpu.memory_space<vmem>>, vector<32x128xf32>
    %cst_86 = arith.constant dense<0.000000e+00> : vector<2x128xf32>
    %261 = tpu.matmul %254, %260, %cst_86 {dimension_numbers = #tpu.dot_dimension_numbers<[1], [0], [0], [1], [0, 0, 1, 1], [], []>} : vector<2x32xf32>, vector<32x128xf32>, vector<2x128xf32> -> vector<2x128xf32>
    %262 = arith.addf %259, %261 : vector<2x128xf32>
    %263 = vector.extract_strided_slice %262 {offsets = [0, 0], sizes = [2, 32], strides = [1, 1]} : vector<2x128xf32> to vector<2x32xf32>
    %264 = arith.negf %263 : vector<2x32xf32>
    %265 = math.exp %264 : vector<2x32xf32>
    %cst_87 = arith.constant 1.000000e+00 : f32
    %266 = vector.broadcast %cst_87 : f32 to vector<2x32xf32>
    %267 = arith.addf %266, %265 : vector<2x32xf32>
    %268 = arith.divf %266, %267 : vector<2x32xf32>
    %269 = vector.extract_strided_slice %262 {offsets = [0, 32], sizes = [2, 32], strides = [1, 1]} : vector<2x128xf32> to vector<2x32xf32>
    %270 = arith.negf %269 : vector<2x32xf32>
    %271 = math.exp %270 : vector<2x32xf32>
    %cst_88 = arith.constant 1.000000e+00 : f32
    %272 = vector.broadcast %cst_88 : f32 to vector<2x32xf32>
    %273 = arith.addf %272, %271 : vector<2x32xf32>
    %274 = arith.divf %272, %273 : vector<2x32xf32>
    %275 = vector.extract_strided_slice %262 {offsets = [0, 64], sizes = [2, 32], strides = [1, 1]} : vector<2x128xf32> to vector<2x32xf32>
    %276 = math.tanh %275 : vector<2x32xf32>
    %277 = vector.extract_strided_slice %262 {offsets = [0, 96], sizes = [2, 32], strides = [1, 1]} : vector<2x128xf32> to vector<2x32xf32>
    %278 = arith.negf %277 : vector<2x32xf32>
    %279 = math.exp %278 : vector<2x32xf32>
    %cst_89 = arith.constant 1.000000e+00 : f32
    %280 = vector.broadcast %cst_89 : f32 to vector<2x32xf32>
    %281 = arith.addf %280, %279 : vector<2x32xf32>
    %282 = arith.divf %280, %281 : vector<2x32xf32>
    %283 = arith.mulf %274, %252 : vector<2x32xf32>
    %284 = arith.mulf %268, %276 : vector<2x32xf32>
    %285 = arith.addf %283, %284 : vector<2x32xf32>
    %286 = math.tanh %285 : vector<2x32xf32>
    %287 = arith.mulf %282, %286 : vector<2x32xf32>
    %c6 = arith.constant 6 : index
    %c0_90 = arith.constant 0 : index
    %c0_91 = arith.constant 0 : index
    %288 = vector.load %arg25[%c6, %c0_90, %c0_91] : memref<8x2x32xf32, #tpu.memory_space<vmem>>, vector<1x2x32xf32>
    %289 = vector.shape_cast %288 : vector<1x2x32xf32> to vector<2x32xf32>
    %290 = vector.shape_cast %287 : vector<2x32xf32> to vector<1x2x32xf32>
    tpu.vector_store %arg25[%c6, %c0_90, %c0_91], %290 {strides = array<i32>} : memref<8x2x32xf32, #tpu.memory_space<vmem>>, vector<1x2x32xf32>,
    %291 = vector.extract_strided_slice %57 {offsets = [7, 0, 0], sizes = [1, 2, 128], strides = [1, 1, 1]} : vector<8x2x256xf32> to vector<1x2x128xf32>
    %292 = vector.shape_cast %291 : vector<1x2x128xf32> to vector<2x128xf32>
    %c0_92 = arith.constant 0 : index
    %c0_93 = arith.constant 0 : index
    %293 = vector.load %arg11[%c0_92, %c0_93] : memref<32x128xf32, #tpu.memory_space<vmem>>, vector<32x128xf32>
    %cst_94 = arith.constant dense<0.000000e+00> : vector<2x128xf32>
    %294 = tpu.matmul %287, %293, %cst_94 {dimension_numbers = #tpu.dot_dimension_numbers<[1], [0], [0], [1], [0, 0, 1, 1], [], []>} : vector<2x32xf32>, vector<32x128xf32>, vector<2x128xf32> -> vector<2x128xf32>
    %295 = arith.addf %292, %294 : vector<2x128xf32>
    %296 = vector.extract_strided_slice %295 {offsets = [0, 0], sizes = [2, 32], strides = [1, 1]} : vector<2x128xf32> to vector<2x32xf32>
    %297 = arith.negf %296 : vector<2x32xf32>
    %298 = math.exp %297 : vector<2x32xf32>
    %cst_95 = arith.constant 1.000000e+00 : f32
    %299 = vector.broadcast %cst_95 : f32 to vector<2x32xf32>
    %300 = arith.addf %299, %298 : vector<2x32xf32>
    %301 = arith.divf %299, %300 : vector<2x32xf32>
    %302 = vector.extract_strided_slice %295 {offsets = [0, 32], sizes = [2, 32], strides = [1, 1]} : vector<2x128xf32> to vector<2x32xf32>
    %303 = arith.negf %302 : vector<2x32xf32>
    %304 = math.exp %303 : vector<2x32xf32>
    %cst_96 = arith.constant 1.000000e+00 : f32
    %305 = vector.broadcast %cst_96 : f32 to vector<2x32xf32>
    %306 = arith.addf %305, %304 : vector<2x32xf32>
    %307 = arith.divf %305, %306 : vector<2x32xf32>
    %308 = vector.extract_strided_slice %295 {offsets = [0, 64], sizes = [2, 32], strides = [1, 1]} : vector<2x128xf32> to vector<2x32xf32>
    %309 = math.tanh %308 : vector<2x32xf32>
    %310 = vector.extract_strided_slice %295 {offsets = [0, 96], sizes = [2, 32], strides = [1, 1]} : vector<2x128xf32> to vector<2x32xf32>
    %311 = arith.negf %310 : vector<2x32xf32>
    %312 = math.exp %311 : vector<2x32xf32>
    %cst_97 = arith.constant 1.000000e+00 : f32
    %313 = vector.broadcast %cst_97 : f32 to vector<2x32xf32>
    %314 = arith.addf %313, %312 : vector<2x32xf32>
    %315 = arith.divf %313, %314 : vector<2x32xf32>
    %316 = arith.mulf %307, %285 : vector<2x32xf32>
    %317 = arith.mulf %301, %309 : vector<2x32xf32>
    %318 = arith.addf %316, %317 : vector<2x32xf32>
    %319 = math.tanh %318 : vector<2x32xf32>
    %320 = arith.mulf %315, %319 : vector<2x32xf32>
    %c7 = arith.constant 7 : index
    %c0_98 = arith.constant 0 : index
    %c0_99 = arith.constant 0 : index
    %321 = vector.load %arg25[%c7, %c0_98, %c0_99] : memref<8x2x32xf32, #tpu.memory_space<vmem>>, vector<1x2x32xf32>
    %322 = vector.shape_cast %321 : vector<1x2x32xf32> to vector<2x32xf32>
    %323 = vector.shape_cast %320 : vector<2x32xf32> to vector<1x2x32xf32>
    tpu.vector_store %arg25[%c7, %c0_98, %c0_99], %323 {strides = array<i32>} : memref<8x2x32xf32, #tpu.memory_space<vmem>>, vector<1x2x32xf32>,
    %c0_100 = arith.constant 0 : index
    %c0_101 = arith.constant 0 : index
    %324 = vector.load %arg15[%c0_100, %c0_101] : memref<2x32xf32, #tpu.memory_space<vmem>>, vector<2x32xf32>
    %c0_102 = arith.constant 0 : index
    %c0_103 = arith.constant 0 : index
    %325 = vector.load %arg16[%c0_102, %c0_103] : memref<2x32xf32, #tpu.memory_space<vmem>>, vector<2x32xf32>
    %326 = vector.extract_strided_slice %57 {offsets = [7, 0, 128], sizes = [1, 2, 128], strides = [1, 1, 1]} : vector<8x2x256xf32> to vector<1x2x128xf32>
    %327 = vector.shape_cast %326 : vector<1x2x128xf32> to vector<2x128xf32>
    %c0_104 = arith.constant 0 : index
    %c0_105 = arith.constant 0 : index
    %328 = vector.load %arg12[%c0_104, %c0_105] : memref<32x128xf32, #tpu.memory_space<vmem>>, vector<32x128xf32>
    %cst_106 = arith.constant dense<0.000000e+00> : vector<2x128xf32>
    %329 = tpu.matmul %324, %328, %cst_106 {dimension_numbers = #tpu.dot_dimension_numbers<[1], [0], [0], [1], [0, 0, 1, 1], [], []>} : vector<2x32xf32>, vector<32x128xf32>, vector<2x128xf32> -> vector<2x128xf32>
    %330 = arith.addf %327, %329 : vector<2x128xf32>
    %331 = vector.extract_strided_slice %330 {offsets = [0, 0], sizes = [2, 32], strides = [1, 1]} : vector<2x128xf32> to vector<2x32xf32>
    %332 = arith.negf %331 : vector<2x32xf32>
    %333 = math.exp %332 : vector<2x32xf32>
    %cst_107 = arith.constant 1.000000e+00 : f32
    %334 = vector.broadcast %cst_107 : f32 to vector<2x32xf32>
    %335 = arith.addf %334, %333 : vector<2x32xf32>
    %336 = arith.divf %334, %335 : vector<2x32xf32>
    %337 = vector.extract_strided_slice %330 {offsets = [0, 32], sizes = [2, 32], strides = [1, 1]} : vector<2x128xf32> to vector<2x32xf32>
    %338 = arith.negf %337 : vector<2x32xf32>
    %339 = math.exp %338 : vector<2x32xf32>
    %cst_108 = arith.constant 1.000000e+00 : f32
    %340 = vector.broadcast %cst_108 : f32 to vector<2x32xf32>
    %341 = arith.addf %340, %339 : vector<2x32xf32>
    %342 = arith.divf %340, %341 : vector<2x32xf32>
    %343 = vector.extract_strided_slice %330 {offsets = [0, 64], sizes = [2, 32], strides = [1, 1]} : vector<2x128xf32> to vector<2x32xf32>
    %344 = math.tanh %343 : vector<2x32xf32>
    %345 = vector.extract_strided_slice %330 {offsets = [0, 96], sizes = [2, 32], strides = [1, 1]} : vector<2x128xf32> to vector<2x32xf32>
    %346 = arith.negf %345 : vector<2x32xf32>
    %347 = math.exp %346 : vector<2x32xf32>
    %cst_109 = arith.constant 1.000000e+00 : f32
    %348 = vector.broadcast %cst_109 : f32 to vector<2x32xf32>
    %349 = arith.addf %348, %347 : vector<2x32xf32>
    %350 = arith.divf %348, %349 : vector<2x32xf32>
    %351 = arith.mulf %342, %325 : vector<2x32xf32>
    %352 = arith.mulf %336, %344 : vector<2x32xf32>
    %353 = arith.addf %351, %352 : vector<2x32xf32>
    %354 = math.tanh %353 : vector<2x32xf32>
    %355 = arith.mulf %350, %354 : vector<2x32xf32>
    %c7_110 = arith.constant 7 : index
    %c0_111 = arith.constant 0 : index
    %c0_112 = arith.constant 0 : index
    %356 = vector.load %arg26[%c7_110, %c0_111, %c0_112] : memref<8x2x32xf32, #tpu.memory_space<vmem>>, vector<1x2x32xf32>
    %357 = vector.shape_cast %356 : vector<1x2x32xf32> to vector<2x32xf32>
    %358 = vector.shape_cast %355 : vector<2x32xf32> to vector<1x2x32xf32>
    tpu.vector_store %arg26[%c7_110, %c0_111, %c0_112], %358 {strides = array<i32>} : memref<8x2x32xf32, #tpu.memory_space<vmem>>, vector<1x2x32xf32>,
    %359 = vector.extract_strided_slice %57 {offsets = [6, 0, 128], sizes = [1, 2, 128], strides = [1, 1, 1]} : vector<8x2x256xf32> to vector<1x2x128xf32>
    %360 = vector.shape_cast %359 : vector<1x2x128xf32> to vector<2x128xf32>
    %c0_113 = arith.constant 0 : index
    %c0_114 = arith.constant 0 : index
    %361 = vector.load %arg12[%c0_113, %c0_114] : memref<32x128xf32, #tpu.memory_space<vmem>>, vector<32x128xf32>
    %cst_115 = arith.constant dense<0.000000e+00> : vector<2x128xf32>
    %362 = tpu.matmul %355, %361, %cst_115 {dimension_numbers = #tpu.dot_dimension_numbers<[1], [0], [0], [1], [0, 0, 1, 1], [], []>} : vector<2x32xf32>, vector<32x128xf32>, vector<2x128xf32> -> vector<2x128xf32>
    %363 = arith.addf %360, %362 : vector<2x128xf32>
    %364 = vector.extract_strided_slice %363 {offsets = [0, 0], sizes = [2, 32], strides = [1, 1]} : vector<2x128xf32> to vector<2x32xf32>
    %365 = arith.negf %364 : vector<2x32xf32>
    %366 = math.exp %365 : vector<2x32xf32>
    %cst_116 = arith.constant 1.000000e+00 : f32
    %367 = vector.broadcast %cst_116 : f32 to vector<2x32xf32>
    %368 = arith.addf %367, %366 : vector<2x32xf32>
    %369 = arith.divf %367, %368 : vector<2x32xf32>
    %370 = vector.extract_strided_slice %363 {offsets = [0, 32], sizes = [2, 32], strides = [1, 1]} : vector<2x128xf32> to vector<2x32xf32>
    %371 = arith.negf %370 : vector<2x32xf32>
    %372 = math.exp %371 : vector<2x32xf32>
    %cst_117 = arith.constant 1.000000e+00 : f32
    %373 = vector.broadcast %cst_117 : f32 to vector<2x32xf32>
    %374 = arith.addf %373, %372 : vector<2x32xf32>
    %375 = arith.divf %373, %374 : vector<2x32xf32>
    %376 = vector.extract_strided_slice %363 {offsets = [0, 64], sizes = [2, 32], strides = [1, 1]} : vector<2x128xf32> to vector<2x32xf32>
    %377 = math.tanh %376 : vector<2x32xf32>
    %378 = vector.extract_strided_slice %363 {offsets = [0, 96], sizes = [2, 32], strides = [1, 1]} : vector<2x128xf32> to vector<2x32xf32>
    %379 = arith.negf %378 : vector<2x32xf32>
    %380 = math.exp %379 : vector<2x32xf32>
    %cst_118 = arith.constant 1.000000e+00 : f32
    %381 = vector.broadcast %cst_118 : f32 to vector<2x32xf32>
    %382 = arith.addf %381, %380 : vector<2x32xf32>
    %383 = arith.divf %381, %382 : vector<2x32xf32>
    %384 = arith.mulf %375, %353 : vector<2x32xf32>
    %385 = arith.mulf %369, %377 : vector<2x32xf32>
    %386 = arith.addf %384, %385 : vector<2x32xf32>
    %387 = math.tanh %386 : vector<2x32xf32>
    %388 = arith.mulf %383, %387 : vector<2x32xf32>
    %c6_119 = arith.constant 6 : index
    %c0_120 = arith.constant 0 : index
    %c0_121 = arith.constant 0 : index
    %389 = vector.load %arg26[%c6_119, %c0_120, %c0_121] : memref<8x2x32xf32, #tpu.memory_space<vmem>>, vector<1x2x32xf32>
    %390 = vector.shape_cast %389 : vector<1x2x32xf32> to vector<2x32xf32>
    %391 = vector.shape_cast %388 : vector<2x32xf32> to vector<1x2x32xf32>
    tpu.vector_store %arg26[%c6_119, %c0_120, %c0_121], %391 {strides = array<i32>} : memref<8x2x32xf32, #tpu.memory_space<vmem>>, vector<1x2x32xf32>,
    %392 = vector.extract_strided_slice %57 {offsets = [5, 0, 128], sizes = [1, 2, 128], strides = [1, 1, 1]} : vector<8x2x256xf32> to vector<1x2x128xf32>
    %393 = vector.shape_cast %392 : vector<1x2x128xf32> to vector<2x128xf32>
    %c0_122 = arith.constant 0 : index
    %c0_123 = arith.constant 0 : index
    %394 = vector.load %arg12[%c0_122, %c0_123] : memref<32x128xf32, #tpu.memory_space<vmem>>, vector<32x128xf32>
    %cst_124 = arith.constant dense<0.000000e+00> : vector<2x128xf32>
    %395 = tpu.matmul %388, %394, %cst_124 {dimension_numbers = #tpu.dot_dimension_numbers<[1], [0], [0], [1], [0, 0, 1, 1], [], []>} : vector<2x32xf32>, vector<32x128xf32>, vector<2x128xf32> -> vector<2x128xf32>
    %396 = arith.addf %393, %395 : vector<2x128xf32>
    %397 = vector.extract_strided_slice %396 {offsets = [0, 0], sizes = [2, 32], strides = [1, 1]} : vector<2x128xf32> to vector<2x32xf32>
    %398 = arith.negf %397 : vector<2x32xf32>
    %399 = math.exp %398 : vector<2x32xf32>
    %cst_125 = arith.constant 1.000000e+00 : f32
    %400 = vector.broadcast %cst_125 : f32 to vector<2x32xf32>
    %401 = arith.addf %400, %399 : vector<2x32xf32>
    %402 = arith.divf %400, %401 : vector<2x32xf32>
    %403 = vector.extract_strided_slice %396 {offsets = [0, 32], sizes = [2, 32], strides = [1, 1]} : vector<2x128xf32> to vector<2x32xf32>
    %404 = arith.negf %403 : vector<2x32xf32>
    %405 = math.exp %404 : vector<2x32xf32>
    %cst_126 = arith.constant 1.000000e+00 : f32
    %406 = vector.broadcast %cst_126 : f32 to vector<2x32xf32>
    %407 = arith.addf %406, %405 : vector<2x32xf32>
    %408 = arith.divf %406, %407 : vector<2x32xf32>
    %409 = vector.extract_strided_slice %396 {offsets = [0, 64], sizes = [2, 32], strides = [1, 1]} : vector<2x128xf32> to vector<2x32xf32>
    %410 = math.tanh %409 : vector<2x32xf32>
    %411 = vector.extract_strided_slice %396 {offsets = [0, 96], sizes = [2, 32], strides = [1, 1]} : vector<2x128xf32> to vector<2x32xf32>
    %412 = arith.negf %411 : vector<2x32xf32>
    %413 = math.exp %412 : vector<2x32xf32>
    %cst_127 = arith.constant 1.000000e+00 : f32
    %414 = vector.broadcast %cst_127 : f32 to vector<2x32xf32>
    %415 = arith.addf %414, %413 : vector<2x32xf32>
    %416 = arith.divf %414, %415 : vector<2x32xf32>
    %417 = arith.mulf %408, %386 : vector<2x32xf32>
    %418 = arith.mulf %402, %410 : vector<2x32xf32>
    %419 = arith.addf %417, %418 : vector<2x32xf32>
    %420 = math.tanh %419 : vector<2x32xf32>
    %421 = arith.mulf %416, %420 : vector<2x32xf32>
    %c5_128 = arith.constant 5 : index
    %c0_129 = arith.constant 0 : index
    %c0_130 = arith.constant 0 : index
    %422 = vector.load %arg26[%c5_128, %c0_129, %c0_130] : memref<8x2x32xf32, #tpu.memory_space<vmem>>, vector<1x2x32xf32>
    %423 = vector.shape_cast %422 : vector<1x2x32xf32> to vector<2x32xf32>
    %424 = vector.shape_cast %421 : vector<2x32xf32> to vector<1x2x32xf32>
    tpu.vector_store %arg26[%c5_128, %c0_129, %c0_130], %424 {strides = array<i32>} : memref<8x2x32xf32, #tpu.memory_space<vmem>>, vector<1x2x32xf32>,
    %425 = vector.extract_strided_slice %57 {offsets = [4, 0, 128], sizes = [1, 2, 128], strides = [1, 1, 1]} : vector<8x2x256xf32> to vector<1x2x128xf32>
    %426 = vector.shape_cast %425 : vector<1x2x128xf32> to vector<2x128xf32>
    %c0_131 = arith.constant 0 : index
    %c0_132 = arith.constant 0 : index
    %427 = vector.load %arg12[%c0_131, %c0_132] : memref<32x128xf32, #tpu.memory_space<vmem>>, vector<32x128xf32>
    %cst_133 = arith.constant dense<0.000000e+00> : vector<2x128xf32>
    %428 = tpu.matmul %421, %427, %cst_133 {dimension_numbers = #tpu.dot_dimension_numbers<[1], [0], [0], [1], [0, 0, 1, 1], [], []>} : vector<2x32xf32>, vector<32x128xf32>, vector<2x128xf32> -> vector<2x128xf32>
    %429 = arith.addf %426, %428 : vector<2x128xf32>
    %430 = vector.extract_strided_slice %429 {offsets = [0, 0], sizes = [2, 32], strides = [1, 1]} : vector<2x128xf32> to vector<2x32xf32>
    %431 = arith.negf %430 : vector<2x32xf32>
    %432 = math.exp %431 : vector<2x32xf32>
    %cst_134 = arith.constant 1.000000e+00 : f32
    %433 = vector.broadcast %cst_134 : f32 to vector<2x32xf32>
    %434 = arith.addf %433, %432 : vector<2x32xf32>
    %435 = arith.divf %433, %434 : vector<2x32xf32>
    %436 = vector.extract_strided_slice %429 {offsets = [0, 32], sizes = [2, 32], strides = [1, 1]} : vector<2x128xf32> to vector<2x32xf32>
    %437 = arith.negf %436 : vector<2x32xf32>
    %438 = math.exp %437 : vector<2x32xf32>
    %cst_135 = arith.constant 1.000000e+00 : f32
    %439 = vector.broadcast %cst_135 : f32 to vector<2x32xf32>
    %440 = arith.addf %439, %438 : vector<2x32xf32>
    %441 = arith.divf %439, %440 : vector<2x32xf32>
    %442 = vector.extract_strided_slice %429 {offsets = [0, 64], sizes = [2, 32], strides = [1, 1]} : vector<2x128xf32> to vector<2x32xf32>
    %443 = math.tanh %442 : vector<2x32xf32>
    %444 = vector.extract_strided_slice %429 {offsets = [0, 96], sizes = [2, 32], strides = [1, 1]} : vector<2x128xf32> to vector<2x32xf32>
    %445 = arith.negf %444 : vector<2x32xf32>
    %446 = math.exp %445 : vector<2x32xf32>
    %cst_136 = arith.constant 1.000000e+00 : f32
    %447 = vector.broadcast %cst_136 : f32 to vector<2x32xf32>
    %448 = arith.addf %447, %446 : vector<2x32xf32>
    %449 = arith.divf %447, %448 : vector<2x32xf32>
    %450 = arith.mulf %441, %419 : vector<2x32xf32>
    %451 = arith.mulf %435, %443 : vector<2x32xf32>
    %452 = arith.addf %450, %451 : vector<2x32xf32>
    %453 = math.tanh %452 : vector<2x32xf32>
    %454 = arith.mulf %449, %453 : vector<2x32xf32>
    %c4_137 = arith.constant 4 : index
    %c0_138 = arith.constant 0 : index
    %c0_139 = arith.constant 0 : index
    %455 = vector.load %arg26[%c4_137, %c0_138, %c0_139] : memref<8x2x32xf32, #tpu.memory_space<vmem>>, vector<1x2x32xf32>
    %456 = vector.shape_cast %455 : vector<1x2x32xf32> to vector<2x32xf32>
    %457 = vector.shape_cast %454 : vector<2x32xf32> to vector<1x2x32xf32>
    tpu.vector_store %arg26[%c4_137, %c0_138, %c0_139], %457 {strides = array<i32>} : memref<8x2x32xf32, #tpu.memory_space<vmem>>, vector<1x2x32xf32>,
    %458 = vector.extract_strided_slice %57 {offsets = [3, 0, 128], sizes = [1, 2, 128], strides = [1, 1, 1]} : vector<8x2x256xf32> to vector<1x2x128xf32>
    %459 = vector.shape_cast %458 : vector<1x2x128xf32> to vector<2x128xf32>
    %c0_140 = arith.constant 0 : index
    %c0_141 = arith.constant 0 : index
    %460 = vector.load %arg12[%c0_140, %c0_141] : memref<32x128xf32, #tpu.memory_space<vmem>>, vector<32x128xf32>
    %cst_142 = arith.constant dense<0.000000e+00> : vector<2x128xf32>
    %461 = tpu.matmul %454, %460, %cst_142 {dimension_numbers = #tpu.dot_dimension_numbers<[1], [0], [0], [1], [0, 0, 1, 1], [], []>} : vector<2x32xf32>, vector<32x128xf32>, vector<2x128xf32> -> vector<2x128xf32>
    %462 = arith.addf %459, %461 : vector<2x128xf32>
    %463 = vector.extract_strided_slice %462 {offsets = [0, 0], sizes = [2, 32], strides = [1, 1]} : vector<2x128xf32> to vector<2x32xf32>
    %464 = arith.negf %463 : vector<2x32xf32>
    %465 = math.exp %464 : vector<2x32xf32>
    %cst_143 = arith.constant 1.000000e+00 : f32
    %466 = vector.broadcast %cst_143 : f32 to vector<2x32xf32>
    %467 = arith.addf %466, %465 : vector<2x32xf32>
    %468 = arith.divf %466, %467 : vector<2x32xf32>
    %469 = vector.extract_strided_slice %462 {offsets = [0, 32], sizes = [2, 32], strides = [1, 1]} : vector<2x128xf32> to vector<2x32xf32>
    %470 = arith.negf %469 : vector<2x32xf32>
    %471 = math.exp %470 : vector<2x32xf32>
    %cst_144 = arith.constant 1.000000e+00 : f32
    %472 = vector.broadcast %cst_144 : f32 to vector<2x32xf32>
    %473 = arith.addf %472, %471 : vector<2x32xf32>
    %474 = arith.divf %472, %473 : vector<2x32xf32>
    %475 = vector.extract_strided_slice %462 {offsets = [0, 64], sizes = [2, 32], strides = [1, 1]} : vector<2x128xf32> to vector<2x32xf32>
    %476 = math.tanh %475 : vector<2x32xf32>
    %477 = vector.extract_strided_slice %462 {offsets = [0, 96], sizes = [2, 32], strides = [1, 1]} : vector<2x128xf32> to vector<2x32xf32>
    %478 = arith.negf %477 : vector<2x32xf32>
    %479 = math.exp %478 : vector<2x32xf32>
    %cst_145 = arith.constant 1.000000e+00 : f32
    %480 = vector.broadcast %cst_145 : f32 to vector<2x32xf32>
    %481 = arith.addf %480, %479 : vector<2x32xf32>
    %482 = arith.divf %480, %481 : vector<2x32xf32>
    %483 = arith.mulf %474, %452 : vector<2x32xf32>
    %484 = arith.mulf %468, %476 : vector<2x32xf32>
    %485 = arith.addf %483, %484 : vector<2x32xf32>
    %486 = math.tanh %485 : vector<2x32xf32>
    %487 = arith.mulf %482, %486 : vector<2x32xf32>
    %c3_146 = arith.constant 3 : index
    %c0_147 = arith.constant 0 : index
    %c0_148 = arith.constant 0 : index
    %488 = vector.load %arg26[%c3_146, %c0_147, %c0_148] : memref<8x2x32xf32, #tpu.memory_space<vmem>>, vector<1x2x32xf32>
    %489 = vector.shape_cast %488 : vector<1x2x32xf32> to vector<2x32xf32>
    %490 = vector.shape_cast %487 : vector<2x32xf32> to vector<1x2x32xf32>
    tpu.vector_store %arg26[%c3_146, %c0_147, %c0_148], %490 {strides = array<i32>} : memref<8x2x32xf32, #tpu.memory_space<vmem>>, vector<1x2x32xf32>,
    %491 = vector.extract_strided_slice %57 {offsets = [2, 0, 128], sizes = [1, 2, 128], strides = [1, 1, 1]} : vector<8x2x256xf32> to vector<1x2x128xf32>
    %492 = vector.shape_cast %491 : vector<1x2x128xf32> to vector<2x128xf32>
    %c0_149 = arith.constant 0 : index
    %c0_150 = arith.constant 0 : index
    %493 = vector.load %arg12[%c0_149, %c0_150] : memref<32x128xf32, #tpu.memory_space<vmem>>, vector<32x128xf32>
    %cst_151 = arith.constant dense<0.000000e+00> : vector<2x128xf32>
    %494 = tpu.matmul %487, %493, %cst_151 {dimension_numbers = #tpu.dot_dimension_numbers<[1], [0], [0], [1], [0, 0, 1, 1], [], []>} : vector<2x32xf32>, vector<32x128xf32>, vector<2x128xf32> -> vector<2x128xf32>
    %495 = arith.addf %492, %494 : vector<2x128xf32>
    %496 = vector.extract_strided_slice %495 {offsets = [0, 0], sizes = [2, 32], strides = [1, 1]} : vector<2x128xf32> to vector<2x32xf32>
    %497 = arith.negf %496 : vector<2x32xf32>
    %498 = math.exp %497 : vector<2x32xf32>
    %cst_152 = arith.constant 1.000000e+00 : f32
    %499 = vector.broadcast %cst_152 : f32 to vector<2x32xf32>
    %500 = arith.addf %499, %498 : vector<2x32xf32>
    %501 = arith.divf %499, %500 : vector<2x32xf32>
    %502 = vector.extract_strided_slice %495 {offsets = [0, 32], sizes = [2, 32], strides = [1, 1]} : vector<2x128xf32> to vector<2x32xf32>
    %503 = arith.negf %502 : vector<2x32xf32>
    %504 = math.exp %503 : vector<2x32xf32>
    %cst_153 = arith.constant 1.000000e+00 : f32
    %505 = vector.broadcast %cst_153 : f32 to vector<2x32xf32>
    %506 = arith.addf %505, %504 : vector<2x32xf32>
    %507 = arith.divf %505, %506 : vector<2x32xf32>
    %508 = vector.extract_strided_slice %495 {offsets = [0, 64], sizes = [2, 32], strides = [1, 1]} : vector<2x128xf32> to vector<2x32xf32>
    %509 = math.tanh %508 : vector<2x32xf32>
    %510 = vector.extract_strided_slice %495 {offsets = [0, 96], sizes = [2, 32], strides = [1, 1]} : vector<2x128xf32> to vector<2x32xf32>
    %511 = arith.negf %510 : vector<2x32xf32>
    %512 = math.exp %511 : vector<2x32xf32>
    %cst_154 = arith.constant 1.000000e+00 : f32
    %513 = vector.broadcast %cst_154 : f32 to vector<2x32xf32>
    %514 = arith.addf %513, %512 : vector<2x32xf32>
    %515 = arith.divf %513, %514 : vector<2x32xf32>
    %516 = arith.mulf %507, %485 : vector<2x32xf32>
    %517 = arith.mulf %501, %509 : vector<2x32xf32>
    %518 = arith.addf %516, %517 : vector<2x32xf32>
    %519 = math.tanh %518 : vector<2x32xf32>
    %520 = arith.mulf %515, %519 : vector<2x32xf32>
    %c2_155 = arith.constant 2 : index
    %c0_156 = arith.constant 0 : index
    %c0_157 = arith.constant 0 : index
    %521 = vector.load %arg26[%c2_155, %c0_156, %c0_157] : memref<8x2x32xf32, #tpu.memory_space<vmem>>, vector<1x2x32xf32>
    %522 = vector.shape_cast %521 : vector<1x2x32xf32> to vector<2x32xf32>
    %523 = vector.shape_cast %520 : vector<2x32xf32> to vector<1x2x32xf32>
    tpu.vector_store %arg26[%c2_155, %c0_156, %c0_157], %523 {strides = array<i32>} : memref<8x2x32xf32, #tpu.memory_space<vmem>>, vector<1x2x32xf32>,
    %524 = vector.extract_strided_slice %57 {offsets = [1, 0, 128], sizes = [1, 2, 128], strides = [1, 1, 1]} : vector<8x2x256xf32> to vector<1x2x128xf32>
    %525 = vector.shape_cast %524 : vector<1x2x128xf32> to vector<2x128xf32>
    %c0_158 = arith.constant 0 : index
    %c0_159 = arith.constant 0 : index
    %526 = vector.load %arg12[%c0_158, %c0_159] : memref<32x128xf32, #tpu.memory_space<vmem>>, vector<32x128xf32>
    %cst_160 = arith.constant dense<0.000000e+00> : vector<2x128xf32>
    %527 = tpu.matmul %520, %526, %cst_160 {dimension_numbers = #tpu.dot_dimension_numbers<[1], [0], [0], [1], [0, 0, 1, 1], [], []>} : vector<2x32xf32>, vector<32x128xf32>, vector<2x128xf32> -> vector<2x128xf32>
    %528 = arith.addf %525, %527 : vector<2x128xf32>
    %529 = vector.extract_strided_slice %528 {offsets = [0, 0], sizes = [2, 32], strides = [1, 1]} : vector<2x128xf32> to vector<2x32xf32>
    %530 = arith.negf %529 : vector<2x32xf32>
    %531 = math.exp %530 : vector<2x32xf32>
    %cst_161 = arith.constant 1.000000e+00 : f32
    %532 = vector.broadcast %cst_161 : f32 to vector<2x32xf32>
    %533 = arith.addf %532, %531 : vector<2x32xf32>
    %534 = arith.divf %532, %533 : vector<2x32xf32>
    %535 = vector.extract_strided_slice %528 {offsets = [0, 32], sizes = [2, 32], strides = [1, 1]} : vector<2x128xf32> to vector<2x32xf32>
    %536 = arith.negf %535 : vector<2x32xf32>
    %537 = math.exp %536 : vector<2x32xf32>
    %cst_162 = arith.constant 1.000000e+00 : f32
    %538 = vector.broadcast %cst_162 : f32 to vector<2x32xf32>
    %539 = arith.addf %538, %537 : vector<2x32xf32>
    %540 = arith.divf %538, %539 : vector<2x32xf32>
    %541 = vector.extract_strided_slice %528 {offsets = [0, 64], sizes = [2, 32], strides = [1, 1]} : vector<2x128xf32> to vector<2x32xf32>
    %542 = math.tanh %541 : vector<2x32xf32>
    %543 = vector.extract_strided_slice %528 {offsets = [0, 96], sizes = [2, 32], strides = [1, 1]} : vector<2x128xf32> to vector<2x32xf32>
    %544 = arith.negf %543 : vector<2x32xf32>
    %545 = math.exp %544 : vector<2x32xf32>
    %cst_163 = arith.constant 1.000000e+00 : f32
    %546 = vector.broadcast %cst_163 : f32 to vector<2x32xf32>
    %547 = arith.addf %546, %545 : vector<2x32xf32>
    %548 = arith.divf %546, %547 : vector<2x32xf32>
    %549 = arith.mulf %540, %518 : vector<2x32xf32>
    %550 = arith.mulf %534, %542 : vector<2x32xf32>
    %551 = arith.addf %549, %550 : vector<2x32xf32>
    %552 = math.tanh %551 : vector<2x32xf32>
    %553 = arith.mulf %548, %552 : vector<2x32xf32>
    %c1_164 = arith.constant 1 : index
    %c0_165 = arith.constant 0 : index
    %c0_166 = arith.constant 0 : index
    %554 = vector.load %arg26[%c1_164, %c0_165, %c0_166] : memref<8x2x32xf32, #tpu.memory_space<vmem>>, vector<1x2x32xf32>
    %555 = vector.shape_cast %554 : vector<1x2x32xf32> to vector<2x32xf32>
    %556 = vector.shape_cast %553 : vector<2x32xf32> to vector<1x2x32xf32>
    tpu.vector_store %arg26[%c1_164, %c0_165, %c0_166], %556 {strides = array<i32>} : memref<8x2x32xf32, #tpu.memory_space<vmem>>, vector<1x2x32xf32>,
    %557 = vector.extract_strided_slice %57 {offsets = [0, 0, 128], sizes = [1, 2, 128], strides = [1, 1, 1]} : vector<8x2x256xf32> to vector<1x2x128xf32>
    %558 = vector.shape_cast %557 : vector<1x2x128xf32> to vector<2x128xf32>
    %c0_167 = arith.constant 0 : index
    %c0_168 = arith.constant 0 : index
    %559 = vector.load %arg12[%c0_167, %c0_168] : memref<32x128xf32, #tpu.memory_space<vmem>>, vector<32x128xf32>
    %cst_169 = arith.constant dense<0.000000e+00> : vector<2x128xf32>
    %560 = tpu.matmul %553, %559, %cst_169 {dimension_numbers = #tpu.dot_dimension_numbers<[1], [0], [0], [1], [0, 0, 1, 1], [], []>} : vector<2x32xf32>, vector<32x128xf32>, vector<2x128xf32> -> vector<2x128xf32>
    %561 = arith.addf %558, %560 : vector<2x128xf32>
    %562 = vector.extract_strided_slice %561 {offsets = [0, 0], sizes = [2, 32], strides = [1, 1]} : vector<2x128xf32> to vector<2x32xf32>
    %563 = arith.negf %562 : vector<2x32xf32>
    %564 = math.exp %563 : vector<2x32xf32>
    %cst_170 = arith.constant 1.000000e+00 : f32
    %565 = vector.broadcast %cst_170 : f32 to vector<2x32xf32>
    %566 = arith.addf %565, %564 : vector<2x32xf32>
    %567 = arith.divf %565, %566 : vector<2x32xf32>
    %568 = vector.extract_strided_slice %561 {offsets = [0, 32], sizes = [2, 32], strides = [1, 1]} : vector<2x128xf32> to vector<2x32xf32>
    %569 = arith.negf %568 : vector<2x32xf32>
    %570 = math.exp %569 : vector<2x32xf32>
    %cst_171 = arith.constant 1.000000e+00 : f32
    %571 = vector.broadcast %cst_171 : f32 to vector<2x32xf32>
    %572 = arith.addf %571, %570 : vector<2x32xf32>
    %573 = arith.divf %571, %572 : vector<2x32xf32>
    %574 = vector.extract_strided_slice %561 {offsets = [0, 64], sizes = [2, 32], strides = [1, 1]} : vector<2x128xf32> to vector<2x32xf32>
    %575 = math.tanh %574 : vector<2x32xf32>
    %576 = vector.extract_strided_slice %561 {offsets = [0, 96], sizes = [2, 32], strides = [1, 1]} : vector<2x128xf32> to vector<2x32xf32>
    %577 = arith.negf %576 : vector<2x32xf32>
    %578 = math.exp %577 : vector<2x32xf32>
    %cst_172 = arith.constant 1.000000e+00 : f32
    %579 = vector.broadcast %cst_172 : f32 to vector<2x32xf32>
    %580 = arith.addf %579, %578 : vector<2x32xf32>
    %581 = arith.divf %579, %580 : vector<2x32xf32>
    %582 = arith.mulf %573, %551 : vector<2x32xf32>
    %583 = arith.mulf %567, %575 : vector<2x32xf32>
    %584 = arith.addf %582, %583 : vector<2x32xf32>
    %585 = math.tanh %584 : vector<2x32xf32>
    %586 = arith.mulf %581, %585 : vector<2x32xf32>
    %c0_173 = arith.constant 0 : index
    %c0_174 = arith.constant 0 : index
    %c0_175 = arith.constant 0 : index
    %587 = vector.load %arg26[%c0_173, %c0_174, %c0_175] : memref<8x2x32xf32, #tpu.memory_space<vmem>>, vector<1x2x32xf32>
    %588 = vector.shape_cast %587 : vector<1x2x32xf32> to vector<2x32xf32>
    %589 = vector.shape_cast %586 : vector<2x32xf32> to vector<1x2x32xf32>
    tpu.vector_store %arg26[%c0_173, %c0_174, %c0_175], %589 {strides = array<i32>} : memref<8x2x32xf32, #tpu.memory_space<vmem>>, vector<1x2x32xf32>,
    %c0_176 = arith.constant 0 : index
    %c0_177 = arith.constant 0 : index
    %c0_178 = arith.constant 0 : index
    %590 = vector.load %arg25[%c0_176, %c0_177, %c0_178] : memref<8x2x32xf32, #tpu.memory_space<vmem>>, vector<8x2x32xf32>
    %591 = vector.shape_cast %590 : vector<8x2x32xf32> to vector<16x32xf32>
    %c0_179 = arith.constant 0 : index
    %c0_180 = arith.constant 0 : index
    %c0_181 = arith.constant 0 : index
    %592 = vector.load %arg26[%c0_179, %c0_180, %c0_181] : memref<8x2x32xf32, #tpu.memory_space<vmem>>, vector<8x2x32xf32>
    %593 = vector.shape_cast %592 : vector<8x2x32xf32> to vector<16x32xf32>
    %c0_182 = arith.constant 0 : index
    %c0_183 = arith.constant 0 : index
    %594 = vector.load %arg17[%c0_182, %c0_183] : memref<32x5xf32, #tpu.memory_space<vmem>>, vector<32x5xf32>
    %cst_184 = arith.constant dense<0.000000e+00> : vector<16x5xf32>
    %595 = tpu.matmul %591, %594, %cst_184 {dimension_numbers = #tpu.dot_dimension_numbers<[1], [0], [0], [1], [0, 0, 1, 1], [], []>} : vector<16x32xf32>, vector<32x5xf32>, vector<16x5xf32> -> vector<16x5xf32>
    %c0_185 = arith.constant 0 : index
    %c0_186 = arith.constant 0 : index
    %596 = vector.load %arg18[%c0_185, %c0_186] : memref<32x5xf32, #tpu.memory_space<vmem>>, vector<32x5xf32>
    %cst_187 = arith.constant dense<0.000000e+00> : vector<16x5xf32>
    %597 = tpu.matmul %593, %596, %cst_187 {dimension_numbers = #tpu.dot_dimension_numbers<[1], [0], [0], [1], [0, 0, 1, 1], [], []>} : vector<16x32xf32>, vector<32x5xf32>, vector<16x5xf32> -> vector<16x5xf32>
    %598 = arith.addf %595, %597 : vector<16x5xf32>
    %c0_188 = arith.constant 0 : index
    %c0_189 = arith.constant 0 : index
    %599 = vector.load %arg19[%c0_188, %c0_189] : memref<1x5xf32, #tpu.memory_space<vmem>>, vector<1x5xf32>
    %600 = vector.broadcast %599 : vector<1x5xf32> to vector<16x5xf32>
    %601 = arith.addf %598, %600 : vector<16x5xf32>
    %602 = vector.shape_cast %601 : vector<16x5xf32> to vector<8x2x5xf32>
    %cst_190 = arith.constant dense<0xFF800000> : vector<2x5xf32>
    %603 = vector.multi_reduction <maximumf>, %602, %cst_190 [0] : vector<8x2x5xf32> to vector<2x5xf32>
    %604 = vector.shape_cast %603 : vector<2x5xf32> to vector<1x2x5xf32>
    %605 = vector.broadcast %604 : vector<1x2x5xf32> to vector<8x2x5xf32>
    %606 = arith.subf %602, %605 : vector<8x2x5xf32>
    %607 = math.exp %606 : vector<8x2x5xf32>
    %cst_191 = arith.constant dense<0.000000e+00> : vector<2x5xf32>
    %608 = vector.multi_reduction <add>, %607, %cst_191 [0] : vector<8x2x5xf32> to vector<2x5xf32>
    %609 = vector.shape_cast %608 : vector<2x5xf32> to vector<1x2x5xf32>
    %610 = tpu.reciprocal %609 {approx = true} : vector<1x2x5xf32> -> vector<1x2x5xf32>
    %611 = vector.broadcast %610 : vector<1x2x5xf32> to vector<8x2x5xf32>
    %612 = arith.mulf %607, %611 : vector<8x2x5xf32>
    %c0_192 = arith.constant 0 : index
    %c0_193 = arith.constant 0 : index
    %613 = vector.load %arg23[%c0_192, %c0_193] : memref<2x8xf32, #tpu.memory_space<vmem>>, vector<2x8xf32>
    %c0_194 = arith.constant 0 : index
    %c0_195 = arith.constant 0 : index
    %614 = vector.load %arg20[%c0_194, %c0_195] : memref<5x5xf32, #tpu.memory_space<vmem>>, vector<5x5xf32>
    %615 = tpu.iota {dimensions = array<i32: 1>} : vector<2x5xi32>
    %616 = tpu.iota {dimensions = array<i32: 1>} : vector<2x5x5xi32>
    %c0_196 = arith.constant 0 : index
    %c0_197 = arith.constant 0 : index
    %617 = vector.load %arg21[%c0_196, %c0_197] : memref<1x5xf32, #tpu.memory_space<vmem>>, vector<1x5xf32>
    %618 = vector.extract_strided_slice %612 {offsets = [0, 0, 0], sizes = [1, 2, 5], strides = [1, 1, 1]} : vector<8x2x5xf32> to vector<1x2x5xf32>
    %619 = vector.shape_cast %618 : vector<1x2x5xf32> to vector<2x5xf32>
    %620 = vector.broadcast %617 : vector<1x5xf32> to vector<2x5xf32>
    %621 = arith.addf %620, %619 : vector<2x5xf32>
    %622 = vector.shape_cast %621 : vector<2x5xf32> to vector<2x5x1xf32>
    %623 = vector.shape_cast %614 : vector<5x5xf32> to vector<1x5x5xf32>
    %624 = vector.broadcast %622 : vector<2x5x1xf32> to vector<2x5x5xf32>
    %625 = vector.broadcast %623 : vector<1x5x5xf32> to vector<2x5x5xf32>
    %626 = arith.addf %624, %625 : vector<2x5x5xf32>
    %627 = vector.extract_strided_slice %612 {offsets = [1, 0, 0], sizes = [1, 2, 5], strides = [1, 1, 1]} : vector<8x2x5xf32> to vector<1x2x5xf32>
    %628 = vector.shape_cast %627 : vector<1x2x5xf32> to vector<2x5xf32>
    %629 = vector.shape_cast %628 : vector<2x5xf32> to vector<2x1x5xf32>
    %630 = vector.broadcast %629 : vector<2x1x5xf32> to vector<2x5x5xf32>
    %631 = arith.addf %626, %630 : vector<2x5x5xf32>
    %cst_198 = arith.constant dense<0xFF800000> : vector<2x5xf32>
    %632 = vector.multi_reduction <maximumf>, %631, %cst_198 [1] : vector<2x5x5xf32> to vector<2x5xf32>
    %cst_199 = arith.constant dense<0xFF800000> : vector<2x5xf32>
    %633 = vector.multi_reduction <maximumf>, %631, %cst_199 [1] : vector<2x5x5xf32> to vector<2x5xf32>
    %634 = vector.shape_cast %633 : vector<2x5xf32> to vector<2x1x5xf32>
    %635 = vector.broadcast %634 : vector<2x1x5xf32> to vector<2x5x5xf32>
    %636 = arith.cmpf oeq, %631, %635 : vector<2x5x5xf32>
    %c5_i32 = arith.constant 5 : i32
    %637 = vector.broadcast %c5_i32 : i32 to vector<2x5x5xi32>
    %638 = arith.select %636, %616, %637 : vector<2x5x5xi1>, vector<2x5x5xi32>
    %cst_200 = arith.constant dense<2147483647> : vector<2x5xi32>
    %639 = vector.multi_reduction <minsi>, %638, %cst_200 [1] : vector<2x5x5xi32> to vector<2x5xi32>
    %640 = vector.extract_strided_slice %613 {offsets = [0, 1], sizes = [2, 1], strides = [1, 1]} : vector<2x8xf32> to vector<2x1xf32>
    %cst_201 = arith.constant 5.000000e-01 : f32
    %641 = vector.broadcast %cst_201 : f32 to vector<2x1xf32>
    %642 = arith.cmpf ogt, %640, %641 : vector<2x1xf32>
    %643 = vector.shape_cast %642 : vector<2x1xi1> to vector<2x1xi1>
    %644 = vector.broadcast %643 : vector<2x1xi1> to vector<2x5xi1>
    %645 = arith.select %644, %639, %615 : vector<2x5xi1>, vector<2x5xi32>
    %646 = vector.shape_cast %642 : vector<2x1xi1> to vector<2x1xi1>
    %647 = vector.broadcast %646 : vector<2x1xi1> to vector<2x5xi1>
    %648 = arith.select %647, %632, %621 : vector<2x5xi1>, vector<2x5xf32>
    %649 = vector.shape_cast %648 : vector<2x5xf32> to vector<2x5x1xf32>
    %650 = vector.shape_cast %614 : vector<5x5xf32> to vector<1x5x5xf32>
    %651 = vector.broadcast %649 : vector<2x5x1xf32> to vector<2x5x5xf32>
    %652 = vector.broadcast %650 : vector<1x5x5xf32> to vector<2x5x5xf32>
    %653 = arith.addf %651, %652 : vector<2x5x5xf32>
    %654 = vector.extract_strided_slice %612 {offsets = [2, 0, 0], sizes = [1, 2, 5], strides = [1, 1, 1]} : vector<8x2x5xf32> to vector<1x2x5xf32>
    %655 = vector.shape_cast %654 : vector<1x2x5xf32> to vector<2x5xf32>
    %656 = vector.shape_cast %655 : vector<2x5xf32> to vector<2x1x5xf32>
    %657 = vector.broadcast %656 : vector<2x1x5xf32> to vector<2x5x5xf32>
    %658 = arith.addf %653, %657 : vector<2x5x5xf32>
    %cst_202 = arith.constant dense<0xFF800000> : vector<2x5xf32>
    %659 = vector.multi_reduction <maximumf>, %658, %cst_202 [1] : vector<2x5x5xf32> to vector<2x5xf32>
    %cst_203 = arith.constant dense<0xFF800000> : vector<2x5xf32>
    %660 = vector.multi_reduction <maximumf>, %658, %cst_203 [1] : vector<2x5x5xf32> to vector<2x5xf32>
    %661 = vector.shape_cast %660 : vector<2x5xf32> to vector<2x1x5xf32>
    %662 = vector.broadcast %661 : vector<2x1x5xf32> to vector<2x5x5xf32>
    %663 = arith.cmpf oeq, %658, %662 : vector<2x5x5xf32>
    %c5_i32_204 = arith.constant 5 : i32
    %664 = vector.broadcast %c5_i32_204 : i32 to vector<2x5x5xi32>
    %665 = arith.select %663, %616, %664 : vector<2x5x5xi1>, vector<2x5x5xi32>
    %cst_205 = arith.constant dense<2147483647> : vector<2x5xi32>
    %666 = vector.multi_reduction <minsi>, %665, %cst_205 [1] : vector<2x5x5xi32> to vector<2x5xi32>
    %667 = vector.extract_strided_slice %613 {offsets = [0, 2], sizes = [2, 1], strides = [1, 1]} : vector<2x8xf32> to vector<2x1xf32>
    %cst_206 = arith.constant 5.000000e-01 : f32
    %668 = vector.broadcast %cst_206 : f32 to vector<2x1xf32>
    %669 = arith.cmpf ogt, %667, %668 : vector<2x1xf32>
    %670 = vector.shape_cast %669 : vector<2x1xi1> to vector<2x1xi1>
    %671 = vector.broadcast %670 : vector<2x1xi1> to vector<2x5xi1>
    %672 = arith.select %671, %666, %615 : vector<2x5xi1>, vector<2x5xi32>
    %673 = vector.shape_cast %669 : vector<2x1xi1> to vector<2x1xi1>
    %674 = vector.broadcast %673 : vector<2x1xi1> to vector<2x5xi1>
    %675 = arith.select %674, %659, %648 : vector<2x5xi1>, vector<2x5xf32>
    %676 = vector.shape_cast %675 : vector<2x5xf32> to vector<2x5x1xf32>
    %677 = vector.shape_cast %614 : vector<5x5xf32> to vector<1x5x5xf32>
    %678 = vector.broadcast %676 : vector<2x5x1xf32> to vector<2x5x5xf32>
    %679 = vector.broadcast %677 : vector<1x5x5xf32> to vector<2x5x5xf32>
    %680 = arith.addf %678, %679 : vector<2x5x5xf32>
    %681 = vector.extract_strided_slice %612 {offsets = [3, 0, 0], sizes = [1, 2, 5], strides = [1, 1, 1]} : vector<8x2x5xf32> to vector<1x2x5xf32>
    %682 = vector.shape_cast %681 : vector<1x2x5xf32> to vector<2x5xf32>
    %683 = vector.shape_cast %682 : vector<2x5xf32> to vector<2x1x5xf32>
    %684 = vector.broadcast %683 : vector<2x1x5xf32> to vector<2x5x5xf32>
    %685 = arith.addf %680, %684 : vector<2x5x5xf32>
    %cst_207 = arith.constant dense<0xFF800000> : vector<2x5xf32>
    %686 = vector.multi_reduction <maximumf>, %685, %cst_207 [1] : vector<2x5x5xf32> to vector<2x5xf32>
    %cst_208 = arith.constant dense<0xFF800000> : vector<2x5xf32>
    %687 = vector.multi_reduction <maximumf>, %685, %cst_208 [1] : vector<2x5x5xf32> to vector<2x5xf32>
    %688 = vector.shape_cast %687 : vector<2x5xf32> to vector<2x1x5xf32>
    %689 = vector.broadcast %688 : vector<2x1x5xf32> to vector<2x5x5xf32>
    %690 = arith.cmpf oeq, %685, %689 : vector<2x5x5xf32>
    %c5_i32_209 = arith.constant 5 : i32
    %691 = vector.broadcast %c5_i32_209 : i32 to vector<2x5x5xi32>
    %692 = arith.select %690, %616, %691 : vector<2x5x5xi1>, vector<2x5x5xi32>
    %cst_210 = arith.constant dense<2147483647> : vector<2x5xi32>
    %693 = vector.multi_reduction <minsi>, %692, %cst_210 [1] : vector<2x5x5xi32> to vector<2x5xi32>
    %694 = vector.extract_strided_slice %613 {offsets = [0, 3], sizes = [2, 1], strides = [1, 1]} : vector<2x8xf32> to vector<2x1xf32>
    %cst_211 = arith.constant 5.000000e-01 : f32
    %695 = vector.broadcast %cst_211 : f32 to vector<2x1xf32>
    %696 = arith.cmpf ogt, %694, %695 : vector<2x1xf32>
    %697 = vector.shape_cast %696 : vector<2x1xi1> to vector<2x1xi1>
    %698 = vector.broadcast %697 : vector<2x1xi1> to vector<2x5xi1>
    %699 = arith.select %698, %693, %615 : vector<2x5xi1>, vector<2x5xi32>
    %700 = vector.shape_cast %696 : vector<2x1xi1> to vector<2x1xi1>
    %701 = vector.broadcast %700 : vector<2x1xi1> to vector<2x5xi1>
    %702 = arith.select %701, %686, %675 : vector<2x5xi1>, vector<2x5xf32>
    %703 = vector.shape_cast %702 : vector<2x5xf32> to vector<2x5x1xf32>
    %704 = vector.shape_cast %614 : vector<5x5xf32> to vector<1x5x5xf32>
    %705 = vector.broadcast %703 : vector<2x5x1xf32> to vector<2x5x5xf32>
    %706 = vector.broadcast %704 : vector<1x5x5xf32> to vector<2x5x5xf32>
    %707 = arith.addf %705, %706 : vector<2x5x5xf32>
    %708 = vector.extract_strided_slice %612 {offsets = [4, 0, 0], sizes = [1, 2, 5], strides = [1, 1, 1]} : vector<8x2x5xf32> to vector<1x2x5xf32>
    %709 = vector.shape_cast %708 : vector<1x2x5xf32> to vector<2x5xf32>
    %710 = vector.shape_cast %709 : vector<2x5xf32> to vector<2x1x5xf32>
    %711 = vector.broadcast %710 : vector<2x1x5xf32> to vector<2x5x5xf32>
    %712 = arith.addf %707, %711 : vector<2x5x5xf32>
    %cst_212 = arith.constant dense<0xFF800000> : vector<2x5xf32>
    %713 = vector.multi_reduction <maximumf>, %712, %cst_212 [1] : vector<2x5x5xf32> to vector<2x5xf32>
    %cst_213 = arith.constant dense<0xFF800000> : vector<2x5xf32>
    %714 = vector.multi_reduction <maximumf>, %712, %cst_213 [1] : vector<2x5x5xf32> to vector<2x5xf32>
    %715 = vector.shape_cast %714 : vector<2x5xf32> to vector<2x1x5xf32>
    %716 = vector.broadcast %715 : vector<2x1x5xf32> to vector<2x5x5xf32>
    %717 = arith.cmpf oeq, %712, %716 : vector<2x5x5xf32>
    %c5_i32_214 = arith.constant 5 : i32
    %718 = vector.broadcast %c5_i32_214 : i32 to vector<2x5x5xi32>
    %719 = arith.select %717, %616, %718 : vector<2x5x5xi1>, vector<2x5x5xi32>
    %cst_215 = arith.constant dense<2147483647> : vector<2x5xi32>
    %720 = vector.multi_reduction <minsi>, %719, %cst_215 [1] : vector<2x5x5xi32> to vector<2x5xi32>
    %721 = vector.extract_strided_slice %613 {offsets = [0, 4], sizes = [2, 1], strides = [1, 1]} : vector<2x8xf32> to vector<2x1xf32>
    %cst_216 = arith.constant 5.000000e-01 : f32
    %722 = vector.broadcast %cst_216 : f32 to vector<2x1xf32>
    %723 = arith.cmpf ogt, %721, %722 : vector<2x1xf32>
    %724 = vector.shape_cast %723 : vector<2x1xi1> to vector<2x1xi1>
    %725 = vector.broadcast %724 : vector<2x1xi1> to vector<2x5xi1>
    %726 = arith.select %725, %720, %615 : vector<2x5xi1>, vector<2x5xi32>
    %727 = vector.shape_cast %723 : vector<2x1xi1> to vector<2x1xi1>
    %728 = vector.broadcast %727 : vector<2x1xi1> to vector<2x5xi1>
    %729 = arith.select %728, %713, %702 : vector<2x5xi1>, vector<2x5xf32>
    %730 = vector.shape_cast %729 : vector<2x5xf32> to vector<2x5x1xf32>
    %731 = vector.shape_cast %614 : vector<5x5xf32> to vector<1x5x5xf32>
    %732 = vector.broadcast %730 : vector<2x5x1xf32> to vector<2x5x5xf32>
    %733 = vector.broadcast %731 : vector<1x5x5xf32> to vector<2x5x5xf32>
    %734 = arith.addf %732, %733 : vector<2x5x5xf32>
    %735 = vector.extract_strided_slice %612 {offsets = [5, 0, 0], sizes = [1, 2, 5], strides = [1, 1, 1]} : vector<8x2x5xf32> to vector<1x2x5xf32>
    %736 = vector.shape_cast %735 : vector<1x2x5xf32> to vector<2x5xf32>
    %737 = vector.shape_cast %736 : vector<2x5xf32> to vector<2x1x5xf32>
    %738 = vector.broadcast %737 : vector<2x1x5xf32> to vector<2x5x5xf32>
    %739 = arith.addf %734, %738 : vector<2x5x5xf32>
    %cst_217 = arith.constant dense<0xFF800000> : vector<2x5xf32>
    %740 = vector.multi_reduction <maximumf>, %739, %cst_217 [1] : vector<2x5x5xf32> to vector<2x5xf32>
    %cst_218 = arith.constant dense<0xFF800000> : vector<2x5xf32>
    %741 = vector.multi_reduction <maximumf>, %739, %cst_218 [1] : vector<2x5x5xf32> to vector<2x5xf32>
    %742 = vector.shape_cast %741 : vector<2x5xf32> to vector<2x1x5xf32>
    %743 = vector.broadcast %742 : vector<2x1x5xf32> to vector<2x5x5xf32>
    %744 = arith.cmpf oeq, %739, %743 : vector<2x5x5xf32>
    %c5_i32_219 = arith.constant 5 : i32
    %745 = vector.broadcast %c5_i32_219 : i32 to vector<2x5x5xi32>
    %746 = arith.select %744, %616, %745 : vector<2x5x5xi1>, vector<2x5x5xi32>
    %cst_220 = arith.constant dense<2147483647> : vector<2x5xi32>
    %747 = vector.multi_reduction <minsi>, %746, %cst_220 [1] : vector<2x5x5xi32> to vector<2x5xi32>
    %748 = vector.extract_strided_slice %613 {offsets = [0, 5], sizes = [2, 1], strides = [1, 1]} : vector<2x8xf32> to vector<2x1xf32>
    %cst_221 = arith.constant 5.000000e-01 : f32
    %749 = vector.broadcast %cst_221 : f32 to vector<2x1xf32>
    %750 = arith.cmpf ogt, %748, %749 : vector<2x1xf32>
    %751 = vector.shape_cast %750 : vector<2x1xi1> to vector<2x1xi1>
    %752 = vector.broadcast %751 : vector<2x1xi1> to vector<2x5xi1>
    %753 = arith.select %752, %747, %615 : vector<2x5xi1>, vector<2x5xi32>
    %754 = vector.shape_cast %750 : vector<2x1xi1> to vector<2x1xi1>
    %755 = vector.broadcast %754 : vector<2x1xi1> to vector<2x5xi1>
    %756 = arith.select %755, %740, %729 : vector<2x5xi1>, vector<2x5xf32>
    %757 = vector.shape_cast %756 : vector<2x5xf32> to vector<2x5x1xf32>
    %758 = vector.shape_cast %614 : vector<5x5xf32> to vector<1x5x5xf32>
    %759 = vector.broadcast %757 : vector<2x5x1xf32> to vector<2x5x5xf32>
    %760 = vector.broadcast %758 : vector<1x5x5xf32> to vector<2x5x5xf32>
    %761 = arith.addf %759, %760 : vector<2x5x5xf32>
    %762 = vector.extract_strided_slice %612 {offsets = [6, 0, 0], sizes = [1, 2, 5], strides = [1, 1, 1]} : vector<8x2x5xf32> to vector<1x2x5xf32>
    %763 = vector.shape_cast %762 : vector<1x2x5xf32> to vector<2x5xf32>
    %764 = vector.shape_cast %763 : vector<2x5xf32> to vector<2x1x5xf32>
    %765 = vector.broadcast %764 : vector<2x1x5xf32> to vector<2x5x5xf32>
    %766 = arith.addf %761, %765 : vector<2x5x5xf32>
    %cst_222 = arith.constant dense<0xFF800000> : vector<2x5xf32>
    %767 = vector.multi_reduction <maximumf>, %766, %cst_222 [1] : vector<2x5x5xf32> to vector<2x5xf32>
    %cst_223 = arith.constant dense<0xFF800000> : vector<2x5xf32>
    %768 = vector.multi_reduction <maximumf>, %766, %cst_223 [1] : vector<2x5x5xf32> to vector<2x5xf32>
    %769 = vector.shape_cast %768 : vector<2x5xf32> to vector<2x1x5xf32>
    %770 = vector.broadcast %769 : vector<2x1x5xf32> to vector<2x5x5xf32>
    %771 = arith.cmpf oeq, %766, %770 : vector<2x5x5xf32>
    %c5_i32_224 = arith.constant 5 : i32
    %772 = vector.broadcast %c5_i32_224 : i32 to vector<2x5x5xi32>
    %773 = arith.select %771, %616, %772 : vector<2x5x5xi1>, vector<2x5x5xi32>
    %cst_225 = arith.constant dense<2147483647> : vector<2x5xi32>
    %774 = vector.multi_reduction <minsi>, %773, %cst_225 [1] : vector<2x5x5xi32> to vector<2x5xi32>
    %775 = vector.extract_strided_slice %613 {offsets = [0, 6], sizes = [2, 1], strides = [1, 1]} : vector<2x8xf32> to vector<2x1xf32>
    %cst_226 = arith.constant 5.000000e-01 : f32
    %776 = vector.broadcast %cst_226 : f32 to vector<2x1xf32>
    %777 = arith.cmpf ogt, %775, %776 : vector<2x1xf32>
    %778 = vector.shape_cast %777 : vector<2x1xi1> to vector<2x1xi1>
    %779 = vector.broadcast %778 : vector<2x1xi1> to vector<2x5xi1>
    %780 = arith.select %779, %774, %615 : vector<2x5xi1>, vector<2x5xi32>
    %781 = vector.shape_cast %777 : vector<2x1xi1> to vector<2x1xi1>
    %782 = vector.broadcast %781 : vector<2x1xi1> to vector<2x5xi1>
    %783 = arith.select %782, %767, %756 : vector<2x5xi1>, vector<2x5xf32>
    %784 = vector.shape_cast %783 : vector<2x5xf32> to vector<2x5x1xf32>
    %785 = vector.shape_cast %614 : vector<5x5xf32> to vector<1x5x5xf32>
    %786 = vector.broadcast %784 : vector<2x5x1xf32> to vector<2x5x5xf32>
    %787 = vector.broadcast %785 : vector<1x5x5xf32> to vector<2x5x5xf32>
    %788 = arith.addf %786, %787 : vector<2x5x5xf32>
    %789 = vector.extract_strided_slice %612 {offsets = [7, 0, 0], sizes = [1, 2, 5], strides = [1, 1, 1]} : vector<8x2x5xf32> to vector<1x2x5xf32>
    %790 = vector.shape_cast %789 : vector<1x2x5xf32> to vector<2x5xf32>
    %791 = vector.shape_cast %790 : vector<2x5xf32> to vector<2x1x5xf32>
    %792 = vector.broadcast %791 : vector<2x1x5xf32> to vector<2x5x5xf32>
    %793 = arith.addf %788, %792 : vector<2x5x5xf32>
    %cst_227 = arith.constant dense<0xFF800000> : vector<2x5xf32>
    %794 = vector.multi_reduction <maximumf>, %793, %cst_227 [1] : vector<2x5x5xf32> to vector<2x5xf32>
    %cst_228 = arith.constant dense<0xFF800000> : vector<2x5xf32>
    %795 = vector.multi_reduction <maximumf>, %793, %cst_228 [1] : vector<2x5x5xf32> to vector<2x5xf32>
    %796 = vector.shape_cast %795 : vector<2x5xf32> to vector<2x1x5xf32>
    %797 = vector.broadcast %796 : vector<2x1x5xf32> to vector<2x5x5xf32>
    %798 = arith.cmpf oeq, %793, %797 : vector<2x5x5xf32>
    %c5_i32_229 = arith.constant 5 : i32
    %799 = vector.broadcast %c5_i32_229 : i32 to vector<2x5x5xi32>
    %800 = arith.select %798, %616, %799 : vector<2x5x5xi1>, vector<2x5x5xi32>
    %cst_230 = arith.constant dense<2147483647> : vector<2x5xi32>
    %801 = vector.multi_reduction <minsi>, %800, %cst_230 [1] : vector<2x5x5xi32> to vector<2x5xi32>
    %802 = vector.extract_strided_slice %613 {offsets = [0, 7], sizes = [2, 1], strides = [1, 1]} : vector<2x8xf32> to vector<2x1xf32>
    %cst_231 = arith.constant 5.000000e-01 : f32
    %803 = vector.broadcast %cst_231 : f32 to vector<2x1xf32>
    %804 = arith.cmpf ogt, %802, %803 : vector<2x1xf32>
    %805 = vector.shape_cast %804 : vector<2x1xi1> to vector<2x1xi1>
    %806 = vector.broadcast %805 : vector<2x1xi1> to vector<2x5xi1>
    %807 = arith.select %806, %801, %615 : vector<2x5xi1>, vector<2x5xi32>
    %808 = vector.shape_cast %804 : vector<2x1xi1> to vector<2x1xi1>
    %809 = vector.broadcast %808 : vector<2x1xi1> to vector<2x5xi1>
    %810 = arith.select %809, %794, %783 : vector<2x5xi1>, vector<2x5xf32>
    %c0_232 = arith.constant 0 : index
    %c0_233 = arith.constant 0 : index
    %811 = vector.load %arg22[%c0_232, %c0_233] : memref<1x5xf32, #tpu.memory_space<vmem>>, vector<1x5xf32>
    %812 = vector.broadcast %811 : vector<1x5xf32> to vector<2x5xf32>
    %813 = arith.addf %810, %812 : vector<2x5xf32>
    %cst_234 = arith.constant dense<0xFF800000> : vector<2xf32>
    %814 = vector.multi_reduction <maximumf>, %813, %cst_234 [1] : vector<2x5xf32> to vector<2xf32>
    %815 = vector.shape_cast %814 : vector<2xf32> to vector<2x1xf32>
    %816 = vector.broadcast %815 : vector<2x1xf32> to vector<2x5xf32>
    %817 = arith.cmpf oeq, %813, %816 : vector<2x5xf32>
    %c5_i32_235 = arith.constant 5 : i32
    %818 = vector.broadcast %c5_i32_235 : i32 to vector<2x5xi32>
    %819 = arith.select %817, %615, %818 : vector<2x5xi1>, vector<2x5xi32>
    %cst_236 = arith.constant dense<2147483647> : vector<2xi32>
    %820 = vector.multi_reduction <minsi>, %819, %cst_236 [1] : vector<2x5xi32> to vector<2xi32>
    %821 = vector.shape_cast %820 : vector<2xi32> to vector<2x1xi32>
    %822 = tpu.iota {dimensions = array<i32: 1>} : vector<2x8xi32>
    %c7_i32 = arith.constant 7 : i32
    %823 = vector.broadcast %c7_i32 : i32 to vector<2x8xi32>
    %824 = arith.cmpi eq, %822, %823 : vector<2x8xi32>
    %c0_i32 = arith.constant 0 : i32
    %825 = vector.shape_cast %821 : vector<2x1xi32> to vector<2x1xi32>
    %826 = vector.broadcast %825 : vector<2x1xi32> to vector<2x8xi32>
    %827 = vector.broadcast %c0_i32 : i32 to vector<2x8xi32>
    %828 = arith.select %824, %826, %827 : vector<2x8xi1>, vector<2x8xi32>
    %829 = vector.broadcast %821 : vector<2x1xi32> to vector<2x5xi32>
    %830 = arith.cmpi eq, %615, %829 : vector<2x5xi32>
    %c0_i32_237 = arith.constant 0 : i32
    %831 = vector.broadcast %c0_i32_237 : i32 to vector<2x5xi32>
    %832 = arith.select %830, %807, %831 : vector<2x5xi1>, vector<2x5xi32>
    %cst_238 = arith.constant dense<0> : vector<2xi32>
    %833 = vector.multi_reduction <add>, %832, %cst_238 [1] : vector<2x5xi32> to vector<2xi32>
    %834 = vector.shape_cast %833 : vector<2xi32> to vector<2x1xi32>
    %c6_i32 = arith.constant 6 : i32
    %835 = vector.broadcast %c6_i32 : i32 to vector<2x8xi32>
    %836 = arith.cmpi eq, %822, %835 : vector<2x8xi32>
    %837 = vector.shape_cast %834 : vector<2x1xi32> to vector<2x1xi32>
    %838 = vector.broadcast %837 : vector<2x1xi32> to vector<2x8xi32>
    %839 = arith.select %836, %838, %828 : vector<2x8xi1>, vector<2x8xi32>
    %840 = vector.broadcast %834 : vector<2x1xi32> to vector<2x5xi32>
    %841 = arith.cmpi eq, %615, %840 : vector<2x5xi32>
    %c0_i32_239 = arith.constant 0 : i32
    %842 = vector.broadcast %c0_i32_239 : i32 to vector<2x5xi32>
    %843 = arith.select %841, %780, %842 : vector<2x5xi1>, vector<2x5xi32>
    %cst_240 = arith.constant dense<0> : vector<2xi32>
    %844 = vector.multi_reduction <add>, %843, %cst_240 [1] : vector<2x5xi32> to vector<2xi32>
    %845 = vector.shape_cast %844 : vector<2xi32> to vector<2x1xi32>
    %c5_i32_241 = arith.constant 5 : i32
    %846 = vector.broadcast %c5_i32_241 : i32 to vector<2x8xi32>
    %847 = arith.cmpi eq, %822, %846 : vector<2x8xi32>
    %848 = vector.shape_cast %845 : vector<2x1xi32> to vector<2x1xi32>
    %849 = vector.broadcast %848 : vector<2x1xi32> to vector<2x8xi32>
    %850 = arith.select %847, %849, %839 : vector<2x8xi1>, vector<2x8xi32>
    %851 = vector.broadcast %845 : vector<2x1xi32> to vector<2x5xi32>
    %852 = arith.cmpi eq, %615, %851 : vector<2x5xi32>
    %c0_i32_242 = arith.constant 0 : i32
    %853 = vector.broadcast %c0_i32_242 : i32 to vector<2x5xi32>
    %854 = arith.select %852, %753, %853 : vector<2x5xi1>, vector<2x5xi32>
    %cst_243 = arith.constant dense<0> : vector<2xi32>
    %855 = vector.multi_reduction <add>, %854, %cst_243 [1] : vector<2x5xi32> to vector<2xi32>
    %856 = vector.shape_cast %855 : vector<2xi32> to vector<2x1xi32>
    %c4_i32 = arith.constant 4 : i32
    %857 = vector.broadcast %c4_i32 : i32 to vector<2x8xi32>
    %858 = arith.cmpi eq, %822, %857 : vector<2x8xi32>
    %859 = vector.shape_cast %856 : vector<2x1xi32> to vector<2x1xi32>
    %860 = vector.broadcast %859 : vector<2x1xi32> to vector<2x8xi32>
    %861 = arith.select %858, %860, %850 : vector<2x8xi1>, vector<2x8xi32>
    %862 = vector.broadcast %856 : vector<2x1xi32> to vector<2x5xi32>
    %863 = arith.cmpi eq, %615, %862 : vector<2x5xi32>
    %c0_i32_244 = arith.constant 0 : i32
    %864 = vector.broadcast %c0_i32_244 : i32 to vector<2x5xi32>
    %865 = arith.select %863, %726, %864 : vector<2x5xi1>, vector<2x5xi32>
    %cst_245 = arith.constant dense<0> : vector<2xi32>
    %866 = vector.multi_reduction <add>, %865, %cst_245 [1] : vector<2x5xi32> to vector<2xi32>
    %867 = vector.shape_cast %866 : vector<2xi32> to vector<2x1xi32>
    %c3_i32 = arith.constant 3 : i32
    %868 = vector.broadcast %c3_i32 : i32 to vector<2x8xi32>
    %869 = arith.cmpi eq, %822, %868 : vector<2x8xi32>
    %870 = vector.shape_cast %867 : vector<2x1xi32> to vector<2x1xi32>
    %871 = vector.broadcast %870 : vector<2x1xi32> to vector<2x8xi32>
    %872 = arith.select %869, %871, %861 : vector<2x8xi1>, vector<2x8xi32>
    %873 = vector.broadcast %867 : vector<2x1xi32> to vector<2x5xi32>
    %874 = arith.cmpi eq, %615, %873 : vector<2x5xi32>
    %c0_i32_246 = arith.constant 0 : i32
    %875 = vector.broadcast %c0_i32_246 : i32 to vector<2x5xi32>
    %876 = arith.select %874, %699, %875 : vector<2x5xi1>, vector<2x5xi32>
    %cst_247 = arith.constant dense<0> : vector<2xi32>
    %877 = vector.multi_reduction <add>, %876, %cst_247 [1] : vector<2x5xi32> to vector<2xi32>
    %878 = vector.shape_cast %877 : vector<2xi32> to vector<2x1xi32>
    %c2_i32 = arith.constant 2 : i32
    %879 = vector.broadcast %c2_i32 : i32 to vector<2x8xi32>
    %880 = arith.cmpi eq, %822, %879 : vector<2x8xi32>
    %881 = vector.shape_cast %878 : vector<2x1xi32> to vector<2x1xi32>
    %882 = vector.broadcast %881 : vector<2x1xi32> to vector<2x8xi32>
    %883 = arith.select %880, %882, %872 : vector<2x8xi1>, vector<2x8xi32>
    %884 = vector.broadcast %878 : vector<2x1xi32> to vector<2x5xi32>
    %885 = arith.cmpi eq, %615, %884 : vector<2x5xi32>
    %c0_i32_248 = arith.constant 0 : i32
    %886 = vector.broadcast %c0_i32_248 : i32 to vector<2x5xi32>
    %887 = arith.select %885, %672, %886 : vector<2x5xi1>, vector<2x5xi32>
    %cst_249 = arith.constant dense<0> : vector<2xi32>
    %888 = vector.multi_reduction <add>, %887, %cst_249 [1] : vector<2x5xi32> to vector<2xi32>
    %889 = vector.shape_cast %888 : vector<2xi32> to vector<2x1xi32>
    %c1_i32 = arith.constant 1 : i32
    %890 = vector.broadcast %c1_i32 : i32 to vector<2x8xi32>
    %891 = arith.cmpi eq, %822, %890 : vector<2x8xi32>
    %892 = vector.shape_cast %889 : vector<2x1xi32> to vector<2x1xi32>
    %893 = vector.broadcast %892 : vector<2x1xi32> to vector<2x8xi32>
    %894 = arith.select %891, %893, %883 : vector<2x8xi1>, vector<2x8xi32>
    %895 = vector.broadcast %889 : vector<2x1xi32> to vector<2x5xi32>
    %896 = arith.cmpi eq, %615, %895 : vector<2x5xi32>
    %c0_i32_250 = arith.constant 0 : i32
    %897 = vector.broadcast %c0_i32_250 : i32 to vector<2x5xi32>
    %898 = arith.select %896, %645, %897 : vector<2x5xi1>, vector<2x5xi32>
    %cst_251 = arith.constant dense<0> : vector<2xi32>
    %899 = vector.multi_reduction <add>, %898, %cst_251 [1] : vector<2x5xi32> to vector<2xi32>
    %900 = vector.shape_cast %899 : vector<2xi32> to vector<2x1xi32>
    %c0_i32_252 = arith.constant 0 : i32
    %901 = vector.broadcast %c0_i32_252 : i32 to vector<2x8xi32>
    %902 = arith.cmpi eq, %822, %901 : vector<2x8xi32>
    %903 = vector.shape_cast %900 : vector<2x1xi32> to vector<2x1xi32>
    %904 = vector.broadcast %903 : vector<2x1xi32> to vector<2x8xi32>
    %905 = arith.select %902, %904, %894 : vector<2x8xi1>, vector<2x8xi32>
    %c0_253 = arith.constant 0 : index
    %c0_254 = arith.constant 0 : index
    %906 = vector.load %arg24[%c0_253, %c0_254] : memref<2x8xi32, #tpu.memory_space<vmem>>, vector<2x8xi32>
    tpu.vector_store %arg24[%c0_253, %c0_254], %905 {strides = array<i32>} : memref<2x8xi32, #tpu.memory_space<vmem>>, vector<2x8xi32>,
    return
  }
}

</mosaic_0001>

<llo_original>
// kernel: lstm_crf_forward.1
$region0: #{lstm_crf_forward.1}
  #allocation0 [shape = 'u32[]', space=smem, size = 0x4, offset = 0x4, fixed_abs, tag = 'smem constant byte address 0x4 - core index']
  #allocation1 [shape = 'u32[144,128]{1,0:T(1,128)}', space=vmem, size = 0x12000, scoped, tag = 'internal scratch']
  #allocation2 [shape = 'f32[8,2,32]{2,1,0:T(2,128)}', space=vmem, size = 0x2000, scoped, tag = 'scratch operand']
  #allocation3 [shape = 'f32[8,2,32]{2,1,0:T(2,128)}', space=vmem, size = 0x2000, scoped, tag = 'scratch operand']
  %s0 = inlined_call_operand.vmem [shape: f32[8,2,16], index: 0, kind: input, shape index: {}]
  %s1 = inlined_call_operand.vmem [shape: f32[2,16,8], index: 1, kind: input, shape index: {}]
  %s2 = inlined_call_operand.vmem [shape: f32[24,8], index: 2, kind: input, shape index: {}]
  %s3 = inlined_call_operand.vmem [shape: f32[1,8], index: 3, kind: input, shape index: {}]
  %s4 = inlined_call_operand.vmem [shape: f32[32,8], index: 4, kind: input, shape index: {}]
  %s5 = inlined_call_operand.vmem [shape: f32[1,8], index: 5, kind: input, shape index: {}]
  %s6 = inlined_call_operand.vmem [shape: f32[40,8], index: 6, kind: input, shape index: {}]
  %s7 = inlined_call_operand.vmem [shape: f32[1,8], index: 7, kind: input, shape index: {}]
  %s8 = inlined_call_operand.vmem [shape: f32[16,256], index: 8, kind: input, shape index: {}]
  %s9 = inlined_call_operand.vmem [shape: f32[8,256], index: 9, kind: input, shape index: {}]
  %s10 = inlined_call_operand.vmem [shape: f32[1,256], index: 10, kind: input, shape index: {}]
  %s11 = inlined_call_operand.vmem [shape: f32[32,128], index: 11, kind: input, shape index: {}]
  %s12 = inlined_call_operand.vmem [shape: f32[32,128], index: 12, kind: input, shape index: {}]
  %s13 = inlined_call_operand.vmem [shape: f32[2,32], index: 13, kind: input, shape index: {}]
  %s14 = inlined_call_operand.vmem [shape: f32[2,32], index: 14, kind: input, shape index: {}]
  %s15 = inlined_call_operand.vmem [shape: f32[2,32], index: 15, kind: input, shape index: {}]
  %s16 = inlined_call_operand.vmem [shape: f32[2,32], index: 16, kind: input, shape index: {}]
  %s17 = inlined_call_operand.vmem [shape: f32[32,5], index: 17, kind: input, shape index: {}]
  %s18 = inlined_call_operand.vmem [shape: f32[32,5], index: 18, kind: input, shape index: {}]
  %s19 = inlined_call_operand.vmem [shape: f32[1,5], index: 19, kind: input, shape index: {}]
  %s20 = inlined_call_operand.vmem [shape: f32[5,5], index: 20, kind: input, shape index: {}]
  %s21 = inlined_call_operand.vmem [shape: f32[1,5], index: 21, kind: input, shape index: {}]
  %s22 = inlined_call_operand.vmem [shape: f32[1,5], index: 22, kind: input, shape index: {}]
  %s23 = inlined_call_operand.vmem [shape: f32[2,8], index: 23, kind: input, shape index: {}]
  %s24 = inlined_call_operand.hbm [shape: s32[2,8], index: 24, kind: output, shape index: {}]
  %s25 = sld [smem:[#allocation0]]
  $region106: #{lstm_crf_forward.1} parent=0
    _
  %s27 = ssub.s32 1, %s25
  %s28 = scalar_select 0, %s27, %s25
  $region1: #{lstm_crf_forward.1} parent=0
    #allocation4 [shape = 'u8[1024]{0}', space=vmem, size = 0x400, scoped, tag = 'output window, operand 0, single buffered']
    #allocation5 [shape = 's32[1]{0}', space=sflag, size = 0x4, scoped, tag = 'scoped memory for lstm_crf_forward.1']
    %29 = vsyncpa [#allocation5], 0
    // Predicated region
    $region2: #{lstm_crf_forward.1} parent=1 // pred_check
      _
    $region3: #{lstm_crf_forward.1} parent=1 // pred_check_branch
      %31 = sbr.rel (0) target = $region5
    $region4: #{lstm_crf_forward.1} parent=1 // pred_region
      _
    $region5: #{lstm_crf_forward.1} parent=1 // pred_fallthru
      _
    // Predicated region
    $region6: #{lstm_crf_forward.1} parent=1 // pred_check
      _
    $region7: #{lstm_crf_forward.1} parent=1 // pred_check_branch
      %33 = sbr.rel (0) target = $region9
    $region8: #{lstm_crf_forward.1} parent=1 // pred_region
      _
    $region9: #{lstm_crf_forward.1} parent=1 // pred_fallthru
      _
    // Predicated region
    $region10: #{lstm_crf_forward.1} parent=1 // pred_check
      _
    $region11: #{lstm_crf_forward.1} parent=1 // pred_check_branch
      %35 = sbr.rel (0) target = $region13
    $region12: #{lstm_crf_forward.1} parent=1 // pred_region
      _
    $region13: #{lstm_crf_forward.1} parent=1 // pred_fallthru
      _
    // Predicated region
    $region14: #{lstm_crf_forward.1} parent=1 // pred_check
      _
    $region15: #{lstm_crf_forward.1} parent=1 // pred_check_branch
      %37 = sbr.rel (0) target = $region17
    $region16: #{lstm_crf_forward.1} parent=1 // pred_region
      _
    $region17: #{lstm_crf_forward.1} parent=1 // pred_fallthru
      _
    // Predicated region
    $region18: #{lstm_crf_forward.1} parent=1 // pred_check
      _
    $region19: #{lstm_crf_forward.1} parent=1 // pred_check_branch
      %39 = sbr.rel (0) target = $region21
    $region20: #{lstm_crf_forward.1} parent=1 // pred_region
      _
    $region21: #{lstm_crf_forward.1} parent=1 // pred_fallthru
      _
    // Predicated region
    $region22: #{lstm_crf_forward.1} parent=1 // pred_check
      _
    $region23: #{lstm_crf_forward.1} parent=1 // pred_check_branch
      %41 = sbr.rel (0) target = $region25
    $region24: #{lstm_crf_forward.1} parent=1 // pred_region
      _
    $region25: #{lstm_crf_forward.1} parent=1 // pred_fallthru
      _
    // Predicated region
    $region26: #{lstm_crf_forward.1} parent=1 // pred_check
      _
    $region27: #{lstm_crf_forward.1} parent=1 // pred_check_branch
      %43 = sbr.rel (0) target = $region29
    $region28: #{lstm_crf_forward.1} parent=1 // pred_region
      _
    $region29: #{lstm_crf_forward.1} parent=1 // pred_fallthru
      _
    // Predicated region
    $region30: #{lstm_crf_forward.1} parent=1 // pred_check
      _
    $region31: #{lstm_crf_forward.1} parent=1 // pred_check_branch
      %45 = sbr.rel (0) target = $region33
    $region32: #{lstm_crf_forward.1} parent=1 // pred_region
      _
    $region33: #{lstm_crf_forward.1} parent=1 // pred_fallthru
      _
    // Predicated region
    $region34: #{lstm_crf_forward.1} parent=1 // pred_check
      _
    $region35: #{lstm_crf_forward.1} parent=1 // pred_check_branch
      %47 = sbr.rel (0) target = $region37
    $region36: #{lstm_crf_forward.1} parent=1 // pred_region
      _
    $region37: #{lstm_crf_forward.1} parent=1 // pred_fallthru
      _
    // Predicated region
    $region38: #{lstm_crf_forward.1} parent=1 // pred_check
      _
    $region39: #{lstm_crf_forward.1} parent=1 // pred_check_branch
      %49 = sbr.rel (0) target = $region41
    $region40: #{lstm_crf_forward.1} parent=1 // pred_region
      _
    $region41: #{lstm_crf_forward.1} parent=1 // pred_fallthru
      _
    // Predicated region
    $region42: #{lstm_crf_forward.1} parent=1 // pred_check
      _
    $region43: #{lstm_crf_forward.1} parent=1 // pred_check_branch
      %51 = sbr.rel (0) target = $region45
    $region44: #{lstm_crf_forward.1} parent=1 // pred_region
      _
    $region45: #{lstm_crf_forward.1} parent=1 // pred_fallthru
      _
    // Predicated region
    $region46: #{lstm_crf_forward.1} parent=1 // pred_check
      _
    $region47: #{lstm_crf_forward.1} parent=1 // pred_check_branch
      %53 = sbr.rel (0) target = $region49
    $region48: #{lstm_crf_forward.1} parent=1 // pred_region
      _
    $region49: #{lstm_crf_forward.1} parent=1 // pred_fallthru
      _
    // Predicated region
    $region50: #{lstm_crf_forward.1} parent=1 // pred_check
      _
    $region51: #{lstm_crf_forward.1} parent=1 // pred_check_branch
      %55 = sbr.rel (0) target = $region53
    $region52: #{lstm_crf_forward.1} parent=1 // pred_region
      _
    $region53: #{lstm_crf_forward.1} parent=1 // pred_fallthru
      _
    // Predicated region
    $region54: #{lstm_crf_forward.1} parent=1 // pred_check
      _
    $region55: #{lstm_crf_forward.1} parent=1 // pred_check_branch
      %57 = sbr.rel (0) target = $region57
    $region56: #{lstm_crf_forward.1} parent=1 // pred_region
      _
    $region57: #{lstm_crf_forward.1} parent=1 // pred_fallthru
      _
    // Predicated region
    $region58: #{lstm_crf_forward.1} parent=1 // pred_check
      _
    $region59: #{lstm_crf_forward.1} parent=1 // pred_check_branch
      %59 = sbr.rel (0) target = $region61
    $region60: #{lstm_crf_forward.1} parent=1 // pred_region
      _
    $region61: #{lstm_crf_forward.1} parent=1 // pred_fallthru
      _
    // Predicated region
    $region62: #{lstm_crf_forward.1} parent=1 // pred_check
      _
    $region63: #{lstm_crf_forward.1} parent=1 // pred_check_branch
      %61 = sbr.rel (0) target = $region65
    $region64: #{lstm_crf_forward.1} parent=1 // pred_region
      _
    $region65: #{lstm_crf_forward.1} parent=1 // pred_fallthru
      _
    // Predicated region
    $region66: #{lstm_crf_forward.1} parent=1 // pred_check
      _
    $region67: #{lstm_crf_forward.1} parent=1 // pred_check_branch
      %63 = sbr.rel (0) target = $region69
    $region68: #{lstm_crf_forward.1} parent=1 // pred_region
      _
    $region69: #{lstm_crf_forward.1} parent=1 // pred_fallthru
      _
    // Predicated region
    $region70: #{lstm_crf_forward.1} parent=1 // pred_check
      _
    $region71: #{lstm_crf_forward.1} parent=1 // pred_check_branch
      %65 = sbr.rel (0) target = $region73
    $region72: #{lstm_crf_forward.1} parent=1 // pred_region
      _
    $region73: #{lstm_crf_forward.1} parent=1 // pred_fallthru
      _
    // Predicated region
    $region74: #{lstm_crf_forward.1} parent=1 // pred_check
      _
    $region75: #{lstm_crf_forward.1} parent=1 // pred_check_branch
      %67 = sbr.rel (0) target = $region77
    $region76: #{lstm_crf_forward.1} parent=1 // pred_region
      _
    $region77: #{lstm_crf_forward.1} parent=1 // pred_fallthru
      _
    // Predicated region
    $region78: #{lstm_crf_forward.1} parent=1 // pred_check
      _
    $region79: #{lstm_crf_forward.1} parent=1 // pred_check_branch
      %69 = sbr.rel (0) target = $region81
    $region80: #{lstm_crf_forward.1} parent=1 // pred_region
      _
    $region81: #{lstm_crf_forward.1} parent=1 // pred_fallthru
      _
    // Predicated region
    $region82: #{lstm_crf_forward.1} parent=1 // pred_check
      _
    $region83: #{lstm_crf_forward.1} parent=1 // pred_check_branch
      %71 = sbr.rel (0) target = $region85
    $region84: #{lstm_crf_forward.1} parent=1 // pred_region
      _
    $region85: #{lstm_crf_forward.1} parent=1 // pred_fallthru
      _
    // Predicated region
    $region86: #{lstm_crf_forward.1} parent=1 // pred_check
      _
    $region87: #{lstm_crf_forward.1} parent=1 // pred_check_branch
      %73 = sbr.rel (0) target = $region89
    $region88: #{lstm_crf_forward.1} parent=1 // pred_region
      _
    $region89: #{lstm_crf_forward.1} parent=1 // pred_fallthru
      _
    // Predicated region
    $region90: #{lstm_crf_forward.1} parent=1 // pred_check
      _
    $region91: #{lstm_crf_forward.1} parent=1 // pred_check_branch
      %75 = sbr.rel (0) target = $region93
    $region92: #{lstm_crf_forward.1} parent=1 // pred_region
      _
    $region93: #{lstm_crf_forward.1} parent=1 // pred_fallthru
      _
    // Predicated region
    $region94: #{lstm_crf_forward.1} parent=1 // pred_check
      _
    $region95: #{lstm_crf_forward.1} parent=1 // pred_check_branch
      %77 = sbr.rel (0) target = $region97
    $region96: #{lstm_crf_forward.1} parent=1 // pred_region
      _
    $region97: #{lstm_crf_forward.1} parent=1 // pred_fallthru
      _
    %v78 = vld [vmem:[%s1] sm:$0xff]
    %v79 = vld [vmem:[%s1 + $0x8] sm:$0xff]
    %v80 = vld [vmem:[%s1 + $0x10] sm:$0xff]
    %v81 = vld [vmem:[%s1 + $0x18] sm:$0xff]
    %vm86 = vcmask 1046528
    %v87 = vrot.slane %v78, 1
    %v88 = vrot.slane %v79, 1
    %v89 = vsel %vm86, %v87, %v88
    %v90 = vrot.slane %v80, 1
    %v91 = vrot.slane %v81, 1
    %v92 = vsel %vm86, %v90, %v91
    %93 = vrot.lane.b32.xlu0 %v89, 8
    %v94 = vpop.permute.xlu0 %93
    %95 = vrot.lane.b32.xlu0 %v88, 8
    %v96 = vpop.permute.xlu0 %95
    %97 = vrot.lane.b32.xlu0 %v92, 8
    %v98 = vpop.permute.xlu0 %97
    %99 = vrot.lane.b32.xlu0 %v91, 8
    %v100 = vpop.permute.xlu0 %99
    %vm105 = vcmask 1045504
    %v106 = vrot.slane %v78, 2
    %v107 = vrot.slane %v79, 2
    %v108 = vsel %vm105, %v106, %v107
    %v109 = vrot.slane %v80, 2
    %v110 = vrot.slane %v81, 2
    %v111 = vsel %vm105, %v109, %v110
    %112 = vrot.lane.b32.xlu0 %v108, 16
    %v113 = vpop.permute.xlu0 %112
    %114 = vrot.lane.b32.xlu0 %v107, 16
    %v115 = vpop.permute.xlu0 %114
    %116 = vrot.lane.b32.xlu0 %v111, 16
    %v117 = vpop.permute.xlu0 %116
    %118 = vrot.lane.b32.xlu0 %v110, 16
    %v119 = vpop.permute.xlu0 %118
    %vm124 = vcmask 64512
    %v125 = vsel %vm124, %v78, %v94
    %v126 = vsel %vm124, %v79, %v96
    %v127 = vsel %vm124, %v80, %v98
    %v128 = vsel %vm124, %v81, %v100
    %vm129 = vcmask 130048
    %v130 = vsel %vm129, %v125, %v113
    %v131 = vsel %vm129, %v126, %v115
    %v132 = vsel %vm129, %v127, %v117
    %v133 = vsel %vm129, %v128, %v119
    %v138 = vcombine.high %v130, %v130
    %v140 = vunpack.c.l.s4 1983009808
    %v141 = vunpack.c.0.s8 %v140
    %v142 = vlaneseq
    %v143 = vshrl.u32 %v142, 7
    %v144 = vsub.s32 %v141, %v143
    %v145 = vrot.slane %v130, %v144
    %v147 = vunpack.c.l.s4 1983009808
    %v148 = vunpack.c.0.s8 %v147
    %v149 = vlaneseq
    %v150 = vshrl.u32 %v149, 7
    %v151 = vsub.s32 %v148, %v150
    %v152 = vrot.slane %v138, %v151
    %v153 = vcombine.high %v145, %v145
    %v154 = vcombine.high %v152, %v152
    %v155 = vcombine.high %v131, %v131
    %v157 = vunpack.c.l.s4 1983009808
    %v158 = vunpack.c.0.s8 %v157
    %v159 = vlaneseq
    %v160 = vshrl.u32 %v159, 7
    %v161 = vsub.s32 %v158, %v160
    %v162 = vrot.slane %v131, %v161
    %v164 = vunpack.c.l.s4 1983009808
    %v165 = vunpack.c.0.s8 %v164
    %v166 = vlaneseq
    %v167 = vshrl.u32 %v166, 7
    %v168 = vsub.s32 %v165, %v167
    %v169 = vrot.slane %v155, %v168
    %v170 = vcombine.high %v162, %v162
    %v171 = vcombine.high %v132, %v132
    %v173 = vunpack.c.l.s4 1983009808
    %v174 = vunpack.c.0.s8 %v173
    %v175 = vlaneseq
    %v176 = vshrl.u32 %v175, 7
    %v177 = vsub.s32 %v174, %v176
    %v178 = vrot.slane %v132, %v177
    %v180 = vunpack.c.l.s4 1983009808
    %v181 = vunpack.c.0.s8 %v180
    %v182 = vlaneseq
    %v183 = vshrl.u32 %v182, 7
    %v184 = vsub.s32 %v181, %v183
    %v185 = vrot.slane %v171, %v184
    %v186 = vcombine.high %v178, %v178
    %v187 = vcombine.high %v185, %v185
    %v188 = vcombine.high %v133, %v133
    %v190 = vunpack.c.l.s4 1983009808
    %v191 = vunpack.c.0.s8 %v190
    %v192 = vlaneseq
    %v193 = vshrl.u32 %v192, 7
    %v194 = vsub.s32 %v191, %v193
    %v195 = vrot.slane %v133, %v194
    %v197 = vunpack.c.l.s4 1983009808
    %v198 = vunpack.c.0.s8 %v197
    %v199 = vlaneseq
    %v200 = vshrl.u32 %v199, 7
    %v201 = vsub.s32 %v198, %v200
    %v202 = vrot.slane %v188, %v201
    %v203 = vcombine.high %v195, %v195
    %v204 = vld [vmem:[%s2] sm:$0xff]
    %v205 = vld [vmem:[%s2 + $0x8] sm:$0xff]
    %v206 = vld [vmem:[%s2 + $0x10] sm:$0xff]
    %v207 = vld [vmem:[%s3] sm:$0x1]
    %v209 = vlaneseq
    %v210 = vshrl.u32 %v209, 7
    %v211 = vsub.s32 0, %v210
    %v212 = vrot.slane %v207, %v211
    %v214 = vcombine.low %v145, %v153
    %v215 = vcombine.low %v152, %v154
    %v217 = vunpack.c.l.s4 1983009808
    %v218 = vunpack.c.0.s8 %v217
    %v219 = vlaneseq
    %v220 = vshrl.u32 %v219, 7
    %v221 = vsub.s32 %v218, %v220
    %v222 = vrot.slane %v214, %v221
    %v224 = vunpack.c.l.s4 1983009808
    %v225 = vunpack.c.0.s8 %v224
    %v226 = vlaneseq
    %v227 = vshrl.u32 %v226, 7
    %v228 = vsub.s32 %v225, %v227
    %v229 = vrot.slane %v215, %v228
    %v230 = vcombine.low %v222, %v229
    %v231 = vcombine.low %v162, %v170
    %v232 = vcombine.low %v169, %v178
    %v234 = vunpack.c.l.s4 1983009808
    %v235 = vunpack.c.0.s8 %v234
    %v236 = vlaneseq
    %v237 = vshrl.u32 %v236, 7
    %v238 = vsub.s32 %v235, %v237
    %v239 = vrot.slane %v231, %v238
    %v241 = vunpack.c.l.s4 1983009808
    %v242 = vunpack.c.0.s8 %v241
    %v243 = vlaneseq
    %v244 = vshrl.u32 %v243, 7
    %v245 = vsub.s32 %v242, %v244
    %v246 = vrot.slane %v232, %v245
    %v247 = vcombine.low %v239, %v246
    %v248 = vcombine.low %v186, %v185
    %v249 = vcombine.low %v187, %v195
    %v251 = vunpack.c.l.s4 1983009808
    %v252 = vunpack.c.0.s8 %v251
    %v253 = vlaneseq
    %v254 = vshrl.u32 %v253, 7
    %v255 = vsub.s32 %v252, %v254
    %v256 = vrot.slane %v248, %v255
    %v258 = vunpack.c.l.s4 1983009808
    %v259 = vunpack.c.0.s8 %v258
    %v260 = vlaneseq
    %v261 = vshrl.u32 %v260, 7
    %v262 = vsub.s32 %v259, %v261
    %v263 = vrot.slane %v249, %v262
    %v264 = vcombine.low %v256, %v263
    %v265 = vcombine.low %v203, %v202
    %v267 = vunpack.c.l.s4 1983009808
    %v268 = vunpack.c.0.s8 %v267
    %v269 = vlaneseq
    %v270 = vshrl.u32 %v269, 7
    %v271 = vsub.s32 %v268, %v270
    %v272 = vrot.slane %v265, %v271
    %vm273 = vcmask 195584
    %v274 = vsel %vm273, %v230, 0
    %v276 = vsel %vm273, %v247, 0
    %v278 = vsel %vm273, %v264, 0
    %v280 = vsel %vm273, %v272, 0
    %282 = vmatprep.subr.mxu0 0.0
    %283 = vmatpush1.msra.mxu0 %v204
    %284 = vmatprep.subr.mxu0 0.0
    %285 = vmatpush1.msra.mxu0 %v205
    %286 = vmatprep.subr.mxu0 0.0
    %287 = vmatpush1.msra.mxu0 %v206
    %288 = vmatprep.subr.mxu0 0.0
    %289 = vmatpush1.msra.mxu0 0.0
    %290 = vmatprep.subr.mxu0 0.0
    %291 = vmatpush1.msra.mxu0 0.0
    %292 = vmatprep.subr.mxu0 0.0
    %293 = vmatpush1.msra.mxu0 0.0
    %294 = vmatprep.subr.mxu0 0.0
    %295 = vmatpush1.msra.mxu0 0.0
    %296 = vmatprep.subr.mxu0 0.0
    %297 = vmatpush1.msra.mxu0 0.0
    %298 = vmatprep.subr.mxu0 0.0
    %299 = vmatpush1.msra.mxu0 0.0
    %300 = vmatprep.subr.mxu0 0.0
    %301 = vmatpush1.msra.mxu0 0.0
    %302 = vmatprep.subr.mxu0 0.0
    %303 = vmatpush1.msra.mxu0 0.0
    %304 = vmatprep.subr.mxu0 0.0
    %305 = vmatpush1.msra.mxu0 0.0
    %306 = vmatprep.subr.mxu0 0.0
    %307 = vmatpush1.msra.mxu0 0.0
    %308 = vmatprep.subr.mxu0 0.0
    %309 = vmatpush1.msra.mxu0 0.0
    %310 = vmatprep.subr.mxu0 0.0
    %311 = vmatpush1.msra.mxu0 0.0
    %312 = vmatprep.subr.mxu0 0.0
    %313 = vmatpush1.msra.mxu0 0.0
    %314 = vmatprep.subr.mxu0 0.0
    %315 = vmatpush1.msra.mxu0 0.0
    %316 = vmatprep.subr.mxu0 0.0
    %317 = vmatpush1.msra.mxu0 0.0
    %318 = vmatprep.subr.mxu0 0.0
    %319 = vmatpush1.msra.mxu0 0.0
    %320 = vmatprep.subr.mxu0 0.0
    %321 = vmatpush1.msra.mxu0 0.0
    %322 = vmatprep.subr.mxu0 0.0
    %323 = vmatpush1.msra.mxu0 0.0
    %324 = vmatprep.subr.mxu0 0.0
    %325 = vmatpush1.msra.mxu0 0.0
    %326 = vmatprep.subr.mxu0 0.0
    %327 = vmatpush1.msra.mxu0 0.0
    %328 = vmatprep.subr.mxu0 0.0
    %329 = vmatpush1.msra.mxu0 0.0
    %330 = vmatprep.subr.mxu0 0.0
    %331 = vmatpush1.msra.mxu0 0.0
    %332 = vmatprep.subr.mxu0 0.0
    %333 = vmatpush1.msra.mxu0 0.0
    %334 = vmatprep.subr.mxu0 0.0
    %335 = vmatpush1.msra.mxu0 0.0
    %336 = vmatprep.subr.mxu0 0.0
    %337 = vmatpush1.msra.mxu0 0.0
    %338 = vmatprep.subr.mxu0 0.0
    %339 = vmatpush1.msra.mxu0 0.0
    %340 = vmatprep.subr.mxu0 0.0
    %341 = vmatpush1.msra.mxu0 0.0
    %342 = vmatprep.subr.mxu0 0.0
    %343 = vmatpush1.msra.mxu0 0.0
    %344 = vmatprep.subr.mxu0 0.0
    %345 = vmatpush1.msra.mxu0 0.0
    %346 = vmatprep.mubr.f32.mxu0 0.0
    %347 = vmatmul.mubr.f32.gmra.mrb[0].mxu0 %v274
    %v348 = vpop.f32.mrb[0].mxu0
    %v349 = vadd.f32 %v212, %v348
    %v350 = vpop.f32.mrb[0].mxu0
    %351 = vmatprep.mubr.f32.mxu0 0.0
    %352 = vmatmul.mubr.f32.gmra.mrb[0].mxu0 %v276
    %v353 = vpop.f32.mrb[0].mxu0
    %v354 = vadd.f32 %v212, %v353
    %v355 = vpop.f32.mrb[0].mxu0
    %356 = vmatprep.mubr.f32.mxu0 0.0
    %357 = vmatmul.mubr.f32.gmra.mrb[0].mxu0 %v278
    %v358 = vpop.f32.mrb[0].mxu0
    %v359 = vadd.f32 %v212, %v358
    %v360 = vpop.f32.mrb[0].mxu0
    %361 = vmatprep.mubr.f32.mxu0 0.0
    %362 = vmatmul.mubr.f32.gmra.mrb[0].mxu0 %v280
    %v363 = vpop.f32.mrb[0].mxu0
    %v364 = vadd.f32 %v212, %v363
    %v365 = vpop.f32.mrb[0].mxu0
    %366 = vdwg.mxu0
    %v367 = vmax.f32 %v349, 0.0
    %v368 = vmax.f32 %v354, 0.0
    %v369 = vmax.f32 %v359, 0.0
    %v370 = vmax.f32 %v364, 0.0
    %v375 = vcombine.high %v367, %v367
    %v377 = vunpack.c.l.s4 1983009808
    %v378 = vunpack.c.0.s8 %v377
    %v379 = vlaneseq
    %v380 = vshrl.u32 %v379, 7
    %v381 = vsub.s32 %v378, %v380
    %v382 = vrot.slane %v367, %v381
    %v384 = vunpack.c.l.s4 1983009808
    %v385 = vunpack.c.0.s8 %v384
    %v386 = vlaneseq
    %v387 = vshrl.u32 %v386, 7
    %v388 = vsub.s32 %v385, %v387
    %v389 = vrot.slane %v375, %v388
    %v390 = vcombine.high %v382, %v382
    %v391 = vcombine.high %v389, %v389
    %v392 = vcombine.high %v368, %v368
    %v394 = vunpack.c.l.s4 1983009808
    %v395 = vunpack.c.0.s8 %v394
    %v396 = vlaneseq
    %v397 = vshrl.u32 %v396, 7
    %v398 = vsub.s32 %v395, %v397
    %v399 = vrot.slane %v368, %v398
    %v401 = vunpack.c.l.s4 1983009808
    %v402 = vunpack.c.0.s8 %v401
    %v403 = vlaneseq
    %v404 = vshrl.u32 %v403, 7
    %v405 = vsub.s32 %v402, %v404
    %v406 = vrot.slane %v392, %v405
    %v407 = vcombine.high %v399, %v399
    %v408 = vcombine.high %v406, %v406
    %v409 = vcombine.high %v369, %v369
    %v411 = vunpack.c.l.s4 1983009808
    %v412 = vunpack.c.0.s8 %v411
    %v413 = vlaneseq
    %v414 = vshrl.u32 %v413, 7
    %v415 = vsub.s32 %v412, %v414
    %v416 = vrot.slane %v369, %v415
    %v418 = vunpack.c.l.s4 1983009808
    %v419 = vunpack.c.0.s8 %v418
    %v420 = vlaneseq
    %v421 = vshrl.u32 %v420, 7
    %v422 = vsub.s32 %v419, %v421
    %v423 = vrot.slane %v409, %v422
    %v424 = vcombine.high %v416, %v416
    %v425 = vcombine.high %v423, %v423
    %v427 = vunpack.c.l.s4 1983009808
    %v428 = vunpack.c.0.s8 %v427
    %v429 = vlaneseq
    %v430 = vshrl.u32 %v429, 7
    %v431 = vsub.s32 %v428, %v430
    %v432 = vrot.slane %v370, %v431
    %v433 = vcombine.high %v432, %v432
    %v434 = vcombine.low %v382, %v390
    %v435 = vcombine.low %v389, %v391
    %v437 = vunpack.c.l.s4 1983009808
    %v438 = vunpack.c.0.s8 %v437
    %v439 = vlaneseq
    %v440 = vshrl.u32 %v439, 7
    %v441 = vsub.s32 %v438, %v440
    %v442 = vrot.slane %v434, %v441
    %v444 = vunpack.c.l.s4 1983009808
    %v445 = vunpack.c.0.s8 %v444
    %v446 = vlaneseq
    %v447 = vshrl.u32 %v446, 7
    %v448 = vsub.s32 %v445, %v447
    %v449 = vrot.slane %v435, %v448
    %v450 = vcombine.low %v442, %v449
    %v451 = vcombine.low %v399, %v407
    %v453 = vunpack.c.l.s4 1983009808
    %v454 = vunpack.c.0.s8 %v453
    %v455 = vlaneseq
    %v456 = vshrl.u32 %v455, 7
    %v457 = vsub.s32 %v454, %v456
    %v458 = vrot.slane %v451, %v457
    %v459 = vcombine.low %v408, %v416
    %v460 = vcombine.low %v424, %v423
    %v462 = vunpack.c.l.s4 1983009808
    %v463 = vunpack.c.0.s8 %v462
    %v464 = vlaneseq
    %v465 = vshrl.u32 %v464, 7
    %v466 = vsub.s32 %v463, %v465
    %v467 = vrot.slane %v459, %v466
    %v469 = vunpack.c.l.s4 1983009808
    %v470 = vunpack.c.0.s8 %v469
    %v471 = vlaneseq
    %v472 = vshrl.u32 %v471, 7
    %v473 = vsub.s32 %v470, %v472
    %v474 = vrot.slane %v460, %v473
    %v475 = vcombine.low %v467, %v474
    %v476 = vcombine.low %v425, %v432
    %v478 = vunpack.c.l.s4 1983009808
    %v479 = vunpack.c.0.s8 %v478
    %v480 = vlaneseq
    %v481 = vshrl.u32 %v480, 7
    %v482 = vsub.s32 %v479, %v481
    %v483 = vrot.slane %v476, %v482
    %v488 = vrot.slane %v450, 1
    %v489 = vrot.slane %v458, 1
    %v490 = vsel %vm86, %v488, %v489
    %v491 = vrot.slane %v475, 1
    %v492 = vrot.slane %v483, 1
    %v493 = vsel %vm86, %v491, %v492
    %494 = vrot.lane.b32.xlu0 %v490, 8
    %v495 = vpop.permute.xlu0 %494
    %496 = vrot.lane.b32.xlu0 %v489, 8
    %v497 = vpop.permute.xlu0 %496
    %498 = vrot.lane.b32.xlu0 %v493, 8
    %v499 = vpop.permute.xlu0 %498
    %500 = vrot.lane.b32.xlu0 %v492, 8
    %v501 = vpop.permute.xlu0 %500
    %v506 = vcombine.low %v390, %v389
    %v507 = vcombine.low %v391, %v399
    %v509 = vunpack.c.l.s4 1983009808
    %v510 = vunpack.c.0.s8 %v509
    %v511 = vlaneseq
    %v512 = vshrl.u32 %v511, 7
    %v513 = vsub.s32 %v510, %v512
    %v514 = vrot.slane %v506, %v513
    %v516 = vunpack.c.l.s4 1983009808
    %v517 = vunpack.c.0.s8 %v516
    %v518 = vlaneseq
    %v519 = vshrl.u32 %v518, 7
    %v520 = vsub.s32 %v517, %v519
    %v521 = vrot.slane %v507, %v520
    %v522 = vcombine.low %v514, %v521
    %v523 = vcombine.low %v407, %v406
    %v525 = vunpack.c.l.s4 1983009808
    %v526 = vunpack.c.0.s8 %v525
    %v527 = vlaneseq
    %v528 = vshrl.u32 %v527, 7
    %v529 = vsub.s32 %v526, %v528
    %v530 = vrot.slane %v523, %v529
    %v531 = vcombine.low %v416, %v424
    %v532 = vcombine.low %v423, %v425
    %v534 = vunpack.c.l.s4 1983009808
    %v535 = vunpack.c.0.s8 %v534
    %v536 = vlaneseq
    %v537 = vshrl.u32 %v536, 7
    %v538 = vsub.s32 %v535, %v537
    %v539 = vrot.slane %v531, %v538
    %v541 = vunpack.c.l.s4 1983009808
    %v542 = vunpack.c.0.s8 %v541
    %v543 = vlaneseq
    %v544 = vshrl.u32 %v543, 7
    %v545 = vsub.s32 %v542, %v544
    %v546 = vrot.slane %v532, %v545
    %v547 = vcombine.low %v539, %v546
    %v548 = vcombine.low %v432, %v433
    %v550 = vunpack.c.l.s4 1983009808
    %v551 = vunpack.c.0.s8 %v550
    %v552 = vlaneseq
    %v553 = vshrl.u32 %v552, 7
    %v554 = vsub.s32 %v551, %v553
    %v555 = vrot.slane %v548, %v554
    %556 = vrot.lane.b32.xlu0 %v522, 16
    %v557 = vpop.permute.xlu0 %556
    %558 = vrot.lane.b32.xlu0 %v530, 16
    %v559 = vpop.permute.xlu0 %558
    %560 = vrot.lane.b32.xlu0 %v547, 16
    %v561 = vpop.permute.xlu0 %560
    %562 = vrot.lane.b32.xlu0 %v555, 16
    %v563 = vpop.permute.xlu0 %562
    %v568 = vrot.slane %v522, 1
    %v569 = vrot.slane %v530, 1
    %v570 = vsel %vm86, %v568, %v569
    %v571 = vrot.slane %v547, 1
    %v572 = vrot.slane %v555, 1
    %v573 = vsel %vm86, %v571, %v572
    %574 = vrot.lane.b32.xlu0 %v570, 24
    %v575 = vpop.permute.xlu0 %574
    %576 = vrot.lane.b32.xlu0 %v569, 24
    %v577 = vpop.permute.xlu0 %576
    %578 = vrot.lane.b32.xlu0 %v573, 24
    %v579 = vpop.permute.xlu0 %578
    %580 = vrot.lane.b32.xlu0 %v572, 24
    %v581 = vpop.permute.xlu0 %580
    %v586 = vsel %vm124, %v450, %v495
    %v587 = vsel %vm124, %v458, %v497
    %v588 = vsel %vm124, %v475, %v499
    %v589 = vsel %vm124, %v483, %v501
    %v590 = vsel %vm129, %v586, %v557
    %v591 = vsel %vm129, %v587, %v559
    %v592 = vsel %vm129, %v588, %v561
    %v593 = vsel %vm129, %v589, %v563
    %v594 = vsel %vm273, %v590, %v575
    %v595 = vsel %vm273, %v591, %v577
    %v596 = vsel %vm273, %v592, %v579
    %v597 = vsel %vm273, %v593, %v581
    %v602 = vcombine.high %v594, %v594
    %v604 = vunpack.c.l.s4 1966171168
    %v605 = vunpack.c.0.s8 %v604
    %v606 = vlaneseq
    %v607 = vshrl.u32 %v606, 7
    %v608 = vsub.s32 %v605, %v607
    %v609 = vrot.slane %v594, %v608
    %v611 = vunpack.c.l.s4 1966171168
    %v612 = vunpack.c.0.s8 %v611
    %v613 = vlaneseq
    %v614 = vshrl.u32 %v613, 7
    %v615 = vsub.s32 %v612, %v614
    %v616 = vrot.slane %v602, %v615
    %v617 = vcombine.high %v609, %v609
    %v618 = vcombine.high %v616, %v616
    %v620 = vunpack.c.l.s4 1966171168
    %v621 = vunpack.c.0.s8 %v620
    %v622 = vlaneseq
    %v623 = vshrl.u32 %v622, 7
    %v624 = vsub.s32 %v621, %v623
    %v625 = vrot.slane %v609, %v624
    %v627 = vunpack.c.l.s4 1966171168
    %v628 = vunpack.c.0.s8 %v627
    %v629 = vlaneseq
    %v630 = vshrl.u32 %v629, 7
    %v631 = vsub.s32 %v628, %v630
    %v632 = vrot.slane %v616, %v631
    %v634 = vunpack.c.l.s4 1966171168
    %v635 = vunpack.c.0.s8 %v634
    %v636 = vlaneseq
    %v637 = vshrl.u32 %v636, 7
    %v638 = vsub.s32 %v635, %v637
    %v639 = vrot.slane %v617, %v638
    %v641 = vunpack.c.l.s4 1966171168
    %v642 = vunpack.c.0.s8 %v641
    %v643 = vlaneseq
    %v644 = vshrl.u32 %v643, 7
    %v645 = vsub.s32 %v642, %v644
    %v646 = vrot.slane %v618, %v645
    %v647 = vcombine.high %v625, %v625
    %v648 = vcombine.high %v632, %v632
    %v649 = vcombine.high %v639, %v639
    %v650 = vcombine.high %v646, %v646
    %v652 = vunpack.c.l.s4 1966171168
    %v653 = vunpack.c.0.s8 %v652
    %v654 = vlaneseq
    %v655 = vshrl.u32 %v654, 7
    %v656 = vsub.s32 %v653, %v655
    %v657 = vrot.slane %v595, %v656
    %v658 = vcombine.high %v657, %v657
    %v660 = vunpack.c.l.s4 1966171168
    %v661 = vunpack.c.0.s8 %v660
    %v662 = vlaneseq
    %v663 = vshrl.u32 %v662, 7
    %v664 = vsub.s32 %v661, %v663
    %v665 = vrot.slane %v657, %v664
    %v667 = vunpack.c.l.s4 1966171168
    %v668 = vunpack.c.0.s8 %v667
    %v669 = vlaneseq
    %v670 = vshrl.u32 %v669, 7
    %v671 = vsub.s32 %v668, %v670
    %v672 = vrot.slane %v658, %v671
    %v673 = vcombine.high %v665, %v665
    %v674 = vcombine.high %v596, %v596
    %v676 = vunpack.c.l.s4 1966171168
    %v677 = vunpack.c.0.s8 %v676
    %v678 = vlaneseq
    %v679 = vshrl.u32 %v678, 7
    %v680 = vsub.s32 %v677, %v679
    %v681 = vrot.slane %v596, %v680
    %v683 = vunpack.c.l.s4 1966171168
    %v684 = vunpack.c.0.s8 %v683
    %v685 = vlaneseq
    %v686 = vshrl.u32 %v685, 7
    %v687 = vsub.s32 %v684, %v686
    %v688 = vrot.slane %v674, %v687
    %v689 = vcombine.high %v681, %v681
    %v690 = vcombine.high %v688, %v688
    %v692 = vunpack.c.l.s4 1966171168
    %v693 = vunpack.c.0.s8 %v692
    %v694 = vlaneseq
    %v695 = vshrl.u32 %v694, 7
    %v696 = vsub.s32 %v693, %v695
    %v697 = vrot.slane %v681, %v696
    %v699 = vunpack.c.l.s4 1966171168
    %v700 = vunpack.c.0.s8 %v699
    %v701 = vlaneseq
    %v702 = vshrl.u32 %v701, 7
    %v703 = vsub.s32 %v700, %v702
    %v704 = vrot.slane %v688, %v703
    %v706 = vunpack.c.l.s4 1966171168
    %v707 = vunpack.c.0.s8 %v706
    %v708 = vlaneseq
    %v709 = vshrl.u32 %v708, 7
    %v710 = vsub.s32 %v707, %v709
    %v711 = vrot.slane %v689, %v710
    %v713 = vunpack.c.l.s4 1966171168
    %v714 = vunpack.c.0.s8 %v713
    %v715 = vlaneseq
    %v716 = vshrl.u32 %v715, 7
    %v717 = vsub.s32 %v714, %v716
    %v718 = vrot.slane %v690, %v717
    %v719 = vcombine.high %v697, %v697
    %v720 = vcombine.high %v704, %v704
    %v721 = vcombine.high %v711, %v711
    %v722 = vcombine.high %v718, %v718
    %v724 = vunpack.c.l.s4 1966171168
    %v725 = vunpack.c.0.s8 %v724
    %v726 = vlaneseq
    %v727 = vshrl.u32 %v726, 7
    %v728 = vsub.s32 %v725, %v727
    %v729 = vrot.slane %v597, %v728
    %v730 = vcombine.high %v729, %v729
    %v732 = vunpack.c.l.s4 1966171168
    %v733 = vunpack.c.0.s8 %v732
    %v734 = vlaneseq
    %v735 = vshrl.u32 %v734, 7
    %v736 = vsub.s32 %v733, %v735
    %v737 = vrot.slane %v729, %v736
    %v739 = vunpack.c.l.s4 1966171168
    %v740 = vunpack.c.0.s8 %v739
    %v741 = vlaneseq
    %v742 = vshrl.u32 %v741, 7
    %v743 = vsub.s32 %v740, %v742
    %v744 = vrot.slane %v730, %v743
    %v745 = vcombine.high %v737, %v737
    %v746 = vld [vmem:[%s4] sm:$0xff]
    %v747 = vld [vmem:[%s4 + $0x8] sm:$0xff]
    %v748 = vld [vmem:[%s4 + $0x10] sm:$0xff]
    %v749 = vld [vmem:[%s4 + $0x18] sm:$0xff]
    %v750 = vld [vmem:[%s5] sm:$0x1]
    %v752 = vlaneseq
    %v753 = vshrl.u32 %v752, 7
    %v754 = vsub.s32 0, %v753
    %v755 = vrot.slane %v750, %v754
    %v757 = vcombine.low %v625, %v639
    %v758 = vcombine.low %v647, %v649
    %v759 = vcombine.low %v632, %v646
    %v760 = vcombine.low %v648, %v650
    %v762 = vunpack.c.l.s4 1966171168
    %v763 = vunpack.c.0.s8 %v762
    %v764 = vlaneseq
    %v765 = vshrl.u32 %v764, 7
    %v766 = vsub.s32 %v763, %v765
    %v767 = vrot.slane %v757, %v766
    %v769 = vunpack.c.l.s4 1966171168
    %v770 = vunpack.c.0.s8 %v769
    %v771 = vlaneseq
    %v772 = vshrl.u32 %v771, 7
    %v773 = vsub.s32 %v770, %v772
    %v774 = vrot.slane %v758, %v773
    %v776 = vunpack.c.l.s4 1966171168
    %v777 = vunpack.c.0.s8 %v776
    %v778 = vlaneseq
    %v779 = vshrl.u32 %v778, 7
    %v780 = vsub.s32 %v777, %v779
    %v781 = vrot.slane %v759, %v780
    %v783 = vunpack.c.l.s4 1966171168
    %v784 = vunpack.c.0.s8 %v783
    %v785 = vlaneseq
    %v786 = vshrl.u32 %v785, 7
    %v787 = vsub.s32 %v784, %v786
    %v788 = vrot.slane %v760, %v787
    %v789 = vcombine.low %v767, %v774
    %v790 = vcombine.low %v781, %v788
    %v792 = vunpack.c.l.s4 1966171168
    %v793 = vunpack.c.0.s8 %v792
    %v794 = vlaneseq
    %v795 = vshrl.u32 %v794, 7
    %v796 = vsub.s32 %v793, %v795
    %v797 = vrot.slane %v789, %v796
    %v799 = vunpack.c.l.s4 1966171168
    %v800 = vunpack.c.0.s8 %v799
    %v801 = vlaneseq
    %v802 = vshrl.u32 %v801, 7
    %v803 = vsub.s32 %v800, %v802
    %v804 = vrot.slane %v790, %v803
    %v805 = vcombine.low %v797, %v804
    %v806 = vcombine.low %v665, %v672
    %v807 = vcombine.low %v673, %v697
    %v808 = vcombine.low %v711, %v719
    %v809 = vcombine.low %v721, %v704
    %v811 = vunpack.c.l.s4 1966171168
    %v812 = vunpack.c.0.s8 %v811
    %v813 = vlaneseq
    %v814 = vshrl.u32 %v813, 7
    %v815 = vsub.s32 %v812, %v814
    %v816 = vrot.slane %v806, %v815
    %v818 = vunpack.c.l.s4 1966171168
    %v819 = vunpack.c.0.s8 %v818
    %v820 = vlaneseq
    %v821 = vshrl.u32 %v820, 7
    %v822 = vsub.s32 %v819, %v821
    %v823 = vrot.slane %v807, %v822
    %v825 = vunpack.c.l.s4 1966171168
    %v826 = vunpack.c.0.s8 %v825
    %v827 = vlaneseq
    %v828 = vshrl.u32 %v827, 7
    %v829 = vsub.s32 %v826, %v828
    %v830 = vrot.slane %v808, %v829
    %v832 = vunpack.c.l.s4 1966171168
    %v833 = vunpack.c.0.s8 %v832
    %v834 = vlaneseq
    %v835 = vshrl.u32 %v834, 7
    %v836 = vsub.s32 %v833, %v835
    %v837 = vrot.slane %v809, %v836
    %v838 = vcombine.low %v816, %v823
    %v839 = vcombine.low %v830, %v837
    %v841 = vunpack.c.l.s4 1966171168
    %v842 = vunpack.c.0.s8 %v841
    %v843 = vlaneseq
    %v844 = vshrl.u32 %v843, 7
    %v845 = vsub.s32 %v842, %v844
    %v846 = vrot.slane %v838, %v845
    %v848 = vunpack.c.l.s4 1966171168
    %v849 = vunpack.c.0.s8 %v848
    %v850 = vlaneseq
    %v851 = vshrl.u32 %v850, 7
    %v852 = vsub.s32 %v849, %v851
    %v853 = vrot.slane %v839, %v852
    %v854 = vcombine.low %v846, %v853
    %v855 = vcombine.low %v718, %v720
    %v856 = vcombine.low %v722, %v737
    %v857 = vcombine.low %v744, %v745
    %v859 = vunpack.c.l.s4 1966171168
    %v860 = vunpack.c.0.s8 %v859
    %v861 = vlaneseq
    %v862 = vshrl.u32 %v861, 7
    %v863 = vsub.s32 %v860, %v862
    %v864 = vrot.slane %v855, %v863
    %v866 = vunpack.c.l.s4 1966171168
    %v867 = vunpack.c.0.s8 %v866
    %v868 = vlaneseq
    %v869 = vshrl.u32 %v868, 7
    %v870 = vsub.s32 %v867, %v869
    %v871 = vrot.slane %v856, %v870
    %v873 = vunpack.c.l.s4 1966171168
    %v874 = vunpack.c.0.s8 %v873
    %v875 = vlaneseq
    %v876 = vshrl.u32 %v875, 7
    %v877 = vsub.s32 %v874, %v876
    %v878 = vrot.slane %v857, %v877
    %v879 = vcombine.low %v864, %v871
    %v881 = vunpack.c.l.s4 1966171168
    %v882 = vunpack.c.0.s8 %v881
    %v883 = vlaneseq
    %v884 = vshrl.u32 %v883, 7
    %v885 = vsub.s32 %v882, %v884
    %v886 = vrot.slane %v879, %v885
    %v888 = vunpack.c.l.s4 1966171168
    %v889 = vunpack.c.0.s8 %v888
    %v890 = vlaneseq
    %v891 = vshrl.u32 %v890, 7
    %v892 = vsub.s32 %v889, %v891
    %v893 = vrot.slane %v878, %v892
    %v894 = vcombine.low %v886, %v893
    %vm895 = vcmask 261120
    %v896 = vsel %vm895, %v805, 0
    %v898 = vsel %vm895, %v854, 0
    %v900 = vsel %vm895, %v894, 0
    %902 = vmatprep.subr.mxu0 0.0
    %903 = vmatpush1.msra.mxu0 %v746
    %904 = vmatprep.subr.mxu0 0.0
    %905 = vmatpush1.msra.mxu0 %v747
    %906 = vmatprep.subr.mxu0 0.0
    %907 = vmatpush1.msra.mxu0 %v748
    %908 = vmatprep.subr.mxu0 0.0
    %909 = vmatpush1.msra.mxu0 %v749
    %910 = vmatprep.subr.mxu0 0.0
    %911 = vmatpush1.msra.mxu0 0.0
    %912 = vmatprep.subr.mxu0 0.0
    %913 = vmatpush1.msra.mxu0 0.0
    %914 = vmatprep.subr.mxu0 0.0
    %915 = vmatpush1.msra.mxu0 0.0
    %916 = vmatprep.subr.mxu0 0.0
    %917 = vmatpush1.msra.mxu0 0.0
    %918 = vmatprep.subr.mxu0 0.0
    %919 = vmatpush1.msra.mxu0 0.0
    %920 = vmatprep.subr.mxu0 0.0
    %921 = vmatpush1.msra.mxu0 0.0
    %922 = vmatprep.subr.mxu0 0.0
    %923 = vmatpush1.msra.mxu0 0.0
    %924 = vmatprep.subr.mxu0 0.0
    %925 = vmatpush1.msra.mxu0 0.0
    %926 = vmatprep.subr.mxu0 0.0
    %927 = vmatpush1.msra.mxu0 0.0
    %928 = vmatprep.subr.mxu0 0.0
    %929 = vmatpush1.msra.mxu0 0.0
    %930 = vmatprep.subr.mxu0 0.0
    %931 = vmatpush1.msra.mxu0 0.0
    %932 = vmatprep.subr.mxu0 0.0
    %933 = vmatpush1.msra.mxu0 0.0
    %934 = vmatprep.subr.mxu0 0.0
    %935 = vmatpush1.msra.mxu0 0.0
    %936 = vmatprep.subr.mxu0 0.0
    %937 = vmatpush1.msra.mxu0 0.0
    %938 = vmatprep.subr.mxu0 0.0
    %939 = vmatpush1.msra.mxu0 0.0
    %940 = vmatprep.subr.mxu0 0.0
    %941 = vmatpush1.msra.mxu0 0.0
    %942 = vmatprep.subr.mxu0 0.0
    %943 = vmatpush1.msra.mxu0 0.0
    %944 = vmatprep.subr.mxu0 0.0
    %945 = vmatpush1.msra.mxu0 0.0
    %946 = vmatprep.subr.mxu0 0.0
    %947 = vmatpush1.msra.mxu0 0.0
    %948 = vmatprep.subr.mxu0 0.0
    %949 = vmatpush1.msra.mxu0 0.0
    %950 = vmatprep.subr.mxu0 0.0
    %951 = vmatpush1.msra.mxu0 0.0
    %952 = vmatprep.subr.mxu0 0.0
    %953 = vmatpush1.msra.mxu0 0.0
    %954 = vmatprep.subr.mxu0 0.0
    %955 = vmatpush1.msra.mxu0 0.0
    %956 = vmatprep.subr.mxu0 0.0
    %957 = vmatpush1.msra.mxu0 0.0
    %958 = vmatprep.subr.mxu0 0.0
    %959 = vmatpush1.msra.mxu0 0.0
    %960 = vmatprep.subr.mxu0 0.0
    %961 = vmatpush1.msra.mxu0 0.0
    %962 = vmatprep.subr.mxu0 0.0
    %963 = vmatpush1.msra.mxu0 0.0
    %964 = vmatprep.subr.mxu0 0.0
    %965 = vmatpush1.msra.mxu0 0.0
    %966 = vmatprep.mubr.f32.mxu0 0.0
    %967 = vmatmul.mubr.f32.gmra.mrb[0].mxu0 %v896
    %v968 = vpop.f32.mrb[0].mxu0
    %v969 = vadd.f32 %v755, %v968
    %v970 = vpop.f32.mrb[0].mxu0
    %971 = vmatprep.mubr.f32.mxu0 0.0
    %972 = vmatmul.mubr.f32.gmra.mrb[0].mxu0 %v898
    %v973 = vpop.f32.mrb[0].mxu0
    %v974 = vadd.f32 %v755, %v973
    %v975 = vpop.f32.mrb[0].mxu0
    %976 = vmatprep.mubr.f32.mxu0 0.0
    %977 = vmatmul.mubr.f32.gmra.mrb[0].mxu0 %v900
    %v978 = vpop.f32.mrb[0].mxu0
    %v979 = vadd.f32 %v755, %v978
    %v980 = vpop.f32.mrb[0].mxu0
    %981 = vdwg.mxu0
    %v982 = vmax.f32 %v969, 0.0
    %v983 = vmax.f32 %v974, 0.0
    %v984 = vmax.f32 %v979, 0.0
    %v988 = vcombine.high %v982, %v982
    %v990 = vunpack.c.l.s4 1966171168
    %v991 = vunpack.c.0.s8 %v990
    %v992 = vlaneseq
    %v993 = vshrl.u32 %v992, 7
    %v994 = vsub.s32 %v991, %v993
    %v995 = vrot.slane %v982, %v994
    %v997 = vunpack.c.l.s4 1966171168
    %v998 = vunpack.c.0.s8 %v997
    %v999 = vlaneseq
    %v1000 = vshrl.u32 %v999, 7
    %v1001 = vsub.s32 %v998, %v1000
    %v1002 = vrot.slane %v988, %v1001
    %v1003 = vcombine.high %v995, %v995
    %v1004 = vcombine.high %v1002, %v1002
    %v1006 = vunpack.c.l.s4 1966171168
    %v1007 = vunpack.c.0.s8 %v1006
    %v1008 = vlaneseq
    %v1009 = vshrl.u32 %v1008, 7
    %v1010 = vsub.s32 %v1007, %v1009
    %v1011 = vrot.slane %v995, %v1010
    %v1013 = vunpack.c.l.s4 1966171168
    %v1014 = vunpack.c.0.s8 %v1013
    %v1015 = vlaneseq
    %v1016 = vshrl.u32 %v1015, 7
    %v1017 = vsub.s32 %v1014, %v1016
    %v1018 = vrot.slane %v1002, %v1017
    %v1020 = vunpack.c.l.s4 1966171168
    %v1021 = vunpack.c.0.s8 %v1020
    %v1022 = vlaneseq
    %v1023 = vshrl.u32 %v1022, 7
    %v1024 = vsub.s32 %v1021, %v1023
    %v1025 = vrot.slane %v1003, %v1024
    %v1027 = vunpack.c.l.s4 1966171168
    %v1028 = vunpack.c.0.s8 %v1027
    %v1029 = vlaneseq
    %v1030 = vshrl.u32 %v1029, 7
    %v1031 = vsub.s32 %v1028, %v1030
    %v1032 = vrot.slane %v1004, %v1031
    %v1033 = vcombine.high %v1011, %v1011
    %v1034 = vcombine.high %v1018, %v1018
    %v1035 = vcombine.high %v1025, %v1025
    %v1036 = vcombine.high %v1032, %v1032
    %v1037 = vcombine.high %v983, %v983
    %v1039 = vunpack.c.l.s4 1966171168
    %v1040 = vunpack.c.0.s8 %v1039
    %v1041 = vlaneseq
    %v1042 = vshrl.u32 %v1041, 7
    %v1043 = vsub.s32 %v1040, %v1042
    %v1044 = vrot.slane %v983, %v1043
    %v1046 = vunpack.c.l.s4 1966171168
    %v1047 = vunpack.c.0.s8 %v1046
    %v1048 = vlaneseq
    %v1049 = vshrl.u32 %v1048, 7
    %v1050 = vsub.s32 %v1047, %v1049
    %v1051 = vrot.slane %v1037, %v1050
    %v1052 = vcombine.high %v1044, %v1044
    %v1053 = vcombine.high %v1051, %v1051
    %v1055 = vunpack.c.l.s4 1966171168
    %v1056 = vunpack.c.0.s8 %v1055
    %v1057 = vlaneseq
    %v1058 = vshrl.u32 %v1057, 7
    %v1059 = vsub.s32 %v1056, %v1058
    %v1060 = vrot.slane %v1044, %v1059
    %v1062 = vunpack.c.l.s4 1966171168
    %v1063 = vunpack.c.0.s8 %v1062
    %v1064 = vlaneseq
    %v1065 = vshrl.u32 %v1064, 7
    %v1066 = vsub.s32 %v1063, %v1065
    %v1067 = vrot.slane %v1051, %v1066
    %v1069 = vunpack.c.l.s4 1966171168
    %v1070 = vunpack.c.0.s8 %v1069
    %v1071 = vlaneseq
    %v1072 = vshrl.u32 %v1071, 7
    %v1073 = vsub.s32 %v1070, %v1072
    %v1074 = vrot.slane %v1052, %v1073
    %v1076 = vunpack.c.l.s4 1966171168
    %v1077 = vunpack.c.0.s8 %v1076
    %v1078 = vlaneseq
    %v1079 = vshrl.u32 %v1078, 7
    %v1080 = vsub.s32 %v1077, %v1079
    %v1081 = vrot.slane %v1053, %v1080
    %v1082 = vcombine.high %v1060, %v1060
    %v1083 = vcombine.high %v1067, %v1067
    %v1084 = vcombine.high %v1074, %v1074
    %v1085 = vcombine.high %v1081, %v1081
    %v1086 = vcombine.high %v984, %v984
    %v1088 = vunpack.c.l.s4 1966171168
    %v1089 = vunpack.c.0.s8 %v1088
    %v1090 = vlaneseq
    %v1091 = vshrl.u32 %v1090, 7
    %v1092 = vsub.s32 %v1089, %v1091
    %v1093 = vrot.slane %v984, %v1092
    %v1095 = vunpack.c.l.s4 1966171168
    %v1096 = vunpack.c.0.s8 %v1095
    %v1097 = vlaneseq
    %v1098 = vshrl.u32 %v1097, 7
    %v1099 = vsub.s32 %v1096, %v1098
    %v1100 = vrot.slane %v1086, %v1099
    %v1101 = vcombine.high %v1093, %v1093
    %v1102 = vcombine.high %v1100, %v1100
    %v1104 = vunpack.c.l.s4 1966171168
    %v1105 = vunpack.c.0.s8 %v1104
    %v1106 = vlaneseq
    %v1107 = vshrl.u32 %v1106, 7
    %v1108 = vsub.s32 %v1105, %v1107
    %v1109 = vrot.slane %v1093, %v1108
    %v1111 = vunpack.c.l.s4 1966171168
    %v1112 = vunpack.c.0.s8 %v1111
    %v1113 = vlaneseq
    %v1114 = vshrl.u32 %v1113, 7
    %v1115 = vsub.s32 %v1112, %v1114
    %v1116 = vrot.slane %v1100, %v1115
    %v1118 = vunpack.c.l.s4 1966171168
    %v1119 = vunpack.c.0.s8 %v1118
    %v1120 = vlaneseq
    %v1121 = vshrl.u32 %v1120, 7
    %v1122 = vsub.s32 %v1119, %v1121
    %v1123 = vrot.slane %v1101, %v1122
    %v1125 = vunpack.c.l.s4 1966171168
    %v1126 = vunpack.c.0.s8 %v1125
    %v1127 = vlaneseq
    %v1128 = vshrl.u32 %v1127, 7
    %v1129 = vsub.s32 %v1126, %v1128
    %v1130 = vrot.slane %v1102, %v1129
    %v1131 = vcombine.high %v1109, %v1109
    %v1132 = vcombine.high %v1123, %v1123
    %v1133 = vcombine.low %v1011, %v1025
    %v1134 = vcombine.low %v1033, %v1035
    %v1135 = vcombine.low %v1018, %v1032
    %v1137 = vunpack.c.l.s4 1966171168
    %v1138 = vunpack.c.0.s8 %v1137
    %v1139 = vlaneseq
    %v1140 = vshrl.u32 %v1139, 7
    %v1141 = vsub.s32 %v1138, %v1140
    %v1142 = vrot.slane %v1133, %v1141
    %v1144 = vunpack.c.l.s4 1966171168
    %v1145 = vunpack.c.0.s8 %v1144
    %v1146 = vlaneseq
    %v1147 = vshrl.u32 %v1146, 7
    %v1148 = vsub.s32 %v1145, %v1147
    %v1149 = vrot.slane %v1134, %v1148
    %v1151 = vunpack.c.l.s4 1966171168
    %v1152 = vunpack.c.0.s8 %v1151
    %v1153 = vlaneseq
    %v1154 = vshrl.u32 %v1153, 7
    %v1155 = vsub.s32 %v1152, %v1154
    %v1156 = vrot.slane %v1135, %v1155
    %v1158 = vunpack.c.l.s4 1966171168
    %v1159 = vunpack.c.0.s8 %v1158
    %v1160 = vlaneseq
    %v1161 = vshrl.u32 %v1160, 7
    %v1162 = vsub.s32 %v1159, %v1161
    %v1163 = vrot.slane %v1034, %v1162
    %v1164 = vcombine.low %v1142, %v1149
    %v1165 = vcombine.low %v1156, %v1163
    %v1167 = vunpack.c.l.s4 1966171168
    %v1168 = vunpack.c.0.s8 %v1167
    %v1169 = vlaneseq
    %v1170 = vshrl.u32 %v1169, 7
    %v1171 = vsub.s32 %v1168, %v1170
    %v1172 = vrot.slane %v1164, %v1171
    %v1174 = vunpack.c.l.s4 1966171168
    %v1175 = vunpack.c.0.s8 %v1174
    %v1176 = vlaneseq
    %v1177 = vshrl.u32 %v1176, 7
    %v1178 = vsub.s32 %v1175, %v1177
    %v1179 = vrot.slane %v1165, %v1178
    %v1180 = vcombine.low %v1172, %v1179
    %v1181 = vcombine.low %v1084, %v1067
    %v1182 = vcombine.low %v1081, %v1083
    %v1183 = vcombine.low %v1085, %v1109
    %v1185 = vunpack.c.l.s4 1966171168
    %v1186 = vunpack.c.0.s8 %v1185
    %v1187 = vlaneseq
    %v1188 = vshrl.u32 %v1187, 7
    %v1189 = vsub.s32 %v1186, %v1188
    %v1190 = vrot.slane %v1181, %v1189
    %v1192 = vunpack.c.l.s4 1966171168
    %v1193 = vunpack.c.0.s8 %v1192
    %v1194 = vlaneseq
    %v1195 = vshrl.u32 %v1194, 7
    %v1196 = vsub.s32 %v1193, %v1195
    %v1197 = vrot.slane %v1182, %v1196
    %v1199 = vunpack.c.l.s4 1966171168
    %v1200 = vunpack.c.0.s8 %v1199
    %v1201 = vlaneseq
    %v1202 = vshrl.u32 %v1201, 7
    %v1203 = vsub.s32 %v1200, %v1202
    %v1204 = vrot.slane %v1183, %v1203
    %v1206 = vunpack.c.l.s4 1966171168
    %v1207 = vunpack.c.0.s8 %v1206
    %v1208 = vlaneseq
    %v1209 = vshrl.u32 %v1208, 7
    %v1210 = vsub.s32 %v1207, %v1209
    %v1211 = vrot.slane %v1123, %v1210
    %v1212 = vcombine.low %v1190, %v1197
    %v1213 = vcombine.low %v1204, %v1211
    %v1215 = vunpack.c.l.s4 1966171168
    %v1216 = vunpack.c.0.s8 %v1215
    %v1217 = vlaneseq
    %v1218 = vshrl.u32 %v1217, 7
    %v1219 = vsub.s32 %v1216, %v1218
    %v1220 = vrot.slane %v1212, %v1219
    %v1222 = vunpack.c.l.s4 1966171168
    %v1223 = vunpack.c.0.s8 %v1222
    %v1224 = vlaneseq
    %v1225 = vshrl.u32 %v1224, 7
    %v1226 = vsub.s32 %v1223, %v1225
    %v1227 = vrot.slane %v1213, %v1226
    %v1228 = vcombine.low %v1220, %v1227
    %v1231 = vcombine.low %v1025, %v1033
    %v1232 = vcombine.low %v1035, %v1018
    %v1233 = vcombine.low %v1032, %v1034
    %v1235 = vunpack.c.l.s4 1966171168
    %v1236 = vunpack.c.0.s8 %v1235
    %v1237 = vlaneseq
    %v1238 = vshrl.u32 %v1237, 7
    %v1239 = vsub.s32 %v1236, %v1238
    %v1240 = vrot.slane %v1231, %v1239
    %v1242 = vunpack.c.l.s4 1966171168
    %v1243 = vunpack.c.0.s8 %v1242
    %v1244 = vlaneseq
    %v1245 = vshrl.u32 %v1244, 7
    %v1246 = vsub.s32 %v1243, %v1245
    %v1247 = vrot.slane %v1232, %v1246
    %v1249 = vunpack.c.l.s4 1966171168
    %v1250 = vunpack.c.0.s8 %v1249
    %v1251 = vlaneseq
    %v1252 = vshrl.u32 %v1251, 7
    %v1253 = vsub.s32 %v1250, %v1252
    %v1254 = vrot.slane %v1233, %v1253
    %v1256 = vunpack.c.l.s4 1966171168
    %v1257 = vunpack.c.0.s8 %v1256
    %v1258 = vlaneseq
    %v1259 = vshrl.u32 %v1258, 7
    %v1260 = vsub.s32 %v1257, %v1259
    %v1261 = vrot.slane %v1036, %v1260
    %v1262 = vcombine.low %v1240, %v1247
    %v1263 = vcombine.low %v1254, %v1261
    %v1265 = vunpack.c.l.s4 1966171168
    %v1266 = vunpack.c.0.s8 %v1265
    %v1267 = vlaneseq
    %v1268 = vshrl.u32 %v1267, 7
    %v1269 = vsub.s32 %v1266, %v1268
    %v1270 = vrot.slane %v1262, %v1269
    %v1272 = vunpack.c.l.s4 1966171168
    %v1273 = vunpack.c.0.s8 %v1272
    %v1274 = vlaneseq
    %v1275 = vshrl.u32 %v1274, 7
    %v1276 = vsub.s32 %v1273, %v1275
    %v1277 = vrot.slane %v1263, %v1276
    %v1278 = vcombine.low %v1270, %v1277
    %v1279 = vcombine.low %v1067, %v1081
    %v1280 = vcombine.low %v1083, %v1085
    %v1281 = vcombine.low %v1109, %v1123
    %v1283 = vunpack.c.l.s4 1966171168
    %v1284 = vunpack.c.0.s8 %v1283
    %v1285 = vlaneseq
    %v1286 = vshrl.u32 %v1285, 7
    %v1287 = vsub.s32 %v1284, %v1286
    %v1288 = vrot.slane %v1279, %v1287
    %v1290 = vunpack.c.l.s4 1966171168
    %v1291 = vunpack.c.0.s8 %v1290
    %v1292 = vlaneseq
    %v1293 = vshrl.u32 %v1292, 7
    %v1294 = vsub.s32 %v1291, %v1293
    %v1295 = vrot.slane %v1280, %v1294
    %v1297 = vunpack.c.l.s4 1966171168
    %v1298 = vunpack.c.0.s8 %v1297
    %v1299 = vlaneseq
    %v1300 = vshrl.u32 %v1299, 7
    %v1301 = vsub.s32 %v1298, %v1300
    %v1302 = vrot.slane %v1281, %v1301
    %v1304 = vunpack.c.l.s4 1966171168
    %v1305 = vunpack.c.0.s8 %v1304
    %v1306 = vlaneseq
    %v1307 = vshrl.u32 %v1306, 7
    %v1308 = vsub.s32 %v1305, %v1307
    %v1309 = vrot.slane %v1131, %v1308
    %v1310 = vcombine.low %v1288, %v1295
    %v1311 = vcombine.low %v1302, %v1309
    %v1313 = vunpack.c.l.s4 1966171168
    %v1314 = vunpack.c.0.s8 %v1313
    %v1315 = vlaneseq
    %v1316 = vshrl.u32 %v1315, 7
    %v1317 = vsub.s32 %v1314, %v1316
    %v1318 = vrot.slane %v1310, %v1317
    %v1320 = vunpack.c.l.s4 1966171168
    %v1321 = vunpack.c.0.s8 %v1320
    %v1322 = vlaneseq
    %v1323 = vshrl.u32 %v1322, 7
    %v1324 = vsub.s32 %v1321, %v1323
    %v1325 = vrot.slane %v1311, %v1324
    %v1326 = vcombine.low %v1318, %v1325
    %1327 = vrot.lane.b32.xlu0 %v1278, 8
    %v1328 = vpop.permute.xlu0 %1327
    %1329 = vrot.lane.b32.xlu0 %v1326, 8
    %v1330 = vpop.permute.xlu0 %1329
    %v1333 = vcombine.low %v1034, %v1036
    %v1335 = vunpack.c.l.s4 1966171168
    %v1336 = vunpack.c.0.s8 %v1335
    %v1337 = vlaneseq
    %v1338 = vshrl.u32 %v1337, 7
    %v1339 = vsub.s32 %v1336, %v1338
    %v1340 = vrot.slane %v1333, %v1339
    %v1342 = vunpack.c.l.s4 1966171168
    %v1343 = vunpack.c.0.s8 %v1342
    %v1344 = vlaneseq
    %v1345 = vshrl.u32 %v1344, 7
    %v1346 = vsub.s32 %v1343, %v1345
    %v1347 = vrot.slane %v1060, %v1346
    %v1348 = vcombine.low %v1149, %v1156
    %v1349 = vcombine.low %v1340, %v1347
    %v1351 = vunpack.c.l.s4 1966171168
    %v1352 = vunpack.c.0.s8 %v1351
    %v1353 = vlaneseq
    %v1354 = vshrl.u32 %v1353, 7
    %v1355 = vsub.s32 %v1352, %v1354
    %v1356 = vrot.slane %v1348, %v1355
    %v1358 = vunpack.c.l.s4 1966171168
    %v1359 = vunpack.c.0.s8 %v1358
    %v1360 = vlaneseq
    %v1361 = vshrl.u32 %v1360, 7
    %v1362 = vsub.s32 %v1359, %v1361
    %v1363 = vrot.slane %v1349, %v1362
    %v1364 = vcombine.low %v1356, %v1363
    %v1365 = vcombine.low %v1123, %v1131
    %v1367 = vunpack.c.l.s4 1966171168
    %v1368 = vunpack.c.0.s8 %v1367
    %v1369 = vlaneseq
    %v1370 = vshrl.u32 %v1369, 7
    %v1371 = vsub.s32 %v1368, %v1370
    %v1372 = vrot.slane %v1365, %v1371
    %v1374 = vunpack.c.l.s4 1966171168
    %v1375 = vunpack.c.0.s8 %v1374
    %v1376 = vlaneseq
    %v1377 = vshrl.u32 %v1376, 7
    %v1378 = vsub.s32 %v1375, %v1377
    %v1379 = vrot.slane %v1132, %v1378
    %v1380 = vcombine.low %v1197, %v1204
    %v1381 = vcombine.low %v1372, %v1379
    %v1383 = vunpack.c.l.s4 1966171168
    %v1384 = vunpack.c.0.s8 %v1383
    %v1385 = vlaneseq
    %v1386 = vshrl.u32 %v1385, 7
    %v1387 = vsub.s32 %v1384, %v1386
    %v1388 = vrot.slane %v1380, %v1387
    %v1390 = vunpack.c.l.s4 1966171168
    %v1391 = vunpack.c.0.s8 %v1390
    %v1392 = vlaneseq
    %v1393 = vshrl.u32 %v1392, 7
    %v1394 = vsub.s32 %v1391, %v1393
    %v1395 = vrot.slane %v1381, %v1394
    %v1396 = vcombine.low %v1388, %v1395
    %1397 = vrot.lane.b32.xlu0 %v1364, 16
    %v1398 = vpop.permute.xlu0 %1397
    %1399 = vrot.lane.b32.xlu0 %v1396, 16
    %v1400 = vpop.permute.xlu0 %1399
    %v1403 = vcombine.low %v1036, %v1060
    %v1405 = vunpack.c.l.s4 1966171168
    %v1406 = vunpack.c.0.s8 %v1405
    %v1407 = vlaneseq
    %v1408 = vshrl.u32 %v1407, 7
    %v1409 = vsub.s32 %v1406, %v1408
    %v1410 = vrot.slane %v1403, %v1409
    %v1412 = vunpack.c.l.s4 1966171168
    %v1413 = vunpack.c.0.s8 %v1412
    %v1414 = vlaneseq
    %v1415 = vshrl.u32 %v1414, 7
    %v1416 = vsub.s32 %v1413, %v1415
    %v1417 = vrot.slane %v1074, %v1416
    %v1418 = vcombine.low %v1247, %v1254
    %v1419 = vcombine.low %v1410, %v1417
    %v1421 = vunpack.c.l.s4 1966171168
    %v1422 = vunpack.c.0.s8 %v1421
    %v1423 = vlaneseq
    %v1424 = vshrl.u32 %v1423, 7
    %v1425 = vsub.s32 %v1422, %v1424
    %v1426 = vrot.slane %v1418, %v1425
    %v1428 = vunpack.c.l.s4 1966171168
    %v1429 = vunpack.c.0.s8 %v1428
    %v1430 = vlaneseq
    %v1431 = vshrl.u32 %v1430, 7
    %v1432 = vsub.s32 %v1429, %v1431
    %v1433 = vrot.slane %v1419, %v1432
    %v1434 = vcombine.low %v1426, %v1433
    %v1435 = vcombine.low %v1131, %v1132
    %v1437 = vunpack.c.l.s4 1966171168
    %v1438 = vunpack.c.0.s8 %v1437
    %v1439 = vlaneseq
    %v1440 = vshrl.u32 %v1439, 7
    %v1441 = vsub.s32 %v1438, %v1440
    %v1442 = vrot.slane %v1435, %v1441
    %v1444 = vunpack.c.l.s4 1966171168
    %v1445 = vunpack.c.0.s8 %v1444
    %v1446 = vlaneseq
    %v1447 = vshrl.u32 %v1446, 7
    %v1448 = vsub.s32 %v1445, %v1447
    %v1449 = vrot.slane %v1116, %v1448
    %v1450 = vcombine.low %v1295, %v1302
    %v1451 = vcombine.low %v1442, %v1449
    %v1453 = vunpack.c.l.s4 1966171168
    %v1454 = vunpack.c.0.s8 %v1453
    %v1455 = vlaneseq
    %v1456 = vshrl.u32 %v1455, 7
    %v1457 = vsub.s32 %v1454, %v1456
    %v1458 = vrot.slane %v1450, %v1457
    %v1460 = vunpack.c.l.s4 1966171168
    %v1461 = vunpack.c.0.s8 %v1460
    %v1462 = vlaneseq
    %v1463 = vshrl.u32 %v1462, 7
    %v1464 = vsub.s32 %v1461, %v1463
    %v1465 = vrot.slane %v1451, %v1464
    %v1466 = vcombine.low %v1458, %v1465
    %1467 = vrot.lane.b32.xlu0 %v1434, 24
    %v1468 = vpop.permute.xlu0 %1467
    %1469 = vrot.lane.b32.xlu0 %v1466, 24
    %v1470 = vpop.permute.xlu0 %1469
    %v1473 = vcombine.low %v1060, %v1074
    %v1475 = vunpack.c.l.s4 1966171168
    %v1476 = vunpack.c.0.s8 %v1475
    %v1477 = vlaneseq
    %v1478 = vshrl.u32 %v1477, 7
    %v1479 = vsub.s32 %v1476, %v1478
    %v1480 = vrot.slane %v1473, %v1479
    %v1482 = vunpack.c.l.s4 1966171168
    %v1483 = vunpack.c.0.s8 %v1482
    %v1484 = vlaneseq
    %v1485 = vshrl.u32 %v1484, 7
    %v1486 = vsub.s32 %v1483, %v1485
    %v1487 = vrot.slane %v1082, %v1486
    %v1488 = vcombine.low %v1156, %v1340
    %v1489 = vcombine.low %v1480, %v1487
    %v1491 = vunpack.c.l.s4 1966171168
    %v1492 = vunpack.c.0.s8 %v1491
    %v1493 = vlaneseq
    %v1494 = vshrl.u32 %v1493, 7
    %v1495 = vsub.s32 %v1492, %v1494
    %v1496 = vrot.slane %v1488, %v1495
    %v1498 = vunpack.c.l.s4 1966171168
    %v1499 = vunpack.c.0.s8 %v1498
    %v1500 = vlaneseq
    %v1501 = vshrl.u32 %v1500, 7
    %v1502 = vsub.s32 %v1499, %v1501
    %v1503 = vrot.slane %v1489, %v1502
    %v1504 = vcombine.low %v1496, %v1503
    %v1505 = vcombine.low %v1132, %v1116
    %v1507 = vunpack.c.l.s4 1966171168
    %v1508 = vunpack.c.0.s8 %v1507
    %v1509 = vlaneseq
    %v1510 = vshrl.u32 %v1509, 7
    %v1511 = vsub.s32 %v1508, %v1510
    %v1512 = vrot.slane %v1505, %v1511
    %v1514 = vunpack.c.l.s4 1966171168
    %v1515 = vunpack.c.0.s8 %v1514
    %v1516 = vlaneseq
    %v1517 = vshrl.u32 %v1516, 7
    %v1518 = vsub.s32 %v1515, %v1517
    %v1519 = vrot.slane %v1130, %v1518
    %v1520 = vcombine.low %v1204, %v1372
    %v1521 = vcombine.low %v1512, %v1519
    %v1523 = vunpack.c.l.s4 1966171168
    %v1524 = vunpack.c.0.s8 %v1523
    %v1525 = vlaneseq
    %v1526 = vshrl.u32 %v1525, 7
    %v1527 = vsub.s32 %v1524, %v1526
    %v1528 = vrot.slane %v1520, %v1527
    %v1530 = vunpack.c.l.s4 1966171168
    %v1531 = vunpack.c.0.s8 %v1530
    %v1532 = vlaneseq
    %v1533 = vshrl.u32 %v1532, 7
    %v1534 = vsub.s32 %v1531, %v1533
    %v1535 = vrot.slane %v1521, %v1534
    %v1536 = vcombine.low %v1528, %v1535
    %1537 = vrot.lane.b32.xlu0 %v1504, 32
    %v1538 = vpop.permute.xlu0 %1537
    %1539 = vrot.lane.b32.xlu0 %v1536, 32
    %v1540 = vpop.permute.xlu0 %1539
    %v1543 = vsel %vm124, %v1180, %v1328
    %v1544 = vsel %vm124, %v1228, %v1330
    %v1545 = vsel %vm129, %v1543, %v1398
    %v1546 = vsel %vm129, %v1544, %v1400
    %v1547 = vsel %vm273, %v1545, %v1468
    %v1548 = vsel %vm273, %v1546, %v1470
    %v1549 = vsel %vm895, %v1547, %v1538
    %v1550 = vsel %vm895, %v1548, %v1540
    %v1553 = vcombine.high %v1549, %v1549
    %v1555 = vunpack.c.l.s4 1966171168
    %v1556 = vunpack.c.0.s8 %v1555
    %v1557 = vlaneseq
    %v1558 = vshrl.u32 %v1557, 7
    %v1559 = vsub.s32 %v1556, %v1558
    %v1560 = vrot.slane %v1549, %v1559
    %v1562 = vunpack.c.l.s4 1966171168
    %v1563 = vunpack.c.0.s8 %v1562
    %v1564 = vlaneseq
    %v1565 = vshrl.u32 %v1564, 7
    %v1566 = vsub.s32 %v1563, %v1565
    %v1567 = vrot.slane %v1553, %v1566
    %v1568 = vcombine.high %v1560, %v1560
    %v1569 = vcombine.high %v1567, %v1567
    %v1571 = vunpack.c.l.s4 1966171168
    %v1572 = vunpack.c.0.s8 %v1571
    %v1573 = vlaneseq
    %v1574 = vshrl.u32 %v1573, 7
    %v1575 = vsub.s32 %v1572, %v1574
    %v1576 = vrot.slane %v1560, %v1575
    %v1578 = vunpack.c.l.s4 1966171168
    %v1579 = vunpack.c.0.s8 %v1578
    %v1580 = vlaneseq
    %v1581 = vshrl.u32 %v1580, 7
    %v1582 = vsub.s32 %v1579, %v1581
    %v1583 = vrot.slane %v1567, %v1582
    %v1585 = vunpack.c.l.s4 1966171168
    %v1586 = vunpack.c.0.s8 %v1585
    %v1587 = vlaneseq
    %v1588 = vshrl.u32 %v1587, 7
    %v1589 = vsub.s32 %v1586, %v1588
    %v1590 = vrot.slane %v1568, %v1589
    %v1592 = vunpack.c.l.s4 1966171168
    %v1593 = vunpack.c.0.s8 %v1592
    %v1594 = vlaneseq
    %v1595 = vshrl.u32 %v1594, 7
    %v1596 = vsub.s32 %v1593, %v1595
    %v1597 = vrot.slane %v1569, %v1596
    %v1598 = vcombine.high %v1576, %v1576
    %v1599 = vcombine.high %v1583, %v1583
    %v1600 = vcombine.high %v1590, %v1590
    %v1601 = vcombine.high %v1550, %v1550
    %v1603 = vunpack.c.l.s4 1966171168
    %v1604 = vunpack.c.0.s8 %v1603
    %v1605 = vlaneseq
    %v1606 = vshrl.u32 %v1605, 7
    %v1607 = vsub.s32 %v1604, %v1606
    %v1608 = vrot.slane %v1550, %v1607
    %v1610 = vunpack.c.l.s4 1966171168
    %v1611 = vunpack.c.0.s8 %v1610
    %v1612 = vlaneseq
    %v1613 = vshrl.u32 %v1612, 7
    %v1614 = vsub.s32 %v1611, %v1613
    %v1615 = vrot.slane %v1601, %v1614
    %v1616 = vcombine.high %v1608, %v1608
    %v1617 = vcombine.high %v1615, %v1615
    %v1619 = vunpack.c.l.s4 1966171168
    %v1620 = vunpack.c.0.s8 %v1619
    %v1621 = vlaneseq
    %v1622 = vshrl.u32 %v1621, 7
    %v1623 = vsub.s32 %v1620, %v1622
    %v1624 = vrot.slane %v1608, %v1623
    %v1626 = vunpack.c.l.s4 1966171168
    %v1627 = vunpack.c.0.s8 %v1626
    %v1628 = vlaneseq
    %v1629 = vshrl.u32 %v1628, 7
    %v1630 = vsub.s32 %v1627, %v1629
    %v1631 = vrot.slane %v1615, %v1630
    %v1633 = vunpack.c.l.s4 1966171168
    %v1634 = vunpack.c.0.s8 %v1633
    %v1635 = vlaneseq
    %v1636 = vshrl.u32 %v1635, 7
    %v1637 = vsub.s32 %v1634, %v1636
    %v1638 = vrot.slane %v1616, %v1637
    %v1640 = vunpack.c.l.s4 1966171168
    %v1641 = vunpack.c.0.s8 %v1640
    %v1642 = vlaneseq
    %v1643 = vshrl.u32 %v1642, 7
    %v1644 = vsub.s32 %v1641, %v1643
    %v1645 = vrot.slane %v1617, %v1644
    %v1646 = vcombine.high %v1624, %v1624
    %v1647 = vcombine.high %v1631, %v1631
    %v1648 = vcombine.high %v1638, %v1638
    %v1649 = vld [vmem:[%s6] sm:$0xff]
    %v1650 = vld [vmem:[%s6 + $0x8] sm:$0xff]
    %v1651 = vld [vmem:[%s6 + $0x10] sm:$0xff]
    %v1652 = vld [vmem:[%s6 + $0x18] sm:$0xff]
    %v1653 = vld [vmem:[%s6 + $0x20] sm:$0xff]
    %v1654 = vld [vmem:[%s7] sm:$0x1]
    %v1656 = vlaneseq
    %v1657 = vshrl.u32 %v1656, 7
    %v1658 = vsub.s32 0, %v1657
    %v1659 = vrot.slane %v1654, %v1658
    %v1661 = vcombine.low %v1576, %v1590
    %v1662 = vcombine.low %v1598, %v1600
    %v1663 = vcombine.low %v1583, %v1597
    %v1664 = vcombine.low %v1599, %v1624
    %v1666 = vunpack.c.l.s4 1966171168
    %v1667 = vunpack.c.0.s8 %v1666
    %v1668 = vlaneseq
    %v1669 = vshrl.u32 %v1668, 7
    %v1670 = vsub.s32 %v1667, %v1669
    %v1671 = vrot.slane %v1661, %v1670
    %v1673 = vunpack.c.l.s4 1966171168
    %v1674 = vunpack.c.0.s8 %v1673
    %v1675 = vlaneseq
    %v1676 = vshrl.u32 %v1675, 7
    %v1677 = vsub.s32 %v1674, %v1676
    %v1678 = vrot.slane %v1662, %v1677
    %v1680 = vunpack.c.l.s4 1966171168
    %v1681 = vunpack.c.0.s8 %v1680
    %v1682 = vlaneseq
    %v1683 = vshrl.u32 %v1682, 7
    %v1684 = vsub.s32 %v1681, %v1683
    %v1685 = vrot.slane %v1663, %v1684
    %v1687 = vunpack.c.l.s4 1966171168
    %v1688 = vunpack.c.0.s8 %v1687
    %v1689 = vlaneseq
    %v1690 = vshrl.u32 %v1689, 7
    %v1691 = vsub.s32 %v1688, %v1690
    %v1692 = vrot.slane %v1664, %v1691
    %v1693 = vcombine.low %v1671, %v1678
    %v1694 = vcombine.low %v1685, %v1692
    %v1696 = vunpack.c.l.s4 1966171168
    %v1697 = vunpack.c.0.s8 %v1696
    %v1698 = vlaneseq
    %v1699 = vshrl.u32 %v1698, 7
    %v1700 = vsub.s32 %v1697, %v1699
    %v1701 = vrot.slane %v1693, %v1700
    %v1703 = vunpack.c.l.s4 1966171168
    %v1704 = vunpack.c.0.s8 %v1703
    %v1705 = vlaneseq
    %v1706 = vshrl.u32 %v1705, 7
    %v1707 = vsub.s32 %v1704, %v1706
    %v1708 = vrot.slane %v1694, %v1707
    %v1709 = vcombine.low %v1701, %v1708
    %v1710 = vcombine.low %v1638, %v1646
    %v1711 = vcombine.low %v1648, %v1631
    %v1712 = vcombine.low %v1645, %v1647
    %v1714 = vunpack.c.l.s4 1966171168
    %v1715 = vunpack.c.0.s8 %v1714
    %v1716 = vlaneseq
    %v1717 = vshrl.u32 %v1716, 7
    %v1718 = vsub.s32 %v1715, %v1717
    %v1719 = vrot.slane %v1710, %v1718
    %v1721 = vunpack.c.l.s4 1966171168
    %v1722 = vunpack.c.0.s8 %v1721
    %v1723 = vlaneseq
    %v1724 = vshrl.u32 %v1723, 7
    %v1725 = vsub.s32 %v1722, %v1724
    %v1726 = vrot.slane %v1711, %v1725
    %v1728 = vunpack.c.l.s4 1966171168
    %v1729 = vunpack.c.0.s8 %v1728
    %v1730 = vlaneseq
    %v1731 = vshrl.u32 %v1730, 7
    %v1732 = vsub.s32 %v1729, %v1731
    %v1733 = vrot.slane %v1712, %v1732
    %v1734 = vcombine.low %v1719, %v1726
    %v1736 = vunpack.c.l.s4 1966171168
    %v1737 = vunpack.c.0.s8 %v1736
    %v1738 = vlaneseq
    %v1739 = vshrl.u32 %v1738, 7
    %v1740 = vsub.s32 %v1737, %v1739
    %v1741 = vrot.slane %v1734, %v1740
    %v1743 = vunpack.c.l.s4 1966171168
    %v1744 = vunpack.c.0.s8 %v1743
    %v1745 = vlaneseq
    %v1746 = vshrl.u32 %v1745, 7
    %v1747 = vsub.s32 %v1744, %v1746
    %v1748 = vrot.slane %v1733, %v1747
    %v1749 = vcombine.low %v1741, %v1748
    %vm1750 = vcmask 326656
    %v1751 = vsel %vm1750, %v1709, 0
    %v1753 = vsel %vm1750, %v1749, 0
    %1755 = vmatprep.subr.mxu0 0.0
    %1756 = vmatpush1.msra.mxu0 %v1649
    %1757 = vmatprep.subr.mxu0 0.0
    %1758 = vmatpush1.msra.mxu0 %v1650
    %1759 = vmatprep.subr.mxu0 0.0
    %1760 = vmatpush1.msra.mxu0 %v1651
    %1761 = vmatprep.subr.mxu0 0.0
    %1762 = vmatpush1.msra.mxu0 %v1652
    %1763 = vmatprep.subr.mxu0 0.0
    %1764 = vmatpush1.msra.mxu0 %v1653
    %1765 = vmatprep.subr.mxu0 0.0
    %1766 = vmatpush1.msra.mxu0 0.0
    %1767 = vmatprep.subr.mxu0 0.0
    %1768 = vmatpush1.msra.mxu0 0.0
    %1769 = vmatprep.subr.mxu0 0.0
    %1770 = vmatpush1.msra.mxu0 0.0
    %1771 = vmatprep.subr.mxu0 0.0
    %1772 = vmatpush1.msra.mxu0 0.0
    %1773 = vmatprep.subr.mxu0 0.0
    %1774 = vmatpush1.msra.mxu0 0.0
    %1775 = vmatprep.subr.mxu0 0.0
    %1776 = vmatpush1.msra.mxu0 0.0
    %1777 = vmatprep.subr.mxu0 0.0
    %1778 = vmatpush1.msra.mxu0 0.0
    %1779 = vmatprep.subr.mxu0 0.0
    %1780 = vmatpush1.msra.mxu0 0.0
    %1781 = vmatprep.subr.mxu0 0.0
    %1782 = vmatpush1.msra.mxu0 0.0
    %1783 = vmatprep.subr.mxu0 0.0
    %1784 = vmatpush1.msra.mxu0 0.0
    %1785 = vmatprep.subr.mxu0 0.0
    %1786 = vmatpush1.msra.mxu0 0.0
    %1787 = vmatprep.subr.mxu0 0.0
    %1788 = vmatpush1.msra.mxu0 0.0
    %1789 = vmatprep.subr.mxu0 0.0
    %1790 = vmatpush1.msra.mxu0 0.0
    %1791 = vmatprep.subr.mxu0 0.0
    %1792 = vmatpush1.msra.mxu0 0.0
    %1793 = vmatprep.subr.mxu0 0.0
    %1794 = vmatpush1.msra.mxu0 0.0
    %1795 = vmatprep.subr.mxu0 0.0
    %1796 = vmatpush1.msra.mxu0 0.0
    %1797 = vmatprep.subr.mxu0 0.0
    %1798 = vmatpush1.msra.mxu0 0.0
    %1799 = vmatprep.subr.mxu0 0.0
    %1800 = vmatpush1.msra.mxu0 0.0
    %1801 = vmatprep.subr.mxu0 0.0
    %1802 = vmatpush1.msra.mxu0 0.0
    %1803 = vmatprep.subr.mxu0 0.0
    %1804 = vmatpush1.msra.mxu0 0.0
    %1805 = vmatprep.subr.mxu0 0.0
    %1806 = vmatpush1.msra.mxu0 0.0
    %1807 = vmatprep.subr.mxu0 0.0
    %1808 = vmatpush1.msra.mxu0 0.0
    %1809 = vmatprep.subr.mxu0 0.0
    %1810 = vmatpush1.msra.mxu0 0.0
    %1811 = vmatprep.subr.mxu0 0.0
    %1812 = vmatpush1.msra.mxu0 0.0
    %1813 = vmatprep.subr.mxu0 0.0
    %1814 = vmatpush1.msra.mxu0 0.0
    %1815 = vmatprep.subr.mxu0 0.0
    %1816 = vmatpush1.msra.mxu0 0.0
    %1817 = vmatprep.subr.mxu0 0.0
    %1818 = vmatpush1.msra.mxu0 0.0
    %1819 = vmatprep.mubr.f32.mxu0 0.0
    %1820 = vmatmul.mubr.f32.gmra.mrb[0].mxu0 %v1751
    %v1821 = vpop.f32.mrb[0].mxu0
    %v1822 = vadd.f32 %v1659, %v1821
    %v1823 = vpop.f32.mrb[0].mxu0
    %1824 = vmatprep.mubr.f32.mxu0 0.0
    %1825 = vmatmul.mubr.f32.gmra.mrb[0].mxu0 %v1753
    %v1826 = vpop.f32.mrb[0].mxu0
    %v1827 = vadd.f32 %v1659, %v1826
    %v1828 = vpop.f32.mrb[0].mxu0
    %1829 = vdwg.mxu0
    %v1830 = vmax.f32 %v1822, 0.0
    %v1831 = vmax.f32 %v1827, 0.0
    %v1834 = vcombine.high %v1830, %v1830
    %v1836 = vunpack.c.l.s4 1966171168
    %v1837 = vunpack.c.0.s8 %v1836
    %v1838 = vlaneseq
    %v1839 = vshrl.u32 %v1838, 7
    %v1840 = vsub.s32 %v1837, %v1839
    %v1841 = vrot.slane %v1830, %v1840
    %v1843 = vunpack.c.l.s4 1966171168
    %v1844 = vunpack.c.0.s8 %v1843
    %v1845 = vlaneseq
    %v1846 = vshrl.u32 %v1845, 7
    %v1847 = vsub.s32 %v1844, %v1846
    %v1848 = vrot.slane %v1834, %v1847
    %v1849 = vcombine.high %v1841, %v1841
    %v1850 = vcombine.high %v1848, %v1848
    %v1852 = vunpack.c.l.s4 1966171168
    %v1853 = vunpack.c.0.s8 %v1852
    %v1854 = vlaneseq
    %v1855 = vshrl.u32 %v1854, 7
    %v1856 = vsub.s32 %v1853, %v1855
    %v1857 = vrot.slane %v1841, %v1856
    %v1859 = vunpack.c.l.s4 1966171168
    %v1860 = vunpack.c.0.s8 %v1859
    %v1861 = vlaneseq
    %v1862 = vshrl.u32 %v1861, 7
    %v1863 = vsub.s32 %v1860, %v1862
    %v1864 = vrot.slane %v1848, %v1863
    %v1866 = vunpack.c.l.s4 1966171168
    %v1867 = vunpack.c.0.s8 %v1866
    %v1868 = vlaneseq
    %v1869 = vshrl.u32 %v1868, 7
    %v1870 = vsub.s32 %v1867, %v1869
    %v1871 = vrot.slane %v1849, %v1870
    %v1873 = vunpack.c.l.s4 1966171168
    %v1874 = vunpack.c.0.s8 %v1873
    %v1875 = vlaneseq
    %v1876 = vshrl.u32 %v1875, 7
    %v1877 = vsub.s32 %v1874, %v1876
    %v1878 = vrot.slane %v1850, %v1877
    %v1879 = vcombine.high %v1857, %v1857
    %v1880 = vcombine.high %v1864, %v1864
    %v1881 = vcombine.high %v1871, %v1871
    %v1882 = vcombine.high %v1878, %v1878
    %v1883 = vcombine.high %v1831, %v1831
    %v1885 = vunpack.c.l.s4 1966171168
    %v1886 = vunpack.c.0.s8 %v1885
    %v1887 = vlaneseq
    %v1888 = vshrl.u32 %v1887, 7
    %v1889 = vsub.s32 %v1886, %v1888
    %v1890 = vrot.slane %v1831, %v1889
    %v1892 = vunpack.c.l.s4 1966171168
    %v1893 = vunpack.c.0.s8 %v1892
    %v1894 = vlaneseq
    %v1895 = vshrl.u32 %v1894, 7
    %v1896 = vsub.s32 %v1893, %v1895
    %v1897 = vrot.slane %v1883, %v1896
    %v1898 = vcombine.high %v1890, %v1890
    %v1899 = vcombine.high %v1897, %v1897
    %v1901 = vunpack.c.l.s4 1966171168
    %v1902 = vunpack.c.0.s8 %v1901
    %v1903 = vlaneseq
    %v1904 = vshrl.u32 %v1903, 7
    %v1905 = vsub.s32 %v1902, %v1904
    %v1906 = vrot.slane %v1890, %v1905
    %v1908 = vunpack.c.l.s4 1966171168
    %v1909 = vunpack.c.0.s8 %v1908
    %v1910 = vlaneseq
    %v1911 = vshrl.u32 %v1910, 7
    %v1912 = vsub.s32 %v1909, %v1911
    %v1913 = vrot.slane %v1897, %v1912
    %v1915 = vunpack.c.l.s4 1966171168
    %v1916 = vunpack.c.0.s8 %v1915
    %v1917 = vlaneseq
    %v1918 = vshrl.u32 %v1917, 7
    %v1919 = vsub.s32 %v1916, %v1918
    %v1920 = vrot.slane %v1898, %v1919
    %v1922 = vunpack.c.l.s4 1966171168
    %v1923 = vunpack.c.0.s8 %v1922
    %v1924 = vlaneseq
    %v1925 = vshrl.u32 %v1924, 7
    %v1926 = vsub.s32 %v1923, %v1925
    %v1927 = vrot.slane %v1899, %v1926
    %v1928 = vcombine.high %v1906, %v1906
    %v1929 = vcombine.high %v1920, %v1920
    %v1930 = vcombine.low %v1857, %v1871
    %v1931 = vcombine.low %v1879, %v1881
    %v1932 = vcombine.low %v1864, %v1878
    %v1934 = vunpack.c.l.s4 1966171168
    %v1935 = vunpack.c.0.s8 %v1934
    %v1936 = vlaneseq
    %v1937 = vshrl.u32 %v1936, 7
    %v1938 = vsub.s32 %v1935, %v1937
    %v1939 = vrot.slane %v1930, %v1938
    %v1941 = vunpack.c.l.s4 1966171168
    %v1942 = vunpack.c.0.s8 %v1941
    %v1943 = vlaneseq
    %v1944 = vshrl.u32 %v1943, 7
    %v1945 = vsub.s32 %v1942, %v1944
    %v1946 = vrot.slane %v1931, %v1945
    %v1948 = vunpack.c.l.s4 1966171168
    %v1949 = vunpack.c.0.s8 %v1948
    %v1950 = vlaneseq
    %v1951 = vshrl.u32 %v1950, 7
    %v1952 = vsub.s32 %v1949, %v1951
    %v1953 = vrot.slane %v1932, %v1952
    %v1955 = vunpack.c.l.s4 1966171168
    %v1956 = vunpack.c.0.s8 %v1955
    %v1957 = vlaneseq
    %v1958 = vshrl.u32 %v1957, 7
    %v1959 = vsub.s32 %v1956, %v1958
    %v1960 = vrot.slane %v1880, %v1959
    %v1961 = vcombine.low %v1939, %v1946
    %v1962 = vcombine.low %v1953, %v1960
    %v1964 = vunpack.c.l.s4 1966171168
    %v1965 = vunpack.c.0.s8 %v1964
    %v1966 = vlaneseq
    %v1967 = vshrl.u32 %v1966, 7
    %v1968 = vsub.s32 %v1965, %v1967
    %v1969 = vrot.slane %v1961, %v1968
    %v1971 = vunpack.c.l.s4 1966171168
    %v1972 = vunpack.c.0.s8 %v1971
    %v1973 = vlaneseq
    %v1974 = vshrl.u32 %v1973, 7
    %v1975 = vsub.s32 %v1972, %v1974
    %v1976 = vrot.slane %v1962, %v1975
    %v1977 = vcombine.low %v1969, %v1976
    %v1978 = vcombine.low %v1882, %v1906
    %v1979 = vcombine.low %v1920, %v1928
    %v1980 = vcombine.low %v1929, %v1913
    %v1982 = vunpack.c.l.s4 1966171168
    %v1983 = vunpack.c.0.s8 %v1982
    %v1984 = vlaneseq
    %v1985 = vshrl.u32 %v1984, 7
    %v1986 = vsub.s32 %v1983, %v1985
    %v1987 = vrot.slane %v1978, %v1986
    %v1989 = vunpack.c.l.s4 1966171168
    %v1990 = vunpack.c.0.s8 %v1989
    %v1991 = vlaneseq
    %v1992 = vshrl.u32 %v1991, 7
    %v1993 = vsub.s32 %v1990, %v1992
    %v1994 = vrot.slane %v1979, %v1993
    %v1996 = vunpack.c.l.s4 1966171168
    %v1997 = vunpack.c.0.s8 %v1996
    %v1998 = vlaneseq
    %v1999 = vshrl.u32 %v1998, 7
    %v2000 = vsub.s32 %v1997, %v1999
    %v2001 = vrot.slane %v1980, %v2000
    %v2003 = vunpack.c.l.s4 1966171168
    %v2004 = vunpack.c.0.s8 %v2003
    %v2005 = vlaneseq
    %v2006 = vshrl.u32 %v2005, 7
    %v2007 = vsub.s32 %v2004, %v2006
    %v2008 = vrot.slane %v1927, %v2007
    %v2009 = vcombine.low %v1987, %v1994
    %v2010 = vcombine.low %v2001, %v2008
    %v2012 = vunpack.c.l.s4 1966171168
    %v2013 = vunpack.c.0.s8 %v2012
    %v2014 = vlaneseq
    %v2015 = vshrl.u32 %v2014, 7
    %v2016 = vsub.s32 %v2013, %v2015
    %v2017 = vrot.slane %v2009, %v2016
    %v2019 = vunpack.c.l.s4 1966171168
    %v2020 = vunpack.c.0.s8 %v2019
    %v2021 = vlaneseq
    %v2022 = vshrl.u32 %v2021, 7
    %v2023 = vsub.s32 %v2020, %v2022
    %v2024 = vrot.slane %v2010, %v2023
    %v2025 = vcombine.low %v2017, %v2024
    %vm2028 = vcmask 63488
    %v2029 = vsel %vm2028, %v1977, -inf
    %v2030 = vrot.slane %v2029, 4
    %v2031 = vmax.f32 %v2029, %v2030
    %v2032 = vrot.slane %v2031, 2
    %v2033 = vmax.f32 %v2031, %v2032
    %v2034 = vrot.slane %v2033, 1
    %v2035 = vmax.f32 %v2033, %v2034
    %v2036 = vsel %vm2028, %v2025, -inf
    %v2037 = vrot.slane %v2036, 4
    %v2038 = vmax.f32 %v2036, %v2037
    %v2039 = vrot.slane %v2038, 2
    %v2040 = vmax.f32 %v2038, %v2039
    %v2041 = vrot.slane %v2040, 1
    %v2042 = vmax.f32 %v2040, %v2041
    %v2043 = vld [vmem:[%s0] sm:$0x3]
    %v2044 = vld [vmem:[%s0 + $0x2] sm:$0x3]
    %v2045 = vld [vmem:[%s0 + $0x4] sm:$0x3]
    %v2046 = vld [vmem:[%s0 + $0x6] sm:$0x3]
    %v2047 = vld [vmem:[%s0 + $0x8] sm:$0x3]
    %v2048 = vld [vmem:[%s0 + $0xa] sm:$0x3]
    %v2049 = vld [vmem:[%s0 + $0xc] sm:$0x3]
    %v2050 = vld [vmem:[%s0 + $0xe] sm:$0x3]
    %v2051 = vld [vmem:[%s8] sm:$0xff]
    %v2052 = vld [vmem:[%s8 + $0x8] sm:$0xff]
    %v2053 = vld [vmem:[%s8 + $0x10] sm:$0xff]
    %v2054 = vld [vmem:[%s8 + $0x18] sm:$0xff]
    %v2063 = vcombine.low %v2043, %v2044
    %v2064 = vcombine.low %v2045, %v2046
    %v2066 = vunpack.c.l.s4 1983009808
    %v2067 = vunpack.c.0.s8 %v2066
    %v2068 = vlaneseq
    %v2069 = vshrl.u32 %v2068, 7
    %v2070 = vsub.s32 %v2067, %v2069
    %v2071 = vrot.slane %v2063, %v2070
    %v2073 = vunpack.c.l.s4 1983009808
    %v2074 = vunpack.c.0.s8 %v2073
    %v2075 = vlaneseq
    %v2076 = vshrl.u32 %v2075, 7
    %v2077 = vsub.s32 %v2074, %v2076
    %v2078 = vrot.slane %v2064, %v2077
    %v2079 = vcombine.low %v2071, %v2078
    %v2080 = vcombine.low %v2047, %v2048
    %v2081 = vcombine.low %v2049, %v2050
    %v2083 = vunpack.c.l.s4 1983009808
    %v2084 = vunpack.c.0.s8 %v2083
    %v2085 = vlaneseq
    %v2086 = vshrl.u32 %v2085, 7
    %v2087 = vsub.s32 %v2084, %v2086
    %v2088 = vrot.slane %v2080, %v2087
    %v2090 = vunpack.c.l.s4 1983009808
    %v2091 = vunpack.c.0.s8 %v2090
    %v2092 = vlaneseq
    %v2093 = vshrl.u32 %v2092, 7
    %v2094 = vsub.s32 %v2091, %v2093
    %v2095 = vrot.slane %v2081, %v2094
    %v2096 = vcombine.low %v2088, %v2095
    %v2097 = vsel %vm129, %v2079, 0
    %v2099 = vsel %vm129, %v2096, 0
    %2101 = vmatprep.subr.mxu0 %v2052
    %2102 = vmatpush1.msra.mxu0 %v2051
    %2103 = vmatprep.subr.mxu0 %v2054
    %2104 = vmatpush1.msra.mxu0 %v2053
    %2105 = vmatprep.subr.mxu0 0.0
    %2106 = vmatpush1.msra.mxu0 0.0
    %2107 = vmatprep.subr.mxu0 0.0
    %2108 = vmatpush1.msra.mxu0 0.0
    %2109 = vmatprep.subr.mxu0 0.0
    %2110 = vmatpush1.msra.mxu0 0.0
    %2111 = vmatprep.subr.mxu0 0.0
    %2112 = vmatpush1.msra.mxu0 0.0
    %2113 = vmatprep.subr.mxu0 0.0
    %2114 = vmatpush1.msra.mxu0 0.0
    %2115 = vmatprep.subr.mxu0 0.0
    %2116 = vmatpush1.msra.mxu0 0.0
    %2117 = vmatprep.subr.mxu0 0.0
    %2118 = vmatpush1.msra.mxu0 0.0
    %2119 = vmatprep.subr.mxu0 0.0
    %2120 = vmatpush1.msra.mxu0 0.0
    %2121 = vmatprep.subr.mxu0 0.0
    %2122 = vmatpush1.msra.mxu0 0.0
    %2123 = vmatprep.subr.mxu0 0.0
    %2124 = vmatpush1.msra.mxu0 0.0
    %2125 = vmatprep.subr.mxu0 0.0
    %2126 = vmatpush1.msra.mxu0 0.0
    %2127 = vmatprep.subr.mxu0 0.0
    %2128 = vmatpush1.msra.mxu0 0.0
    %2129 = vmatprep.subr.mxu0 0.0
    %2130 = vmatpush1.msra.mxu0 0.0
    %2131 = vmatprep.subr.mxu0 0.0
    %2132 = vmatpush1.msra.mxu0 0.0
    %2133 = vmatprep.subr.mxu0 0.0
    %2134 = vmatpush1.msra.mxu0 0.0
    %2135 = vmatprep.subr.mxu0 0.0
    %2136 = vmatpush1.msra.mxu0 0.0
    %2137 = vmatprep.subr.mxu0 0.0
    %2138 = vmatpush1.msra.mxu0 0.0
    %2139 = vmatprep.subr.mxu0 0.0
    %2140 = vmatpush1.msra.mxu0 0.0
    %2141 = vmatprep.subr.mxu0 0.0
    %2142 = vmatpush1.msra.mxu0 0.0
    %2143 = vmatprep.subr.mxu0 0.0
    %2144 = vmatpush1.msra.mxu0 0.0
    %2145 = vmatprep.subr.mxu0 0.0
    %2146 = vmatpush1.msra.mxu0 0.0
    %2147 = vmatprep.subr.mxu0 0.0
    %2148 = vmatpush1.msra.mxu0 0.0
    %2149 = vmatprep.subr.mxu0 0.0
    %2150 = vmatpush1.msra.mxu0 0.0
    %2151 = vmatprep.subr.mxu0 0.0
    %2152 = vmatpush1.msra.mxu0 0.0
    %2153 = vmatprep.subr.mxu0 0.0
    %2154 = vmatpush1.msra.mxu0 0.0
    %2155 = vmatprep.subr.mxu0 0.0
    %2156 = vmatpush1.msra.mxu0 0.0
    %2157 = vmatprep.subr.mxu0 0.0
    %2158 = vmatpush1.msra.mxu0 0.0
    %2159 = vmatprep.subr.mxu0 0.0
    %2160 = vmatpush1.msra.mxu0 0.0
    %2161 = vmatprep.subr.mxu0 0.0
    %2162 = vmatpush1.msra.mxu0 0.0
    %2163 = vmatprep.subr.mxu0 0.0
    %2164 = vmatpush1.msra.mxu0 0.0
    %2165 = vmatprep.mubr.f32.mxu0 0.0
    %2166 = vmatmul.mubr.f32.gmra.mrb[0].mxu0 %v2097
    %v2167 = vpop.f32.mrb[0].mxu0
    %v2168 = vadd.f32 0.0, %v2167
    %v2169 = vpop.f32.mrb[0].mxu0
    %v2170 = vadd.f32 0.0, %v2169
    %2171 = vmatprep.mubr.f32.mxu0 0.0
    %2172 = vmatmul.mubr.f32.gmra.mrb[0].mxu0 %v2099
    %v2173 = vpop.f32.mrb[0].mxu0
    %v2174 = vadd.f32 0.0, %v2173
    %v2175 = vpop.f32.mrb[0].mxu0
    %v2176 = vadd.f32 0.0, %v2175
    %2177 = vdwg.mxu0
    %v2178 = vld [vmem:[%s9] sm:$0xff]
    %v2179 = vld [vmem:[%s9 + $0x8] sm:$0xff]
    %vm2182 = vcmask 1041409
    %v2183 = vsel %vm2182, %v2042, %v2035
    %v2184 = vsel %vm124, %v2183, 0
    %2186 = vmatprep.subr.mxu0 %v2179
    %2187 = vmatpush1.msra.mxu0 %v2178
    %2188 = vmatprep.subr.mxu0 0.0
    %2189 = vmatpush1.msra.mxu0 0.0
    %2190 = vmatprep.subr.mxu0 0.0
    %2191 = vmatpush1.msra.mxu0 0.0
    %2192 = vmatprep.subr.mxu0 0.0
    %2193 = vmatpush1.msra.mxu0 0.0
    %2194 = vmatprep.subr.mxu0 0.0
    %2195 = vmatpush1.msra.mxu0 0.0
    %2196 = vmatprep.subr.mxu0 0.0
    %2197 = vmatpush1.msra.mxu0 0.0
    %2198 = vmatprep.subr.mxu0 0.0
    %2199 = vmatpush1.msra.mxu0 0.0
    %2200 = vmatprep.subr.mxu0 0.0
    %2201 = vmatpush1.msra.mxu0 0.0
    %2202 = vmatprep.subr.mxu0 0.0
    %2203 = vmatpush1.msra.mxu0 0.0
    %2204 = vmatprep.subr.mxu0 0.0
    %2205 = vmatpush1.msra.mxu0 0.0
    %2206 = vmatprep.subr.mxu0 0.0
    %2207 = vmatpush1.msra.mxu0 0.0
    %2208 = vmatprep.subr.mxu0 0.0
    %2209 = vmatpush1.msra.mxu0 0.0
    %2210 = vmatprep.subr.mxu0 0.0
    %2211 = vmatpush1.msra.mxu0 0.0
    %2212 = vmatprep.subr.mxu0 0.0
    %2213 = vmatpush1.msra.mxu0 0.0
    %2214 = vmatprep.subr.mxu0 0.0
    %2215 = vmatpush1.msra.mxu0 0.0
    %2216 = vmatprep.subr.mxu0 0.0
    %2217 = vmatpush1.msra.mxu0 0.0
    %2218 = vmatprep.subr.mxu0 0.0
    %2219 = vmatpush1.msra.mxu0 0.0
    %2220 = vmatprep.subr.mxu0 0.0
    %2221 = vmatpush1.msra.mxu0 0.0
    %2222 = vmatprep.subr.mxu0 0.0
    %2223 = vmatpush1.msra.mxu0 0.0
    %2224 = vmatprep.subr.mxu0 0.0
    %2225 = vmatpush1.msra.mxu0 0.0
    %2226 = vmatprep.subr.mxu0 0.0
    %2227 = vmatpush1.msra.mxu0 0.0
    %2228 = vmatprep.subr.mxu0 0.0
    %2229 = vmatpush1.msra.mxu0 0.0
    %2230 = vmatprep.subr.mxu0 0.0
    %2231 = vmatpush1.msra.mxu0 0.0
    %2232 = vmatprep.subr.mxu0 0.0
    %2233 = vmatpush1.msra.mxu0 0.0
    %2234 = vmatprep.subr.mxu0 0.0
    %2235 = vmatpush1.msra.mxu0 0.0
    %2236 = vmatprep.subr.mxu0 0.0
    %2237 = vmatpush1.msra.mxu0 0.0
    %2238 = vmatprep.subr.mxu0 0.0
    %2239 = vmatpush1.msra.mxu0 0.0
    %2240 = vmatprep.subr.mxu0 0.0
    %2241 = vmatpush1.msra.mxu0 0.0
    %2242 = vmatprep.subr.mxu0 0.0
    %2243 = vmatpush1.msra.mxu0 0.0
    %2244 = vmatprep.subr.mxu0 0.0
    %2245 = vmatpush1.msra.mxu0 0.0
    %2246 = vmatprep.subr.mxu0 0.0
    %2247 = vmatpush1.msra.mxu0 0.0
    %2248 = vmatprep.subr.mxu0 0.0
    %2249 = vmatpush1.msra.mxu0 0.0
    %2250 = vmatprep.mubr.f32.mxu0 0.0
    %2251 = vmatmul.mubr.f32.gmra.mrb[0].mxu0 %v2184
    %v2252 = vpop.f32.mrb[0].mxu0
    %v2253 = vadd.f32 0.0, %v2252
    %v2254 = vpop.f32.mrb[0].mxu0
    %v2255 = vadd.f32 0.0, %v2254
    %2256 = vdwg.mxu0
    %v2261 = vcombine.low %v2168, %v2170
    %v2262 = vcombine.high %v2168, %v2170
    %v2264 = vunpack.c.l.s4 1983009808
    %v2265 = vunpack.c.0.s8 %v2264
    %v2266 = vlaneseq
    %v2267 = vshrl.u32 %v2266, 7
    %v2268 = vsub.s32 %v2265, %v2267
    %v2269 = vrot.slane %v2261, %v2268
    %v2271 = vunpack.c.l.s4 1983009808
    %v2272 = vunpack.c.0.s8 %v2271
    %v2273 = vlaneseq
    %v2274 = vshrl.u32 %v2273, 7
    %v2275 = vsub.s32 %v2272, %v2274
    %v2276 = vrot.slane %v2262, %v2275
    %v2277 = vcombine.high %v2269, %v2269
    %v2278 = vcombine.high %v2276, %v2276
    %v2279 = vcombine.low %v2174, %v2176
    %v2280 = vcombine.high %v2174, %v2176
    %v2282 = vunpack.c.l.s4 1983009808
    %v2283 = vunpack.c.0.s8 %v2282
    %v2284 = vlaneseq
    %v2285 = vshrl.u32 %v2284, 7
    %v2286 = vsub.s32 %v2283, %v2285
    %v2287 = vrot.slane %v2279, %v2286
    %v2289 = vunpack.c.l.s4 1983009808
    %v2290 = vunpack.c.0.s8 %v2289
    %v2291 = vlaneseq
    %v2292 = vshrl.u32 %v2291, 7
    %v2293 = vsub.s32 %v2290, %v2292
    %v2294 = vrot.slane %v2280, %v2293
    %v2295 = vcombine.high %v2287, %v2287
    %v2296 = vcombine.high %v2294, %v2294
    %v2307 = vcombine.low %v2253, %v2255
    %v2309 = vunpack.c.l.s4 1983009808
    %v2310 = vunpack.c.0.s8 %v2309
    %v2311 = vlaneseq
    %v2312 = vshrl.u32 %v2311, 7
    %v2313 = vsub.s32 %v2310, %v2312
    %v2314 = vrot.slane %v2307, %v2313
    %v2316 = vadd.f32 %v2269, %v2314
    %v2317 = vadd.f32 %v2277, %v2314
    %v2318 = vadd.f32 %v2276, %v2314
    %v2319 = vadd.f32 %v2278, %v2314
    %v2320 = vadd.f32 %v2287, %v2314
    %v2321 = vadd.f32 %v2295, %v2314
    %v2322 = vadd.f32 %v2294, %v2314
    %v2323 = vadd.f32 %v2296, %v2314
    %v2324 = vld [vmem:[%s10] sm:$0x3]
    %v2326 = vlaneseq
    %v2327 = vshrl.u32 %v2326, 7
    %v2328 = vsub.s32 0, %v2327
    %v2329 = vrot.slane %v2324, %v2328
    %v2330 = vlaneseq
    %v2331 = vshrl.u32 %v2330, 7
    %v2332 = vsub.s32 1, %v2331
    %v2333 = vrot.slane %v2324, %v2332
    %v2334 = vcombine.low %v2329, %v2333
    %v2336 = vunpack.c.l.s4 1983009808
    %v2337 = vunpack.c.0.s8 %v2336
    %v2338 = vlaneseq
    %v2339 = vshrl.u32 %v2338, 7
    %v2340 = vsub.s32 %v2337, %v2339
    %v2341 = vrot.slane %v2334, %v2340
    %v2343 = vadd.f32 %v2316, %v2341
    %v2344 = vadd.f32 %v2317, %v2341
    %v2345 = vadd.f32 %v2318, %v2341
    %v2346 = vadd.f32 %v2319, %v2341
    %v2347 = vadd.f32 %v2320, %v2341
    %v2348 = vadd.f32 %v2321, %v2341
    %v2349 = vadd.f32 %v2322, %v2341
    %v2350 = vadd.f32 %v2323, %v2341
    %v2351 = vld [vmem:[%s13] sm:$0x3]
    %v2352 = vld [vmem:[%s14] sm:$0x3]
    %v2353 = vld [vmem:[%s11] sm:$0xff]
    %v2354 = vld [vmem:[%s11 + $0x8] sm:$0xff]
    %v2355 = vld [vmem:[%s11 + $0x10] sm:$0xff]
    %v2356 = vld [vmem:[%s11 + $0x18] sm:$0xff]
    %v2358 = vsel %vm895, %v2351, 0
    %2360 = vmatprep.subr.mxu0 0.0
    %2361 = vmatpush1.msra.mxu0 %v2353
    %2362 = vmatprep.subr.mxu0 0.0
    %2363 = vmatpush1.msra.mxu0 %v2354
    %2364 = vmatprep.subr.mxu0 0.0
    %2365 = vmatpush1.msra.mxu0 %v2355
    %2366 = vmatprep.subr.mxu0 0.0
    %2367 = vmatpush1.msra.mxu0 %v2356
    %2368 = vmatprep.subr.mxu0 0.0
    %2369 = vmatpush1.msra.mxu0 0.0
    %2370 = vmatprep.subr.mxu0 0.0
    %2371 = vmatpush1.msra.mxu0 0.0
    %2372 = vmatprep.subr.mxu0 0.0
    %2373 = vmatpush1.msra.mxu0 0.0
    %2374 = vmatprep.subr.mxu0 0.0
    %2375 = vmatpush1.msra.mxu0 0.0
    %2376 = vmatprep.subr.mxu0 0.0
    %2377 = vmatpush1.msra.mxu0 0.0
    %2378 = vmatprep.subr.mxu0 0.0
    %2379 = vmatpush1.msra.mxu0 0.0
    %2380 = vmatprep.subr.mxu0 0.0
    %2381 = vmatpush1.msra.mxu0 0.0
    %2382 = vmatprep.subr.mxu0 0.0
    %2383 = vmatpush1.msra.mxu0 0.0
    %2384 = vmatprep.subr.mxu0 0.0
    %2385 = vmatpush1.msra.mxu0 0.0
    %2386 = vmatprep.subr.mxu0 0.0
    %2387 = vmatpush1.msra.mxu0 0.0
    %2388 = vmatprep.subr.mxu0 0.0
    %2389 = vmatpush1.msra.mxu0 0.0
    %2390 = vmatprep.subr.mxu0 0.0
    %2391 = vmatpush1.msra.mxu0 0.0
    %2392 = vmatprep.subr.mxu0 0.0
    %2393 = vmatpush1.msra.mxu0 0.0
    %2394 = vmatprep.subr.mxu0 0.0
    %2395 = vmatpush1.msra.mxu0 0.0
    %2396 = vmatprep.subr.mxu0 0.0
    %2397 = vmatpush1.msra.mxu0 0.0
    %2398 = vmatprep.subr.mxu0 0.0
    %2399 = vmatpush1.msra.mxu0 0.0
    %2400 = vmatprep.subr.mxu0 0.0
    %2401 = vmatpush1.msra.mxu0 0.0
    %2402 = vmatprep.subr.mxu0 0.0
    %2403 = vmatpush1.msra.mxu0 0.0
    %2404 = vmatprep.subr.mxu0 0.0
    %2405 = vmatpush1.msra.mxu0 0.0
    %2406 = vmatprep.subr.mxu0 0.0
    %2407 = vmatpush1.msra.mxu0 0.0
    %2408 = vmatprep.subr.mxu0 0.0
    %2409 = vmatpush1.msra.mxu0 0.0
    %2410 = vmatprep.subr.mxu0 0.0
    %2411 = vmatpush1.msra.mxu0 0.0
    %2412 = vmatprep.subr.mxu0 0.0
    %2413 = vmatpush1.msra.mxu0 0.0
    %2414 = vmatprep.subr.mxu0 0.0
    %2415 = vmatpush1.msra.mxu0 0.0
    %2416 = vmatprep.subr.mxu0 0.0
    %2417 = vmatpush1.msra.mxu0 0.0
    %2418 = vmatprep.subr.mxu0 0.0
    %2419 = vmatpush1.msra.mxu0 0.0
    %2420 = vmatprep.subr.mxu0 0.0
    %2421 = vmatpush1.msra.mxu0 0.0
    %2422 = vmatprep.subr.mxu0 0.0
    %2423 = vmatpush1.msra.mxu0 0.0
    %2424 = vmatprep.mubr.f32.mxu0 0.0
    %2425 = vmatmul.mubr.f32.gmra.mrb[0].mxu0 %v2358
    %v2426 = vpop.f32.mrb[0].mxu0
    %v2427 = vadd.f32 0.0, %v2426
    %v2428 = vpop.f32.mrb[0].mxu0
    %2429 = vdwg.mxu0
    %v2430 = vadd.f32 %v2343, %v2427
    %v2431 = vxor.u32 %v2430, 2147483648
    %v2432 = vmul.f32 %v2431, 1.442695
    %v2433 = vpow.pop %v2432
    %v2434 = vadd.f32 %v2433, 1.0
    %v2435 = vrcp.pop %v2434
    %v2436 = vmul.f32 1.0, %v2435
    %v2437 = vtanh.pop %v2430
    %v2440 = vunpack.c.l.s4 1983009808
    %v2441 = vunpack.c.0.s8 %v2440
    %v2442 = vlaneseq
    %v2443 = vshrl.u32 %v2442, 7
    %v2444 = vsub.s32 %v2441, %v2443
    %v2445 = vrot.slane %v2352, %v2444
    %2446 = vrot.lane.b32.xlu0 %v2445, 32
    %v2447 = vpop.permute.xlu0 %2446
    %v2449 = vmul.f32 %v2436, %v2447
    %2451 = vrot.lane.b32.xlu0 %v2437, 64
    %v2452 = vpop.permute.xlu0 %2451
    %v2454 = vmul.f32 %v2436, %v2452
    %2456 = vrot.lane.b32.xlu0 %v2454, 32
    %v2457 = vpop.permute.xlu0 %2456
    %v2459 = vadd.f32 %v2449, %v2457
    %v2460 = vtanh.pop %v2459
    %2462 = vrot.lane.b32.xlu0 %v2460, 64
    %v2463 = vpop.permute.xlu0 %2462
    %v2465 = vmul.f32 %v2436, %v2463
    %v2468 = vunpack.c.l.s4 1983009808
    %v2469 = vunpack.c.0.s8 %v2468
    %v2470 = vlaneseq
    %v2471 = vshrl.u32 %v2470, 7
    %v2472 = vsub.s32 %v2469, %v2471
    %v2473 = vrot.slane %v2465, %v2472
    %2474 = vrot.lane.b32.xlu0 %v2473, 32
    %v2475 = vpop.permute.xlu0 %2474
    %vm2477 = vcmask 254976
    %2478 = vst.msk [vmem:[#allocation2] sm:$0x3] %vm2477, %v2475
    %v2479 = vld [vmem:[%s11] sm:$0xff]
    %v2480 = vld [vmem:[%s11 + $0x8] sm:$0xff]
    %v2481 = vld [vmem:[%s11 + $0x10] sm:$0xff]
    %v2482 = vld [vmem:[%s11 + $0x18] sm:$0xff]
    %v2483 = vsel %vm895, %v2475, 0
    %2485 = vmatprep.subr.mxu0 0.0
    %2486 = vmatpush1.msra.mxu0 %v2479
    %2487 = vmatprep.subr.mxu0 0.0
    %2488 = vmatpush1.msra.mxu0 %v2480
    %2489 = vmatprep.subr.mxu0 0.0
    %2490 = vmatpush1.msra.mxu0 %v2481
    %2491 = vmatprep.subr.mxu0 0.0
    %2492 = vmatpush1.msra.mxu0 %v2482
    %2493 = vmatprep.subr.mxu0 0.0
    %2494 = vmatpush1.msra.mxu0 0.0
    %2495 = vmatprep.subr.mxu0 0.0
    %2496 = vmatpush1.msra.mxu0 0.0
    %2497 = vmatprep.subr.mxu0 0.0
    %2498 = vmatpush1.msra.mxu0 0.0
    %2499 = vmatprep.subr.mxu0 0.0
    %2500 = vmatpush1.msra.mxu0 0.0
    %2501 = vmatprep.subr.mxu0 0.0
    %2502 = vmatpush1.msra.mxu0 0.0
    %2503 = vmatprep.subr.mxu0 0.0
    %2504 = vmatpush1.msra.mxu0 0.0
    %2505 = vmatprep.subr.mxu0 0.0
    %2506 = vmatpush1.msra.mxu0 0.0
    %2507 = vmatprep.subr.mxu0 0.0
    %2508 = vmatpush1.msra.mxu0 0.0
    %2509 = vmatprep.subr.mxu0 0.0
    %2510 = vmatpush1.msra.mxu0 0.0
    %2511 = vmatprep.subr.mxu0 0.0
    %2512 = vmatpush1.msra.mxu0 0.0
    %2513 = vmatprep.subr.mxu0 0.0
    %2514 = vmatpush1.msra.mxu0 0.0
    %2515 = vmatprep.subr.mxu0 0.0
    %2516 = vmatpush1.msra.mxu0 0.0
    %2517 = vmatprep.subr.mxu0 0.0
    %2518 = vmatpush1.msra.mxu0 0.0
    %2519 = vmatprep.subr.mxu0 0.0
    %2520 = vmatpush1.msra.mxu0 0.0
    %2521 = vmatprep.subr.mxu0 0.0
    %2522 = vmatpush1.msra.mxu0 0.0
    %2523 = vmatprep.subr.mxu0 0.0
    %2524 = vmatpush1.msra.mxu0 0.0
    %2525 = vmatprep.subr.mxu0 0.0
    %2526 = vmatpush1.msra.mxu0 0.0
    %2527 = vmatprep.subr.mxu0 0.0
    %2528 = vmatpush1.msra.mxu0 0.0
    %2529 = vmatprep.subr.mxu0 0.0
    %2530 = vmatpush1.msra.mxu0 0.0
    %2531 = vmatprep.subr.mxu0 0.0
    %2532 = vmatpush1.msra.mxu0 0.0
    %2533 = vmatprep.subr.mxu0 0.0
    %2534 = vmatpush1.msra.mxu0 0.0
    %2535 = vmatprep.subr.mxu0 0.0
    %2536 = vmatpush1.msra.mxu0 0.0
    %2537 = vmatprep.subr.mxu0 0.0
    %2538 = vmatpush1.msra.mxu0 0.0
    %2539 = vmatprep.subr.mxu0 0.0
    %2540 = vmatpush1.msra.mxu0 0.0
    %2541 = vmatprep.subr.mxu0 0.0
    %2542 = vmatpush1.msra.mxu0 0.0
    %2543 = vmatprep.subr.mxu0 0.0
    %2544 = vmatpush1.msra.mxu0 0.0
    %2545 = vmatprep.subr.mxu0 0.0
    %2546 = vmatpush1.msra.mxu0 0.0
    %2547 = vmatprep.subr.mxu0 0.0
    %2548 = vmatpush1.msra.mxu0 0.0
    %2549 = vmatprep.mubr.f32.mxu0 0.0
    %2550 = vmatmul.mubr.f32.gmra.mrb[0].mxu0 %v2483
    %v2551 = vpop.f32.mrb[0].mxu0
    %v2552 = vadd.f32 0.0, %v2551
    %v2553 = vpop.f32.mrb[0].mxu0
    %2554 = vdwg.mxu0
    %v2555 = vadd.f32 %v2344, %v2552
    %v2556 = vxor.u32 %v2555, 2147483648
    %v2557 = vmul.f32 %v2556, 1.442695
    %v2558 = vpow.pop %v2557
    %v2559 = vadd.f32 %v2558, 1.0
    %v2560 = vrcp.pop %v2559
    %v2561 = vmul.f32 1.0, %v2560
    %v2562 = vtanh.pop %v2555
    %v2563 = vmul.f32 %v2561, %v2459
    %2565 = vrot.lane.b32.xlu0 %v2562, 64
    %v2566 = vpop.permute.xlu0 %2565
    %v2568 = vmul.f32 %v2561, %v2566
    %2570 = vrot.lane.b32.xlu0 %v2568, 32
    %v2571 = vpop.permute.xlu0 %2570
    %v2573 = vadd.f32 %v2563, %v2571
    %v2574 = vtanh.pop %v2573
    %2576 = vrot.lane.b32.xlu0 %v2574, 64
    %v2577 = vpop.permute.xlu0 %2576
    %v2579 = vmul.f32 %v2561, %v2577
    %v2582 = vunpack.c.l.s4 1983009808
    %v2583 = vunpack.c.0.s8 %v2582
    %v2584 = vlaneseq
    %v2585 = vshrl.u32 %v2584, 7
    %v2586 = vsub.s32 %v2583, %v2585
    %v2587 = vrot.slane %v2579, %v2586
    %2588 = vrot.lane.b32.xlu0 %v2587, 32
    %v2589 = vpop.permute.xlu0 %2588
    %s2591 = scalar_lea.vmem [#allocation2], 2
    %2592 = vst.msk [vmem:[%s2591] sm:$0x3] %vm2477, %v2589
    %v2593 = vld [vmem:[%s11] sm:$0xff]
    %v2594 = vld [vmem:[%s11 + $0x8] sm:$0xff]
    %v2595 = vld [vmem:[%s11 + $0x10] sm:$0xff]
    %v2596 = vld [vmem:[%s11 + $0x18] sm:$0xff]
    %v2597 = vsel %vm895, %v2589, 0
    %2599 = vmatprep.subr.mxu0 0.0
    %2600 = vmatpush1.msra.mxu0 %v2593
    %2601 = vmatprep.subr.mxu0 0.0
    %2602 = vmatpush1.msra.mxu0 %v2594
    %2603 = vmatprep.subr.mxu0 0.0
    %2604 = vmatpush1.msra.mxu0 %v2595
    %2605 = vmatprep.subr.mxu0 0.0
    %2606 = vmatpush1.msra.mxu0 %v2596
    %2607 = vmatprep.subr.mxu0 0.0
    %2608 = vmatpush1.msra.mxu0 0.0
    %2609 = vmatprep.subr.mxu0 0.0
    %2610 = vmatpush1.msra.mxu0 0.0
    %2611 = vmatprep.subr.mxu0 0.0
    %2612 = vmatpush1.msra.mxu0 0.0
    %2613 = vmatprep.subr.mxu0 0.0
    %2614 = vmatpush1.msra.mxu0 0.0
    %2615 = vmatprep.subr.mxu0 0.0
    %2616 = vmatpush1.msra.mxu0 0.0
    %2617 = vmatprep.subr.mxu0 0.0
    %2618 = vmatpush1.msra.mxu0 0.0
    %2619 = vmatprep.subr.mxu0 0.0
    %2620 = vmatpush1.msra.mxu0 0.0
    %2621 = vmatprep.subr.mxu0 0.0
    %2622 = vmatpush1.msra.mxu0 0.0
    %2623 = vmatprep.subr.mxu0 0.0
    %2624 = vmatpush1.msra.mxu0 0.0
    %2625 = vmatprep.subr.mxu0 0.0
    %2626 = vmatpush1.msra.mxu0 0.0
    %2627 = vmatprep.subr.mxu0 0.0
    %2628 = vmatpush1.msra.mxu0 0.0
    %2629 = vmatprep.subr.mxu0 0.0
    %2630 = vmatpush1.msra.mxu0 0.0
    %2631 = vmatprep.subr.mxu0 0.0
    %2632 = vmatpush1.msra.mxu0 0.0
    %2633 = vmatprep.subr.mxu0 0.0
    %2634 = vmatpush1.msra.mxu0 0.0
    %2635 = vmatprep.subr.mxu0 0.0
    %2636 = vmatpush1.msra.mxu0 0.0
    %2637 = vmatprep.subr.mxu0 0.0
    %2638 = vmatpush1.msra.mxu0 0.0
    %2639 = vmatprep.subr.mxu0 0.0
    %2640 = vmatpush1.msra.mxu0 0.0
    %2641 = vmatprep.subr.mxu0 0.0
    %2642 = vmatpush1.msra.mxu0 0.0
    %2643 = vmatprep.subr.mxu0 0.0
    %2644 = vmatpush1.msra.mxu0 0.0
    %2645 = vmatprep.subr.mxu0 0.0
    %2646 = vmatpush1.msra.mxu0 0.0
    %2647 = vmatprep.subr.mxu0 0.0
    %2648 = vmatpush1.msra.mxu0 0.0
    %2649 = vmatprep.subr.mxu0 0.0
    %2650 = vmatpush1.msra.mxu0 0.0
    %2651 = vmatprep.subr.mxu0 0.0
    %2652 = vmatpush1.msra.mxu0 0.0
    %2653 = vmatprep.subr.mxu0 0.0
    %2654 = vmatpush1.msra.mxu0 0.0
    %2655 = vmatprep.subr.mxu0 0.0
    %2656 = vmatpush1.msra.mxu0 0.0
    %2657 = vmatprep.subr.mxu0 0.0
    %2658 = vmatpush1.msra.mxu0 0.0
    %2659 = vmatprep.subr.mxu0 0.0
    %2660 = vmatpush1.msra.mxu0 0.0
    %2661 = vmatprep.subr.mxu0 0.0
    %2662 = vmatpush1.msra.mxu0 0.0
    %2663 = vmatprep.mubr.f32.mxu0 0.0
    %2664 = vmatmul.mubr.f32.gmra.mrb[0].mxu0 %v2597
    %v2665 = vpop.f32.mrb[0].mxu0
    %v2666 = vadd.f32 0.0, %v2665
    %v2667 = vpop.f32.mrb[0].mxu0
    %2668 = vdwg.mxu0
    %v2669 = vadd.f32 %v2345, %v2666
    %v2670 = vxor.u32 %v2669, 2147483648
    %v2671 = vmul.f32 %v2670, 1.442695
    %v2672 = vpow.pop %v2671
    %v2673 = vadd.f32 %v2672, 1.0
    %v2674 = vrcp.pop %v2673
    %v2675 = vmul.f32 1.0, %v2674
    %v2676 = vtanh.pop %v2669
    %v2677 = vmul.f32 %v2675, %v2573
    %2679 = vrot.lane.b32.xlu0 %v2676, 64
    %v2680 = vpop.permute.xlu0 %2679
    %v2682 = vmul.f32 %v2675, %v2680
    %2684 = vrot.lane.b32.xlu0 %v2682, 32
    %v2685 = vpop.permute.xlu0 %2684
    %v2687 = vadd.f32 %v2677, %v2685
    %v2688 = vtanh.pop %v2687
    %2690 = vrot.lane.b32.xlu0 %v2688, 64
    %v2691 = vpop.permute.xlu0 %2690
    %v2693 = vmul.f32 %v2675, %v2691
    %v2696 = vunpack.c.l.s4 1983009808
    %v2697 = vunpack.c.0.s8 %v2696
    %v2698 = vlaneseq
    %v2699 = vshrl.u32 %v2698, 7
    %v2700 = vsub.s32 %v2697, %v2699
    %v2701 = vrot.slane %v2693, %v2700
    %2702 = vrot.lane.b32.xlu0 %v2701, 32
    %v2703 = vpop.permute.xlu0 %2702
    %s2705 = scalar_lea.vmem [#allocation2], 4
    %2706 = vst.msk [vmem:[%s2705] sm:$0x3] %vm2477, %v2703
    %v2707 = vld [vmem:[%s11] sm:$0xff]
    %v2708 = vld [vmem:[%s11 + $0x8] sm:$0xff]
    %v2709 = vld [vmem:[%s11 + $0x10] sm:$0xff]
    %v2710 = vld [vmem:[%s11 + $0x18] sm:$0xff]
    %v2711 = vsel %vm895, %v2703, 0
    %2713 = vmatprep.subr.mxu0 0.0
    %2714 = vmatpush1.msra.mxu0 %v2707
    %2715 = vmatprep.subr.mxu0 0.0
    %2716 = vmatpush1.msra.mxu0 %v2708
    %2717 = vmatprep.subr.mxu0 0.0
    %2718 = vmatpush1.msra.mxu0 %v2709
    %2719 = vmatprep.subr.mxu0 0.0
    %2720 = vmatpush1.msra.mxu0 %v2710
    %2721 = vmatprep.subr.mxu0 0.0
    %2722 = vmatpush1.msra.mxu0 0.0
    %2723 = vmatprep.subr.mxu0 0.0
    %2724 = vmatpush1.msra.mxu0 0.0
    %2725 = vmatprep.subr.mxu0 0.0
    %2726 = vmatpush1.msra.mxu0 0.0
    %2727 = vmatprep.subr.mxu0 0.0
    %2728 = vmatpush1.msra.mxu0 0.0
    %2729 = vmatprep.subr.mxu0 0.0
    %2730 = vmatpush1.msra.mxu0 0.0
    %2731 = vmatprep.subr.mxu0 0.0
    %2732 = vmatpush1.msra.mxu0 0.0
    %2733 = vmatprep.subr.mxu0 0.0
    %2734 = vmatpush1.msra.mxu0 0.0
    %2735 = vmatprep.subr.mxu0 0.0
    %2736 = vmatpush1.msra.mxu0 0.0
    %2737 = vmatprep.subr.mxu0 0.0
    %2738 = vmatpush1.msra.mxu0 0.0
    %2739 = vmatprep.subr.mxu0 0.0
    %2740 = vmatpush1.msra.mxu0 0.0
    %2741 = vmatprep.subr.mxu0 0.0
    %2742 = vmatpush1.msra.mxu0 0.0
    %2743 = vmatprep.subr.mxu0 0.0
    %2744 = vmatpush1.msra.mxu0 0.0
    %2745 = vmatprep.subr.mxu0 0.0
    %2746 = vmatpush1.msra.mxu0 0.0
    %2747 = vmatprep.subr.mxu0 0.0
    %2748 = vmatpush1.msra.mxu0 0.0
    %2749 = vmatprep.subr.mxu0 0.0
    %2750 = vmatpush1.msra.mxu0 0.0
    %2751 = vmatprep.subr.mxu0 0.0
    %2752 = vmatpush1.msra.mxu0 0.0
    %2753 = vmatprep.subr.mxu0 0.0
    %2754 = vmatpush1.msra.mxu0 0.0
    %2755 = vmatprep.subr.mxu0 0.0
    %2756 = vmatpush1.msra.mxu0 0.0
    %2757 = vmatprep.subr.mxu0 0.0
    %2758 = vmatpush1.msra.mxu0 0.0
    %2759 = vmatprep.subr.mxu0 0.0
    %2760 = vmatpush1.msra.mxu0 0.0
    %2761 = vmatprep.subr.mxu0 0.0
    %2762 = vmatpush1.msra.mxu0 0.0
    %2763 = vmatprep.subr.mxu0 0.0
    %2764 = vmatpush1.msra.mxu0 0.0
    %2765 = vmatprep.subr.mxu0 0.0
    %2766 = vmatpush1.msra.mxu0 0.0
    %2767 = vmatprep.subr.mxu0 0.0
    %2768 = vmatpush1.msra.mxu0 0.0
    %2769 = vmatprep.subr.mxu0 0.0
    %2770 = vmatpush1.msra.mxu0 0.0
    %2771 = vmatprep.subr.mxu0 0.0
    %2772 = vmatpush1.msra.mxu0 0.0
    %2773 = vmatprep.subr.mxu0 0.0
    %2774 = vmatpush1.msra.mxu0 0.0
    %2775 = vmatprep.subr.mxu0 0.0
    %2776 = vmatpush1.msra.mxu0 0.0
    %2777 = vmatprep.mubr.f32.mxu0 0.0
    %2778 = vmatmul.mubr.f32.gmra.mrb[0].mxu0 %v2711
    %v2779 = vpop.f32.mrb[0].mxu0
    %v2780 = vadd.f32 0.0, %v2779
    %v2781 = vpop.f32.mrb[0].mxu0
    %2782 = vdwg.mxu0
    %v2783 = vadd.f32 %v2346, %v2780
    %v2784 = vxor.u32 %v2783, 2147483648
    %v2785 = vmul.f32 %v2784, 1.442695
    %v2786 = vpow.pop %v2785
    %v2787 = vadd.f32 %v2786, 1.0
    %v2788 = vrcp.pop %v2787
    %v2789 = vmul.f32 1.0, %v2788
    %v2790 = vtanh.pop %v2783
    %v2791 = vmul.f32 %v2789, %v2687
    %2793 = vrot.lane.b32.xlu0 %v2790, 64
    %v2794 = vpop.permute.xlu0 %2793
    %v2796 = vmul.f32 %v2789, %v2794
    %2798 = vrot.lane.b32.xlu0 %v2796, 32
    %v2799 = vpop.permute.xlu0 %2798
    %v2801 = vadd.f32 %v2791, %v2799
    %v2802 = vtanh.pop %v2801
    %2804 = vrot.lane.b32.xlu0 %v2802, 64
    %v2805 = vpop.permute.xlu0 %2804
    %v2807 = vmul.f32 %v2789, %v2805
    %v2810 = vunpack.c.l.s4 1983009808
    %v2811 = vunpack.c.0.s8 %v2810
    %v2812 = vlaneseq
    %v2813 = vshrl.u32 %v2812, 7
    %v2814 = vsub.s32 %v2811, %v2813
    %v2815 = vrot.slane %v2807, %v2814
    %2816 = vrot.lane.b32.xlu0 %v2815, 32
    %v2817 = vpop.permute.xlu0 %2816
    %s2819 = scalar_lea.vmem [#allocation2], 6
    %2820 = vst.msk [vmem:[%s2819] sm:$0x3] %vm2477, %v2817
    %v2821 = vld [vmem:[%s11] sm:$0xff]
    %v2822 = vld [vmem:[%s11 + $0x8] sm:$0xff]
    %v2823 = vld [vmem:[%s11 + $0x10] sm:$0xff]
    %v2824 = vld [vmem:[%s11 + $0x18] sm:$0xff]
    %v2825 = vsel %vm895, %v2817, 0
    %2827 = vmatprep.subr.mxu0 0.0
    %2828 = vmatpush1.msra.mxu0 %v2821
    %2829 = vmatprep.subr.mxu0 0.0
    %2830 = vmatpush1.msra.mxu0 %v2822
    %2831 = vmatprep.subr.mxu0 0.0
    %2832 = vmatpush1.msra.mxu0 %v2823
    %2833 = vmatprep.subr.mxu0 0.0
    %2834 = vmatpush1.msra.mxu0 %v2824
    %2835 = vmatprep.subr.mxu0 0.0
    %2836 = vmatpush1.msra.mxu0 0.0
    %2837 = vmatprep.subr.mxu0 0.0
    %2838 = vmatpush1.msra.mxu0 0.0
    %2839 = vmatprep.subr.mxu0 0.0
    %2840 = vmatpush1.msra.mxu0 0.0
    %2841 = vmatprep.subr.mxu0 0.0
    %2842 = vmatpush1.msra.mxu0 0.0
    %2843 = vmatprep.subr.mxu0 0.0
    %2844 = vmatpush1.msra.mxu0 0.0
    %2845 = vmatprep.subr.mxu0 0.0
    %2846 = vmatpush1.msra.mxu0 0.0
    %2847 = vmatprep.subr.mxu0 0.0
    %2848 = vmatpush1.msra.mxu0 0.0
    %2849 = vmatprep.subr.mxu0 0.0
    %2850 = vmatpush1.msra.mxu0 0.0
    %2851 = vmatprep.subr.mxu0 0.0
    %2852 = vmatpush1.msra.mxu0 0.0
    %2853 = vmatprep.subr.mxu0 0.0
    %2854 = vmatpush1.msra.mxu0 0.0
    %2855 = vmatprep.subr.mxu0 0.0
    %2856 = vmatpush1.msra.mxu0 0.0
    %2857 = vmatprep.subr.mxu0 0.0
    %2858 = vmatpush1.msra.mxu0 0.0
    %2859 = vmatprep.subr.mxu0 0.0
    %2860 = vmatpush1.msra.mxu0 0.0
    %2861 = vmatprep.subr.mxu0 0.0
    %2862 = vmatpush1.msra.mxu0 0.0
    %2863 = vmatprep.subr.mxu0 0.0
    %2864 = vmatpush1.msra.mxu0 0.0
    %2865 = vmatprep.subr.mxu0 0.0
    %2866 = vmatpush1.msra.mxu0 0.0
    %2867 = vmatprep.subr.mxu0 0.0
    %2868 = vmatpush1.msra.mxu0 0.0
    %2869 = vmatprep.subr.mxu0 0.0
    %2870 = vmatpush1.msra.mxu0 0.0
    %2871 = vmatprep.subr.mxu0 0.0
    %2872 = vmatpush1.msra.mxu0 0.0
    %2873 = vmatprep.subr.mxu0 0.0
    %2874 = vmatpush1.msra.mxu0 0.0
    %2875 = vmatprep.subr.mxu0 0.0
    %2876 = vmatpush1.msra.mxu0 0.0
    %2877 = vmatprep.subr.mxu0 0.0
    %2878 = vmatpush1.msra.mxu0 0.0
    %2879 = vmatprep.subr.mxu0 0.0
    %2880 = vmatpush1.msra.mxu0 0.0
    %2881 = vmatprep.subr.mxu0 0.0
    %2882 = vmatpush1.msra.mxu0 0.0
    %2883 = vmatprep.subr.mxu0 0.0
    %2884 = vmatpush1.msra.mxu0 0.0
    %2885 = vmatprep.subr.mxu0 0.0
    %2886 = vmatpush1.msra.mxu0 0.0
    %2887 = vmatprep.subr.mxu0 0.0
    %2888 = vmatpush1.msra.mxu0 0.0
    %2889 = vmatprep.subr.mxu0 0.0
    %2890 = vmatpush1.msra.mxu0 0.0
    %2891 = vmatprep.mubr.f32.mxu0 0.0
    %2892 = vmatmul.mubr.f32.gmra.mrb[0].mxu0 %v2825
    %v2893 = vpop.f32.mrb[0].mxu0
    %v2894 = vadd.f32 0.0, %v2893
    %v2895 = vpop.f32.mrb[0].mxu0
    %2896 = vdwg.mxu0
    %v2897 = vadd.f32 %v2347, %v2894
    %v2898 = vxor.u32 %v2897, 2147483648
    %v2899 = vmul.f32 %v2898, 1.442695
    %v2900 = vpow.pop %v2899
    %v2901 = vadd.f32 %v2900, 1.0
    %v2902 = vrcp.pop %v2901
    %v2903 = vmul.f32 1.0, %v2902
    %v2904 = vtanh.pop %v2897
    %v2905 = vmul.f32 %v2903, %v2801
    %2907 = vrot.lane.b32.xlu0 %v2904, 64
    %v2908 = vpop.permute.xlu0 %2907
    %v2910 = vmul.f32 %v2903, %v2908
    %2912 = vrot.lane.b32.xlu0 %v2910, 32
    %v2913 = vpop.permute.xlu0 %2912
    %v2915 = vadd.f32 %v2905, %v2913
    %v2916 = vtanh.pop %v2915
    %2918 = vrot.lane.b32.xlu0 %v2916, 64
    %v2919 = vpop.permute.xlu0 %2918
    %v2921 = vmul.f32 %v2903, %v2919
    %v2924 = vunpack.c.l.s4 1983009808
    %v2925 = vunpack.c.0.s8 %v2924
    %v2926 = vlaneseq
    %v2927 = vshrl.u32 %v2926, 7
    %v2928 = vsub.s32 %v2925, %v2927
    %v2929 = vrot.slane %v2921, %v2928
    %2930 = vrot.lane.b32.xlu0 %v2929, 32
    %v2931 = vpop.permute.xlu0 %2930
    %s2933 = scalar_lea.vmem [#allocation2], 8
    %2934 = vst.msk [vmem:[%s2933] sm:$0x3] %vm2477, %v2931
    %v2935 = vld [vmem:[%s11] sm:$0xff]
    %v2936 = vld [vmem:[%s11 + $0x8] sm:$0xff]
    %v2937 = vld [vmem:[%s11 + $0x10] sm:$0xff]
    %v2938 = vld [vmem:[%s11 + $0x18] sm:$0xff]
    %v2939 = vsel %vm895, %v2931, 0
    %2941 = vmatprep.subr.mxu0 0.0
    %2942 = vmatpush1.msra.mxu0 %v2935
    %2943 = vmatprep.subr.mxu0 0.0
    %2944 = vmatpush1.msra.mxu0 %v2936
    %2945 = vmatprep.subr.mxu0 0.0
    %2946 = vmatpush1.msra.mxu0 %v2937
    %2947 = vmatprep.subr.mxu0 0.0
    %2948 = vmatpush1.msra.mxu0 %v2938
    %2949 = vmatprep.subr.mxu0 0.0
    %2950 = vmatpush1.msra.mxu0 0.0
    %2951 = vmatprep.subr.mxu0 0.0
    %2952 = vmatpush1.msra.mxu0 0.0
    %2953 = vmatprep.subr.mxu0 0.0
    %2954 = vmatpush1.msra.mxu0 0.0
    %2955 = vmatprep.subr.mxu0 0.0
    %2956 = vmatpush1.msra.mxu0 0.0
    %2957 = vmatprep.subr.mxu0 0.0
    %2958 = vmatpush1.msra.mxu0 0.0
    %2959 = vmatprep.subr.mxu0 0.0
    %2960 = vmatpush1.msra.mxu0 0.0
    %2961 = vmatprep.subr.mxu0 0.0
    %2962 = vmatpush1.msra.mxu0 0.0
    %2963 = vmatprep.subr.mxu0 0.0
    %2964 = vmatpush1.msra.mxu0 0.0
    %2965 = vmatprep.subr.mxu0 0.0
    %2966 = vmatpush1.msra.mxu0 0.0
    %2967 = vmatprep.subr.mxu0 0.0
    %2968 = vmatpush1.msra.mxu0 0.0
    %2969 = vmatprep.subr.mxu0 0.0
    %2970 = vmatpush1.msra.mxu0 0.0
    %2971 = vmatprep.subr.mxu0 0.0
    %2972 = vmatpush1.msra.mxu0 0.0
    %2973 = vmatprep.subr.mxu0 0.0
    %2974 = vmatpush1.msra.mxu0 0.0
    %2975 = vmatprep.subr.mxu0 0.0
    %2976 = vmatpush1.msra.mxu0 0.0
    %2977 = vmatprep.subr.mxu0 0.0
    %2978 = vmatpush1.msra.mxu0 0.0
    %2979 = vmatprep.subr.mxu0 0.0
    %2980 = vmatpush1.msra.mxu0 0.0
    %2981 = vmatprep.subr.mxu0 0.0
    %2982 = vmatpush1.msra.mxu0 0.0
    %2983 = vmatprep.subr.mxu0 0.0
    %2984 = vmatpush1.msra.mxu0 0.0
    %2985 = vmatprep.subr.mxu0 0.0
    %2986 = vmatpush1.msra.mxu0 0.0
    %2987 = vmatprep.subr.mxu0 0.0
    %2988 = vmatpush1.msra.mxu0 0.0
    %2989 = vmatprep.subr.mxu0 0.0
    %2990 = vmatpush1.msra.mxu0 0.0
    %2991 = vmatprep.subr.mxu0 0.0
    %2992 = vmatpush1.msra.mxu0 0.0
    %2993 = vmatprep.subr.mxu0 0.0
    %2994 = vmatpush1.msra.mxu0 0.0
    %2995 = vmatprep.subr.mxu0 0.0
    %2996 = vmatpush1.msra.mxu0 0.0
    %2997 = vmatprep.subr.mxu0 0.0
    %2998 = vmatpush1.msra.mxu0 0.0
    %2999 = vmatprep.subr.mxu0 0.0
    %3000 = vmatpush1.msra.mxu0 0.0
    %3001 = vmatprep.subr.mxu0 0.0
    %3002 = vmatpush1.msra.mxu0 0.0
    %3003 = vmatprep.subr.mxu0 0.0
    %3004 = vmatpush1.msra.mxu0 0.0
    %3005 = vmatprep.mubr.f32.mxu0 0.0
    %3006 = vmatmul.mubr.f32.gmra.mrb[0].mxu0 %v2939
    %v3007 = vpop.f32.mrb[0].mxu0
    %v3008 = vadd.f32 0.0, %v3007
    %v3009 = vpop.f32.mrb[0].mxu0
    %3010 = vdwg.mxu0
    %v3011 = vadd.f32 %v2348, %v3008
    %v3012 = vxor.u32 %v3011, 2147483648
    %v3013 = vmul.f32 %v3012, 1.442695
    %v3014 = vpow.pop %v3013
    %v3015 = vadd.f32 %v3014, 1.0
    %v3016 = vrcp.pop %v3015
    %v3017 = vmul.f32 1.0, %v3016
    %v3018 = vtanh.pop %v3011
    %v3019 = vmul.f32 %v3017, %v2915
    %3021 = vrot.lane.b32.xlu0 %v3018, 64
    %v3022 = vpop.permute.xlu0 %3021
    %v3024 = vmul.f32 %v3017, %v3022
    %3026 = vrot.lane.b32.xlu0 %v3024, 32
    %v3027 = vpop.permute.xlu0 %3026
    %v3029 = vadd.f32 %v3019, %v3027
    %v3030 = vtanh.pop %v3029
    %3032 = vrot.lane.b32.xlu0 %v3030, 64
    %v3033 = vpop.permute.xlu0 %3032
    %v3035 = vmul.f32 %v3017, %v3033
    %v3038 = vunpack.c.l.s4 1983009808
    %v3039 = vunpack.c.0.s8 %v3038
    %v3040 = vlaneseq
    %v3041 = vshrl.u32 %v3040, 7
    %v3042 = vsub.s32 %v3039, %v3041
    %v3043 = vrot.slane %v3035, %v3042
    %3044 = vrot.lane.b32.xlu0 %v3043, 32
    %v3045 = vpop.permute.xlu0 %3044
    %s3047 = scalar_lea.vmem [#allocation2], 10
    %3048 = vst.msk [vmem:[%s3047] sm:$0x3] %vm2477, %v3045
    %v3049 = vld [vmem:[%s11] sm:$0xff]
    %v3050 = vld [vmem:[%s11 + $0x8] sm:$0xff]
    %v3051 = vld [vmem:[%s11 + $0x10] sm:$0xff]
    %v3052 = vld [vmem:[%s11 + $0x18] sm:$0xff]
    %v3053 = vsel %vm895, %v3045, 0
    %3055 = vmatprep.subr.mxu0 0.0
    %3056 = vmatpush1.msra.mxu0 %v3049
    %3057 = vmatprep.subr.mxu0 0.0
    %3058 = vmatpush1.msra.mxu0 %v3050
    %3059 = vmatprep.subr.mxu0 0.0
    %3060 = vmatpush1.msra.mxu0 %v3051
    %3061 = vmatprep.subr.mxu0 0.0
    %3062 = vmatpush1.msra.mxu0 %v3052
    %3063 = vmatprep.subr.mxu0 0.0
    %3064 = vmatpush1.msra.mxu0 0.0
    %3065 = vmatprep.subr.mxu0 0.0
    %3066 = vmatpush1.msra.mxu0 0.0
    %3067 = vmatprep.subr.mxu0 0.0
    %3068 = vmatpush1.msra.mxu0 0.0
    %3069 = vmatprep.subr.mxu0 0.0
    %3070 = vmatpush1.msra.mxu0 0.0
    %3071 = vmatprep.subr.mxu0 0.0
    %3072 = vmatpush1.msra.mxu0 0.0
    %3073 = vmatprep.subr.mxu0 0.0
    %3074 = vmatpush1.msra.mxu0 0.0
    %3075 = vmatprep.subr.mxu0 0.0
    %3076 = vmatpush1.msra.mxu0 0.0
    %3077 = vmatprep.subr.mxu0 0.0
    %3078 = vmatpush1.msra.mxu0 0.0
    %3079 = vmatprep.subr.mxu0 0.0
    %3080 = vmatpush1.msra.mxu0 0.0
    %3081 = vmatprep.subr.mxu0 0.0
    %3082 = vmatpush1.msra.mxu0 0.0
    %3083 = vmatprep.subr.mxu0 0.0
    %3084 = vmatpush1.msra.mxu0 0.0
    %3085 = vmatprep.subr.mxu0 0.0
    %3086 = vmatpush1.msra.mxu0 0.0
    %3087 = vmatprep.subr.mxu0 0.0
    %3088 = vmatpush1.msra.mxu0 0.0
    %3089 = vmatprep.subr.mxu0 0.0
    %3090 = vmatpush1.msra.mxu0 0.0
    %3091 = vmatprep.subr.mxu0 0.0
    %3092 = vmatpush1.msra.mxu0 0.0
    %3093 = vmatprep.subr.mxu0 0.0
    %3094 = vmatpush1.msra.mxu0 0.0
    %3095 = vmatprep.subr.mxu0 0.0
    %3096 = vmatpush1.msra.mxu0 0.0
    %3097 = vmatprep.subr.mxu0 0.0
    %3098 = vmatpush1.msra.mxu0 0.0
    %3099 = vmatprep.subr.mxu0 0.0
    %3100 = vmatpush1.msra.mxu0 0.0
    %3101 = vmatprep.subr.mxu0 0.0
    %3102 = vmatpush1.msra.mxu0 0.0
    %3103 = vmatprep.subr.mxu0 0.0
    %3104 = vmatpush1.msra.mxu0 0.0
    %3105 = vmatprep.subr.mxu0 0.0
    %3106 = vmatpush1.msra.mxu0 0.0
    %3107 = vmatprep.subr.mxu0 0.0
    %3108 = vmatpush1.msra.mxu0 0.0
    %3109 = vmatprep.subr.mxu0 0.0
    %3110 = vmatpush1.msra.mxu0 0.0
    %3111 = vmatprep.subr.mxu0 0.0
    %3112 = vmatpush1.msra.mxu0 0.0
    %3113 = vmatprep.subr.mxu0 0.0
    %3114 = vmatpush1.msra.mxu0 0.0
    %3115 = vmatprep.subr.mxu0 0.0
    %3116 = vmatpush1.msra.mxu0 0.0
    %3117 = vmatprep.subr.mxu0 0.0
    %3118 = vmatpush1.msra.mxu0 0.0
    %3119 = vmatprep.mubr.f32.mxu0 0.0
    %3120 = vmatmul.mubr.f32.gmra.mrb[0].mxu0 %v3053
    %v3121 = vpop.f32.mrb[0].mxu0
    %v3122 = vadd.f32 0.0, %v3121
    %v3123 = vpop.f32.mrb[0].mxu0
    %3124 = vdwg.mxu0
    %v3125 = vadd.f32 %v2349, %v3122
    %v3126 = vxor.u32 %v3125, 2147483648
    %v3127 = vmul.f32 %v3126, 1.442695
    %v3128 = vpow.pop %v3127
    %v3129 = vadd.f32 %v3128, 1.0
    %v3130 = vrcp.pop %v3129
    %v3131 = vmul.f32 1.0, %v3130
    %v3132 = vtanh.pop %v3125
    %v3133 = vmul.f32 %v3131, %v3029
    %3135 = vrot.lane.b32.xlu0 %v3132, 64
    %v3136 = vpop.permute.xlu0 %3135
    %v3138 = vmul.f32 %v3131, %v3136
    %3140 = vrot.lane.b32.xlu0 %v3138, 32
    %v3141 = vpop.permute.xlu0 %3140
    %v3143 = vadd.f32 %v3133, %v3141
    %v3144 = vtanh.pop %v3143
    %3146 = vrot.lane.b32.xlu0 %v3144, 64
    %v3147 = vpop.permute.xlu0 %3146
    %v3149 = vmul.f32 %v3131, %v3147
    %v3152 = vunpack.c.l.s4 1983009808
    %v3153 = vunpack.c.0.s8 %v3152
    %v3154 = vlaneseq
    %v3155 = vshrl.u32 %v3154, 7
    %v3156 = vsub.s32 %v3153, %v3155
    %v3157 = vrot.slane %v3149, %v3156
    %3158 = vrot.lane.b32.xlu0 %v3157, 32
    %v3159 = vpop.permute.xlu0 %3158
    %s3161 = scalar_lea.vmem [#allocation2], 12
    %3162 = vst.msk [vmem:[%s3161] sm:$0x3] %vm2477, %v3159
    %v3163 = vld [vmem:[%s11] sm:$0xff]
    %v3164 = vld [vmem:[%s11 + $0x8] sm:$0xff]
    %v3165 = vld [vmem:[%s11 + $0x10] sm:$0xff]
    %v3166 = vld [vmem:[%s11 + $0x18] sm:$0xff]
    %v3167 = vsel %vm895, %v3159, 0
    %3169 = vmatprep.subr.mxu0 0.0
    %3170 = vmatpush1.msra.mxu0 %v3163
    %3171 = vmatprep.subr.mxu0 0.0
    %3172 = vmatpush1.msra.mxu0 %v3164
    %3173 = vmatprep.subr.mxu0 0.0
    %3174 = vmatpush1.msra.mxu0 %v3165
    %3175 = vmatprep.subr.mxu0 0.0
    %3176 = vmatpush1.msra.mxu0 %v3166
    %3177 = vmatprep.subr.mxu0 0.0
    %3178 = vmatpush1.msra.mxu0 0.0
    %3179 = vmatprep.subr.mxu0 0.0
    %3180 = vmatpush1.msra.mxu0 0.0
    %3181 = vmatprep.subr.mxu0 0.0
    %3182 = vmatpush1.msra.mxu0 0.0
    %3183 = vmatprep.subr.mxu0 0.0
    %3184 = vmatpush1.msra.mxu0 0.0
    %3185 = vmatprep.subr.mxu0 0.0
    %3186 = vmatpush1.msra.mxu0 0.0
    %3187 = vmatprep.subr.mxu0 0.0
    %3188 = vmatpush1.msra.mxu0 0.0
    %3189 = vmatprep.subr.mxu0 0.0
    %3190 = vmatpush1.msra.mxu0 0.0
    %3191 = vmatprep.subr.mxu0 0.0
    %3192 = vmatpush1.msra.mxu0 0.0
    %3193 = vmatprep.subr.mxu0 0.0
    %3194 = vmatpush1.msra.mxu0 0.0
    %3195 = vmatprep.subr.mxu0 0.0
    %3196 = vmatpush1.msra.mxu0 0.0
    %3197 = vmatprep.subr.mxu0 0.0
    %3198 = vmatpush1.msra.mxu0 0.0
    %3199 = vmatprep.subr.mxu0 0.0
    %3200 = vmatpush1.msra.mxu0 0.0
    %3201 = vmatprep.subr.mxu0 0.0
    %3202 = vmatpush1.msra.mxu0 0.0
    %3203 = vmatprep.subr.mxu0 0.0
    %3204 = vmatpush1.msra.mxu0 0.0
    %3205 = vmatprep.subr.mxu0 0.0
    %3206 = vmatpush1.msra.mxu0 0.0
    %3207 = vmatprep.subr.mxu0 0.0
    %3208 = vmatpush1.msra.mxu0 0.0
    %3209 = vmatprep.subr.mxu0 0.0
    %3210 = vmatpush1.msra.mxu0 0.0
    %3211 = vmatprep.subr.mxu0 0.0
    %3212 = vmatpush1.msra.mxu0 0.0
    %3213 = vmatprep.subr.mxu0 0.0
    %3214 = vmatpush1.msra.mxu0 0.0
    %3215 = vmatprep.subr.mxu0 0.0
    %3216 = vmatpush1.msra.mxu0 0.0
    %3217 = vmatprep.subr.mxu0 0.0
    %3218 = vmatpush1.msra.mxu0 0.0
    %3219 = vmatprep.subr.mxu0 0.0
    %3220 = vmatpush1.msra.mxu0 0.0
    %3221 = vmatprep.subr.mxu0 0.0
    %3222 = vmatpush1.msra.mxu0 0.0
    %3223 = vmatprep.subr.mxu0 0.0
    %3224 = vmatpush1.msra.mxu0 0.0
    %3225 = vmatprep.subr.mxu0 0.0
    %3226 = vmatpush1.msra.mxu0 0.0
    %3227 = vmatprep.subr.mxu0 0.0
    %3228 = vmatpush1.msra.mxu0 0.0
    %3229 = vmatprep.subr.mxu0 0.0
    %3230 = vmatpush1.msra.mxu0 0.0
    %3231 = vmatprep.subr.mxu0 0.0
    %3232 = vmatpush1.msra.mxu0 0.0
    %3233 = vmatprep.mubr.f32.mxu0 0.0
    %3234 = vmatmul.mubr.f32.gmra.mrb[0].mxu0 %v3167
    %v3235 = vpop.f32.mrb[0].mxu0
    %v3236 = vadd.f32 0.0, %v3235
    %v3237 = vpop.f32.mrb[0].mxu0
    %3238 = vdwg.mxu0
    %v3239 = vadd.f32 %v2350, %v3236
    %v3240 = vxor.u32 %v3239, 2147483648
    %v3241 = vmul.f32 %v3240, 1.442695
    %v3242 = vpow.pop %v3241
    %v3243 = vadd.f32 %v3242, 1.0
    %v3244 = vrcp.pop %v3243
    %v3245 = vmul.f32 1.0, %v3244
    %v3246 = vtanh.pop %v3239
    %v3247 = vmul.f32 %v3245, %v3143
    %3249 = vrot.lane.b32.xlu0 %v3246, 64
    %v3250 = vpop.permute.xlu0 %3249
    %v3252 = vmul.f32 %v3245, %v3250
    %3254 = vrot.lane.b32.xlu0 %v3252, 32
    %v3255 = vpop.permute.xlu0 %3254
    %v3257 = vadd.f32 %v3247, %v3255
    %v3258 = vtanh.pop %v3257
    %3260 = vrot.lane.b32.xlu0 %v3258, 64
    %v3261 = vpop.permute.xlu0 %3260
    %v3263 = vmul.f32 %v3245, %v3261
    %v3266 = vunpack.c.l.s4 1983009808
    %v3267 = vunpack.c.0.s8 %v3266
    %v3268 = vlaneseq
    %v3269 = vshrl.u32 %v3268, 7
    %v3270 = vsub.s32 %v3267, %v3269
    %v3271 = vrot.slane %v3263, %v3270
    %3272 = vrot.lane.b32.xlu0 %v3271, 32
    %v3273 = vpop.permute.xlu0 %3272
    %s3275 = scalar_lea.vmem [#allocation2], 14
    %3276 = vst.msk [vmem:[%s3275] sm:$0x3] %vm2477, %v3273
    %v3277 = vld [vmem:[%s15] sm:$0x3]
    %v3278 = vld [vmem:[%s16] sm:$0x3]
    %v3280 = vrot.slane %v2350, 2
    %v3282 = vld [vmem:[%s12] sm:$0xff]
    %v3283 = vld [vmem:[%s12 + $0x8] sm:$0xff]
    %v3284 = vld [vmem:[%s12 + $0x10] sm:$0xff]
    %v3285 = vld [vmem:[%s12 + $0x18] sm:$0xff]
    %v3287 = vsel %vm895, %v3277, 0
    %3289 = vmatprep.subr.mxu0 0.0
    %3290 = vmatpush1.msra.mxu0 %v3282
    %3291 = vmatprep.subr.mxu0 0.0
    %3292 = vmatpush1.msra.mxu0 %v3283
    %3293 = vmatprep.subr.mxu0 0.0
    %3294 = vmatpush1.msra.mxu0 %v3284
    %3295 = vmatprep.subr.mxu0 0.0
    %3296 = vmatpush1.msra.mxu0 %v3285
    %3297 = vmatprep.subr.mxu0 0.0
    %3298 = vmatpush1.msra.mxu0 0.0
    %3299 = vmatprep.subr.mxu0 0.0
    %3300 = vmatpush1.msra.mxu0 0.0
    %3301 = vmatprep.subr.mxu0 0.0
    %3302 = vmatpush1.msra.mxu0 0.0
    %3303 = vmatprep.subr.mxu0 0.0
    %3304 = vmatpush1.msra.mxu0 0.0
    %3305 = vmatprep.subr.mxu0 0.0
    %3306 = vmatpush1.msra.mxu0 0.0
    %3307 = vmatprep.subr.mxu0 0.0
    %3308 = vmatpush1.msra.mxu0 0.0
    %3309 = vmatprep.subr.mxu0 0.0
    %3310 = vmatpush1.msra.mxu0 0.0
    %3311 = vmatprep.subr.mxu0 0.0
    %3312 = vmatpush1.msra.mxu0 0.0
    %3313 = vmatprep.subr.mxu0 0.0
    %3314 = vmatpush1.msra.mxu0 0.0
    %3315 = vmatprep.subr.mxu0 0.0
    %3316 = vmatpush1.msra.mxu0 0.0
    %3317 = vmatprep.subr.mxu0 0.0
    %3318 = vmatpush1.msra.mxu0 0.0
    %3319 = vmatprep.subr.mxu0 0.0
    %3320 = vmatpush1.msra.mxu0 0.0
    %3321 = vmatprep.subr.mxu0 0.0
    %3322 = vmatpush1.msra.mxu0 0.0
    %3323 = vmatprep.subr.mxu0 0.0
    %3324 = vmatpush1.msra.mxu0 0.0
    %3325 = vmatprep.subr.mxu0 0.0
    %3326 = vmatpush1.msra.mxu0 0.0
    %3327 = vmatprep.subr.mxu0 0.0
    %3328 = vmatpush1.msra.mxu0 0.0
    %3329 = vmatprep.subr.mxu0 0.0
    %3330 = vmatpush1.msra.mxu0 0.0
    %3331 = vmatprep.subr.mxu0 0.0
    %3332 = vmatpush1.msra.mxu0 0.0
    %3333 = vmatprep.subr.mxu0 0.0
    %3334 = vmatpush1.msra.mxu0 0.0
    %3335 = vmatprep.subr.mxu0 0.0
    %3336 = vmatpush1.msra.mxu0 0.0
    %3337 = vmatprep.subr.mxu0 0.0
    %3338 = vmatpush1.msra.mxu0 0.0
    %3339 = vmatprep.subr.mxu0 0.0
    %3340 = vmatpush1.msra.mxu0 0.0
    %3341 = vmatprep.subr.mxu0 0.0
    %3342 = vmatpush1.msra.mxu0 0.0
    %3343 = vmatprep.subr.mxu0 0.0
    %3344 = vmatpush1.msra.mxu0 0.0
    %3345 = vmatprep.subr.mxu0 0.0
    %3346 = vmatpush1.msra.mxu0 0.0
    %3347 = vmatprep.subr.mxu0 0.0
    %3348 = vmatpush1.msra.mxu0 0.0
    %3349 = vmatprep.subr.mxu0 0.0
    %3350 = vmatpush1.msra.mxu0 0.0
    %3351 = vmatprep.subr.mxu0 0.0
    %3352 = vmatpush1.msra.mxu0 0.0
    %3353 = vmatprep.mubr.f32.mxu0 0.0
    %3354 = vmatmul.mubr.f32.gmra.mrb[0].mxu0 %v3287
    %v3355 = vpop.f32.mrb[0].mxu0
    %v3356 = vadd.f32 0.0, %v3355
    %v3357 = vpop.f32.mrb[0].mxu0
    %3358 = vdwg.mxu0
    %v3359 = vadd.f32 %v3280, %v3356
    %v3360 = vxor.u32 %v3359, 2147483648
    %v3361 = vmul.f32 %v3360, 1.442695
    %v3362 = vpow.pop %v3361
    %v3363 = vadd.f32 %v3362, 1.0
    %v3364 = vrcp.pop %v3363
    %v3365 = vmul.f32 1.0, %v3364
    %v3366 = vtanh.pop %v3359
    %v3369 = vunpack.c.l.s4 1983009808
    %v3370 = vunpack.c.0.s8 %v3369
    %v3371 = vlaneseq
    %v3372 = vshrl.u32 %v3371, 7
    %v3373 = vsub.s32 %v3370, %v3372
    %v3374 = vrot.slane %v3278, %v3373
    %3375 = vrot.lane.b32.xlu0 %v3374, 32
    %v3376 = vpop.permute.xlu0 %3375
    %v3378 = vmul.f32 %v3365, %v3376
    %3380 = vrot.lane.b32.xlu0 %v3366, 64
    %v3381 = vpop.permute.xlu0 %3380
    %v3383 = vmul.f32 %v3365, %v3381
    %3385 = vrot.lane.b32.xlu0 %v3383, 32
    %v3386 = vpop.permute.xlu0 %3385
    %v3388 = vadd.f32 %v3378, %v3386
    %v3389 = vtanh.pop %v3388
    %3391 = vrot.lane.b32.xlu0 %v3389, 64
    %v3392 = vpop.permute.xlu0 %3391
    %v3394 = vmul.f32 %v3365, %v3392
    %v3397 = vunpack.c.l.s4 1983009808
    %v3398 = vunpack.c.0.s8 %v3397
    %v3399 = vlaneseq
    %v3400 = vshrl.u32 %v3399, 7
    %v3401 = vsub.s32 %v3398, %v3400
    %v3402 = vrot.slane %v3394, %v3401
    %3403 = vrot.lane.b32.xlu0 %v3402, 32
    %v3404 = vpop.permute.xlu0 %3403
    %s3406 = scalar_lea.vmem [#allocation3], 14
    %3407 = vst.msk [vmem:[%s3406] sm:$0x3] %vm2477, %v3404
    %v3409 = vrot.slane %v2349, 2
    %v3411 = vld [vmem:[%s12] sm:$0xff]
    %v3412 = vld [vmem:[%s12 + $0x8] sm:$0xff]
    %v3413 = vld [vmem:[%s12 + $0x10] sm:$0xff]
    %v3414 = vld [vmem:[%s12 + $0x18] sm:$0xff]
    %v3415 = vsel %vm895, %v3404, 0
    %3417 = vmatprep.subr.mxu0 0.0
    %3418 = vmatpush1.msra.mxu0 %v3411
    %3419 = vmatprep.subr.mxu0 0.0
    %3420 = vmatpush1.msra.mxu0 %v3412
    %3421 = vmatprep.subr.mxu0 0.0
    %3422 = vmatpush1.msra.mxu0 %v3413
    %3423 = vmatprep.subr.mxu0 0.0
    %3424 = vmatpush1.msra.mxu0 %v3414
    %3425 = vmatprep.subr.mxu0 0.0
    %3426 = vmatpush1.msra.mxu0 0.0
    %3427 = vmatprep.subr.mxu0 0.0
    %3428 = vmatpush1.msra.mxu0 0.0
    %3429 = vmatprep.subr.mxu0 0.0
    %3430 = vmatpush1.msra.mxu0 0.0
    %3431 = vmatprep.subr.mxu0 0.0
    %3432 = vmatpush1.msra.mxu0 0.0
    %3433 = vmatprep.subr.mxu0 0.0
    %3434 = vmatpush1.msra.mxu0 0.0
    %3435 = vmatprep.subr.mxu0 0.0
    %3436 = vmatpush1.msra.mxu0 0.0
    %3437 = vmatprep.subr.mxu0 0.0
    %3438 = vmatpush1.msra.mxu0 0.0
    %3439 = vmatprep.subr.mxu0 0.0
    %3440 = vmatpush1.msra.mxu0 0.0
    %3441 = vmatprep.subr.mxu0 0.0
    %3442 = vmatpush1.msra.mxu0 0.0
    %3443 = vmatprep.subr.mxu0 0.0
    %3444 = vmatpush1.msra.mxu0 0.0
    %3445 = vmatprep.subr.mxu0 0.0
    %3446 = vmatpush1.msra.mxu0 0.0
    %3447 = vmatprep.subr.mxu0 0.0
    %3448 = vmatpush1.msra.mxu0 0.0
    %3449 = vmatprep.subr.mxu0 0.0
    %3450 = vmatpush1.msra.mxu0 0.0
    %3451 = vmatprep.subr.mxu0 0.0
    %3452 = vmatpush1.msra.mxu0 0.0
    %3453 = vmatprep.subr.mxu0 0.0
    %3454 = vmatpush1.msra.mxu0 0.0
    %3455 = vmatprep.subr.mxu0 0.0
    %3456 = vmatpush1.msra.mxu0 0.0
    %3457 = vmatprep.subr.mxu0 0.0
    %3458 = vmatpush1.msra.mxu0 0.0
    %3459 = vmatprep.subr.mxu0 0.0
    %3460 = vmatpush1.msra.mxu0 0.0
    %3461 = vmatprep.subr.mxu0 0.0
    %3462 = vmatpush1.msra.mxu0 0.0
    %3463 = vmatprep.subr.mxu0 0.0
    %3464 = vmatpush1.msra.mxu0 0.0
    %3465 = vmatprep.subr.mxu0 0.0
    %3466 = vmatpush1.msra.mxu0 0.0
    %3467 = vmatprep.subr.mxu0 0.0
    %3468 = vmatpush1.msra.mxu0 0.0
    %3469 = vmatprep.subr.mxu0 0.0
    %3470 = vmatpush1.msra.mxu0 0.0
    %3471 = vmatprep.subr.mxu0 0.0
    %3472 = vmatpush1.msra.mxu0 0.0
    %3473 = vmatprep.subr.mxu0 0.0
    %3474 = vmatpush1.msra.mxu0 0.0
    %3475 = vmatprep.subr.mxu0 0.0
    %3476 = vmatpush1.msra.mxu0 0.0
    %3477 = vmatprep.subr.mxu0 0.0
    %3478 = vmatpush1.msra.mxu0 0.0
    %3479 = vmatprep.subr.mxu0 0.0
    %3480 = vmatpush1.msra.mxu0 0.0
    %3481 = vmatprep.mubr.f32.mxu0 0.0
    %3482 = vmatmul.mubr.f32.gmra.mrb[0].mxu0 %v3415
    %v3483 = vpop.f32.mrb[0].mxu0
    %v3484 = vadd.f32 0.0, %v3483
    %v3485 = vpop.f32.mrb[0].mxu0
    %3486 = vdwg.mxu0
    %v3487 = vadd.f32 %v3409, %v3484
    %v3488 = vxor.u32 %v3487, 2147483648
    %v3489 = vmul.f32 %v3488, 1.442695
    %v3490 = vpow.pop %v3489
    %v3491 = vadd.f32 %v3490, 1.0
    %v3492 = vrcp.pop %v3491
    %v3493 = vmul.f32 1.0, %v3492
    %v3494 = vtanh.pop %v3487
    %v3495 = vmul.f32 %v3493, %v3388
    %3497 = vrot.lane.b32.xlu0 %v3494, 64
    %v3498 = vpop.permute.xlu0 %3497
    %v3500 = vmul.f32 %v3493, %v3498
    %3502 = vrot.lane.b32.xlu0 %v3500, 32
    %v3503 = vpop.permute.xlu0 %3502
    %v3505 = vadd.f32 %v3495, %v3503
    %v3506 = vtanh.pop %v3505
    %3508 = vrot.lane.b32.xlu0 %v3506, 64
    %v3509 = vpop.permute.xlu0 %3508
    %v3511 = vmul.f32 %v3493, %v3509
    %v3514 = vunpack.c.l.s4 1983009808
    %v3515 = vunpack.c.0.s8 %v3514
    %v3516 = vlaneseq
    %v3517 = vshrl.u32 %v3516, 7
    %v3518 = vsub.s32 %v3515, %v3517
    %v3519 = vrot.slane %v3511, %v3518
    %3520 = vrot.lane.b32.xlu0 %v3519, 32
    %v3521 = vpop.permute.xlu0 %3520
    %s3523 = scalar_lea.vmem [#allocation3], 12
    %3524 = vst.msk [vmem:[%s3523] sm:$0x3] %vm2477, %v3521
    %v3526 = vrot.slane %v2348, 2
    %v3528 = vld [vmem:[%s12] sm:$0xff]
    %v3529 = vld [vmem:[%s12 + $0x8] sm:$0xff]
    %v3530 = vld [vmem:[%s12 + $0x10] sm:$0xff]
    %v3531 = vld [vmem:[%s12 + $0x18] sm:$0xff]
    %v3532 = vsel %vm895, %v3521, 0
    %3534 = vmatprep.subr.mxu0 0.0
    %3535 = vmatpush1.msra.mxu0 %v3528
    %3536 = vmatprep.subr.mxu0 0.0
    %3537 = vmatpush1.msra.mxu0 %v3529
    %3538 = vmatprep.subr.mxu0 0.0
    %3539 = vmatpush1.msra.mxu0 %v3530
    %3540 = vmatprep.subr.mxu0 0.0
    %3541 = vmatpush1.msra.mxu0 %v3531
    %3542 = vmatprep.subr.mxu0 0.0
    %3543 = vmatpush1.msra.mxu0 0.0
    %3544 = vmatprep.subr.mxu0 0.0
    %3545 = vmatpush1.msra.mxu0 0.0
    %3546 = vmatprep.subr.mxu0 0.0
    %3547 = vmatpush1.msra.mxu0 0.0
    %3548 = vmatprep.subr.mxu0 0.0
    %3549 = vmatpush1.msra.mxu0 0.0
    %3550 = vmatprep.subr.mxu0 0.0
    %3551 = vmatpush1.msra.mxu0 0.0
    %3552 = vmatprep.subr.mxu0 0.0
    %3553 = vmatpush1.msra.mxu0 0.0
    %3554 = vmatprep.subr.mxu0 0.0
    %3555 = vmatpush1.msra.mxu0 0.0
    %3556 = vmatprep.subr.mxu0 0.0
    %3557 = vmatpush1.msra.mxu0 0.0
    %3558 = vmatprep.subr.mxu0 0.0
    %3559 = vmatpush1.msra.mxu0 0.0
    %3560 = vmatprep.subr.mxu0 0.0
    %3561 = vmatpush1.msra.mxu0 0.0
    %3562 = vmatprep.subr.mxu0 0.0
    %3563 = vmatpush1.msra.mxu0 0.0
    %3564 = vmatprep.subr.mxu0 0.0
    %3565 = vmatpush1.msra.mxu0 0.0
    %3566 = vmatprep.subr.mxu0 0.0
    %3567 = vmatpush1.msra.mxu0 0.0
    %3568 = vmatprep.subr.mxu0 0.0
    %3569 = vmatpush1.msra.mxu0 0.0
    %3570 = vmatprep.subr.mxu0 0.0
    %3571 = vmatpush1.msra.mxu0 0.0
    %3572 = vmatprep.subr.mxu0 0.0
    %3573 = vmatpush1.msra.mxu0 0.0
    %3574 = vmatprep.subr.mxu0 0.0
    %3575 = vmatpush1.msra.mxu0 0.0
    %3576 = vmatprep.subr.mxu0 0.0
    %3577 = vmatpush1.msra.mxu0 0.0
    %3578 = vmatprep.subr.mxu0 0.0
    %3579 = vmatpush1.msra.mxu0 0.0
    %3580 = vmatprep.subr.mxu0 0.0
    %3581 = vmatpush1.msra.mxu0 0.0
    %3582 = vmatprep.subr.mxu0 0.0
    %3583 = vmatpush1.msra.mxu0 0.0
    %3584 = vmatprep.subr.mxu0 0.0
    %3585 = vmatpush1.msra.mxu0 0.0
    %3586 = vmatprep.subr.mxu0 0.0
    %3587 = vmatpush1.msra.mxu0 0.0
    %3588 = vmatprep.subr.mxu0 0.0
    %3589 = vmatpush1.msra.mxu0 0.0
    %3590 = vmatprep.subr.mxu0 0.0
    %3591 = vmatpush1.msra.mxu0 0.0
    %3592 = vmatprep.subr.mxu0 0.0
    %3593 = vmatpush1.msra.mxu0 0.0
    %3594 = vmatprep.subr.mxu0 0.0
    %3595 = vmatpush1.msra.mxu0 0.0
    %3596 = vmatprep.subr.mxu0 0.0
    %3597 = vmatpush1.msra.mxu0 0.0
    %3598 = vmatprep.mubr.f32.mxu0 0.0
    %3599 = vmatmul.mubr.f32.gmra.mrb[0].mxu0 %v3532
    %v3600 = vpop.f32.mrb[0].mxu0
    %v3601 = vadd.f32 0.0, %v3600
    %v3602 = vpop.f32.mrb[0].mxu0
    %3603 = vdwg.mxu0
    %v3604 = vadd.f32 %v3526, %v3601
    %v3605 = vxor.u32 %v3604, 2147483648
    %v3606 = vmul.f32 %v3605, 1.442695
    %v3607 = vpow.pop %v3606
    %v3608 = vadd.f32 %v3607, 1.0
    %v3609 = vrcp.pop %v3608
    %v3610 = vmul.f32 1.0, %v3609
    %v3611 = vtanh.pop %v3604
    %v3612 = vmul.f32 %v3610, %v3505
    %3614 = vrot.lane.b32.xlu0 %v3611, 64
    %v3615 = vpop.permute.xlu0 %3614
    %v3617 = vmul.f32 %v3610, %v3615
    %3619 = vrot.lane.b32.xlu0 %v3617, 32
    %v3620 = vpop.permute.xlu0 %3619
    %v3622 = vadd.f32 %v3612, %v3620
    %v3623 = vtanh.pop %v3622
    %3625 = vrot.lane.b32.xlu0 %v3623, 64
    %v3626 = vpop.permute.xlu0 %3625
    %v3628 = vmul.f32 %v3610, %v3626
    %v3631 = vunpack.c.l.s4 1983009808
    %v3632 = vunpack.c.0.s8 %v3631
    %v3633 = vlaneseq
    %v3634 = vshrl.u32 %v3633, 7
    %v3635 = vsub.s32 %v3632, %v3634
    %v3636 = vrot.slane %v3628, %v3635
    %3637 = vrot.lane.b32.xlu0 %v3636, 32
    %v3638 = vpop.permute.xlu0 %3637
    %s3640 = scalar_lea.vmem [#allocation3], 10
    %3641 = vst.msk [vmem:[%s3640] sm:$0x3] %vm2477, %v3638
    %v3643 = vrot.slane %v2347, 2
    %v3645 = vld [vmem:[%s12] sm:$0xff]
    %v3646 = vld [vmem:[%s12 + $0x8] sm:$0xff]
    %v3647 = vld [vmem:[%s12 + $0x10] sm:$0xff]
    %v3648 = vld [vmem:[%s12 + $0x18] sm:$0xff]
    %v3649 = vsel %vm895, %v3638, 0
    %3651 = vmatprep.subr.mxu0 0.0
    %3652 = vmatpush1.msra.mxu0 %v3645
    %3653 = vmatprep.subr.mxu0 0.0
    %3654 = vmatpush1.msra.mxu0 %v3646
    %3655 = vmatprep.subr.mxu0 0.0
    %3656 = vmatpush1.msra.mxu0 %v3647
    %3657 = vmatprep.subr.mxu0 0.0
    %3658 = vmatpush1.msra.mxu0 %v3648
    %3659 = vmatprep.subr.mxu0 0.0
    %3660 = vmatpush1.msra.mxu0 0.0
    %3661 = vmatprep.subr.mxu0 0.0
    %3662 = vmatpush1.msra.mxu0 0.0
    %3663 = vmatprep.subr.mxu0 0.0
    %3664 = vmatpush1.msra.mxu0 0.0
    %3665 = vmatprep.subr.mxu0 0.0
    %3666 = vmatpush1.msra.mxu0 0.0
    %3667 = vmatprep.subr.mxu0 0.0
    %3668 = vmatpush1.msra.mxu0 0.0
    %3669 = vmatprep.subr.mxu0 0.0
    %3670 = vmatpush1.msra.mxu0 0.0
    %3671 = vmatprep.subr.mxu0 0.0
    %3672 = vmatpush1.msra.mxu0 0.0
    %3673 = vmatprep.subr.mxu0 0.0
    %3674 = vmatpush1.msra.mxu0 0.0
    %3675 = vmatprep.subr.mxu0 0.0
    %3676 = vmatpush1.msra.mxu0 0.0
    %3677 = vmatprep.subr.mxu0 0.0
    %3678 = vmatpush1.msra.mxu0 0.0
    %3679 = vmatprep.subr.mxu0 0.0
    %3680 = vmatpush1.msra.mxu0 0.0
    %3681 = vmatprep.subr.mxu0 0.0
    %3682 = vmatpush1.msra.mxu0 0.0
    %3683 = vmatprep.subr.mxu0 0.0
    %3684 = vmatpush1.msra.mxu0 0.0
    %3685 = vmatprep.subr.mxu0 0.0
    %3686 = vmatpush1.msra.mxu0 0.0
    %3687 = vmatprep.subr.mxu0 0.0
    %3688 = vmatpush1.msra.mxu0 0.0
    %3689 = vmatprep.subr.mxu0 0.0
    %3690 = vmatpush1.msra.mxu0 0.0
    %3691 = vmatprep.subr.mxu0 0.0
    %3692 = vmatpush1.msra.mxu0 0.0
    %3693 = vmatprep.subr.mxu0 0.0
    %3694 = vmatpush1.msra.mxu0 0.0
    %3695 = vmatprep.subr.mxu0 0.0
    %3696 = vmatpush1.msra.mxu0 0.0
    %3697 = vmatprep.subr.mxu0 0.0
    %3698 = vmatpush1.msra.mxu0 0.0
    %3699 = vmatprep.subr.mxu0 0.0
    %3700 = vmatpush1.msra.mxu0 0.0
    %3701 = vmatprep.subr.mxu0 0.0
    %3702 = vmatpush1.msra.mxu0 0.0
    %3703 = vmatprep.subr.mxu0 0.0
    %3704 = vmatpush1.msra.mxu0 0.0
    %3705 = vmatprep.subr.mxu0 0.0
    %3706 = vmatpush1.msra.mxu0 0.0
    %3707 = vmatprep.subr.mxu0 0.0
    %3708 = vmatpush1.msra.mxu0 0.0
    %3709 = vmatprep.subr.mxu0 0.0
    %3710 = vmatpush1.msra.mxu0 0.0
    %3711 = vmatprep.subr.mxu0 0.0
    %3712 = vmatpush1.msra.mxu0 0.0
    %3713 = vmatprep.subr.mxu0 0.0
    %3714 = vmatpush1.msra.mxu0 0.0
    %3715 = vmatprep.mubr.f32.mxu0 0.0
    %3716 = vmatmul.mubr.f32.gmra.mrb[0].mxu0 %v3649
    %v3717 = vpop.f32.mrb[0].mxu0
    %v3718 = vadd.f32 0.0, %v3717
    %v3719 = vpop.f32.mrb[0].mxu0
    %3720 = vdwg.mxu0
    %v3721 = vadd.f32 %v3643, %v3718
    %v3722 = vxor.u32 %v3721, 2147483648
    %v3723 = vmul.f32 %v3722, 1.442695
    %v3724 = vpow.pop %v3723
    %v3725 = vadd.f32 %v3724, 1.0
    %v3726 = vrcp.pop %v3725
    %v3727 = vmul.f32 1.0, %v3726
    %v3728 = vtanh.pop %v3721
    %v3729 = vmul.f32 %v3727, %v3622
    %3731 = vrot.lane.b32.xlu0 %v3728, 64
    %v3732 = vpop.permute.xlu0 %3731
    %v3734 = vmul.f32 %v3727, %v3732
    %3736 = vrot.lane.b32.xlu0 %v3734, 32
    %v3737 = vpop.permute.xlu0 %3736
    %v3739 = vadd.f32 %v3729, %v3737
    %v3740 = vtanh.pop %v3739
    %3742 = vrot.lane.b32.xlu0 %v3740, 64
    %v3743 = vpop.permute.xlu0 %3742
    %v3745 = vmul.f32 %v3727, %v3743
    %v3748 = vunpack.c.l.s4 1983009808
    %v3749 = vunpack.c.0.s8 %v3748
    %v3750 = vlaneseq
    %v3751 = vshrl.u32 %v3750, 7
    %v3752 = vsub.s32 %v3749, %v3751
    %v3753 = vrot.slane %v3745, %v3752
    %3754 = vrot.lane.b32.xlu0 %v3753, 32
    %v3755 = vpop.permute.xlu0 %3754
    %s3757 = scalar_lea.vmem [#allocation3], 8
    %3758 = vst.msk [vmem:[%s3757] sm:$0x3] %vm2477, %v3755
    %v3760 = vrot.slane %v2346, 2
    %v3762 = vld [vmem:[%s12] sm:$0xff]
    %v3763 = vld [vmem:[%s12 + $0x8] sm:$0xff]
    %v3764 = vld [vmem:[%s12 + $0x10] sm:$0xff]
    %v3765 = vld [vmem:[%s12 + $0x18] sm:$0xff]
    %v3766 = vsel %vm895, %v3755, 0
    %3768 = vmatprep.subr.mxu0 0.0
    %3769 = vmatpush1.msra.mxu0 %v3762
    %3770 = vmatprep.subr.mxu0 0.0
    %3771 = vmatpush1.msra.mxu0 %v3763
    %3772 = vmatprep.subr.mxu0 0.0
    %3773 = vmatpush1.msra.mxu0 %v3764
    %3774 = vmatprep.subr.mxu0 0.0
    %3775 = vmatpush1.msra.mxu0 %v3765
    %3776 = vmatprep.subr.mxu0 0.0
    %3777 = vmatpush1.msra.mxu0 0.0
    %3778 = vmatprep.subr.mxu0 0.0
    %3779 = vmatpush1.msra.mxu0 0.0
    %3780 = vmatprep.subr.mxu0 0.0
    %3781 = vmatpush1.msra.mxu0 0.0
    %3782 = vmatprep.subr.mxu0 0.0
    %3783 = vmatpush1.msra.mxu0 0.0
    %3784 = vmatprep.subr.mxu0 0.0
    %3785 = vmatpush1.msra.mxu0 0.0
    %3786 = vmatprep.subr.mxu0 0.0
    %3787 = vmatpush1.msra.mxu0 0.0
    %3788 = vmatprep.subr.mxu0 0.0
    %3789 = vmatpush1.msra.mxu0 0.0
    %3790 = vmatprep.subr.mxu0 0.0
    %3791 = vmatpush1.msra.mxu0 0.0
    %3792 = vmatprep.subr.mxu0 0.0
    %3793 = vmatpush1.msra.mxu0 0.0
    %3794 = vmatprep.subr.mxu0 0.0
    %3795 = vmatpush1.msra.mxu0 0.0
    %3796 = vmatprep.subr.mxu0 0.0
    %3797 = vmatpush1.msra.mxu0 0.0
    %3798 = vmatprep.subr.mxu0 0.0
    %3799 = vmatpush1.msra.mxu0 0.0
    %3800 = vmatprep.subr.mxu0 0.0
    %3801 = vmatpush1.msra.mxu0 0.0
    %3802 = vmatprep.subr.mxu0 0.0
    %3803 = vmatpush1.msra.mxu0 0.0
    %3804 = vmatprep.subr.mxu0 0.0
    %3805 = vmatpush1.msra.mxu0 0.0
    %3806 = vmatprep.subr.mxu0 0.0
    %3807 = vmatpush1.msra.mxu0 0.0
    %3808 = vmatprep.subr.mxu0 0.0
    %3809 = vmatpush1.msra.mxu0 0.0
    %3810 = vmatprep.subr.mxu0 0.0
    %3811 = vmatpush1.msra.mxu0 0.0
    %3812 = vmatprep.subr.mxu0 0.0
    %3813 = vmatpush1.msra.mxu0 0.0
    %3814 = vmatprep.subr.mxu0 0.0
    %3815 = vmatpush1.msra.mxu0 0.0
    %3816 = vmatprep.subr.mxu0 0.0
    %3817 = vmatpush1.msra.mxu0 0.0
    %3818 = vmatprep.subr.mxu0 0.0
    %3819 = vmatpush1.msra.mxu0 0.0
    %3820 = vmatprep.subr.mxu0 0.0
    %3821 = vmatpush1.msra.mxu0 0.0
    %3822 = vmatprep.subr.mxu0 0.0
    %3823 = vmatpush1.msra.mxu0 0.0
    %3824 = vmatprep.subr.mxu0 0.0
    %3825 = vmatpush1.msra.mxu0 0.0
    %3826 = vmatprep.subr.mxu0 0.0
    %3827 = vmatpush1.msra.mxu0 0.0
    %3828 = vmatprep.subr.mxu0 0.0
    %3829 = vmatpush1.msra.mxu0 0.0
    %3830 = vmatprep.subr.mxu0 0.0
    %3831 = vmatpush1.msra.mxu0 0.0
    %3832 = vmatprep.mubr.f32.mxu0 0.0
    %3833 = vmatmul.mubr.f32.gmra.mrb[0].mxu0 %v3766
    %v3834 = vpop.f32.mrb[0].mxu0
    %v3835 = vadd.f32 0.0, %v3834
    %v3836 = vpop.f32.mrb[0].mxu0
    %3837 = vdwg.mxu0
    %v3838 = vadd.f32 %v3760, %v3835
    %v3839 = vxor.u32 %v3838, 2147483648
    %v3840 = vmul.f32 %v3839, 1.442695
    %v3841 = vpow.pop %v3840
    %v3842 = vadd.f32 %v3841, 1.0
    %v3843 = vrcp.pop %v3842
    %v3844 = vmul.f32 1.0, %v3843
    %v3845 = vtanh.pop %v3838
    %v3846 = vmul.f32 %v3844, %v3739
    %3848 = vrot.lane.b32.xlu0 %v3845, 64
    %v3849 = vpop.permute.xlu0 %3848
    %v3851 = vmul.f32 %v3844, %v3849
    %3853 = vrot.lane.b32.xlu0 %v3851, 32
    %v3854 = vpop.permute.xlu0 %3853
    %v3856 = vadd.f32 %v3846, %v3854
    %v3857 = vtanh.pop %v3856
    %3859 = vrot.lane.b32.xlu0 %v3857, 64
    %v3860 = vpop.permute.xlu0 %3859
    %v3862 = vmul.f32 %v3844, %v3860
    %v3865 = vunpack.c.l.s4 1983009808
    %v3866 = vunpack.c.0.s8 %v3865
    %v3867 = vlaneseq
    %v3868 = vshrl.u32 %v3867, 7
    %v3869 = vsub.s32 %v3866, %v3868
    %v3870 = vrot.slane %v3862, %v3869
    %3871 = vrot.lane.b32.xlu0 %v3870, 32
    %v3872 = vpop.permute.xlu0 %3871
    %s3874 = scalar_lea.vmem [#allocation3], 6
    %3875 = vst.msk [vmem:[%s3874] sm:$0x3] %vm2477, %v3872
    %v3877 = vrot.slane %v2345, 2
    %v3879 = vld [vmem:[%s12] sm:$0xff]
    %v3880 = vld [vmem:[%s12 + $0x8] sm:$0xff]
    %v3881 = vld [vmem:[%s12 + $0x10] sm:$0xff]
    %v3882 = vld [vmem:[%s12 + $0x18] sm:$0xff]
    %v3883 = vsel %vm895, %v3872, 0
    %3885 = vmatprep.subr.mxu0 0.0
    %3886 = vmatpush1.msra.mxu0 %v3879
    %3887 = vmatprep.subr.mxu0 0.0
    %3888 = vmatpush1.msra.mxu0 %v3880
    %3889 = vmatprep.subr.mxu0 0.0
    %3890 = vmatpush1.msra.mxu0 %v3881
    %3891 = vmatprep.subr.mxu0 0.0
    %3892 = vmatpush1.msra.mxu0 %v3882
    %3893 = vmatprep.subr.mxu0 0.0
    %3894 = vmatpush1.msra.mxu0 0.0
    %3895 = vmatprep.subr.mxu0 0.0
    %3896 = vmatpush1.msra.mxu0 0.0
    %3897 = vmatprep.subr.mxu0 0.0
    %3898 = vmatpush1.msra.mxu0 0.0
    %3899 = vmatprep.subr.mxu0 0.0
    %3900 = vmatpush1.msra.mxu0 0.0
    %3901 = vmatprep.subr.mxu0 0.0
    %3902 = vmatpush1.msra.mxu0 0.0
    %3903 = vmatprep.subr.mxu0 0.0
    %3904 = vmatpush1.msra.mxu0 0.0
    %3905 = vmatprep.subr.mxu0 0.0
    %3906 = vmatpush1.msra.mxu0 0.0
    %3907 = vmatprep.subr.mxu0 0.0
    %3908 = vmatpush1.msra.mxu0 0.0
    %3909 = vmatprep.subr.mxu0 0.0
    %3910 = vmatpush1.msra.mxu0 0.0
    %3911 = vmatprep.subr.mxu0 0.0
    %3912 = vmatpush1.msra.mxu0 0.0
    %3913 = vmatprep.subr.mxu0 0.0
    %3914 = vmatpush1.msra.mxu0 0.0
    %3915 = vmatprep.subr.mxu0 0.0
    %3916 = vmatpush1.msra.mxu0 0.0
    %3917 = vmatprep.subr.mxu0 0.0
    %3918 = vmatpush1.msra.mxu0 0.0
    %3919 = vmatprep.subr.mxu0 0.0
    %3920 = vmatpush1.msra.mxu0 0.0
    %3921 = vmatprep.subr.mxu0 0.0
    %3922 = vmatpush1.msra.mxu0 0.0
    %3923 = vmatprep.subr.mxu0 0.0
    %3924 = vmatpush1.msra.mxu0 0.0
    %3925 = vmatprep.subr.mxu0 0.0
    %3926 = vmatpush1.msra.mxu0 0.0
    %3927 = vmatprep.subr.mxu0 0.0
    %3928 = vmatpush1.msra.mxu0 0.0
    %3929 = vmatprep.subr.mxu0 0.0
    %3930 = vmatpush1.msra.mxu0 0.0
    %3931 = vmatprep.subr.mxu0 0.0
    %3932 = vmatpush1.msra.mxu0 0.0
    %3933 = vmatprep.subr.mxu0 0.0
    %3934 = vmatpush1.msra.mxu0 0.0
    %3935 = vmatprep.subr.mxu0 0.0
    %3936 = vmatpush1.msra.mxu0 0.0
    %3937 = vmatprep.subr.mxu0 0.0
    %3938 = vmatpush1.msra.mxu0 0.0
    %3939 = vmatprep.subr.mxu0 0.0
    %3940 = vmatpush1.msra.mxu0 0.0
    %3941 = vmatprep.subr.mxu0 0.0
    %3942 = vmatpush1.msra.mxu0 0.0
    %3943 = vmatprep.subr.mxu0 0.0
    %3944 = vmatpush1.msra.mxu0 0.0
    %3945 = vmatprep.subr.mxu0 0.0
    %3946 = vmatpush1.msra.mxu0 0.0
    %3947 = vmatprep.subr.mxu0 0.0
    %3948 = vmatpush1.msra.mxu0 0.0
    %3949 = vmatprep.mubr.f32.mxu0 0.0
    %3950 = vmatmul.mubr.f32.gmra.mrb[0].mxu0 %v3883
    %v3951 = vpop.f32.mrb[0].mxu0
    %v3952 = vadd.f32 0.0, %v3951
    %v3953 = vpop.f32.mrb[0].mxu0
    %3954 = vdwg.mxu0
    %v3955 = vadd.f32 %v3877, %v3952
    %v3956 = vxor.u32 %v3955, 2147483648
    %v3957 = vmul.f32 %v3956, 1.442695
    %v3958 = vpow.pop %v3957
    %v3959 = vadd.f32 %v3958, 1.0
    %v3960 = vrcp.pop %v3959
    %v3961 = vmul.f32 1.0, %v3960
    %v3962 = vtanh.pop %v3955
    %v3963 = vmul.f32 %v3961, %v3856
    %3965 = vrot.lane.b32.xlu0 %v3962, 64
    %v3966 = vpop.permute.xlu0 %3965
    %v3968 = vmul.f32 %v3961, %v3966
    %3970 = vrot.lane.b32.xlu0 %v3968, 32
    %v3971 = vpop.permute.xlu0 %3970
    %v3973 = vadd.f32 %v3963, %v3971
    %v3974 = vtanh.pop %v3973
    %3976 = vrot.lane.b32.xlu0 %v3974, 64
    %v3977 = vpop.permute.xlu0 %3976
    %v3979 = vmul.f32 %v3961, %v3977
    %v3982 = vunpack.c.l.s4 1983009808
    %v3983 = vunpack.c.0.s8 %v3982
    %v3984 = vlaneseq
    %v3985 = vshrl.u32 %v3984, 7
    %v3986 = vsub.s32 %v3983, %v3985
    %v3987 = vrot.slane %v3979, %v3986
    %3988 = vrot.lane.b32.xlu0 %v3987, 32
    %v3989 = vpop.permute.xlu0 %3988
    %s3991 = scalar_lea.vmem [#allocation3], 4
    %3992 = vst.msk [vmem:[%s3991] sm:$0x3] %vm2477, %v3989
    %v3994 = vrot.slane %v2344, 2
    %v3996 = vld [vmem:[%s12] sm:$0xff]
    %v3997 = vld [vmem:[%s12 + $0x8] sm:$0xff]
    %v3998 = vld [vmem:[%s12 + $0x10] sm:$0xff]
    %v3999 = vld [vmem:[%s12 + $0x18] sm:$0xff]
    %v4000 = vsel %vm895, %v3989, 0
    %4002 = vmatprep.subr.mxu0 0.0
    %4003 = vmatpush1.msra.mxu0 %v3996
    %4004 = vmatprep.subr.mxu0 0.0
    %4005 = vmatpush1.msra.mxu0 %v3997
    %4006 = vmatprep.subr.mxu0 0.0
    %4007 = vmatpush1.msra.mxu0 %v3998
    %4008 = vmatprep.subr.mxu0 0.0
    %4009 = vmatpush1.msra.mxu0 %v3999
    %4010 = vmatprep.subr.mxu0 0.0
    %4011 = vmatpush1.msra.mxu0 0.0
    %4012 = vmatprep.subr.mxu0 0.0
    %4013 = vmatpush1.msra.mxu0 0.0
    %4014 = vmatprep.subr.mxu0 0.0
    %4015 = vmatpush1.msra.mxu0 0.0
    %4016 = vmatprep.subr.mxu0 0.0
    %4017 = vmatpush1.msra.mxu0 0.0
    %4018 = vmatprep.subr.mxu0 0.0
    %4019 = vmatpush1.msra.mxu0 0.0
    %4020 = vmatprep.subr.mxu0 0.0
    %4021 = vmatpush1.msra.mxu0 0.0
    %4022 = vmatprep.subr.mxu0 0.0
    %4023 = vmatpush1.msra.mxu0 0.0
    %4024 = vmatprep.subr.mxu0 0.0
    %4025 = vmatpush1.msra.mxu0 0.0
    %4026 = vmatprep.subr.mxu0 0.0
    %4027 = vmatpush1.msra.mxu0 0.0
    %4028 = vmatprep.subr.mxu0 0.0
    %4029 = vmatpush1.msra.mxu0 0.0
    %4030 = vmatprep.subr.mxu0 0.0
    %4031 = vmatpush1.msra.mxu0 0.0
    %4032 = vmatprep.subr.mxu0 0.0
    %4033 = vmatpush1.msra.mxu0 0.0
    %4034 = vmatprep.subr.mxu0 0.0
    %4035 = vmatpush1.msra.mxu0 0.0
    %4036 = vmatprep.subr.mxu0 0.0
    %4037 = vmatpush1.msra.mxu0 0.0
    %4038 = vmatprep.subr.mxu0 0.0
    %4039 = vmatpush1.msra.mxu0 0.0
    %4040 = vmatprep.subr.mxu0 0.0
    %4041 = vmatpush1.msra.mxu0 0.0
    %4042 = vmatprep.subr.mxu0 0.0
    %4043 = vmatpush1.msra.mxu0 0.0
    %4044 = vmatprep.subr.mxu0 0.0
    %4045 = vmatpush1.msra.mxu0 0.0
    %4046 = vmatprep.subr.mxu0 0.0
    %4047 = vmatpush1.msra.mxu0 0.0
    %4048 = vmatprep.subr.mxu0 0.0
    %4049 = vmatpush1.msra.mxu0 0.0
    %4050 = vmatprep.subr.mxu0 0.0
    %4051 = vmatpush1.msra.mxu0 0.0
    %4052 = vmatprep.subr.mxu0 0.0
    %4053 = vmatpush1.msra.mxu0 0.0
    %4054 = vmatprep.subr.mxu0 0.0
    %4055 = vmatpush1.msra.mxu0 0.0
    %4056 = vmatprep.subr.mxu0 0.0
    %4057 = vmatpush1.msra.mxu0 0.0
    %4058 = vmatprep.subr.mxu0 0.0
    %4059 = vmatpush1.msra.mxu0 0.0
    %4060 = vmatprep.subr.mxu0 0.0
    %4061 = vmatpush1.msra.mxu0 0.0
    %4062 = vmatprep.subr.mxu0 0.0
    %4063 = vmatpush1.msra.mxu0 0.0
    %4064 = vmatprep.subr.mxu0 0.0
    %4065 = vmatpush1.msra.mxu0 0.0
    %4066 = vmatprep.mubr.f32.mxu0 0.0
    %4067 = vmatmul.mubr.f32.gmra.mrb[0].mxu0 %v4000
    %v4068 = vpop.f32.mrb[0].mxu0
    %v4069 = vadd.f32 0.0, %v4068
    %v4070 = vpop.f32.mrb[0].mxu0
    %4071 = vdwg.mxu0
    %v4072 = vadd.f32 %v3994, %v4069
    %v4073 = vxor.u32 %v4072, 2147483648
    %v4074 = vmul.f32 %v4073, 1.442695
    %v4075 = vpow.pop %v4074
    %v4076 = vadd.f32 %v4075, 1.0
    %v4077 = vrcp.pop %v4076
    %v4078 = vmul.f32 1.0, %v4077
    %v4079 = vtanh.pop %v4072
    %v4080 = vmul.f32 %v4078, %v3973
    %4082 = vrot.lane.b32.xlu0 %v4079, 64
    %v4083 = vpop.permute.xlu0 %4082
    %v4085 = vmul.f32 %v4078, %v4083
    %4087 = vrot.lane.b32.xlu0 %v4085, 32
    %v4088 = vpop.permute.xlu0 %4087
    %v4090 = vadd.f32 %v4080, %v4088
    %v4091 = vtanh.pop %v4090
    %4093 = vrot.lane.b32.xlu0 %v4091, 64
    %v4094 = vpop.permute.xlu0 %4093
    %v4096 = vmul.f32 %v4078, %v4094
    %v4099 = vunpack.c.l.s4 1983009808
    %v4100 = vunpack.c.0.s8 %v4099
    %v4101 = vlaneseq
    %v4102 = vshrl.u32 %v4101, 7
    %v4103 = vsub.s32 %v4100, %v4102
    %v4104 = vrot.slane %v4096, %v4103
    %4105 = vrot.lane.b32.xlu0 %v4104, 32
    %v4106 = vpop.permute.xlu0 %4105
    %s4108 = scalar_lea.vmem [#allocation3], 2
    %4109 = vst.msk [vmem:[%s4108] sm:$0x3] %vm2477, %v4106
    %v4111 = vrot.slane %v2343, 2
    %v4113 = vld [vmem:[%s12] sm:$0xff]
    %v4114 = vld [vmem:[%s12 + $0x8] sm:$0xff]
    %v4115 = vld [vmem:[%s12 + $0x10] sm:$0xff]
    %v4116 = vld [vmem:[%s12 + $0x18] sm:$0xff]
    %v4117 = vsel %vm895, %v4106, 0
    %4119 = vmatprep.subr.mxu0 0.0
    %4120 = vmatpush1.msra.mxu0 %v4113
    %4121 = vmatprep.subr.mxu0 0.0
    %4122 = vmatpush1.msra.mxu0 %v4114
    %4123 = vmatprep.subr.mxu0 0.0
    %4124 = vmatpush1.msra.mxu0 %v4115
    %4125 = vmatprep.subr.mxu0 0.0
    %4126 = vmatpush1.msra.mxu0 %v4116
    %4127 = vmatprep.subr.mxu0 0.0
    %4128 = vmatpush1.msra.mxu0 0.0
    %4129 = vmatprep.subr.mxu0 0.0
    %4130 = vmatpush1.msra.mxu0 0.0
    %4131 = vmatprep.subr.mxu0 0.0
    %4132 = vmatpush1.msra.mxu0 0.0
    %4133 = vmatprep.subr.mxu0 0.0
    %4134 = vmatpush1.msra.mxu0 0.0
    %4135 = vmatprep.subr.mxu0 0.0
    %4136 = vmatpush1.msra.mxu0 0.0
    %4137 = vmatprep.subr.mxu0 0.0
    %4138 = vmatpush1.msra.mxu0 0.0
    %4139 = vmatprep.subr.mxu0 0.0
    %4140 = vmatpush1.msra.mxu0 0.0
    %4141 = vmatprep.subr.mxu0 0.0
    %4142 = vmatpush1.msra.mxu0 0.0
    %4143 = vmatprep.subr.mxu0 0.0
    %4144 = vmatpush1.msra.mxu0 0.0
    %4145 = vmatprep.subr.mxu0 0.0
    %4146 = vmatpush1.msra.mxu0 0.0
    %4147 = vmatprep.subr.mxu0 0.0
    %4148 = vmatpush1.msra.mxu0 0.0
    %4149 = vmatprep.subr.mxu0 0.0
    %4150 = vmatpush1.msra.mxu0 0.0
    %4151 = vmatprep.subr.mxu0 0.0
    %4152 = vmatpush1.msra.mxu0 0.0
    %4153 = vmatprep.subr.mxu0 0.0
    %4154 = vmatpush1.msra.mxu0 0.0
    %4155 = vmatprep.subr.mxu0 0.0
    %4156 = vmatpush1.msra.mxu0 0.0
    %4157 = vmatprep.subr.mxu0 0.0
    %4158 = vmatpush1.msra.mxu0 0.0
    %4159 = vmatprep.subr.mxu0 0.0
    %4160 = vmatpush1.msra.mxu0 0.0
    %4161 = vmatprep.subr.mxu0 0.0
    %4162 = vmatpush1.msra.mxu0 0.0
    %4163 = vmatprep.subr.mxu0 0.0
    %4164 = vmatpush1.msra.mxu0 0.0
    %4165 = vmatprep.subr.mxu0 0.0
    %4166 = vmatpush1.msra.mxu0 0.0
    %4167 = vmatprep.subr.mxu0 0.0
    %4168 = vmatpush1.msra.mxu0 0.0
    %4169 = vmatprep.subr.mxu0 0.0
    %4170 = vmatpush1.msra.mxu0 0.0
    %4171 = vmatprep.subr.mxu0 0.0
    %4172 = vmatpush1.msra.mxu0 0.0
    %4173 = vmatprep.subr.mxu0 0.0
    %4174 = vmatpush1.msra.mxu0 0.0
    %4175 = vmatprep.subr.mxu0 0.0
    %4176 = vmatpush1.msra.mxu0 0.0
    %4177 = vmatprep.subr.mxu0 0.0
    %4178 = vmatpush1.msra.mxu0 0.0
    %4179 = vmatprep.subr.mxu0 0.0
    %4180 = vmatpush1.msra.mxu0 0.0
    %4181 = vmatprep.subr.mxu0 0.0
    %4182 = vmatpush1.msra.mxu0 0.0
    %4183 = vmatprep.mubr.f32.mxu0 0.0
    %4184 = vmatmul.mubr.f32.gmra.mrb[0].mxu0 %v4117
    %v4185 = vpop.f32.mrb[0].mxu0
    %v4186 = vadd.f32 0.0, %v4185
    %v4187 = vpop.f32.mrb[0].mxu0
    %4188 = vdwg.mxu0
    %v4189 = vadd.f32 %v4111, %v4186
    %v4190 = vxor.u32 %v4189, 2147483648
    %v4191 = vmul.f32 %v4190, 1.442695
    %v4192 = vpow.pop %v4191
    %v4193 = vadd.f32 %v4192, 1.0
    %v4194 = vrcp.pop %v4193
    %v4195 = vmul.f32 1.0, %v4194
    %v4196 = vtanh.pop %v4189
    %v4197 = vmul.f32 %v4195, %v4090
    %4199 = vrot.lane.b32.xlu0 %v4196, 64
    %v4200 = vpop.permute.xlu0 %4199
    %v4202 = vmul.f32 %v4195, %v4200
    %4204 = vrot.lane.b32.xlu0 %v4202, 32
    %v4205 = vpop.permute.xlu0 %4204
    %v4207 = vadd.f32 %v4197, %v4205
    %v4208 = vtanh.pop %v4207
    %4210 = vrot.lane.b32.xlu0 %v4208, 64
    %v4211 = vpop.permute.xlu0 %4210
    %v4213 = vmul.f32 %v4195, %v4211
    %v4216 = vunpack.c.l.s4 1983009808
    %v4217 = vunpack.c.0.s8 %v4216
    %v4218 = vlaneseq
    %v4219 = vshrl.u32 %v4218, 7
    %v4220 = vsub.s32 %v4217, %v4219
    %v4221 = vrot.slane %v4213, %v4220
    %4222 = vrot.lane.b32.xlu0 %v4221, 32
    %v4223 = vpop.permute.xlu0 %4222
    %4225 = vst.msk [vmem:[#allocation3] sm:$0x3] %vm2477, %v4223
    %v4226 = vld [vmem:[#allocation2] sm:$0x3]
    %v4227 = vld [vmem:[#allocation2 + $0x2] sm:$0x3]
    %v4228 = vld [vmem:[#allocation2 + $0x4] sm:$0x3]
    %v4229 = vld [vmem:[#allocation2 + $0x6] sm:$0x3]
    %v4230 = vld [vmem:[#allocation2 + $0x8] sm:$0x3]
    %v4231 = vld [vmem:[#allocation2 + $0xa] sm:$0x3]
    %v4232 = vld [vmem:[#allocation2 + $0xc] sm:$0x3]
    %v4233 = vld [vmem:[#allocation2 + $0xe] sm:$0x3]
    %v4234 = vld [vmem:[#allocation3] sm:$0x3]
    %v4235 = vld [vmem:[#allocation3 + $0x2] sm:$0x3]
    %v4236 = vld [vmem:[#allocation3 + $0x4] sm:$0x3]
    %v4237 = vld [vmem:[#allocation3 + $0x6] sm:$0x3]
    %v4238 = vld [vmem:[#allocation3 + $0x8] sm:$0x3]
    %v4239 = vld [vmem:[#allocation3 + $0xa] sm:$0x3]
    %v4240 = vld [vmem:[#allocation3 + $0xc] sm:$0x3]
    %v4241 = vld [vmem:[#allocation3 + $0xe] sm:$0x3]
    %v4242 = vld [vmem:[%s17] sm:$0xff]
    %v4243 = vld [vmem:[%s17 + $0x8] sm:$0xff]
    %v4244 = vld [vmem:[%s17 + $0x10] sm:$0xff]
    %v4245 = vld [vmem:[%s17 + $0x18] sm:$0xff]
    %v4246 = vld [vmem:[%s18] sm:$0xff]
    %v4247 = vld [vmem:[%s18 + $0x8] sm:$0xff]
    %v4248 = vld [vmem:[%s18 + $0x10] sm:$0xff]
    %v4249 = vld [vmem:[%s18 + $0x18] sm:$0xff]
    %v4258 = vcombine.low %v4234, %v4235
    %v4259 = vcombine.low %v4236, %v4237
    %v4261 = vunpack.c.l.s4 1983009808
    %v4262 = vunpack.c.0.s8 %v4261
    %v4263 = vlaneseq
    %v4264 = vshrl.u32 %v4263, 7
    %v4265 = vsub.s32 %v4262, %v4264
    %v4266 = vrot.slane %v4258, %v4265
    %v4268 = vunpack.c.l.s4 1983009808
    %v4269 = vunpack.c.0.s8 %v4268
    %v4270 = vlaneseq
    %v4271 = vshrl.u32 %v4270, 7
    %v4272 = vsub.s32 %v4269, %v4271
    %v4273 = vrot.slane %v4259, %v4272
    %v4274 = vcombine.low %v4266, %v4273
    %v4275 = vcombine.low %v4238, %v4239
    %v4276 = vcombine.low %v4240, %v4241
    %v4278 = vunpack.c.l.s4 1983009808
    %v4279 = vunpack.c.0.s8 %v4278
    %v4280 = vlaneseq
    %v4281 = vshrl.u32 %v4280, 7
    %v4282 = vsub.s32 %v4279, %v4281
    %v4283 = vrot.slane %v4275, %v4282
    %v4285 = vunpack.c.l.s4 1983009808
    %v4286 = vunpack.c.0.s8 %v4285
    %v4287 = vlaneseq
    %v4288 = vshrl.u32 %v4287, 7
    %v4289 = vsub.s32 %v4286, %v4288
    %v4290 = vrot.slane %v4276, %v4289
    %v4291 = vcombine.low %v4283, %v4290
    %v4292 = vsel %vm895, %v4274, 0
    %v4294 = vsel %vm895, %v4291, 0
    %4296 = vmatprep.subr.mxu0 0.0
    %4297 = vmatpush1.msra.mxu0 %v4246
    %4298 = vmatprep.subr.mxu0 0.0
    %4299 = vmatpush1.msra.mxu0 %v4247
    %4300 = vmatprep.subr.mxu0 0.0
    %4301 = vmatpush1.msra.mxu0 %v4248
    %4302 = vmatprep.subr.mxu0 0.0
    %4303 = vmatpush1.msra.mxu0 %v4249
    %4304 = vmatprep.subr.mxu0 0.0
    %4305 = vmatpush1.msra.mxu0 0.0
    %4306 = vmatprep.subr.mxu0 0.0
    %4307 = vmatpush1.msra.mxu0 0.0
    %4308 = vmatprep.subr.mxu0 0.0
    %4309 = vmatpush1.msra.mxu0 0.0
    %4310 = vmatprep.subr.mxu0 0.0
    %4311 = vmatpush1.msra.mxu0 0.0
    %4312 = vmatprep.subr.mxu0 0.0
    %4313 = vmatpush1.msra.mxu0 0.0
    %4314 = vmatprep.subr.mxu0 0.0
    %4315 = vmatpush1.msra.mxu0 0.0
    %4316 = vmatprep.subr.mxu0 0.0
    %4317 = vmatpush1.msra.mxu0 0.0
    %4318 = vmatprep.subr.mxu0 0.0
    %4319 = vmatpush1.msra.mxu0 0.0
    %4320 = vmatprep.subr.mxu0 0.0
    %4321 = vmatpush1.msra.mxu0 0.0
    %4322 = vmatprep.subr.mxu0 0.0
    %4323 = vmatpush1.msra.mxu0 0.0
    %4324 = vmatprep.subr.mxu0 0.0
    %4325 = vmatpush1.msra.mxu0 0.0
    %4326 = vmatprep.subr.mxu0 0.0
    %4327 = vmatpush1.msra.mxu0 0.0
    %4328 = vmatprep.subr.mxu0 0.0
    %4329 = vmatpush1.msra.mxu0 0.0
    %4330 = vmatprep.subr.mxu0 0.0
    %4331 = vmatpush1.msra.mxu0 0.0
    %4332 = vmatprep.subr.mxu0 0.0
    %4333 = vmatpush1.msra.mxu0 0.0
    %4334 = vmatprep.subr.mxu0 0.0
    %4335 = vmatpush1.msra.mxu0 0.0
    %4336 = vmatprep.subr.mxu0 0.0
    %4337 = vmatpush1.msra.mxu0 0.0
    %4338 = vmatprep.subr.mxu0 0.0
    %4339 = vmatpush1.msra.mxu0 0.0
    %4340 = vmatprep.subr.mxu0 0.0
    %4341 = vmatpush1.msra.mxu0 0.0
    %4342 = vmatprep.subr.mxu0 0.0
    %4343 = vmatpush1.msra.mxu0 0.0
    %4344 = vmatprep.subr.mxu0 0.0
    %4345 = vmatpush1.msra.mxu0 0.0
    %4346 = vmatprep.subr.mxu0 0.0
    %4347 = vmatpush1.msra.mxu0 0.0
    %4348 = vmatprep.subr.mxu0 0.0
    %4349 = vmatpush1.msra.mxu0 0.0
    %4350 = vmatprep.subr.mxu0 0.0
    %4351 = vmatpush1.msra.mxu0 0.0
    %4352 = vmatprep.subr.mxu0 0.0
    %4353 = vmatpush1.msra.mxu0 0.0
    %4354 = vmatprep.subr.mxu0 0.0
    %4355 = vmatpush1.msra.mxu0 0.0
    %4356 = vmatprep.subr.mxu0 0.0
    %4357 = vmatpush1.msra.mxu0 0.0
    %4358 = vmatprep.subr.mxu0 0.0
    %4359 = vmatpush1.msra.mxu0 0.0
    %4360 = vmatprep.mubr.f32.mxu0 0.0
    %4361 = vmatmul.mubr.f32.gmra.mrb[0].mxu0 %v4292
    %v4362 = vpop.f32.mrb[0].mxu0
    %v4363 = vadd.f32 0.0, %v4362
    %v4364 = vpop.f32.mrb[0].mxu0
    %4365 = vmatprep.mubr.f32.mxu0 0.0
    %4366 = vmatmul.mubr.f32.gmra.mrb[0].mxu0 %v4294
    %v4367 = vpop.f32.mrb[0].mxu0
    %v4368 = vadd.f32 0.0, %v4367
    %v4369 = vpop.f32.mrb[0].mxu0
    %4370 = vdwg.mxu0
    %v4379 = vcombine.low %v4226, %v4227
    %v4380 = vcombine.low %v4228, %v4229
    %v4382 = vunpack.c.l.s4 1983009808
    %v4383 = vunpack.c.0.s8 %v4382
    %v4384 = vlaneseq
    %v4385 = vshrl.u32 %v4384, 7
    %v4386 = vsub.s32 %v4383, %v4385
    %v4387 = vrot.slane %v4379, %v4386
    %v4389 = vunpack.c.l.s4 1983009808
    %v4390 = vunpack.c.0.s8 %v4389
    %v4391 = vlaneseq
    %v4392 = vshrl.u32 %v4391, 7
    %v4393 = vsub.s32 %v4390, %v4392
    %v4394 = vrot.slane %v4380, %v4393
    %v4395 = vcombine.low %v4387, %v4394
    %v4396 = vcombine.low %v4230, %v4231
    %v4397 = vcombine.low %v4232, %v4233
    %v4399 = vunpack.c.l.s4 1983009808
    %v4400 = vunpack.c.0.s8 %v4399
    %v4401 = vlaneseq
    %v4402 = vshrl.u32 %v4401, 7
    %v4403 = vsub.s32 %v4400, %v4402
    %v4404 = vrot.slane %v4396, %v4403
    %v4406 = vunpack.c.l.s4 1983009808
    %v4407 = vunpack.c.0.s8 %v4406
    %v4408 = vlaneseq
    %v4409 = vshrl.u32 %v4408, 7
    %v4410 = vsub.s32 %v4407, %v4409
    %v4411 = vrot.slane %v4397, %v4410
    %v4412 = vcombine.low %v4404, %v4411
    %v4413 = vsel %vm895, %v4395, 0
    %v4415 = vsel %vm895, %v4412, 0
    %4417 = vmatprep.subr.mxu0 0.0
    %4418 = vmatpush1.msra.mxu0 %v4242
    %4419 = vmatprep.subr.mxu0 0.0
    %4420 = vmatpush1.msra.mxu0 %v4243
    %4421 = vmatprep.subr.mxu0 0.0
    %4422 = vmatpush1.msra.mxu0 %v4244
    %4423 = vmatprep.subr.mxu0 0.0
    %4424 = vmatpush1.msra.mxu0 %v4245
    %4425 = vmatprep.subr.mxu0 0.0
    %4426 = vmatpush1.msra.mxu0 0.0
    %4427 = vmatprep.subr.mxu0 0.0
    %4428 = vmatpush1.msra.mxu0 0.0
    %4429 = vmatprep.subr.mxu0 0.0
    %4430 = vmatpush1.msra.mxu0 0.0
    %4431 = vmatprep.subr.mxu0 0.0
    %4432 = vmatpush1.msra.mxu0 0.0
    %4433 = vmatprep.subr.mxu0 0.0
    %4434 = vmatpush1.msra.mxu0 0.0
    %4435 = vmatprep.subr.mxu0 0.0
    %4436 = vmatpush1.msra.mxu0 0.0
    %4437 = vmatprep.subr.mxu0 0.0
    %4438 = vmatpush1.msra.mxu0 0.0
    %4439 = vmatprep.subr.mxu0 0.0
    %4440 = vmatpush1.msra.mxu0 0.0
    %4441 = vmatprep.subr.mxu0 0.0
    %4442 = vmatpush1.msra.mxu0 0.0
    %4443 = vmatprep.subr.mxu0 0.0
    %4444 = vmatpush1.msra.mxu0 0.0
    %4445 = vmatprep.subr.mxu0 0.0
    %4446 = vmatpush1.msra.mxu0 0.0
    %4447 = vmatprep.subr.mxu0 0.0
    %4448 = vmatpush1.msra.mxu0 0.0
    %4449 = vmatprep.subr.mxu0 0.0
    %4450 = vmatpush1.msra.mxu0 0.0
    %4451 = vmatprep.subr.mxu0 0.0
    %4452 = vmatpush1.msra.mxu0 0.0
    %4453 = vmatprep.subr.mxu0 0.0
    %4454 = vmatpush1.msra.mxu0 0.0
    %4455 = vmatprep.subr.mxu0 0.0
    %4456 = vmatpush1.msra.mxu0 0.0
    %4457 = vmatprep.subr.mxu0 0.0
    %4458 = vmatpush1.msra.mxu0 0.0
    %4459 = vmatprep.subr.mxu0 0.0
    %4460 = vmatpush1.msra.mxu0 0.0
    %4461 = vmatprep.subr.mxu0 0.0
    %4462 = vmatpush1.msra.mxu0 0.0
    %4463 = vmatprep.subr.mxu0 0.0
    %4464 = vmatpush1.msra.mxu0 0.0
    %4465 = vmatprep.subr.mxu0 0.0
    %4466 = vmatpush1.msra.mxu0 0.0
    %4467 = vmatprep.subr.mxu0 0.0
    %4468 = vmatpush1.msra.mxu0 0.0
    %4469 = vmatprep.subr.mxu0 0.0
    %4470 = vmatpush1.msra.mxu0 0.0
    %4471 = vmatprep.subr.mxu0 0.0
    %4472 = vmatpush1.msra.mxu0 0.0
    %4473 = vmatprep.subr.mxu0 0.0
    %4474 = vmatpush1.msra.mxu0 0.0
    %4475 = vmatprep.subr.mxu0 0.0
    %4476 = vmatpush1.msra.mxu0 0.0
    %4477 = vmatprep.subr.mxu0 0.0
    %4478 = vmatpush1.msra.mxu0 0.0
    %4479 = vmatprep.subr.mxu0 0.0
    %4480 = vmatpush1.msra.mxu0 0.0
    %4481 = vmatprep.mubr.f32.mxu0 0.0
    %4482 = vmatmul.mubr.f32.gmra.mrb[0].mxu0 %v4413
    %v4483 = vpop.f32.mrb[0].mxu0
    %v4484 = vadd.f32 %v4363, %v4483
    %v4485 = vpop.f32.mrb[0].mxu0
    %4486 = vmatprep.mubr.f32.mxu0 0.0
    %4487 = vmatmul.mubr.f32.gmra.mrb[0].mxu0 %v4415
    %v4488 = vpop.f32.mrb[0].mxu0
    %v4489 = vadd.f32 %v4368, %v4488
    %v4490 = vpop.f32.mrb[0].mxu0
    %4491 = vdwg.mxu0
    %v4492 = vld [vmem:[%s19] sm:$0x1]
    %v4494 = vlaneseq
    %v4495 = vshrl.u32 %v4494, 7
    %v4496 = vsub.s32 0, %v4495
    %v4497 = vrot.slane %v4492, %v4496
    %v4499 = vadd.f32 %v4484, %v4497
    %v4500 = vadd.f32 %v4489, %v4497
    %v4503 = vcombine.high %v4499, %v4499
    %v4505 = vunpack.c.l.s4 1983009808
    %v4506 = vunpack.c.0.s8 %v4505
    %v4507 = vlaneseq
    %v4508 = vshrl.u32 %v4507, 7
    %v4509 = vsub.s32 %v4506, %v4508
    %v4510 = vrot.slane %v4499, %v4509
    %v4512 = vunpack.c.l.s4 1983009808
    %v4513 = vunpack.c.0.s8 %v4512
    %v4514 = vlaneseq
    %v4515 = vshrl.u32 %v4514, 7
    %v4516 = vsub.s32 %v4513, %v4515
    %v4517 = vrot.slane %v4503, %v4516
    %v4518 = vcombine.high %v4510, %v4510
    %v4519 = vcombine.high %v4517, %v4517
    %v4520 = vcombine.high %v4500, %v4500
    %v4522 = vunpack.c.l.s4 1983009808
    %v4523 = vunpack.c.0.s8 %v4522
    %v4524 = vlaneseq
    %v4525 = vshrl.u32 %v4524, 7
    %v4526 = vsub.s32 %v4523, %v4525
    %v4527 = vrot.slane %v4500, %v4526
    %v4529 = vunpack.c.l.s4 1983009808
    %v4530 = vunpack.c.0.s8 %v4529
    %v4531 = vlaneseq
    %v4532 = vshrl.u32 %v4531, 7
    %v4533 = vsub.s32 %v4530, %v4532
    %v4534 = vrot.slane %v4520, %v4533
    %v4535 = vcombine.high %v4527, %v4527
    %v4536 = vcombine.high %v4534, %v4534
    %vm4545 = vcmask 33792
    %v4546 = vsel %vm4545, %v4510, -inf
    %v4547 = vsel %vm4545, %v4518, -inf
    %v4548 = vsel %vm4545, %v4517, -inf
    %v4549 = vsel %vm4545, %v4519, -inf
    %v4550 = vsel %vm4545, %v4527, -inf
    %v4551 = vmax.f32 %v4546, %v4550
    %v4552 = vsel %vm4545, %v4535, -inf
    %v4553 = vmax.f32 %v4547, %v4552
    %v4554 = vsel %vm4545, %v4534, -inf
    %v4555 = vmax.f32 %v4548, %v4554
    %v4556 = vsel %vm4545, %v4536, -inf
    %v4557 = vmax.f32 %v4549, %v4556
    %v4558 = vmax.f32 %v4551, %v4553
    %v4559 = vmax.f32 %v4555, %v4557
    %v4560 = vmax.f32 %v4558, %v4559
    %v4561 = vsub.f32 %v4510, %v4560
    %v4562 = vsub.f32 %v4518, %v4560
    %v4563 = vsub.f32 %v4517, %v4560
    %v4564 = vsub.f32 %v4519, %v4560
    %v4565 = vsub.f32 %v4527, %v4560
    %v4566 = vsub.f32 %v4535, %v4560
    %v4567 = vsub.f32 %v4534, %v4560
    %v4568 = vsub.f32 %v4536, %v4560
    %v4569 = vmul.f32 %v4561, 1.442695
    %v4570 = vpow.pop %v4569
    %v4571 = vmul.f32 %v4562, 1.442695
    %v4572 = vpow.pop %v4571
    %v4573 = vmul.f32 %v4563, 1.442695
    %v4574 = vpow.pop %v4573
    %v4575 = vmul.f32 %v4564, 1.442695
    %v4576 = vpow.pop %v4575
    %v4577 = vmul.f32 %v4565, 1.442695
    %v4578 = vpow.pop %v4577
    %v4579 = vmul.f32 %v4566, 1.442695
    %v4580 = vpow.pop %v4579
    %v4581 = vmul.f32 %v4567, 1.442695
    %v4582 = vpow.pop %v4581
    %v4583 = vmul.f32 %v4568, 1.442695
    %v4584 = vpow.pop %v4583
    %v4585 = vsel %vm4545, %v4570, 0.0
    %v4586 = vsel %vm4545, %v4572, 0.0
    %v4587 = vadd.f32 %v4585, %v4586
    %v4588 = vsel %vm4545, %v4574, 0.0
    %v4589 = vadd.f32 %v4587, %v4588
    %v4590 = vsel %vm4545, %v4576, 0.0
    %v4591 = vadd.f32 %v4589, %v4590
    %v4592 = vsel %vm4545, %v4578, 0.0
    %v4593 = vadd.f32 %v4591, %v4592
    %v4594 = vsel %vm4545, %v4580, 0.0
    %v4595 = vadd.f32 %v4593, %v4594
    %v4596 = vsel %vm4545, %v4582, 0.0
    %v4597 = vadd.f32 %v4595, %v4596
    %v4598 = vsel %vm4545, %v4584, 0.0
    %v4599 = vadd.f32 %v4597, %v4598
    %v4600 = vrcp.pop %v4599
    %v4601 = vmul.f32 %v4570, %v4600
    %v4602 = vmul.f32 %v4572, %v4600
    %v4603 = vmul.f32 %v4574, %v4600
    %v4604 = vmul.f32 %v4576, %v4600
    %v4605 = vmul.f32 %v4578, %v4600
    %v4606 = vmul.f32 %v4580, %v4600
    %v4607 = vmul.f32 %v4582, %v4600
    %v4608 = vmul.f32 %v4584, %v4600
    %v4609 = vld [vmem:[%s23] sm:$0x3]
    %v4610 = vld [vmem:[%s20] sm:$0x1f]
    %v4611 = vlaneseq
    %v4612 = vand.u32 %v4611, 127
    %v4613 = vlaneseq
    %v4614 = vshrl.u32 %v4613, 7
    %v4615 = vld [vmem:[%s21] sm:$0x1]
    %v4617 = vlaneseq
    %v4618 = vshrl.u32 %v4617, 7
    %v4619 = vsub.s32 0, %v4618
    %v4620 = vrot.slane %v4615, %v4619
    %v4622 = vadd.f32 %v4620, %v4601
    %v4623 = vlaneseq
    %v4624 = vshrl.u32 %v4623, 7
    %v4625 = vsub.s32 0, %v4624
    %v4626 = vrot.slane %v4622, %v4625
    %4628 = vbcast.lane.b32.xlu0 %v4626, 256
    %v4629 = vpop.permute.xlu0 %4628
    %v4630 = vlaneseq
    %v4631 = vshrl.u32 %v4630, 7
    %v4632 = vsub.s32 1, %v4631
    %v4633 = vrot.slane %v4622, %v4632
    %4635 = vbcast.lane.b32.xlu0 %v4633, 256
    %v4636 = vpop.permute.xlu0 %4635
    %v4637 = vadd.f32 %v4629, %v4610
    %v4638 = vadd.f32 %v4636, %v4610
    %v4641 = vunpack.c.l.s4 1966171168
    %v4642 = vunpack.c.0.s8 %v4641
    %v4643 = vlaneseq
    %v4644 = vshrl.u32 %v4643, 7
    %v4645 = vsub.s32 %v4642, %v4644
    %v4646 = vrot.slane %v4602, %v4645
    %v4647 = vcombine.high %v4646, %v4646
    %v4648 = vlaneseq
    %v4649 = vshrl.u32 %v4648, 7
    %v4650 = vsub.s32 0, %v4649
    %v4651 = vrot.slane %v4646, %v4650
    %v4652 = vlaneseq
    %v4653 = vshrl.u32 %v4652, 7
    %v4654 = vsub.s32 0, %v4653
    %v4655 = vrot.slane %v4647, %v4654
    %v4658 = vadd.f32 %v4637, %v4651
    %v4659 = vadd.f32 %v4638, %v4655
    %vm4660 = vcmask 36864
    %v4661 = vsel %vm4660, %v4658, -inf
    %v4662 = vrot.slane %v4661, 4
    %v4663 = vmax.f32 %v4661, %v4662
    %v4664 = vrot.slane %v4663, 2
    %v4665 = vmax.f32 %v4663, %v4664
    %v4666 = vrot.slane %v4665, 1
    %v4667 = vmax.f32 %v4665, %v4666
    %v4668 = vsel %vm4660, %v4659, -inf
    %v4669 = vrot.slane %v4668, 4
    %v4670 = vmax.f32 %v4668, %v4669
    %v4671 = vrot.slane %v4670, 2
    %v4672 = vmax.f32 %v4670, %v4671
    %v4673 = vrot.slane %v4672, 1
    %v4674 = vmax.f32 %v4672, %v4673
    %vm4675 = vcmp.eq.f32.partialorder %v4658, %v4667
    %vm4676 = vcmp.eq.f32.partialorder %v4659, %v4674
    %v4677 = vsel %vm4675, %v4614, 5
    %v4678 = vsel %vm4676, %v4614, 5
    %v4679 = vsel %vm4660, %v4677, 2147483647
    %v4680 = vrot.slane %v4679, 4
    %vm4681 = vcmp.lt.s32.totalorder %v4679, %v4680
    %v4682 = vsel %vm4681, %v4679, %v4680
    %v4683 = vrot.slane %v4682, 2
    %vm4684 = vcmp.lt.s32.totalorder %v4682, %v4683
    %v4685 = vsel %vm4684, %v4682, %v4683
    %v4686 = vrot.slane %v4685, 1
    %vm4687 = vcmp.lt.s32.totalorder %v4685, %v4686
    %v4688 = vsel %vm4687, %v4685, %v4686
    %v4689 = vsel %vm4660, %v4678, 2147483647
    %v4690 = vrot.slane %v4689, 4
    %vm4691 = vcmp.lt.s32.totalorder %v4689, %v4690
    %v4692 = vsel %vm4691, %v4689, %v4690
    %v4693 = vrot.slane %v4692, 2
    %vm4694 = vcmp.lt.s32.totalorder %v4692, %v4693
    %v4695 = vsel %vm4694, %v4692, %v4693
    %v4696 = vrot.slane %v4695, 1
    %vm4697 = vcmp.lt.s32.totalorder %v4695, %v4696
    %v4698 = vsel %vm4697, %v4695, %v4696
    %vm4699 = vcmp.gt.f32.partialorder %v4609, 0.5
    %v4700 = vsel %vm4699, 1, 0
    %4701 = vset.pattern.permute.xlu0 1
    %4702 = vperm.xlu0 %4701, %v4700
    %v4703 = vpop.permute.xlu0 %4702
    %vm4704 = vcmp.eq.s32.totalorder %v4703, 1
    %v4705 = vsel %vm2182, %v4698, %v4688
    %v4706 = vsel %vm4704, %v4705, %v4612
    %v4709 = vsel %vm2182, %v4674, %v4667
    %v4711 = vsel %vm4704, %v4709, %v4622
    %v4712 = vlaneseq
    %v4713 = vshrl.u32 %v4712, 7
    %v4714 = vsub.s32 0, %v4713
    %v4715 = vrot.slane %v4711, %v4714
    %4717 = vbcast.lane.b32.xlu0 %v4715, 256
    %v4718 = vpop.permute.xlu0 %4717
    %v4719 = vlaneseq
    %v4720 = vshrl.u32 %v4719, 7
    %v4721 = vsub.s32 1, %v4720
    %v4722 = vrot.slane %v4711, %v4721
    %4724 = vbcast.lane.b32.xlu0 %v4722, 256
    %v4725 = vpop.permute.xlu0 %4724
    %v4726 = vadd.f32 %v4718, %v4610
    %v4727 = vadd.f32 %v4725, %v4610
    %v4730 = vunpack.c.l.s4 1966171168
    %v4731 = vunpack.c.0.s8 %v4730
    %v4732 = vlaneseq
    %v4733 = vshrl.u32 %v4732, 7
    %v4734 = vsub.s32 %v4731, %v4733
    %v4735 = vrot.slane %v4603, %v4734
    %v4736 = vcombine.high %v4735, %v4735
    %v4737 = vlaneseq
    %v4738 = vshrl.u32 %v4737, 7
    %v4739 = vsub.s32 0, %v4738
    %v4740 = vrot.slane %v4735, %v4739
    %v4741 = vlaneseq
    %v4742 = vshrl.u32 %v4741, 7
    %v4743 = vsub.s32 0, %v4742
    %v4744 = vrot.slane %v4736, %v4743
    %v4747 = vadd.f32 %v4726, %v4740
    %v4748 = vadd.f32 %v4727, %v4744
    %v4749 = vsel %vm4660, %v4747, -inf
    %v4750 = vrot.slane %v4749, 4
    %v4751 = vmax.f32 %v4749, %v4750
    %v4752 = vrot.slane %v4751, 2
    %v4753 = vmax.f32 %v4751, %v4752
    %v4754 = vrot.slane %v4753, 1
    %v4755 = vmax.f32 %v4753, %v4754
    %v4756 = vsel %vm4660, %v4748, -inf
    %v4757 = vrot.slane %v4756, 4
    %v4758 = vmax.f32 %v4756, %v4757
    %v4759 = vrot.slane %v4758, 2
    %v4760 = vmax.f32 %v4758, %v4759
    %v4761 = vrot.slane %v4760, 1
    %v4762 = vmax.f32 %v4760, %v4761
    %vm4763 = vcmp.eq.f32.partialorder %v4747, %v4755
    %vm4764 = vcmp.eq.f32.partialorder %v4748, %v4762
    %v4765 = vsel %vm4763, %v4614, 5
    %v4766 = vsel %vm4764, %v4614, 5
    %v4767 = vsel %vm4660, %v4765, 2147483647
    %v4768 = vrot.slane %v4767, 4
    %vm4769 = vcmp.lt.s32.totalorder %v4767, %v4768
    %v4770 = vsel %vm4769, %v4767, %v4768
    %v4771 = vrot.slane %v4770, 2
    %vm4772 = vcmp.lt.s32.totalorder %v4770, %v4771
    %v4773 = vsel %vm4772, %v4770, %v4771
    %v4774 = vrot.slane %v4773, 1
    %vm4775 = vcmp.lt.s32.totalorder %v4773, %v4774
    %v4776 = vsel %vm4775, %v4773, %v4774
    %v4777 = vsel %vm4660, %v4766, 2147483647
    %v4778 = vrot.slane %v4777, 4
    %vm4779 = vcmp.lt.s32.totalorder %v4777, %v4778
    %v4780 = vsel %vm4779, %v4777, %v4778
    %v4781 = vrot.slane %v4780, 2
    %vm4782 = vcmp.lt.s32.totalorder %v4780, %v4781
    %v4783 = vsel %vm4782, %v4780, %v4781
    %v4784 = vrot.slane %v4783, 1
    %vm4785 = vcmp.lt.s32.totalorder %v4783, %v4784
    %v4786 = vsel %vm4785, %v4783, %v4784
    %4787 = vset.pattern.permute.xlu0 2
    %4788 = vperm.xlu0 %4787, %v4700
    %v4789 = vpop.permute.xlu0 %4788
    %vm4790 = vcmp.eq.s32.totalorder %v4789, 1
    %v4791 = vsel %vm2182, %v4786, %v4776
    %v4792 = vsel %vm4790, %v4791, %v4612
    %v4795 = vsel %vm2182, %v4762, %v4755
    %v4797 = vsel %vm4790, %v4795, %v4711
    %v4798 = vlaneseq
    %v4799 = vshrl.u32 %v4798, 7
    %v4800 = vsub.s32 0, %v4799
    %v4801 = vrot.slane %v4797, %v4800
    %4803 = vbcast.lane.b32.xlu0 %v4801, 256
    %v4804 = vpop.permute.xlu0 %4803
    %v4805 = vlaneseq
    %v4806 = vshrl.u32 %v4805, 7
    %v4807 = vsub.s32 1, %v4806
    %v4808 = vrot.slane %v4797, %v4807
    %4810 = vbcast.lane.b32.xlu0 %v4808, 256
    %v4811 = vpop.permute.xlu0 %4810
    %v4812 = vadd.f32 %v4804, %v4610
    %v4813 = vadd.f32 %v4811, %v4610
    %v4816 = vunpack.c.l.s4 1966171168
    %v4817 = vunpack.c.0.s8 %v4816
    %v4818 = vlaneseq
    %v4819 = vshrl.u32 %v4818, 7
    %v4820 = vsub.s32 %v4817, %v4819
    %v4821 = vrot.slane %v4604, %v4820
    %v4822 = vcombine.high %v4821, %v4821
    %v4823 = vlaneseq
    %v4824 = vshrl.u32 %v4823, 7
    %v4825 = vsub.s32 0, %v4824
    %v4826 = vrot.slane %v4821, %v4825
    %v4827 = vlaneseq
    %v4828 = vshrl.u32 %v4827, 7
    %v4829 = vsub.s32 0, %v4828
    %v4830 = vrot.slane %v4822, %v4829
    %v4833 = vadd.f32 %v4812, %v4826
    %v4834 = vadd.f32 %v4813, %v4830
    %v4835 = vsel %vm4660, %v4833, -inf
    %v4836 = vrot.slane %v4835, 4
    %v4837 = vmax.f32 %v4835, %v4836
    %v4838 = vrot.slane %v4837, 2
    %v4839 = vmax.f32 %v4837, %v4838
    %v4840 = vrot.slane %v4839, 1
    %v4841 = vmax.f32 %v4839, %v4840
    %v4842 = vsel %vm4660, %v4834, -inf
    %v4843 = vrot.slane %v4842, 4
    %v4844 = vmax.f32 %v4842, %v4843
    %v4845 = vrot.slane %v4844, 2
    %v4846 = vmax.f32 %v4844, %v4845
    %v4847 = vrot.slane %v4846, 1
    %v4848 = vmax.f32 %v4846, %v4847
    %vm4849 = vcmp.eq.f32.partialorder %v4833, %v4841
    %vm4850 = vcmp.eq.f32.partialorder %v4834, %v4848
    %v4851 = vsel %vm4849, %v4614, 5
    %v4852 = vsel %vm4850, %v4614, 5
    %v4853 = vsel %vm4660, %v4851, 2147483647
    %v4854 = vrot.slane %v4853, 4
    %vm4855 = vcmp.lt.s32.totalorder %v4853, %v4854
    %v4856 = vsel %vm4855, %v4853, %v4854
    %v4857 = vrot.slane %v4856, 2
    %vm4858 = vcmp.lt.s32.totalorder %v4856, %v4857
    %v4859 = vsel %vm4858, %v4856, %v4857
    %v4860 = vrot.slane %v4859, 1
    %vm4861 = vcmp.lt.s32.totalorder %v4859, %v4860
    %v4862 = vsel %vm4861, %v4859, %v4860
    %v4863 = vsel %vm4660, %v4852, 2147483647
    %v4864 = vrot.slane %v4863, 4
    %vm4865 = vcmp.lt.s32.totalorder %v4863, %v4864
    %v4866 = vsel %vm4865, %v4863, %v4864
    %v4867 = vrot.slane %v4866, 2
    %vm4868 = vcmp.lt.s32.totalorder %v4866, %v4867
    %v4869 = vsel %vm4868, %v4866, %v4867
    %v4870 = vrot.slane %v4869, 1
    %vm4871 = vcmp.lt.s32.totalorder %v4869, %v4870
    %v4872 = vsel %vm4871, %v4869, %v4870
    %4873 = vset.pattern.permute.xlu0 3
    %4874 = vperm.xlu0 %4873, %v4700
    %v4875 = vpop.permute.xlu0 %4874
    %vm4876 = vcmp.eq.s32.totalorder %v4875, 1
    %v4877 = vsel %vm2182, %v4872, %v4862
    %v4878 = vsel %vm4876, %v4877, %v4612
    %v4881 = vsel %vm2182, %v4848, %v4841
    %v4883 = vsel %vm4876, %v4881, %v4797
    %v4884 = vlaneseq
    %v4885 = vshrl.u32 %v4884, 7
    %v4886 = vsub.s32 0, %v4885
    %v4887 = vrot.slane %v4883, %v4886
    %4889 = vbcast.lane.b32.xlu0 %v4887, 256
    %v4890 = vpop.permute.xlu0 %4889
    %v4891 = vlaneseq
    %v4892 = vshrl.u32 %v4891, 7
    %v4893 = vsub.s32 1, %v4892
    %v4894 = vrot.slane %v4883, %v4893
    %4896 = vbcast.lane.b32.xlu0 %v4894, 256
    %v4897 = vpop.permute.xlu0 %4896
    %v4898 = vadd.f32 %v4890, %v4610
    %v4899 = vadd.f32 %v4897, %v4610
    %v4902 = vunpack.c.l.s4 1966171168
    %v4903 = vunpack.c.0.s8 %v4902
    %v4904 = vlaneseq
    %v4905 = vshrl.u32 %v4904, 7
    %v4906 = vsub.s32 %v4903, %v4905
    %v4907 = vrot.slane %v4605, %v4906
    %v4908 = vcombine.high %v4907, %v4907
    %v4909 = vlaneseq
    %v4910 = vshrl.u32 %v4909, 7
    %v4911 = vsub.s32 0, %v4910
    %v4912 = vrot.slane %v4907, %v4911
    %v4913 = vlaneseq
    %v4914 = vshrl.u32 %v4913, 7
    %v4915 = vsub.s32 0, %v4914
    %v4916 = vrot.slane %v4908, %v4915
    %v4919 = vadd.f32 %v4898, %v4912
    %v4920 = vadd.f32 %v4899, %v4916
    %v4921 = vsel %vm4660, %v4919, -inf
    %v4922 = vrot.slane %v4921, 4
    %v4923 = vmax.f32 %v4921, %v4922
    %v4924 = vrot.slane %v4923, 2
    %v4925 = vmax.f32 %v4923, %v4924
    %v4926 = vrot.slane %v4925, 1
    %v4927 = vmax.f32 %v4925, %v4926
    %v4928 = vsel %vm4660, %v4920, -inf
    %v4929 = vrot.slane %v4928, 4
    %v4930 = vmax.f32 %v4928, %v4929
    %v4931 = vrot.slane %v4930, 2
    %v4932 = vmax.f32 %v4930, %v4931
    %v4933 = vrot.slane %v4932, 1
    %v4934 = vmax.f32 %v4932, %v4933
    %vm4935 = vcmp.eq.f32.partialorder %v4919, %v4927
    %vm4936 = vcmp.eq.f32.partialorder %v4920, %v4934
    %v4937 = vsel %vm4935, %v4614, 5
    %v4938 = vsel %vm4936, %v4614, 5
    %v4939 = vsel %vm4660, %v4937, 2147483647
    %v4940 = vrot.slane %v4939, 4
    %vm4941 = vcmp.lt.s32.totalorder %v4939, %v4940
    %v4942 = vsel %vm4941, %v4939, %v4940
    %v4943 = vrot.slane %v4942, 2
    %vm4944 = vcmp.lt.s32.totalorder %v4942, %v4943
    %v4945 = vsel %vm4944, %v4942, %v4943
    %v4946 = vrot.slane %v4945, 1
    %vm4947 = vcmp.lt.s32.totalorder %v4945, %v4946
    %v4948 = vsel %vm4947, %v4945, %v4946
    %v4949 = vsel %vm4660, %v4938, 2147483647
    %v4950 = vrot.slane %v4949, 4
    %vm4951 = vcmp.lt.s32.totalorder %v4949, %v4950
    %v4952 = vsel %vm4951, %v4949, %v4950
    %v4953 = vrot.slane %v4952, 2
    %vm4954 = vcmp.lt.s32.totalorder %v4952, %v4953
    %v4955 = vsel %vm4954, %v4952, %v4953
    %v4956 = vrot.slane %v4955, 1
    %vm4957 = vcmp.lt.s32.totalorder %v4955, %v4956
    %v4958 = vsel %vm4957, %v4955, %v4956
    %4959 = vset.pattern.permute.xlu0 4
    %4960 = vperm.xlu0 %4959, %v4700
    %v4961 = vpop.permute.xlu0 %4960
    %vm4962 = vcmp.eq.s32.totalorder %v4961, 1
    %v4963 = vsel %vm2182, %v4958, %v4948
    %v4964 = vsel %vm4962, %v4963, %v4612
    %v4967 = vsel %vm2182, %v4934, %v4927
    %v4969 = vsel %vm4962, %v4967, %v4883
    %v4970 = vlaneseq
    %v4971 = vshrl.u32 %v4970, 7
    %v4972 = vsub.s32 0, %v4971
    %v4973 = vrot.slane %v4969, %v4972
    %4975 = vbcast.lane.b32.xlu0 %v4973, 256
    %v4976 = vpop.permute.xlu0 %4975
    %v4977 = vlaneseq
    %v4978 = vshrl.u32 %v4977, 7
    %v4979 = vsub.s32 1, %v4978
    %v4980 = vrot.slane %v4969, %v4979
    %4982 = vbcast.lane.b32.xlu0 %v4980, 256
    %v4983 = vpop.permute.xlu0 %4982
    %v4984 = vadd.f32 %v4976, %v4610
    %v4985 = vadd.f32 %v4983, %v4610
    %v4988 = vunpack.c.l.s4 1966171168
    %v4989 = vunpack.c.0.s8 %v4988
    %v4990 = vlaneseq
    %v4991 = vshrl.u32 %v4990, 7
    %v4992 = vsub.s32 %v4989, %v4991
    %v4993 = vrot.slane %v4606, %v4992
    %v4994 = vcombine.high %v4993, %v4993
    %v4995 = vlaneseq
    %v4996 = vshrl.u32 %v4995, 7
    %v4997 = vsub.s32 0, %v4996
    %v4998 = vrot.slane %v4993, %v4997
    %v4999 = vlaneseq
    %v5000 = vshrl.u32 %v4999, 7
    %v5001 = vsub.s32 0, %v5000
    %v5002 = vrot.slane %v4994, %v5001
    %v5005 = vadd.f32 %v4984, %v4998
    %v5006 = vadd.f32 %v4985, %v5002
    %v5007 = vsel %vm4660, %v5005, -inf
    %v5008 = vrot.slane %v5007, 4
    %v5009 = vmax.f32 %v5007, %v5008
    %v5010 = vrot.slane %v5009, 2
    %v5011 = vmax.f32 %v5009, %v5010
    %v5012 = vrot.slane %v5011, 1
    %v5013 = vmax.f32 %v5011, %v5012
    %v5014 = vsel %vm4660, %v5006, -inf
    %v5015 = vrot.slane %v5014, 4
    %v5016 = vmax.f32 %v5014, %v5015
    %v5017 = vrot.slane %v5016, 2
    %v5018 = vmax.f32 %v5016, %v5017
    %v5019 = vrot.slane %v5018, 1
    %v5020 = vmax.f32 %v5018, %v5019
    %vm5021 = vcmp.eq.f32.partialorder %v5005, %v5013
    %vm5022 = vcmp.eq.f32.partialorder %v5006, %v5020
    %v5023 = vsel %vm5021, %v4614, 5
    %v5024 = vsel %vm5022, %v4614, 5
    %v5025 = vsel %vm4660, %v5023, 2147483647
    %v5026 = vrot.slane %v5025, 4
    %vm5027 = vcmp.lt.s32.totalorder %v5025, %v5026
    %v5028 = vsel %vm5027, %v5025, %v5026
    %v5029 = vrot.slane %v5028, 2
    %vm5030 = vcmp.lt.s32.totalorder %v5028, %v5029
    %v5031 = vsel %vm5030, %v5028, %v5029
    %v5032 = vrot.slane %v5031, 1
    %vm5033 = vcmp.lt.s32.totalorder %v5031, %v5032
    %v5034 = vsel %vm5033, %v5031, %v5032
    %v5035 = vsel %vm4660, %v5024, 2147483647
    %v5036 = vrot.slane %v5035, 4
    %vm5037 = vcmp.lt.s32.totalorder %v5035, %v5036
    %v5038 = vsel %vm5037, %v5035, %v5036
    %v5039 = vrot.slane %v5038, 2
    %vm5040 = vcmp.lt.s32.totalorder %v5038, %v5039
    %v5041 = vsel %vm5040, %v5038, %v5039
    %v5042 = vrot.slane %v5041, 1
    %vm5043 = vcmp.lt.s32.totalorder %v5041, %v5042
    %v5044 = vsel %vm5043, %v5041, %v5042
    %5045 = vset.pattern.permute.xlu0 5
    %5046 = vperm.xlu0 %5045, %v4700
    %v5047 = vpop.permute.xlu0 %5046
    %vm5048 = vcmp.eq.s32.totalorder %v5047, 1
    %v5049 = vsel %vm2182, %v5044, %v5034
    %v5050 = vsel %vm5048, %v5049, %v4612
    %v5053 = vsel %vm2182, %v5020, %v5013
    %v5055 = vsel %vm5048, %v5053, %v4969
    %v5056 = vlaneseq
    %v5057 = vshrl.u32 %v5056, 7
    %v5058 = vsub.s32 0, %v5057
    %v5059 = vrot.slane %v5055, %v5058
    %5061 = vbcast.lane.b32.xlu0 %v5059, 256
    %v5062 = vpop.permute.xlu0 %5061
    %v5063 = vlaneseq
    %v5064 = vshrl.u32 %v5063, 7
    %v5065 = vsub.s32 1, %v5064
    %v5066 = vrot.slane %v5055, %v5065
    %5068 = vbcast.lane.b32.xlu0 %v5066, 256
    %v5069 = vpop.permute.xlu0 %5068
    %v5070 = vadd.f32 %v5062, %v4610
    %v5071 = vadd.f32 %v5069, %v4610
    %v5074 = vunpack.c.l.s4 1966171168
    %v5075 = vunpack.c.0.s8 %v5074
    %v5076 = vlaneseq
    %v5077 = vshrl.u32 %v5076, 7
    %v5078 = vsub.s32 %v5075, %v5077
    %v5079 = vrot.slane %v4607, %v5078
    %v5080 = vcombine.high %v5079, %v5079
    %v5081 = vlaneseq
    %v5082 = vshrl.u32 %v5081, 7
    %v5083 = vsub.s32 0, %v5082
    %v5084 = vrot.slane %v5079, %v5083
    %v5085 = vlaneseq
    %v5086 = vshrl.u32 %v5085, 7
    %v5087 = vsub.s32 0, %v5086
    %v5088 = vrot.slane %v5080, %v5087
    %v5091 = vadd.f32 %v5070, %v5084
    %v5092 = vadd.f32 %v5071, %v5088
    %v5093 = vsel %vm4660, %v5091, -inf
    %v5094 = vrot.slane %v5093, 4
    %v5095 = vmax.f32 %v5093, %v5094
    %v5096 = vrot.slane %v5095, 2
    %v5097 = vmax.f32 %v5095, %v5096
    %v5098 = vrot.slane %v5097, 1
    %v5099 = vmax.f32 %v5097, %v5098
    %v5100 = vsel %vm4660, %v5092, -inf
    %v5101 = vrot.slane %v5100, 4
    %v5102 = vmax.f32 %v5100, %v5101
    %v5103 = vrot.slane %v5102, 2
    %v5104 = vmax.f32 %v5102, %v5103
    %v5105 = vrot.slane %v5104, 1
    %v5106 = vmax.f32 %v5104, %v5105
    %vm5107 = vcmp.eq.f32.partialorder %v5091, %v5099
    %vm5108 = vcmp.eq.f32.partialorder %v5092, %v5106
    %v5109 = vsel %vm5107, %v4614, 5
    %v5110 = vsel %vm5108, %v4614, 5
    %v5111 = vsel %vm4660, %v5109, 2147483647
    %v5112 = vrot.slane %v5111, 4
    %vm5113 = vcmp.lt.s32.totalorder %v5111, %v5112
    %v5114 = vsel %vm5113, %v5111, %v5112
    %v5115 = vrot.slane %v5114, 2
    %vm5116 = vcmp.lt.s32.totalorder %v5114, %v5115
    %v5117 = vsel %vm5116, %v5114, %v5115
    %v5118 = vrot.slane %v5117, 1
    %vm5119 = vcmp.lt.s32.totalorder %v5117, %v5118
    %v5120 = vsel %vm5119, %v5117, %v5118
    %v5121 = vsel %vm4660, %v5110, 2147483647
    %v5122 = vrot.slane %v5121, 4
    %vm5123 = vcmp.lt.s32.totalorder %v5121, %v5122
    %v5124 = vsel %vm5123, %v5121, %v5122
    %v5125 = vrot.slane %v5124, 2
    %vm5126 = vcmp.lt.s32.totalorder %v5124, %v5125
    %v5127 = vsel %vm5126, %v5124, %v5125
    %v5128 = vrot.slane %v5127, 1
    %vm5129 = vcmp.lt.s32.totalorder %v5127, %v5128
    %v5130 = vsel %vm5129, %v5127, %v5128
    %5131 = vset.pattern.permute.xlu0 6
    %5132 = vperm.xlu0 %5131, %v4700
    %v5133 = vpop.permute.xlu0 %5132
    %vm5134 = vcmp.eq.s32.totalorder %v5133, 1
    %v5135 = vsel %vm2182, %v5130, %v5120
    %v5136 = vsel %vm5134, %v5135, %v4612
    %v5139 = vsel %vm2182, %v5106, %v5099
    %v5141 = vsel %vm5134, %v5139, %v5055
    %v5142 = vlaneseq
    %v5143 = vshrl.u32 %v5142, 7
    %v5144 = vsub.s32 0, %v5143
    %v5145 = vrot.slane %v5141, %v5144
    %5147 = vbcast.lane.b32.xlu0 %v5145, 256
    %v5148 = vpop.permute.xlu0 %5147
    %v5149 = vlaneseq
    %v5150 = vshrl.u32 %v5149, 7
    %v5151 = vsub.s32 1, %v5150
    %v5152 = vrot.slane %v5141, %v5151
    %5154 = vbcast.lane.b32.xlu0 %v5152, 256
    %v5155 = vpop.permute.xlu0 %5154
    %v5156 = vadd.f32 %v5148, %v4610
    %v5157 = vadd.f32 %v5155, %v4610
    %v5160 = vunpack.c.l.s4 1966171168
    %v5161 = vunpack.c.0.s8 %v5160
    %v5162 = vlaneseq
    %v5163 = vshrl.u32 %v5162, 7
    %v5164 = vsub.s32 %v5161, %v5163
    %v5165 = vrot.slane %v4608, %v5164
    %v5166 = vcombine.high %v5165, %v5165
    %v5167 = vlaneseq
    %v5168 = vshrl.u32 %v5167, 7
    %v5169 = vsub.s32 0, %v5168
    %v5170 = vrot.slane %v5165, %v5169
    %v5171 = vlaneseq
    %v5172 = vshrl.u32 %v5171, 7
    %v5173 = vsub.s32 0, %v5172
    %v5174 = vrot.slane %v5166, %v5173
    %v5177 = vadd.f32 %v5156, %v5170
    %v5178 = vadd.f32 %v5157, %v5174
    %v5179 = vsel %vm4660, %v5177, -inf
    %v5180 = vrot.slane %v5179, 4
    %v5181 = vmax.f32 %v5179, %v5180
    %v5182 = vrot.slane %v5181, 2
    %v5183 = vmax.f32 %v5181, %v5182
    %v5184 = vrot.slane %v5183, 1
    %v5185 = vmax.f32 %v5183, %v5184
    %v5186 = vsel %vm4660, %v5178, -inf
    %v5187 = vrot.slane %v5186, 4
    %v5188 = vmax.f32 %v5186, %v5187
    %v5189 = vrot.slane %v5188, 2
    %v5190 = vmax.f32 %v5188, %v5189
    %v5191 = vrot.slane %v5190, 1
    %v5192 = vmax.f32 %v5190, %v5191
    %vm5193 = vcmp.eq.f32.partialorder %v5177, %v5185
    %vm5194 = vcmp.eq.f32.partialorder %v5178, %v5192
    %v5195 = vsel %vm5193, %v4614, 5
    %v5196 = vsel %vm5194, %v4614, 5
    %v5197 = vsel %vm4660, %v5195, 2147483647
    %v5198 = vrot.slane %v5197, 4
    %vm5199 = vcmp.lt.s32.totalorder %v5197, %v5198
    %v5200 = vsel %vm5199, %v5197, %v5198
    %v5201 = vrot.slane %v5200, 2
    %vm5202 = vcmp.lt.s32.totalorder %v5200, %v5201
    %v5203 = vsel %vm5202, %v5200, %v5201
    %v5204 = vrot.slane %v5203, 1
    %vm5205 = vcmp.lt.s32.totalorder %v5203, %v5204
    %v5206 = vsel %vm5205, %v5203, %v5204
    %v5207 = vsel %vm4660, %v5196, 2147483647
    %v5208 = vrot.slane %v5207, 4
    %vm5209 = vcmp.lt.s32.totalorder %v5207, %v5208
    %v5210 = vsel %vm5209, %v5207, %v5208
    %v5211 = vrot.slane %v5210, 2
    %vm5212 = vcmp.lt.s32.totalorder %v5210, %v5211
    %v5213 = vsel %vm5212, %v5210, %v5211
    %v5214 = vrot.slane %v5213, 1
    %vm5215 = vcmp.lt.s32.totalorder %v5213, %v5214
    %v5216 = vsel %vm5215, %v5213, %v5214
    %5217 = vset.pattern.permute.xlu0 7
    %5218 = vperm.xlu0 %5217, %v4700
    %v5219 = vpop.permute.xlu0 %5218
    %vm5220 = vcmp.eq.s32.totalorder %v5219, 1
    %v5221 = vsel %vm2182, %v5216, %v5206
    %v5222 = vsel %vm5220, %v5221, %v4612
    %v5225 = vsel %vm2182, %v5192, %v5185
    %v5227 = vsel %vm5220, %v5225, %v5141
    %v5228 = vld [vmem:[%s22] sm:$0x1]
    %v5230 = vlaneseq
    %v5231 = vshrl.u32 %v5230, 7
    %v5232 = vsub.s32 0, %v5231
    %v5233 = vrot.slane %v5228, %v5232
    %v5235 = vadd.f32 %v5227, %v5233
    %v5236 = vsel %vm4545, %v5235, -inf
    %5237 = vmax.xlane.f32.xlu0 %v5236
    %v5238 = vpop.xlane.xlu0 %5237
    %vm5239 = vcmp.eq.f32.partialorder %v5235, %v5238
    %v5240 = vsel %vm5239, %v4612, 5
    %v5241 = vsel %vm4545, %v5240, 2147483647
    %v5242 = vand.u32 %v5241, 65535
    %v5243 = vshra.s32 %v5241, 16
    %v5244 = vcvt.s32.f32 %v5242
    %v5245 = vcvt.s32.f32 %v5243
    %5246 = vmin.xlane.f32.xlu0 %v5245
    %v5247 = vpop.xlane.xlu0 %5246
    %vm5248 = vcmp.eq.f32.partialorder %v5245, %v5247
    %v5249 = vsel %vm5248, %v5244, inf
    %5250 = vmin.xlane.f32.xlu0 %v5249
    %v5251 = vpop.xlane.xlu0 %5250
    %v5252 = vcvt.f32.s32 %v5251
    %v5253 = vcvt.f32.s32 %v5247
    %v5254 = vshll.u32 %v5253, 16
    %v5255 = vadd.s32 %v5254, %v5252
    %vm5256 = vcmp.eq.s32.totalorder %v4612, 7
    %v5257 = vsel %vm5256, %v5255, 0
    %vm5258 = vcmp.eq.s32.totalorder %v4612, %v5255
    %v5259 = vsel %vm5258, %v5222, 0
    %v5260 = vsel %vm4545, %v5259, 0
    %v5261 = vand.u32 %v5260, 65535
    %v5262 = vshrl.u32 %v5260, 16
    %v5263 = vcvt.s32.f32 %v5261
    %v5264 = vcvt.s32.f32 %v5262
    %5265 = vadd.xlane.f32.xlu0 %v5263
    %v5266 = vpop.xlane.xlu0 %5265
    %5267 = vadd.xlane.f32.xlu0 %v5264
    %v5268 = vpop.xlane.xlu0 %5267
    %v5269 = vcvt.f32.s32 %v5266
    %v5270 = vcvt.f32.s32 %v5268
    %v5271 = vshll.u32 %v5270, 16
    %v5272 = vadd.s32 %v5271, %v5269
    %vm5273 = vcmp.eq.s32.totalorder %v4612, 6
    %v5274 = vsel %vm5273, %v5272, %v5257
    %vm5275 = vcmp.eq.s32.totalorder %v4612, %v5272
    %v5276 = vsel %vm5275, %v5136, 0
    %v5277 = vsel %vm4545, %v5276, 0
    %v5278 = vand.u32 %v5277, 65535
    %v5279 = vshrl.u32 %v5277, 16
    %v5280 = vcvt.s32.f32 %v5278
    %v5281 = vcvt.s32.f32 %v5279
    %5282 = vadd.xlane.f32.xlu0 %v5280
    %v5283 = vpop.xlane.xlu0 %5282
    %5284 = vadd.xlane.f32.xlu0 %v5281
    %v5285 = vpop.xlane.xlu0 %5284
    %v5286 = vcvt.f32.s32 %v5283
    %v5287 = vcvt.f32.s32 %v5285
    %v5288 = vshll.u32 %v5287, 16
    %v5289 = vadd.s32 %v5288, %v5286
    %vm5290 = vcmp.eq.s32.totalorder %v4612, 5
    %v5291 = vsel %vm5290, %v5289, %v5274
    %vm5292 = vcmp.eq.s32.totalorder %v4612, %v5289
    %v5293 = vsel %vm5292, %v5050, 0
    %v5294 = vsel %vm4545, %v5293, 0
    %v5295 = vand.u32 %v5294, 65535
    %v5296 = vshrl.u32 %v5294, 16
    %v5297 = vcvt.s32.f32 %v5295
    %v5298 = vcvt.s32.f32 %v5296
    %5299 = vadd.xlane.f32.xlu0 %v5297
    %v5300 = vpop.xlane.xlu0 %5299
    %5301 = vadd.xlane.f32.xlu0 %v5298
    %v5302 = vpop.xlane.xlu0 %5301
    %v5303 = vcvt.f32.s32 %v5300
    %v5304 = vcvt.f32.s32 %v5302
    %v5305 = vshll.u32 %v5304, 16
    %v5306 = vadd.s32 %v5305, %v5303
    %vm5307 = vcmp.eq.s32.totalorder %v4612, 4
    %v5308 = vsel %vm5307, %v5306, %v5291
    %vm5309 = vcmp.eq.s32.totalorder %v4612, %v5306
    %v5310 = vsel %vm5309, %v4964, 0
    %v5311 = vsel %vm4545, %v5310, 0
    %v5312 = vand.u32 %v5311, 65535
    %v5313 = vshrl.u32 %v5311, 16
    %v5314 = vcvt.s32.f32 %v5312
    %v5315 = vcvt.s32.f32 %v5313
    %5316 = vadd.xlane.f32.xlu0 %v5314
    %v5317 = vpop.xlane.xlu0 %5316
    %5318 = vadd.xlane.f32.xlu0 %v5315
    %v5319 = vpop.xlane.xlu0 %5318
    %v5320 = vcvt.f32.s32 %v5317
    %v5321 = vcvt.f32.s32 %v5319
    %v5322 = vshll.u32 %v5321, 16
    %v5323 = vadd.s32 %v5322, %v5320
    %vm5324 = vcmp.eq.s32.totalorder %v4612, 3
    %v5325 = vsel %vm5324, %v5323, %v5308
    %vm5326 = vcmp.eq.s32.totalorder %v4612, %v5323
    %v5327 = vsel %vm5326, %v4878, 0
    %v5328 = vsel %vm4545, %v5327, 0
    %v5329 = vand.u32 %v5328, 65535
    %v5330 = vshrl.u32 %v5328, 16
    %v5331 = vcvt.s32.f32 %v5329
    %v5332 = vcvt.s32.f32 %v5330
    %5333 = vadd.xlane.f32.xlu0 %v5331
    %v5334 = vpop.xlane.xlu0 %5333
    %5335 = vadd.xlane.f32.xlu0 %v5332
    %v5336 = vpop.xlane.xlu0 %5335
    %v5337 = vcvt.f32.s32 %v5334
    %v5338 = vcvt.f32.s32 %v5336
    %v5339 = vshll.u32 %v5338, 16
    %v5340 = vadd.s32 %v5339, %v5337
    %vm5341 = vcmp.eq.s32.totalorder %v4612, 2
    %v5342 = vsel %vm5341, %v5340, %v5325
    %vm5343 = vcmp.eq.s32.totalorder %v4612, %v5340
    %v5344 = vsel %vm5343, %v4792, 0
    %v5345 = vsel %vm4545, %v5344, 0
    %v5346 = vand.u32 %v5345, 65535
    %v5347 = vshrl.u32 %v5345, 16
    %v5348 = vcvt.s32.f32 %v5346
    %v5349 = vcvt.s32.f32 %v5347
    %5350 = vadd.xlane.f32.xlu0 %v5348
    %v5351 = vpop.xlane.xlu0 %5350
    %5352 = vadd.xlane.f32.xlu0 %v5349
    %v5353 = vpop.xlane.xlu0 %5352
    %v5354 = vcvt.f32.s32 %v5351
    %v5355 = vcvt.f32.s32 %v5353
    %v5356 = vshll.u32 %v5355, 16
    %v5357 = vadd.s32 %v5356, %v5354
    %vm5358 = vcmp.eq.s32.totalorder %v4612, 1
    %v5359 = vsel %vm5358, %v5357, %v5342
    %vm5360 = vcmp.eq.s32.totalorder %v4612, %v5357
    %v5361 = vsel %vm5360, %v4706, 0
    %v5362 = vsel %vm4545, %v5361, 0
    %v5363 = vand.u32 %v5362, 65535
    %v5364 = vshrl.u32 %v5362, 16
    %v5365 = vcvt.s32.f32 %v5363
    %v5366 = vcvt.s32.f32 %v5364
    %5367 = vadd.xlane.f32.xlu0 %v5365
    %v5368 = vpop.xlane.xlu0 %5367
    %5369 = vadd.xlane.f32.xlu0 %v5366
    %v5370 = vpop.xlane.xlu0 %5369
    %v5371 = vcvt.f32.s32 %v5368
    %v5372 = vcvt.f32.s32 %v5370
    %v5373 = vshll.u32 %v5372, 16
    %v5374 = vadd.s32 %v5373, %v5371
    %vm5375 = vcmp.eq.s32.totalorder %v4612, 0
    %v5376 = vsel %vm5375, %v5374, %v5359
    %vm5377 = vcmask 58368
    %5378 = vst.msk [vmem:[#allocation4] sm:$0x3] %vm5377, %v5376
    // Predicated region
    $region98: #{lstm_crf_forward.1} parent=1 // pred_check
      _
    $region99: #{lstm_crf_forward.1} parent=1 // pred_check_branch
      %5380 = sbr.rel (0) target = $region101
    $region100: #{lstm_crf_forward.1} parent=1 // pred_region
      %s5382 = ssub.s32 32, 32
      %5383 = vsyncadd [#allocation5], %s5382
      %s5385 = sshll.u32 [#allocation4], 4
      %s5386 = int_to_ptr.vmem [resolvable:$true] %s5385
      %5388 = dma.vmem_to_hbm [thread:$0]  %s5386, 32, %s24, [#allocation5]
    $region101: #{lstm_crf_forward.1} parent=1 // pred_fallthru
      _
    // Predicated region
    $region102: #{lstm_crf_forward.1} parent=1 // pred_check
      _
    $region103: #{lstm_crf_forward.1} parent=1 // pred_check_branch
      %5390 = sbr.rel (0) target = $region105
    $region104: #{lstm_crf_forward.1} parent=1 // pred_region
      %5391 = dma.done [#allocation5], 32
    $region105: #{lstm_crf_forward.1} parent=1 // pred_fallthru
      _
    %5392 = vsyncpa [#allocation5], 1

</llo_original>
